<compile_context>
chip_gen: v6e
topology: v6e:2x2x1
jax: 0.10.0
libtpu: 0.0.40
codegen_flags: <defaults>
</compile_context>

<pallas_src>
import jax
import jax.numpy as jnp
from jax import lax
from jax.experimental import pallas as pl
from jax.experimental.pallas import tpu as pltpu

EPS = 1e-5


# ----------------------------- kernel bodies --------------------------------


def _stats_kernel(x_ref, st_ref):
    """Per-tile channel-wise (sum, sum_sq) in one traversal via MXU reductions."""
    _, H, W, Cp = x_ref.shape
    x = x_ref[...].reshape(H * W, Cp)
    ones = jnp.ones((1, H * W), jnp.float32)
    st_ref[:, 0:1, :] = jnp.dot(ones, x,
                                preferred_element_type=jnp.float32).reshape(1, 1, Cp)
    st_ref[:, 1:2, :] = jnp.dot(ones, x * x,
                                preferred_element_type=jnp.float32).reshape(1, 1, Cp)


def _conv3x3_bf16(ab, w_ref, cols_ref):
    """3x3 'same' conv of ab (1,H,W,Cp bf16) with w_ref (3, 3Cp, Cp bf16).

    cols_ref (1, H+2, W, 3Cp) bf16 scratch holds the W-direction im2col of the
    zero-padded activation; vertical tap offsets dy are free leading-dim slices.
    Returns an (H*W, Cp) f32 accumulator.
    """
    _, hp2, W, c3 = cols_ref.shape
    H = hp2 - 2
    Cp = c3 // 3
    zrow = jnp.zeros((1, 1, W, c3), jnp.bfloat16)
    zcol = jnp.zeros((1, H, 1, Cp), jnp.bfloat16)

    # zero only the 1-pixel halo (conv padding=1); the interior is fully written
    cols_ref[:, 0:1] = zrow
    cols_ref[:, H + 1:H + 2] = zrow
    # kw=1 (centre) slab: full-width, lane-aligned store
    cols_ref[:, 1:H + 1, :, Cp:2 * Cp] = ab
    # kw=0 slab: left neighbour (column 0 is the zero halo)
    cols_ref[:, 1:H + 1, 1:W, 0:Cp] = ab[:, :, 0:W - 1, :]
    cols_ref[:, 1:H + 1, 0:1, 0:Cp] = zcol
    # kw=2 slab: right neighbour (column W-1 is the zero halo)
    cols_ref[:, 1:H + 1, 0:W - 1, 2 * Cp:3 * Cp] = ab[:, :, 1:W, :]
    cols_ref[:, 1:H + 1, W - 1:W, 2 * Cp:3 * Cp] = zcol

    # three fused-horizontal-tap matmuls (contraction dim 3*Cp), bf16 operands,
    # chained f32 accumulation
    acc = jnp.dot(cols_ref[:, 0:H].reshape(H * W, c3), w_ref[0],
                  preferred_element_type=jnp.float32)
    acc = acc + jnp.dot(cols_ref[:, 1:H + 1].reshape(H * W, c3), w_ref[1],
                        preferred_element_type=jnp.float32)
    acc = acc + jnp.dot(cols_ref[:, 2:H + 2].reshape(H * W, c3), w_ref[2],
                        preferred_element_type=jnp.float32)
    return acc


def _conv1_kernel(x_ref, sc_ref, sh_ref, w_ref, y_ref, st_ref, cols_ref):
    """y1 = conv1(relu(bn1(x)))  +  per-tile (sum, sum_sq) of y1 for BN2."""
    _, H, W, Cp = x_ref.shape
    scale = sc_ref[...].reshape(1, 1, 1, Cp)
    shift = sh_ref[...].reshape(1, 1, 1, Cp)
    a = jnp.maximum(x_ref[...] * scale + shift, 0.0)          # BN1 + ReLU (f32)
    acc = _conv3x3_bf16(a.astype(jnp.bfloat16), w_ref, cols_ref)
    y_ref[...] = acc.reshape(1, H, W, Cp)
    ones = jnp.ones((1, H * W), jnp.float32)
    st_ref[:, 0:1, :] = jnp.dot(ones, acc,
                                preferred_element_type=jnp.float32).reshape(1, 1, Cp)
    st_ref[:, 1:2, :] = jnp.dot(ones, acc * acc,
                                preferred_element_type=jnp.float32).reshape(1, 1, Cp)


def _conv2_kernel(y_ref, x_ref, sc_ref, sh_ref, w_ref, o_ref, cols_ref):
    """out = conv2(relu(bn2(y1))) + x  (residual add)."""
    _, H, W, Cp = y_ref.shape
    scale = sc_ref[...].reshape(1, 1, 1, Cp)
    shift = sh_ref[...].reshape(1, 1, 1, Cp)
    a = jnp.maximum(y_ref[...] * scale + shift, 0.0)          # BN2 + ReLU (f32)
    acc = _conv3x3_bf16(a.astype(jnp.bfloat16), w_ref, cols_ref)
    o_ref[...] = acc.reshape(1, H, W, Cp) + x_ref[...]


# ------------------------------- wrapper -------------------------------------


def _round_up(v, m):
    return (v + m - 1) // m * m


def _taps_rows(w_oihw, cp):
    """OIHW 3x3 weights -> (3, 3*cp, cp) bf16: row kh stacks the three horizontal
    taps along the contraction axis (index kw*cp + ci), zero-padded channels."""
    co, ci, _, _ = w_oihw.shape
    w = jnp.pad(w_oihw, ((0, cp - co), (0, cp - ci), (0, 0), (0, 0)))
    w = jnp.transpose(w, (2, 3, 1, 0))                        # (kh, kw, ci, co)
    return w.reshape(3, 3 * cp, cp).astype(jnp.bfloat16)


def residual_block(x_nchw, g1, b1, w1_oihw, g2, b2, w2_oihw):
    """x_nchw: (N, C, H, W) f32; conv weights in PyTorch OIHW layout."""
    N, C, H, W = x_nchw.shape
    Cp = _round_up(C, 128)                                    # lane-dense channels
    cnt = float(N * H * W)

    x = jnp.transpose(x_nchw, (0, 2, 3, 1))                   # NCHW -> NHWC
    x = jnp.pad(x, ((0, 0), (0, 0), (0, 0), (0, Cp - C)))
    pad_c = lambda v: jnp.pad(v.astype(jnp.float32), (0, Cp - C))
    g1p, b1p, g2p, b2p = pad_c(g1), pad_c(b1), pad_c(g2), pad_c(b2)
    w1r, w2r = _taps_rows(w1_oihw, Cp), _taps_rows(w2_oihw, Cp)

    act_spec = pl.BlockSpec((1, H, W, Cp), lambda n: (n, 0, 0, 0))
    vec_spec = pl.BlockSpec((1, Cp), lambda n: (0, 0))
    wgt_spec = pl.BlockSpec((3, 3 * Cp, Cp), lambda n: (0, 0, 0))
    st_spec = pl.BlockSpec((1, 2, Cp), lambda n: (n, 0, 0))
    act_shape = jax.ShapeDtypeStruct((N, H, W, Cp), jnp.float32)
    st_shape = jax.ShapeDtypeStruct((N, 2, Cp), jnp.float32)
    cols = pltpu.VMEM((1, H + 2, W, 3 * Cp), jnp.bfloat16)
    # One image per grid step; at production sizes (C=128..384, 19x19 boards,
    # large N) the per-step working set still fits comfortably in this budget
    # on v5e / v6e / v7x.
    params = pltpu.CompilerParams(dimension_semantics=("parallel",),
                                  vmem_limit_bytes=32 * 1024 * 1024)

    conv_flops = 2 * N * H * W * (3 * Cp) * Cp * 3
    act_bytes = N * H * W * Cp * 4
    wgt_bytes = 3 * 3 * Cp * Cp * 2

    def moments(partials):
        s = jnp.sum(partials, axis=0)                         # (2, Cp), f32
        mean = s[0] / cnt
        var = jnp.maximum(s[1] / cnt - mean * mean, 0.0)
        return mean, var

    def affine(gamma, beta, mean, var):
        scale = gamma * lax.rsqrt(var + EPS)
        return scale.reshape(1, Cp), (beta - mean * scale).reshape(1, Cp)

    # --- pass 1: BN1 batch statistics over x --------------------------------
    st_x = pl.pallas_call(
        _stats_kernel,
        out_shape=st_shape,
        grid=(N,),
        in_specs=[act_spec],
        out_specs=st_spec,
        compiler_params=params,
        cost_estimate=pl.CostEstimate(flops=4 * N * H * W * Cp,
                                      transcendentals=0,
                                      bytes_accessed=act_bytes),
    )(x)
    scale1, shift1 = affine(g1p, b1p, *moments(st_x))

    # --- pass 2: y1 = conv1(relu(bn1(x))), fused BN2 partial stats ----------
    y1, st_y1 = pl.pallas_call(
        _conv1_kernel,
        out_shape=(act_shape, st_shape),
        grid=(N,),
        in_specs=[act_spec, vec_spec, vec_spec, wgt_spec],
        out_specs=(act_spec, st_spec),
        scratch_shapes=[cols],
        compiler_params=params,
        cost_estimate=pl.CostEstimate(flops=conv_flops,
                                      transcendentals=0,
                                      bytes_accessed=2 * act_bytes + wgt_bytes),
    )(x, scale1, shift1, w1r)
    scale2, shift2 = affine(g2p, b2p, *moments(st_y1))

    # --- pass 3: out = conv2(relu(bn2(y1))) + x ------------------------------
    out = pl.pallas_call(
        _conv2_kernel,
        out_shape=act_shape,
        grid=(N,),
        in_specs=[act_spec, act_spec, vec_spec, vec_spec, wgt_spec],
        out_specs=act_spec,
        scratch_shapes=[cols],
        compiler_params=params,
        cost_estimate=pl.CostEstimate(flops=conv_flops,
                                      transcendentals=0,
                                      bytes_accessed=3 * act_bytes + wgt_bytes),
    )(y1, x, scale2, shift2, w2r)

    return jnp.transpose(out[..., :C], (0, 3, 1, 2))          # NHWC -> NCHW


# ------------------------------ reference ------------------------------------


def reference_block(x, g1, b1, w1, g2, b2, w2):
    """Pure-JAX f32 reference of the PyTorch forward (training-mode BN)."""
    def bn(v, gamma, beta):
        mean = v.mean(axis=(0, 2, 3), keepdims=True)
        var = jnp.square(v - mean).mean(axis=(0, 2, 3), keepdims=True)
        return ((v - mean) / jnp.sqrt(var + EPS)
                * gamma.reshape(1, -1, 1, 1) + beta.reshape(1, -1, 1, 1))

    def conv(v, w):
        return lax.conv_general_dilated(
            v, w, window_strides=(1, 1), padding="SAME",
            dimension_numbers=("NCHW", "OIHW", "NCHW"))

    out = jax.nn.relu(bn(x, g1, b1))
    out = conv(out, w1)
    out = jax.nn.relu(bn(out, g2, b2))
    out = conv(out, w2)
    return out + x


if __name__ == "__main__":
    N, C, H, W = 2, 4, 16, 16
    key = jax.random.PRNGKey(0)
    kx, k1, k2, k3, k4, k5, k6 = jax.random.split(key, 7)

    x = jax.random.normal(kx, (N, C, H, W), jnp.float32)
    w1 = jax.random.normal(k1, (C, C, 3, 3), jnp.float32) * 0.1
    w2 = jax.random.normal(k2, (C, C, 3, 3), jnp.float32) * 0.1
    g1 = 1.0 + 0.1 * jax.random.normal(k3, (C,), jnp.float32)
    b1 = 0.1 * jax.random.normal(k4, (C,), jnp.float32)
    g2 = 1.0 + 0.1 * jax.random.normal(k5, (C,), jnp.float32)
    b2 = 0.1 * jax.random.normal(k6, (C,), jnp.float32)

    fwd = jax.jit(residual_block)
    out = jax.block_until_ready(fwd(x, g1, b1, w1, g2, b2, w2))

    ref = reference_block(x, g1, b1, w1, g2, b2, w2)
    assert out.shape == (N, C, H, W)
    max_err = float(jnp.max(jnp.abs(out - ref)))
    mean_err = float(jnp.mean(jnp.abs(out - ref)))
    # MXU operands are bf16 (f32 accumulation): expect O(1e-3) absolute error
    # through the two convs + BN rescaling; a real bug would be O(0.1 - 1).
    assert max_err < 5e-2, f"max abs mismatch vs JAX reference: {max_err}"
    assert mean_err < 5e-3, f"mean abs mismatch vs JAX reference: {mean_err}"

    print("KERNEL_OK")
</pallas_src>

<mosaic_0001>
module attributes {stable_mosaic.version = 11 : i64} {
  func.func @_stats_kernel(%arg0: i32, %arg1: memref<1x16x16x128xf32, #tpu.memory_space<vmem>>, %arg2: memref<1x2x128xf32, #tpu.memory_space<vmem>>) attributes {dimension_semantics = [#tpu.dimension_semantics<parallel>], iteration_bounds = array<i64: 2>, scalar_prefetch = 0 : i64, scratch_operands = 0 : i64, tpu.core_type = #tpu.core_type<tc>, window_params = [{transform_indices = @transform_0, window_bounds = array<i64: 1, 16, 16, 128>}, {transform_indices = @transform_1, window_bounds = array<i64: 1, 2, 128>}]} {
    %c0 = arith.constant 0 : index
    %c0_0 = arith.constant 0 : index
    %c0_1 = arith.constant 0 : index
    %c0_2 = arith.constant 0 : index
    %0 = vector.load %arg1[%c0, %c0_0, %c0_1, %c0_2] : memref<1x16x16x128xf32, #tpu.memory_space<vmem>>, vector<1x16x16x128xf32>
    %1 = vector.shape_cast %0 : vector<1x16x16x128xf32> to vector<256x128xf32>
    %cst = arith.constant 1.000000e+00 : f32
    %2 = vector.broadcast %cst : f32 to vector<1x256xf32>
    %cst_3 = arith.constant dense<0.000000e+00> : vector<1x128xf32>
    %3 = tpu.matmul %2, %1, %cst_3 {dimension_numbers = #tpu.dot_dimension_numbers<[1], [0], [0], [1], [0, 0, 1, 1], [], []>} : vector<1x256xf32>, vector<256x128xf32>, vector<1x128xf32> -> vector<1x128xf32>
    %4 = vector.shape_cast %3 : vector<1x128xf32> to vector<1x1x128xf32>
    %c0_4 = arith.constant 0 : index
    %c0_5 = arith.constant 0 : index
    %c0_6 = arith.constant 0 : index
    %5 = vector.load %arg2[%c0_4, %c0_5, %c0_6] : memref<1x2x128xf32, #tpu.memory_space<vmem>>, vector<1x1x128xf32>
    tpu.vector_store %arg2[%c0_4, %c0_5, %c0_6], %4 {strides = array<i32>} : memref<1x2x128xf32, #tpu.memory_space<vmem>>, vector<1x1x128xf32>,
    %6 = arith.mulf %1, %1 : vector<256x128xf32>
    %cst_7 = arith.constant dense<0.000000e+00> : vector<1x128xf32>
    %7 = tpu.matmul %2, %6, %cst_7 {dimension_numbers = #tpu.dot_dimension_numbers<[1], [0], [0], [1], [0, 0, 1, 1], [], []>} : vector<1x256xf32>, vector<256x128xf32>, vector<1x128xf32> -> vector<1x128xf32>
    %8 = vector.shape_cast %7 : vector<1x128xf32> to vector<1x1x128xf32>
    %c0_8 = arith.constant 0 : index
    %c1 = arith.constant 1 : index
    %c0_9 = arith.constant 0 : index
    %9 = vector.load %arg2[%c0_8, %c1, %c0_9] : memref<1x2x128xf32, #tpu.memory_space<vmem>>, vector<1x1x128xf32>
    tpu.vector_store %arg2[%c0_8, %c1, %c0_9], %8 {strides = array<i32>} : memref<1x2x128xf32, #tpu.memory_space<vmem>>, vector<1x1x128xf32>,
    return
  }
  func.func @transform_0(%arg0: i32) -> (i32, i32, i32, i32) {
    %c0_i32 = arith.constant 0 : i32
    %c0_i32_0 = arith.constant 0 : i32
    %c0_i32_1 = arith.constant 0 : i32
    %c0_i32_2 = arith.constant 0 : i32
    return %arg0, %c0_i32, %c0_i32_0, %c0_i32_1 : i32, i32, i32, i32
  }
  func.func @transform_1(%arg0: i32) -> (i32, i32, i32) {
    %c0_i32 = arith.constant 0 : i32
    %c0_i32_0 = arith.constant 0 : i32
    %c0_i32_1 = arith.constant 0 : i32
    return %arg0, %c0_i32, %c0_i32_0 : i32, i32, i32
  }
}

module attributes {stable_mosaic.version = 11 : i64} {
  func.func @_conv1_kernel(%arg0: i32, %arg1: memref<1x16x16x128xf32, #tpu.memory_space<vmem>>, %arg2: memref<1x128xf32, #tpu.memory_space<vmem>>, %arg3: memref<1x128xf32, #tpu.memory_space<vmem>>, %arg4: memref<3x384x128xbf16, #tpu.memory_space<vmem>>, %arg5: memref<1x16x16x128xf32, #tpu.memory_space<vmem>>, %arg6: memref<1x2x128xf32, #tpu.memory_space<vmem>>, %arg7: memref<1x18x16x384xbf16, #tpu.memory_space<vmem>>) attributes {dimension_semantics = [#tpu.dimension_semantics<parallel>], iteration_bounds = array<i64: 2>, scalar_prefetch = 0 : i64, scratch_operands = 1 : i64, tpu.core_type = #tpu.core_type<tc>, window_params = [{transform_indices = @transform_0, window_bounds = array<i64: 1, 16, 16, 128>}, {pipeline_mode = #tpu.pipeline_mode<synchronous>, transform_indices = @transform_1, window_bounds = array<i64: 1, 128>}, {pipeline_mode = #tpu.pipeline_mode<synchronous>, transform_indices = @transform_2, window_bounds = array<i64: 1, 128>}, {pipeline_mode = #tpu.pipeline_mode<synchronous>, transform_indices = @transform_3, window_bounds = array<i64: 3, 384, 128>}, {transform_indices = @transform_4, window_bounds = array<i64: 1, 16, 16, 128>}, {transform_indices = @transform_5, window_bounds = array<i64: 1, 2, 128>}]} {
    %c0 = arith.constant 0 : index
    %c0_0 = arith.constant 0 : index
    %0 = vector.load %arg2[%c0, %c0_0] : memref<1x128xf32, #tpu.memory_space<vmem>>, vector<1x128xf32>
    %1 = vector.shape_cast %0 : vector<1x128xf32> to vector<1x1x1x128xf32>
    %c0_1 = arith.constant 0 : index
    %c0_2 = arith.constant 0 : index
    %2 = vector.load %arg3[%c0_1, %c0_2] : memref<1x128xf32, #tpu.memory_space<vmem>>, vector<1x128xf32>
    %3 = vector.shape_cast %2 : vector<1x128xf32> to vector<1x1x1x128xf32>
    %c0_3 = arith.constant 0 : index
    %c0_4 = arith.constant 0 : index
    %c0_5 = arith.constant 0 : index
    %c0_6 = arith.constant 0 : index
    %4 = vector.load %arg1[%c0_3, %c0_4, %c0_5, %c0_6] : memref<1x16x16x128xf32, #tpu.memory_space<vmem>>, vector<1x16x16x128xf32>
    %5 = vector.broadcast %1 : vector<1x1x1x128xf32> to vector<1x16x16x128xf32>
    %6 = arith.mulf %4, %5 : vector<1x16x16x128xf32>
    %7 = vector.broadcast %3 : vector<1x1x1x128xf32> to vector<1x16x16x128xf32>
    %8 = arith.addf %6, %7 : vector<1x16x16x128xf32>
    %cst = arith.constant 0.000000e+00 : f32
    %9 = vector.broadcast %cst : f32 to vector<1x16x16x128xf32>
    %10 = arith.maximumf %8, %9 : vector<1x16x16x128xf32>
    %11 = arith.truncf %10 : vector<1x16x16x128xf32> to vector<1x16x16x128xbf16>
    %cst_7 = arith.constant 0.000000e+00 : bf16
    %12 = vector.broadcast %cst_7 : bf16 to vector<1x1x16x384xbf16>
    %cst_8 = arith.constant 0.000000e+00 : bf16
    %13 = vector.broadcast %cst_8 : bf16 to vector<1x16x1x128xbf16>
    %c0_9 = arith.constant 0 : index
    %c0_10 = arith.constant 0 : index
    %c0_11 = arith.constant 0 : index
    %c0_12 = arith.constant 0 : index
    %14 = vector.load %arg7[%c0_9, %c0_10, %c0_11, %c0_12] : memref<1x18x16x384xbf16, #tpu.memory_space<vmem>>, vector<1x1x16x384xbf16>
    tpu.vector_store %arg7[%c0_9, %c0_10, %c0_11, %c0_12], %12 {strides = array<i32>} : memref<1x18x16x384xbf16, #tpu.memory_space<vmem>>, vector<1x1x16x384xbf16>,
    %c0_13 = arith.constant 0 : index
    %c17 = arith.constant 17 : index
    %c0_14 = arith.constant 0 : index
    %c0_15 = arith.constant 0 : index
    %15 = vector.load %arg7[%c0_13, %c17, %c0_14, %c0_15] : memref<1x18x16x384xbf16, #tpu.memory_space<vmem>>, vector<1x1x16x384xbf16>
    tpu.vector_store %arg7[%c0_13, %c17, %c0_14, %c0_15], %12 {strides = array<i32>} : memref<1x18x16x384xbf16, #tpu.memory_space<vmem>>, vector<1x1x16x384xbf16>,
    %c0_16 = arith.constant 0 : index
    %c1 = arith.constant 1 : index
    %c0_17 = arith.constant 0 : index
    %c128 = arith.constant 128 : index
    %16 = vector.load %arg7[%c0_16, %c1, %c0_17, %c128] : memref<1x18x16x384xbf16, #tpu.memory_space<vmem>>, vector<1x16x16x128xbf16>
    tpu.vector_store %arg7[%c0_16, %c1, %c0_17, %c128], %11 {strides = array<i32>} : memref<1x18x16x384xbf16, #tpu.memory_space<vmem>>, vector<1x16x16x128xbf16>,
    %17 = vector.extract_strided_slice %11 {offsets = [0, 0, 0, 0], sizes = [1, 16, 15, 128], strides = [1, 1, 1, 1]} : vector<1x16x16x128xbf16> to vector<1x16x15x128xbf16>
    %c0_18 = arith.constant 0 : index
    %c1_19 = arith.constant 1 : index
    %c1_20 = arith.constant 1 : index
    %c0_21 = arith.constant 0 : index
    %18 = vector.load %arg7[%c0_18, %c1_19, %c1_20, %c0_21] : memref<1x18x16x384xbf16, #tpu.memory_space<vmem>>, vector<1x16x15x128xbf16>
    tpu.vector_store %arg7[%c0_18, %c1_19, %c1_20, %c0_21], %17 {strides = array<i32>} : memref<1x18x16x384xbf16, #tpu.memory_space<vmem>>, vector<1x16x15x128xbf16>,
    %c0_22 = arith.constant 0 : index
    %c1_23 = arith.constant 1 : index
    %c0_24 = arith.constant 0 : index
    %c0_25 = arith.constant 0 : index
    %19 = vector.load %arg7[%c0_22, %c1_23, %c0_24, %c0_25] : memref<1x18x16x384xbf16, #tpu.memory_space<vmem>>, vector<1x16x1x128xbf16>
    tpu.vector_store %arg7[%c0_22, %c1_23, %c0_24, %c0_25], %13 {strides = array<i32>} : memref<1x18x16x384xbf16, #tpu.memory_space<vmem>>, vector<1x16x1x128xbf16>,
    %20 = vector.extract_strided_slice %11 {offsets = [0, 0, 1, 0], sizes = [1, 16, 15, 128], strides = [1, 1, 1, 1]} : vector<1x16x16x128xbf16> to vector<1x16x15x128xbf16>
    %c0_26 = arith.constant 0 : index
    %c1_27 = arith.constant 1 : index
    %c0_28 = arith.constant 0 : index
    %c256 = arith.constant 256 : index
    %21 = vector.load %arg7[%c0_26, %c1_27, %c0_28, %c256] : memref<1x18x16x384xbf16, #tpu.memory_space<vmem>>, vector<1x16x15x128xbf16>
    tpu.vector_store %arg7[%c0_26, %c1_27, %c0_28, %c256], %20 {strides = array<i32>} : memref<1x18x16x384xbf16, #tpu.memory_space<vmem>>, vector<1x16x15x128xbf16>,
    %c0_29 = arith.constant 0 : index
    %c1_30 = arith.constant 1 : index
    %c15 = arith.constant 15 : index
    %c256_31 = arith.constant 256 : index
    %22 = vector.load %arg7[%c0_29, %c1_30, %c15, %c256_31] : memref<1x18x16x384xbf16, #tpu.memory_space<vmem>>, vector<1x16x1x128xbf16>
    tpu.vector_store %arg7[%c0_29, %c1_30, %c15, %c256_31], %13 {strides = array<i32>} : memref<1x18x16x384xbf16, #tpu.memory_space<vmem>>, vector<1x16x1x128xbf16>,
    %c0_32 = arith.constant 0 : index
    %c0_33 = arith.constant 0 : index
    %c0_34 = arith.constant 0 : index
    %c0_35 = arith.constant 0 : index
    %23 = vector.load %arg7[%c0_32, %c0_33, %c0_34, %c0_35] : memref<1x18x16x384xbf16, #tpu.memory_space<vmem>>, vector<1x16x16x384xbf16>
    %24 = vector.shape_cast %23 : vector<1x16x16x384xbf16> to vector<256x384xbf16>
    %c0_36 = arith.constant 0 : index
    %c0_37 = arith.constant 0 : index
    %c0_38 = arith.constant 0 : index
    %25 = vector.load %arg4[%c0_36, %c0_37, %c0_38] : memref<3x384x128xbf16, #tpu.memory_space<vmem>>, vector<1x384x128xbf16>
    %26 = vector.shape_cast %25 : vector<1x384x128xbf16> to vector<384x128xbf16>
    %cst_39 = arith.constant dense<0.000000e+00> : vector<256x128xf32>
    %27 = tpu.matmul %24, %26, %cst_39 {dimension_numbers = #tpu.dot_dimension_numbers<[1], [0], [0], [1], [0, 0, 1, 1], [], []>} : vector<256x384xbf16>, vector<384x128xbf16>, vector<256x128xf32> -> vector<256x128xf32>
    %c0_40 = arith.constant 0 : index
    %c1_41 = arith.constant 1 : index
    %c0_42 = arith.constant 0 : index
    %c0_43 = arith.constant 0 : index
    %28 = vector.load %arg7[%c0_40, %c1_41, %c0_42, %c0_43] : memref<1x18x16x384xbf16, #tpu.memory_space<vmem>>, vector<1x16x16x384xbf16>
    %29 = vector.shape_cast %28 : vector<1x16x16x384xbf16> to vector<256x384xbf16>
    %c1_44 = arith.constant 1 : index
    %c0_45 = arith.constant 0 : index
    %c0_46 = arith.constant 0 : index
    %30 = vector.load %arg4[%c1_44, %c0_45, %c0_46] : memref<3x384x128xbf16, #tpu.memory_space<vmem>>, vector<1x384x128xbf16>
    %31 = vector.shape_cast %30 : vector<1x384x128xbf16> to vector<384x128xbf16>
    %cst_47 = arith.constant dense<0.000000e+00> : vector<256x128xf32>
    %32 = tpu.matmul %29, %31, %cst_47 {dimension_numbers = #tpu.dot_dimension_numbers<[1], [0], [0], [1], [0, 0, 1, 1], [], []>} : vector<256x384xbf16>, vector<384x128xbf16>, vector<256x128xf32> -> vector<256x128xf32>
    %33 = arith.addf %27, %32 : vector<256x128xf32>
    %c0_48 = arith.constant 0 : index
    %c2 = arith.constant 2 : index
    %c0_49 = arith.constant 0 : index
    %c0_50 = arith.constant 0 : index
    %34 = vector.load %arg7[%c0_48, %c2, %c0_49, %c0_50] : memref<1x18x16x384xbf16, #tpu.memory_space<vmem>>, vector<1x16x16x384xbf16>
    %35 = vector.shape_cast %34 : vector<1x16x16x384xbf16> to vector<256x384xbf16>
    %c2_51 = arith.constant 2 : index
    %c0_52 = arith.constant 0 : index
    %c0_53 = arith.constant 0 : index
    %36 = vector.load %arg4[%c2_51, %c0_52, %c0_53] : memref<3x384x128xbf16, #tpu.memory_space<vmem>>, vector<1x384x128xbf16>
    %37 = vector.shape_cast %36 : vector<1x384x128xbf16> to vector<384x128xbf16>
    %cst_54 = arith.constant dense<0.000000e+00> : vector<256x128xf32>
    %38 = tpu.matmul %35, %37, %cst_54 {dimension_numbers = #tpu.dot_dimension_numbers<[1], [0], [0], [1], [0, 0, 1, 1], [], []>} : vector<256x384xbf16>, vector<384x128xbf16>, vector<256x128xf32> -> vector<256x128xf32>
    %39 = arith.addf %33, %38 : vector<256x128xf32>
    %40 = vector.shape_cast %39 : vector<256x128xf32> to vector<1x16x16x128xf32>
    %c0_55 = arith.constant 0 : index
    %c0_56 = arith.constant 0 : index
    %c0_57 = arith.constant 0 : index
    %c0_58 = arith.constant 0 : index
    %41 = vector.load %arg5[%c0_55, %c0_56, %c0_57, %c0_58] : memref<1x16x16x128xf32, #tpu.memory_space<vmem>>, vector<1x16x16x128xf32>
    tpu.vector_store %arg5[%c0_55, %c0_56, %c0_57, %c0_58], %40 {strides = array<i32>} : memref<1x16x16x128xf32, #tpu.memory_space<vmem>>, vector<1x16x16x128xf32>,
    %cst_59 = arith.constant 1.000000e+00 : f32
    %42 = vector.broadcast %cst_59 : f32 to vector<1x256xf32>
    %cst_60 = arith.constant dense<0.000000e+00> : vector<1x128xf32>
    %43 = tpu.matmul %42, %39, %cst_60 {dimension_numbers = #tpu.dot_dimension_numbers<[1], [0], [0], [1], [0, 0, 1, 1], [], []>} : vector<1x256xf32>, vector<256x128xf32>, vector<1x128xf32> -> vector<1x128xf32>
    %44 = vector.shape_cast %43 : vector<1x128xf32> to vector<1x1x128xf32>
    %c0_61 = arith.constant 0 : index
    %c0_62 = arith.constant 0 : index
    %c0_63 = arith.constant 0 : index
    %45 = vector.load %arg6[%c0_61, %c0_62, %c0_63] : memref<1x2x128xf32, #tpu.memory_space<vmem>>, vector<1x1x128xf32>
    tpu.vector_store %arg6[%c0_61, %c0_62, %c0_63], %44 {strides = array<i32>} : memref<1x2x128xf32, #tpu.memory_space<vmem>>, vector<1x1x128xf32>,
    %46 = arith.mulf %39, %39 : vector<256x128xf32>
    %cst_64 = arith.constant dense<0.000000e+00> : vector<1x128xf32>
    %47 = tpu.matmul %42, %46, %cst_64 {dimension_numbers = #tpu.dot_dimension_numbers<[1], [0], [0], [1], [0, 0, 1, 1], [], []>} : vector<1x256xf32>, vector<256x128xf32>, vector<1x128xf32> -> vector<1x128xf32>
    %48 = vector.shape_cast %47 : vector<1x128xf32> to vector<1x1x128xf32>
    %c0_65 = arith.constant 0 : index
    %c1_66 = arith.constant 1 : index
    %c0_67 = arith.constant 0 : index
    %49 = vector.load %arg6[%c0_65, %c1_66, %c0_67] : memref<1x2x128xf32, #tpu.memory_space<vmem>>, vector<1x1x128xf32>
    tpu.vector_store %arg6[%c0_65, %c1_66, %c0_67], %48 {strides = array<i32>} : memref<1x2x128xf32, #tpu.memory_space<vmem>>, vector<1x1x128xf32>,
    return
  }
  func.func @transform_0(%arg0: i32) -> (i32, i32, i32, i32) {
    %c0_i32 = arith.constant 0 : i32
    %c0_i32_0 = arith.constant 0 : i32
    %c0_i32_1 = arith.constant 0 : i32
    %c0_i32_2 = arith.constant 0 : i32
    return %arg0, %c0_i32, %c0_i32_0, %c0_i32_1 : i32, i32, i32, i32
  }
  func.func @transform_1(%arg0: i32) -> (i32, i32) {
    %c0_i32 = arith.constant 0 : i32
    %c0_i32_0 = arith.constant 0 : i32
    %c0_i32_1 = arith.constant 0 : i32
    return %c0_i32, %c0_i32_0 : i32, i32
  }
  func.func @transform_2(%arg0: i32) -> (i32, i32) {
    %c0_i32 = arith.constant 0 : i32
    %c0_i32_0 = arith.constant 0 : i32
    %c0_i32_1 = arith.constant 0 : i32
    return %c0_i32, %c0_i32_0 : i32, i32
  }
  func.func @transform_3(%arg0: i32) -> (i32, i32, i32) {
    %c0_i32 = arith.constant 0 : i32
    %c0_i32_0 = arith.constant 0 : i32
    %c0_i32_1 = arith.constant 0 : i32
    %c0_i32_2 = arith.constant 0 : i32
    return %c0_i32, %c0_i32_0, %c0_i32_1 : i32, i32, i32
  }
  func.func @transform_4(%arg0: i32) -> (i32, i32, i32, i32) {
    %c0_i32 = arith.constant 0 : i32
    %c0_i32_0 = arith.constant 0 : i32
    %c0_i32_1 = arith.constant 0 : i32
    %c0_i32_2 = arith.constant 0 : i32
    return %arg0, %c0_i32, %c0_i32_0, %c0_i32_1 : i32, i32, i32, i32
  }
  func.func @transform_5(%arg0: i32) -> (i32, i32, i32) {
    %c0_i32 = arith.constant 0 : i32
    %c0_i32_0 = arith.constant 0 : i32
    %c0_i32_1 = arith.constant 0 : i32
    return %arg0, %c0_i32, %c0_i32_0 : i32, i32, i32
  }
}

module attributes {stable_mosaic.version = 11 : i64} {
  func.func @_conv2_kernel(%arg0: i32, %arg1: memref<1x16x16x128xf32, #tpu.memory_space<vmem>>, %arg2: memref<1x16x16x128xf32, #tpu.memory_space<vmem>>, %arg3: memref<1x128xf32, #tpu.memory_space<vmem>>, %arg4: memref<1x128xf32, #tpu.memory_space<vmem>>, %arg5: memref<3x384x128xbf16, #tpu.memory_space<vmem>>, %arg6: memref<1x16x16x128xf32, #tpu.memory_space<vmem>>, %arg7: memref<1x18x16x384xbf16, #tpu.memory_space<vmem>>) attributes {dimension_semantics = [#tpu.dimension_semantics<parallel>], iteration_bounds = array<i64: 2>, scalar_prefetch = 0 : i64, scratch_operands = 1 : i64, tpu.core_type = #tpu.core_type<tc>, window_params = [{transform_indices = @transform_0, window_bounds = array<i64: 1, 16, 16, 128>}, {transform_indices = @transform_1, window_bounds = array<i64: 1, 16, 16, 128>}, {pipeline_mode = #tpu.pipeline_mode<synchronous>, transform_indices = @transform_2, window_bounds = array<i64: 1, 128>}, {pipeline_mode = #tpu.pipeline_mode<synchronous>, transform_indices = @transform_3, window_bounds = array<i64: 1, 128>}, {pipeline_mode = #tpu.pipeline_mode<synchronous>, transform_indices = @transform_4, window_bounds = array<i64: 3, 384, 128>}, {transform_indices = @transform_5, window_bounds = array<i64: 1, 16, 16, 128>}]} {
    %c0 = arith.constant 0 : index
    %c0_0 = arith.constant 0 : index
    %0 = vector.load %arg3[%c0, %c0_0] : memref<1x128xf32, #tpu.memory_space<vmem>>, vector<1x128xf32>
    %1 = vector.shape_cast %0 : vector<1x128xf32> to vector<1x1x1x128xf32>
    %c0_1 = arith.constant 0 : index
    %c0_2 = arith.constant 0 : index
    %2 = vector.load %arg4[%c0_1, %c0_2] : memref<1x128xf32, #tpu.memory_space<vmem>>, vector<1x128xf32>
    %3 = vector.shape_cast %2 : vector<1x128xf32> to vector<1x1x1x128xf32>
    %c0_3 = arith.constant 0 : index
    %c0_4 = arith.constant 0 : index
    %c0_5 = arith.constant 0 : index
    %c0_6 = arith.constant 0 : index
    %4 = vector.load %arg1[%c0_3, %c0_4, %c0_5, %c0_6] : memref<1x16x16x128xf32, #tpu.memory_space<vmem>>, vector<1x16x16x128xf32>
    %5 = vector.broadcast %1 : vector<1x1x1x128xf32> to vector<1x16x16x128xf32>
    %6 = arith.mulf %4, %5 : vector<1x16x16x128xf32>
    %7 = vector.broadcast %3 : vector<1x1x1x128xf32> to vector<1x16x16x128xf32>
    %8 = arith.addf %6, %7 : vector<1x16x16x128xf32>
    %cst = arith.constant 0.000000e+00 : f32
    %9 = vector.broadcast %cst : f32 to vector<1x16x16x128xf32>
    %10 = arith.maximumf %8, %9 : vector<1x16x16x128xf32>
    %11 = arith.truncf %10 : vector<1x16x16x128xf32> to vector<1x16x16x128xbf16>
    %cst_7 = arith.constant 0.000000e+00 : bf16
    %12 = vector.broadcast %cst_7 : bf16 to vector<1x1x16x384xbf16>
    %cst_8 = arith.constant 0.000000e+00 : bf16
    %13 = vector.broadcast %cst_8 : bf16 to vector<1x16x1x128xbf16>
    %c0_9 = arith.constant 0 : index
    %c0_10 = arith.constant 0 : index
    %c0_11 = arith.constant 0 : index
    %c0_12 = arith.constant 0 : index
    %14 = vector.load %arg7[%c0_9, %c0_10, %c0_11, %c0_12] : memref<1x18x16x384xbf16, #tpu.memory_space<vmem>>, vector<1x1x16x384xbf16>
    tpu.vector_store %arg7[%c0_9, %c0_10, %c0_11, %c0_12], %12 {strides = array<i32>} : memref<1x18x16x384xbf16, #tpu.memory_space<vmem>>, vector<1x1x16x384xbf16>,
    %c0_13 = arith.constant 0 : index
    %c17 = arith.constant 17 : index
    %c0_14 = arith.constant 0 : index
    %c0_15 = arith.constant 0 : index
    %15 = vector.load %arg7[%c0_13, %c17, %c0_14, %c0_15] : memref<1x18x16x384xbf16, #tpu.memory_space<vmem>>, vector<1x1x16x384xbf16>
    tpu.vector_store %arg7[%c0_13, %c17, %c0_14, %c0_15], %12 {strides = array<i32>} : memref<1x18x16x384xbf16, #tpu.memory_space<vmem>>, vector<1x1x16x384xbf16>,
    %c0_16 = arith.constant 0 : index
    %c1 = arith.constant 1 : index
    %c0_17 = arith.constant 0 : index
    %c128 = arith.constant 128 : index
    %16 = vector.load %arg7[%c0_16, %c1, %c0_17, %c128] : memref<1x18x16x384xbf16, #tpu.memory_space<vmem>>, vector<1x16x16x128xbf16>
    tpu.vector_store %arg7[%c0_16, %c1, %c0_17, %c128], %11 {strides = array<i32>} : memref<1x18x16x384xbf16, #tpu.memory_space<vmem>>, vector<1x16x16x128xbf16>,
    %17 = vector.extract_strided_slice %11 {offsets = [0, 0, 0, 0], sizes = [1, 16, 15, 128], strides = [1, 1, 1, 1]} : vector<1x16x16x128xbf16> to vector<1x16x15x128xbf16>
    %c0_18 = arith.constant 0 : index
    %c1_19 = arith.constant 1 : index
    %c1_20 = arith.constant 1 : index
    %c0_21 = arith.constant 0 : index
    %18 = vector.load %arg7[%c0_18, %c1_19, %c1_20, %c0_21] : memref<1x18x16x384xbf16, #tpu.memory_space<vmem>>, vector<1x16x15x128xbf16>
    tpu.vector_store %arg7[%c0_18, %c1_19, %c1_20, %c0_21], %17 {strides = array<i32>} : memref<1x18x16x384xbf16, #tpu.memory_space<vmem>>, vector<1x16x15x128xbf16>,
    %c0_22 = arith.constant 0 : index
    %c1_23 = arith.constant 1 : index
    %c0_24 = arith.constant 0 : index
    %c0_25 = arith.constant 0 : index
    %19 = vector.load %arg7[%c0_22, %c1_23, %c0_24, %c0_25] : memref<1x18x16x384xbf16, #tpu.memory_space<vmem>>, vector<1x16x1x128xbf16>
    tpu.vector_store %arg7[%c0_22, %c1_23, %c0_24, %c0_25], %13 {strides = array<i32>} : memref<1x18x16x384xbf16, #tpu.memory_space<vmem>>, vector<1x16x1x128xbf16>,
    %20 = vector.extract_strided_slice %11 {offsets = [0, 0, 1, 0], sizes = [1, 16, 15, 128], strides = [1, 1, 1, 1]} : vector<1x16x16x128xbf16> to vector<1x16x15x128xbf16>
    %c0_26 = arith.constant 0 : index
    %c1_27 = arith.constant 1 : index
    %c0_28 = arith.constant 0 : index
    %c256 = arith.constant 256 : index
    %21 = vector.load %arg7[%c0_26, %c1_27, %c0_28, %c256] : memref<1x18x16x384xbf16, #tpu.memory_space<vmem>>, vector<1x16x15x128xbf16>
    tpu.vector_store %arg7[%c0_26, %c1_27, %c0_28, %c256], %20 {strides = array<i32>} : memref<1x18x16x384xbf16, #tpu.memory_space<vmem>>, vector<1x16x15x128xbf16>,
    %c0_29 = arith.constant 0 : index
    %c1_30 = arith.constant 1 : index
    %c15 = arith.constant 15 : index
    %c256_31 = arith.constant 256 : index
    %22 = vector.load %arg7[%c0_29, %c1_30, %c15, %c256_31] : memref<1x18x16x384xbf16, #tpu.memory_space<vmem>>, vector<1x16x1x128xbf16>
    tpu.vector_store %arg7[%c0_29, %c1_30, %c15, %c256_31], %13 {strides = array<i32>} : memref<1x18x16x384xbf16, #tpu.memory_space<vmem>>, vector<1x16x1x128xbf16>,
    %c0_32 = arith.constant 0 : index
    %c0_33 = arith.constant 0 : index
    %c0_34 = arith.constant 0 : index
    %c0_35 = arith.constant 0 : index
    %23 = vector.load %arg7[%c0_32, %c0_33, %c0_34, %c0_35] : memref<1x18x16x384xbf16, #tpu.memory_space<vmem>>, vector<1x16x16x384xbf16>
    %24 = vector.shape_cast %23 : vector<1x16x16x384xbf16> to vector<256x384xbf16>
    %c0_36 = arith.constant 0 : index
    %c0_37 = arith.constant 0 : index
    %c0_38 = arith.constant 0 : index
    %25 = vector.load %arg5[%c0_36, %c0_37, %c0_38] : memref<3x384x128xbf16, #tpu.memory_space<vmem>>, vector<1x384x128xbf16>
    %26 = vector.shape_cast %25 : vector<1x384x128xbf16> to vector<384x128xbf16>
    %cst_39 = arith.constant dense<0.000000e+00> : vector<256x128xf32>
    %27 = tpu.matmul %24, %26, %cst_39 {dimension_numbers = #tpu.dot_dimension_numbers<[1], [0], [0], [1], [0, 0, 1, 1], [], []>} : vector<256x384xbf16>, vector<384x128xbf16>, vector<256x128xf32> -> vector<256x128xf32>
    %c0_40 = arith.constant 0 : index
    %c1_41 = arith.constant 1 : index
    %c0_42 = arith.constant 0 : index
    %c0_43 = arith.constant 0 : index
    %28 = vector.load %arg7[%c0_40, %c1_41, %c0_42, %c0_43] : memref<1x18x16x384xbf16, #tpu.memory_space<vmem>>, vector<1x16x16x384xbf16>
    %29 = vector.shape_cast %28 : vector<1x16x16x384xbf16> to vector<256x384xbf16>
    %c1_44 = arith.constant 1 : index
    %c0_45 = arith.constant 0 : index
    %c0_46 = arith.constant 0 : index
    %30 = vector.load %arg5[%c1_44, %c0_45, %c0_46] : memref<3x384x128xbf16, #tpu.memory_space<vmem>>, vector<1x384x128xbf16>
    %31 = vector.shape_cast %30 : vector<1x384x128xbf16> to vector<384x128xbf16>
    %cst_47 = arith.constant dense<0.000000e+00> : vector<256x128xf32>
    %32 = tpu.matmul %29, %31, %cst_47 {dimension_numbers = #tpu.dot_dimension_numbers<[1], [0], [0], [1], [0, 0, 1, 1], [], []>} : vector<256x384xbf16>, vector<384x128xbf16>, vector<256x128xf32> -> vector<256x128xf32>
    %33 = arith.addf %27, %32 : vector<256x128xf32>
    %c0_48 = arith.constant 0 : index
    %c2 = arith.constant 2 : index
    %c0_49 = arith.constant 0 : index
    %c0_50 = arith.constant 0 : index
    %34 = vector.load %arg7[%c0_48, %c2, %c0_49, %c0_50] : memref<1x18x16x384xbf16, #tpu.memory_space<vmem>>, vector<1x16x16x384xbf16>
    %35 = vector.shape_cast %34 : vector<1x16x16x384xbf16> to vector<256x384xbf16>
    %c2_51 = arith.constant 2 : index
    %c0_52 = arith.constant 0 : index
    %c0_53 = arith.constant 0 : index
    %36 = vector.load %arg5[%c2_51, %c0_52, %c0_53] : memref<3x384x128xbf16, #tpu.memory_space<vmem>>, vector<1x384x128xbf16>
    %37 = vector.shape_cast %36 : vector<1x384x128xbf16> to vector<384x128xbf16>
    %cst_54 = arith.constant dense<0.000000e+00> : vector<256x128xf32>
    %38 = tpu.matmul %35, %37, %cst_54 {dimension_numbers = #tpu.dot_dimension_numbers<[1], [0], [0], [1], [0, 0, 1, 1], [], []>} : vector<256x384xbf16>, vector<384x128xbf16>, vector<256x128xf32> -> vector<256x128xf32>
    %39 = arith.addf %33, %38 : vector<256x128xf32>
    %40 = vector.shape_cast %39 : vector<256x128xf32> to vector<1x16x16x128xf32>
    %c0_55 = arith.constant 0 : index
    %c0_56 = arith.constant 0 : index
    %c0_57 = arith.constant 0 : index
    %c0_58 = arith.constant 0 : index
    %41 = vector.load %arg2[%c0_55, %c0_56, %c0_57, %c0_58] : memref<1x16x16x128xf32, #tpu.memory_space<vmem>>, vector<1x16x16x128xf32>
    %42 = arith.addf %40, %41 : vector<1x16x16x128xf32>
    %c0_59 = arith.constant 0 : index
    %c0_60 = arith.constant 0 : index
    %c0_61 = arith.constant 0 : index
    %c0_62 = arith.constant 0 : index
    %43 = vector.load %arg6[%c0_59, %c0_60, %c0_61, %c0_62] : memref<1x16x16x128xf32, #tpu.memory_space<vmem>>, vector<1x16x16x128xf32>
    tpu.vector_store %arg6[%c0_59, %c0_60, %c0_61, %c0_62], %42 {strides = array<i32>} : memref<1x16x16x128xf32, #tpu.memory_space<vmem>>, vector<1x16x16x128xf32>,
    return
  }
  func.func @transform_0(%arg0: i32) -> (i32, i32, i32, i32) {
    %c0_i32 = arith.constant 0 : i32
    %c0_i32_0 = arith.constant 0 : i32
    %c0_i32_1 = arith.constant 0 : i32
    %c0_i32_2 = arith.constant 0 : i32
    return %arg0, %c0_i32, %c0_i32_0, %c0_i32_1 : i32, i32, i32, i32
  }
  func.func @transform_1(%arg0: i32) -> (i32, i32, i32, i32) {
    %c0_i32 = arith.constant 0 : i32
    %c0_i32_0 = arith.constant 0 : i32
    %c0_i32_1 = arith.constant 0 : i32
    %c0_i32_2 = arith.constant 0 : i32
    return %arg0, %c0_i32, %c0_i32_0, %c0_i32_1 : i32, i32, i32, i32
  }
  func.func @transform_2(%arg0: i32) -> (i32, i32) {
    %c0_i32 = arith.constant 0 : i32
    %c0_i32_0 = arith.constant 0 : i32
    %c0_i32_1 = arith.constant 0 : i32
    return %c0_i32, %c0_i32_0 : i32, i32
  }
  func.func @transform_3(%arg0: i32) -> (i32, i32) {
    %c0_i32 = arith.constant 0 : i32
    %c0_i32_0 = arith.constant 0 : i32
    %c0_i32_1 = arith.constant 0 : i32
    return %c0_i32, %c0_i32_0 : i32, i32
  }
  func.func @transform_4(%arg0: i32) -> (i32, i32, i32) {
    %c0_i32 = arith.constant 0 : i32
    %c0_i32_0 = arith.constant 0 : i32
    %c0_i32_1 = arith.constant 0 : i32
    %c0_i32_2 = arith.constant 0 : i32
    return %c0_i32, %c0_i32_0, %c0_i32_1 : i32, i32, i32
  }
  func.func @transform_5(%arg0: i32) -> (i32, i32, i32, i32) {
    %c0_i32 = arith.constant 0 : i32
    %c0_i32_0 = arith.constant 0 : i32
    %c0_i32_1 = arith.constant 0 : i32
    %c0_i32_2 = arith.constant 0 : i32
    return %arg0, %c0_i32, %c0_i32_0, %c0_i32_1 : i32, i32, i32, i32
  }
}

</mosaic_0001>

<llo_original>
// kernel: residual_block.3
$region0: #{residual_block.3}
  #allocation0 [shape = 'u32[]', space=smem, size = 0x4, offset = 0x4, fixed_abs, tag = 'smem constant byte address 0x4 - core index']
  #allocation1 [shape = 'u32[144,128]{1,0:T(1,128)}', space=vmem, size = 0x12000, scoped, tag = 'internal scratch']
  %s0 = inlined_call_operand.vmem [shape: f32[2,16,16,128], index: 0, kind: input, shape index: {}]
  %s1 = inlined_call_operand.vmem [shape: f32[2,2,128], index: 1, kind: output, shape index: {}]
  %s2 = sld [smem:[#allocation0]]
  $region37: #{residual_block.3} parent=0
    _
  %s4 = ssub.s32 1, %s2
  %s5 = scalar_select 0, %s4, %s2
  loop: start=0, step=1, limit=4
  $region2: #{residual_block.3} parent=0 // loop_pre_header
    _
  $region3: #{residual_block.3} parent=0 // loop_header
    %s7 = sphi 0, %s11
    %p8 = scmp.ge.s32.totalorder %s7, 4
    %s17 = sphi 0, %s19
    %s20 = sphi 0, %s17
    %s21 = sphi 0, %s20
    %s37 = sphi 0, %s21
    %s43 = sphi 0, %s45
    %s46 = sphi 0, %s43
    %s47 = sphi 0, %s46
    %s63 = sphi 0, %s47
  $region4: #{residual_block.3} parent=0 // loop_header_branch
    %10 = sbr.rel (%p8) target = $region8
  $region5: #{residual_block.3} parent=0 // loop_body
    %s12 = ssub.s32 %s7, 1
    %s13 = ssub.s32 %s7, 2
    %s14 = sadd.s32 %s7, 1
    %s15 = ssub.s32 %s7, %s14
    %p16 = scmp.eq.s32.totalorder %s15, 0
    %s18 = sadd.s32 %s17, 1
    %s19 = scalar_select %p16, %s17, %s18
    %p22 = pneg %p16
    %p23 = scmp.eq.s32.totalorder %s7, 1
    %p24 = por %p22, %p23
    %p25 = scmp.ne.s32.totalorder %s17, %s20
    %p26 = scmp.eq.s32.totalorder %s7, 0
    %p27 = por %p25, %p26
    %p28 = scmp.ne.s32.totalorder %s17, %s20
    %p29 = scmp.eq.s32.totalorder %s12, 1
    %p30 = por %p28, %p29
    %p31 = scmp.ne.s32.totalorder %s20, %s21
    %p32 = scmp.eq.s32.totalorder %s12, 0
    %p33 = por %p31, %p32
    %p34 = scmp.ne.s32.totalorder %s20, %s21
    %p35 = scmp.eq.s32.totalorder %s13, 1
    %p36 = por %p34, %p35
    %p38 = scmp.ne.s32.totalorder %s21, %s37
    %p39 = scmp.eq.s32.totalorder %s13, 0
    %p40 = por %p38, %p39
    %s41 = ssub.s32 %s7, %s14
    %p42 = scmp.eq.s32.totalorder %s41, 0
    %s44 = sadd.s32 %s43, 1
    %s45 = scalar_select %p42, %s43, %s44
    %p48 = pneg %p42
    %p49 = scmp.eq.s32.totalorder %s7, 1
    %p50 = por %p48, %p49
    %p51 = scmp.ne.s32.totalorder %s43, %s46
    %p52 = scmp.eq.s32.totalorder %s7, 0
    %p53 = por %p51, %p52
    %p54 = scmp.ne.s32.totalorder %s43, %s46
    %p55 = scmp.eq.s32.totalorder %s12, 1
    %p56 = por %p54, %p55
    %p57 = scmp.ne.s32.totalorder %s46, %s47
    %p58 = scmp.eq.s32.totalorder %s12, 0
    %p59 = por %p57, %p58
    %p60 = scmp.ne.s32.totalorder %s46, %s47
    %p61 = scmp.eq.s32.totalorder %s13, 1
    %p62 = por %p60, %p61
    %p64 = scmp.ne.s32.totalorder %s47, %s63
    %p65 = scmp.eq.s32.totalorder %s13, 0
    %p66 = por %p64, %p65
    %p67 = scmp.le.s32.totalorder 1, %s7
    %p68 = scmp.lt.s32.totalorder %s7, 3
    %p69 = pnand %p67, %p68
    %p70 = pneg %p69
    // Predicated region
    $region9: #{residual_block.3} parent=5 // pred_check
      _
    $region10: #{residual_block.3} parent=5 // pred_check_branch
      %72 = sbr.rel (%p69) target = $region12
    $region11: #{residual_block.3} parent=5 // pred_region
      %s73 = ssub.s32 %s7, 1
    $region12: #{residual_block.3} parent=5 // pred_fallthru
      _
    %p74 = scmp.lt.s32.totalorder %s7, 2
    // Predicated region
    $region13: #{residual_block.3} parent=5 // pred_check
      %p75 = pneg %p74
    $region14: #{residual_block.3} parent=5 // pred_check_branch
      %77 = sbr.rel (%p75) target = $region16
    $region15: #{residual_block.3} parent=5 // pred_region
      // Predicated region
      $region17: #{residual_block.3} parent=15 // pred_check
        %p78 = pneg %p27
      $region18: #{residual_block.3} parent=15 // pred_check_branch
        %80 = sbr.rel (%p78) target = $region20
      $region19: #{residual_block.3} parent=15 // pred_region
        %p81 = scmp.lt.s32.totalorder %s7, 1
        %s82 = scalar_select %p81, %s7, 1
        %s83 = smul.addr %s82, 32
        %s84 = smul.addr %s83, 8
        %s85 = scalar_lea.vmem %s0, %s84
      $region20: #{residual_block.3} parent=15 // pred_fallthru
        _
    $region16: #{residual_block.3} parent=5 // pred_fallthru
      _
    %p86 = scmp.le.s32.totalorder 1, %s7
    %p87 = scmp.lt.s32.totalorder %s7, 3
    %p88 = pnand %p86, %p87
    %p89 = pneg %p88
    // Predicated region
    $region21: #{residual_block.3} parent=5 // pred_check
      _
    $region22: #{residual_block.3} parent=5 // pred_check_branch
      %91 = sbr.rel (%p88) target = $region24
    $region23: #{residual_block.3} parent=5 // pred_region
      %s92 = ssub.s32 %s7, 1
      %p93 = scmp.lt.s32.totalorder %s12, 1
      %s94 = scalar_select %p93, %s12, 1
      %s95 = smul.addr %s94, 32
      %s96 = smul.addr %s95, 8
      %s97 = scalar_lea.vmem %s0, %s96
      %p98 = pneg %p33
      %p99 = pneg %p30
      %p100 = pneg %p59
      %p101 = pneg %p56
      %p102 = scmp.lt.s32.totalorder %s12, 1
      %s103 = scalar_select %p102, %s12, 1
      %s104 = smul.addr %s103, 2
      %s105 = scalar_lea.vmem %s1, %s104
      %p106 = scmp.lt.s32.totalorder %s12, 1
      %s107 = scalar_select %p106, %s12, 1
      %s108 = smul.addr %s107, 32
      %s109 = smul.addr %s108, 8
      %s110 = scalar_lea.vmem %s0, %s109
      %p111 = scmp.lt.s32.totalorder %s12, 1
      %s112 = scalar_select %p111, %s12, 1
      %s113 = smul.addr %s112, 2
      %s114 = scalar_lea.vmem %s1, %s113
      %v115 = vld [vmem:[%s110] sm:$0xff]
      %v116 = vld [vmem:[%s110 + $0x8] sm:$0xff]
      %v117 = vld [vmem:[%s110 + $0x10] sm:$0xff]
      %v118 = vld [vmem:[%s110 + $0x18] sm:$0xff]
      %v119 = vld [vmem:[%s110 + $0x20] sm:$0xff]
      %v120 = vld [vmem:[%s110 + $0x28] sm:$0xff]
      %v121 = vld [vmem:[%s110 + $0x30] sm:$0xff]
      %v122 = vld [vmem:[%s110 + $0x38] sm:$0xff]
      %v123 = vld [vmem:[%s110 + $0x40] sm:$0xff]
      %v124 = vld [vmem:[%s110 + $0x48] sm:$0xff]
      %v125 = vld [vmem:[%s110 + $0x50] sm:$0xff]
      %v126 = vld [vmem:[%s110 + $0x58] sm:$0xff]
      %v127 = vld [vmem:[%s110 + $0x60] sm:$0xff]
      %v128 = vld [vmem:[%s110 + $0x68] sm:$0xff]
      %v129 = vld [vmem:[%s110 + $0x70] sm:$0xff]
      %v130 = vld [vmem:[%s110 + $0x78] sm:$0xff]
      %v131 = vld [vmem:[%s110 + $0x80] sm:$0xff]
      %v132 = vld [vmem:[%s110 + $0x88] sm:$0xff]
      %v133 = vld [vmem:[%s110 + $0x90] sm:$0xff]
      %v134 = vld [vmem:[%s110 + $0x98] sm:$0xff]
      %v135 = vld [vmem:[%s110 + $0xa0] sm:$0xff]
      %v136 = vld [vmem:[%s110 + $0xa8] sm:$0xff]
      %v137 = vld [vmem:[%s110 + $0xb0] sm:$0xff]
      %v138 = vld [vmem:[%s110 + $0xb8] sm:$0xff]
      %v139 = vld [vmem:[%s110 + $0xc0] sm:$0xff]
      %v140 = vld [vmem:[%s110 + $0xc8] sm:$0xff]
      %v141 = vld [vmem:[%s110 + $0xd0] sm:$0xff]
      %v142 = vld [vmem:[%s110 + $0xd8] sm:$0xff]
      %v143 = vld [vmem:[%s110 + $0xe0] sm:$0xff]
      %v144 = vld [vmem:[%s110 + $0xe8] sm:$0xff]
      %v145 = vld [vmem:[%s110 + $0xf0] sm:$0xff]
      %v146 = vld [vmem:[%s110 + $0xf8] sm:$0xff]
      %147 = vmatprep.subr.mxu0 0.0
      %148 = vmatpush1.msra.mxu0 %v130
      %149 = vmatprep.subr.mxu0 0.0
      %150 = vmatpush1.msra.mxu0 %v129
      %151 = vmatprep.subr.mxu0 0.0
      %152 = vmatpush1.msra.mxu0 %v128
      %153 = vmatprep.subr.mxu0 0.0
      %154 = vmatpush1.msra.mxu0 %v127
      %155 = vmatprep.subr.mxu0 0.0
      %156 = vmatpush1.msra.mxu0 %v126
      %157 = vmatprep.subr.mxu0 0.0
      %158 = vmatpush1.msra.mxu0 %v125
      %159 = vmatprep.subr.mxu0 0.0
      %160 = vmatpush1.msra.mxu0 %v124
      %161 = vmatprep.subr.mxu0 0.0
      %162 = vmatpush1.msra.mxu0 %v123
      %163 = vmatprep.subr.mxu0 0.0
      %164 = vmatpush1.msra.mxu0 %v122
      %165 = vmatprep.subr.mxu0 0.0
      %166 = vmatpush1.msra.mxu0 %v121
      %167 = vmatprep.subr.mxu0 0.0
      %168 = vmatpush1.msra.mxu0 %v120
      %169 = vmatprep.subr.mxu0 0.0
      %170 = vmatpush1.msra.mxu0 %v119
      %171 = vmatprep.subr.mxu0 0.0
      %172 = vmatpush1.msra.mxu0 %v118
      %173 = vmatprep.subr.mxu0 0.0
      %174 = vmatpush1.msra.mxu0 %v117
      %175 = vmatprep.subr.mxu0 0.0
      %176 = vmatpush1.msra.mxu0 %v116
      %177 = vmatprep.subr.mxu0 0.0
      %178 = vmatpush1.msra.mxu0 %v115
      %179 = vmatprep.subr.mxu0 0.0
      %180 = vmatpush2.msra.mxu0 %v146
      %181 = vmatprep.subr.mxu0 0.0
      %182 = vmatpush2.msra.mxu0 %v145
      %183 = vmatprep.subr.mxu0 0.0
      %184 = vmatpush2.msra.mxu0 %v144
      %185 = vmatprep.subr.mxu0 0.0
      %186 = vmatpush2.msra.mxu0 %v143
      %187 = vmatprep.subr.mxu0 0.0
      %188 = vmatpush2.msra.mxu0 %v142
      %189 = vmatprep.subr.mxu0 0.0
      %190 = vmatpush2.msra.mxu0 %v141
      %191 = vmatprep.subr.mxu0 0.0
      %192 = vmatpush2.msra.mxu0 %v140
      %193 = vmatprep.subr.mxu0 0.0
      %194 = vmatpush2.msra.mxu0 %v139
      %195 = vmatprep.subr.mxu0 0.0
      %196 = vmatpush2.msra.mxu0 %v138
      %197 = vmatprep.subr.mxu0 0.0
      %198 = vmatpush2.msra.mxu0 %v137
      %199 = vmatprep.subr.mxu0 0.0
      %200 = vmatpush2.msra.mxu0 %v136
      %201 = vmatprep.subr.mxu0 0.0
      %202 = vmatpush2.msra.mxu0 %v135
      %203 = vmatprep.subr.mxu0 0.0
      %204 = vmatpush2.msra.mxu0 %v134
      %205 = vmatprep.subr.mxu0 0.0
      %206 = vmatpush2.msra.mxu0 %v133
      %207 = vmatprep.subr.mxu0 0.0
      %208 = vmatpush2.msra.mxu0 %v132
      %209 = vmatprep.subr.mxu0 0.0
      %210 = vmatpush2.msra.mxu0 %v131
      %211 = vmatprep.mubr.f32.mxu0 1.0
      %212 = vmatmul.mubr.f32.gmra.mxu0 1.0
      %v213 = vpop.f32.mrf.mxu0
      %v214 = vadd.f32 0.0, %v213
      %v215 = vpop.f32.mrf.mxu0
      %216 = vdwg.mxu0
      %217 = vst [vmem:[%s114] sm:$0x1] %v214
      %v218 = vmul.f32 %v115, %v115
      %v219 = vmul.f32 %v116, %v116
      %v220 = vmul.f32 %v117, %v117
      %v221 = vmul.f32 %v118, %v118
      %v222 = vmul.f32 %v119, %v119
      %v223 = vmul.f32 %v120, %v120
      %v224 = vmul.f32 %v121, %v121
      %v225 = vmul.f32 %v122, %v122
      %v226 = vmul.f32 %v123, %v123
      %v227 = vmul.f32 %v124, %v124
      %v228 = vmul.f32 %v125, %v125
      %v229 = vmul.f32 %v126, %v126
      %v230 = vmul.f32 %v127, %v127
      %v231 = vmul.f32 %v128, %v128
      %v232 = vmul.f32 %v129, %v129
      %v233 = vmul.f32 %v130, %v130
      %v234 = vmul.f32 %v131, %v131
      %v235 = vmul.f32 %v132, %v132
      %v236 = vmul.f32 %v133, %v133
      %v237 = vmul.f32 %v134, %v134
      %v238 = vmul.f32 %v135, %v135
      %v239 = vmul.f32 %v136, %v136
      %v240 = vmul.f32 %v137, %v137
      %v241 = vmul.f32 %v138, %v138
      %v242 = vmul.f32 %v139, %v139
      %v243 = vmul.f32 %v140, %v140
      %v244 = vmul.f32 %v141, %v141
      %v245 = vmul.f32 %v142, %v142
      %v246 = vmul.f32 %v143, %v143
      %v247 = vmul.f32 %v144, %v144
      %v248 = vmul.f32 %v145, %v145
      %v249 = vmul.f32 %v146, %v146
      %250 = vmatprep.subr.mxu0 0.0
      %251 = vmatpush1.msra.mxu0 %v233
      %252 = vmatprep.subr.mxu0 0.0
      %253 = vmatpush1.msra.mxu0 %v232
      %254 = vmatprep.subr.mxu0 0.0
      %255 = vmatpush1.msra.mxu0 %v231
      %256 = vmatprep.subr.mxu0 0.0
      %257 = vmatpush1.msra.mxu0 %v230
      %258 = vmatprep.subr.mxu0 0.0
      %259 = vmatpush1.msra.mxu0 %v229
      %260 = vmatprep.subr.mxu0 0.0
      %261 = vmatpush1.msra.mxu0 %v228
      %262 = vmatprep.subr.mxu0 0.0
      %263 = vmatpush1.msra.mxu0 %v227
      %264 = vmatprep.subr.mxu0 0.0
      %265 = vmatpush1.msra.mxu0 %v226
      %266 = vmatprep.subr.mxu0 0.0
      %267 = vmatpush1.msra.mxu0 %v225
      %268 = vmatprep.subr.mxu0 0.0
      %269 = vmatpush1.msra.mxu0 %v224
      %270 = vmatprep.subr.mxu0 0.0
      %271 = vmatpush1.msra.mxu0 %v223
      %272 = vmatprep.subr.mxu0 0.0
      %273 = vmatpush1.msra.mxu0 %v222
      %274 = vmatprep.subr.mxu0 0.0
      %275 = vmatpush1.msra.mxu0 %v221
      %276 = vmatprep.subr.mxu0 0.0
      %277 = vmatpush1.msra.mxu0 %v220
      %278 = vmatprep.subr.mxu0 0.0
      %279 = vmatpush1.msra.mxu0 %v219
      %280 = vmatprep.subr.mxu0 0.0
      %281 = vmatpush1.msra.mxu0 %v218
      %282 = vmatprep.subr.mxu0 0.0
      %283 = vmatpush2.msra.mxu0 %v249
      %284 = vmatprep.subr.mxu0 0.0
      %285 = vmatpush2.msra.mxu0 %v248
      %286 = vmatprep.subr.mxu0 0.0
      %287 = vmatpush2.msra.mxu0 %v247
      %288 = vmatprep.subr.mxu0 0.0
      %289 = vmatpush2.msra.mxu0 %v246
      %290 = vmatprep.subr.mxu0 0.0
      %291 = vmatpush2.msra.mxu0 %v245
      %292 = vmatprep.subr.mxu0 0.0
      %293 = vmatpush2.msra.mxu0 %v244
      %294 = vmatprep.subr.mxu0 0.0
      %295 = vmatpush2.msra.mxu0 %v243
      %296 = vmatprep.subr.mxu0 0.0
      %297 = vmatpush2.msra.mxu0 %v242
      %298 = vmatprep.subr.mxu0 0.0
      %299 = vmatpush2.msra.mxu0 %v241
      %300 = vmatprep.subr.mxu0 0.0
      %301 = vmatpush2.msra.mxu0 %v240
      %302 = vmatprep.subr.mxu0 0.0
      %303 = vmatpush2.msra.mxu0 %v239
      %304 = vmatprep.subr.mxu0 0.0
      %305 = vmatpush2.msra.mxu0 %v238
      %306 = vmatprep.subr.mxu0 0.0
      %307 = vmatpush2.msra.mxu0 %v237
      %308 = vmatprep.subr.mxu0 0.0
      %309 = vmatpush2.msra.mxu0 %v236
      %310 = vmatprep.subr.mxu0 0.0
      %311 = vmatpush2.msra.mxu0 %v235
      %312 = vmatprep.subr.mxu0 0.0
      %313 = vmatpush2.msra.mxu0 %v234
      %314 = vmatprep.mubr.f32.mxu0 1.0
      %315 = vmatmul.mubr.f32.gmra.mxu0 1.0
      %v316 = vpop.f32.mrf.mxu0
      %v317 = vadd.f32 0.0, %v316
      %v318 = vpop.f32.mrf.mxu0
      %319 = vdwg.mxu0
      %320 = vst [vmem:[%s114 + $0x1] sm:$0x1] %v317
      %p321 = scmp.lt.s32.totalorder %s12, 1
      %s322 = scalar_select %p321, %s12, 1
      %s323 = smul.addr %s322, 2
      %s324 = scalar_lea.vmem %s1, %s323
      // Predicated region
      $region25: #{residual_block.3} parent=23 // pred_check
        %p325 = pneg %p56
      $region26: #{residual_block.3} parent=23 // pred_check_branch
        %327 = sbr.rel (%p325) target = $region28
      $region27: #{residual_block.3} parent=23 // pred_region
        _
      $region28: #{residual_block.3} parent=23 // pred_fallthru
        _
    $region24: #{residual_block.3} parent=5 // pred_fallthru
      _
    %p328 = scmp.le.s32.totalorder 2, %s7
    // Predicated region
    $region29: #{residual_block.3} parent=5 // pred_check
      %p329 = pneg %p328
    $region30: #{residual_block.3} parent=5 // pred_check_branch
      %331 = sbr.rel (%p329) target = $region32
    $region31: #{residual_block.3} parent=5 // pred_region
      %s332 = ssub.s32 %s7, 2
      // Predicated region
      $region33: #{residual_block.3} parent=31 // pred_check
        %p333 = pneg %p62
      $region34: #{residual_block.3} parent=31 // pred_check_branch
        %335 = sbr.rel (%p333) target = $region36
      $region35: #{residual_block.3} parent=31 // pred_region
        %p336 = scmp.lt.s32.totalorder %s13, 1
        %s337 = scalar_select %p336, %s13, 1
        %s338 = smul.addr %s337, 2
        %s339 = scalar_lea.vmem %s1, %s338
      $region36: #{residual_block.3} parent=31 // pred_fallthru
        _
    $region32: #{residual_block.3} parent=5 // pred_fallthru
      _
  $region6: #{residual_block.3} parent=0 // loop_footer
    %s11 = sadd.s32 1, %s7
  $region7: #{residual_block.3} parent=0 // loop_footer_branch
    %6 = sbr.rel target = $region3
  $region8: #{residual_block.3} parent=0 // loop_exit
    _

// kernel: residual_block.4
$region0: #{residual_block.4}
  #allocation0 [shape = 'u32[]', space=smem, size = 0x4, offset = 0x4, fixed_abs, tag = 'smem constant byte address 0x4 - core index']
  #allocation1 [shape = 'u32[144,128]{1,0:T(1,128)}', space=vmem, size = 0x12000, scoped, tag = 'internal scratch']
  #allocation2 [shape = 'bf16[1,18,16,384]{3,2,1,0:T(8,128)(2,1)}', space=vmem, size = 0x36000, scoped, tag = 'scratch operand']
  %s0 = inlined_call_operand.vmem [shape: f32[2,16,16,128], index: 0, kind: input, shape index: {}]
  %s1 = inlined_call_operand.vmem [shape: f32[1,128], index: 1, kind: input, shape index: {}]
  %s2 = inlined_call_operand.vmem [shape: f32[1,128], index: 2, kind: input, shape index: {}]
  %s3 = inlined_call_operand.vmem [shape: bf16[3,384,128], index: 3, kind: input, shape index: {}]
  %s4 = inlined_call_operand.vmem [shape: f32[2,16,16,128], index: 4, kind: output, shape index: {0}]
  %s5 = inlined_call_operand.vmem [shape: f32[2,2,128], index: 5, kind: output, shape index: {1}]
  %6 = xla_tuple %s4, %s5
  %s7 = sld [smem:[#allocation0]]
  $region57: #{residual_block.4} parent=0
    _
  %s9 = ssub.s32 1, %s7
  %s10 = scalar_select 0, %s9, %s7
  loop: start=0, step=1, limit=4
  $region2: #{residual_block.4} parent=0 // loop_pre_header
    _
  $region3: #{residual_block.4} parent=0 // loop_header
    %s12 = sphi 0, %s16
    %p13 = scmp.ge.s32.totalorder %s12, 4
    %s22 = sphi 0, %s24
    %s25 = sphi 0, %s22
    %s26 = sphi 0, %s25
    %s42 = sphi 0, %s26
    %s46 = sphi 0, %s46
    %s48 = sphi 0, %s46
    %s49 = sphi 0, %s48
    %s63 = sphi 0, %s49
    %s67 = sphi 0, %s67
    %s69 = sphi 0, %s67
    %s70 = sphi 0, %s69
    %s84 = sphi 0, %s70
    %s88 = sphi 0, %s88
    %s90 = sphi 0, %s88
    %s91 = sphi 0, %s90
    %s105 = sphi 0, %s91
    %s111 = sphi 0, %s113
    %s114 = sphi 0, %s111
    %s115 = sphi 0, %s114
    %s131 = sphi 0, %s115
    %s137 = sphi 0, %s139
    %s140 = sphi 0, %s137
    %s141 = sphi 0, %s140
    %s157 = sphi 0, %s141
  $region4: #{residual_block.4} parent=0 // loop_header_branch
    %15 = sbr.rel (%p13) target = $region8
  $region5: #{residual_block.4} parent=0 // loop_body
    %s17 = ssub.s32 %s12, 1
    %s18 = ssub.s32 %s12, 2
    %s19 = sadd.s32 %s12, 1
    %s20 = ssub.s32 %s12, %s19
    %p21 = scmp.eq.s32.totalorder %s20, 0
    %s23 = sadd.s32 %s22, 1
    %s24 = scalar_select %p21, %s22, %s23
    %p27 = pneg %p21
    %p28 = scmp.eq.s32.totalorder %s12, 1
    %p29 = por %p27, %p28
    %p30 = scmp.ne.s32.totalorder %s22, %s25
    %p31 = scmp.eq.s32.totalorder %s12, 0
    %p32 = por %p30, %p31
    %p33 = scmp.ne.s32.totalorder %s22, %s25
    %p34 = scmp.eq.s32.totalorder %s17, 1
    %p35 = por %p33, %p34
    %p36 = scmp.ne.s32.totalorder %s25, %s26
    %p37 = scmp.eq.s32.totalorder %s17, 0
    %p38 = por %p36, %p37
    %p39 = scmp.ne.s32.totalorder %s25, %s26
    %p40 = scmp.eq.s32.totalorder %s18, 1
    %p41 = por %p39, %p40
    %p43 = scmp.ne.s32.totalorder %s26, %s42
    %p44 = scmp.eq.s32.totalorder %s18, 0
    %p45 = por %p43, %p44
    %s47 = sadd.s32 %s46, 1
    %p50 = scmp.eq.s32.totalorder %s12, 1
    %p51 = scmp.ne.s32.totalorder %s46, %s48
    %p52 = scmp.eq.s32.totalorder %s12, 0
    %p53 = por %p51, %p52
    %p54 = scmp.ne.s32.totalorder %s46, %s48
    %p55 = scmp.eq.s32.totalorder %s17, 1
    %p56 = por %p54, %p55
    %p57 = scmp.ne.s32.totalorder %s48, %s49
    %p58 = scmp.eq.s32.totalorder %s17, 0
    %p59 = por %p57, %p58
    %p60 = scmp.ne.s32.totalorder %s48, %s49
    %p61 = scmp.eq.s32.totalorder %s18, 1
    %p62 = por %p60, %p61
    %p64 = scmp.ne.s32.totalorder %s49, %s63
    %p65 = scmp.eq.s32.totalorder %s18, 0
    %p66 = por %p64, %p65
    %s68 = sadd.s32 %s67, 1
    %p71 = scmp.eq.s32.totalorder %s12, 1
    %p72 = scmp.ne.s32.totalorder %s67, %s69
    %p73 = scmp.eq.s32.totalorder %s12, 0
    %p74 = por %p72, %p73
    %p75 = scmp.ne.s32.totalorder %s67, %s69
    %p76 = scmp.eq.s32.totalorder %s17, 1
    %p77 = por %p75, %p76
    %p78 = scmp.ne.s32.totalorder %s69, %s70
    %p79 = scmp.eq.s32.totalorder %s17, 0
    %p80 = por %p78, %p79
    %p81 = scmp.ne.s32.totalorder %s69, %s70
    %p82 = scmp.eq.s32.totalorder %s18, 1
    %p83 = por %p81, %p82
    %p85 = scmp.ne.s32.totalorder %s70, %s84
    %p86 = scmp.eq.s32.totalorder %s18, 0
    %p87 = por %p85, %p86
    %s89 = sadd.s32 %s88, 1
    %p92 = scmp.eq.s32.totalorder %s12, 1
    %p93 = scmp.ne.s32.totalorder %s88, %s90
    %p94 = scmp.eq.s32.totalorder %s12, 0
    %p95 = por %p93, %p94
    %p96 = scmp.ne.s32.totalorder %s88, %s90
    %p97 = scmp.eq.s32.totalorder %s17, 1
    %p98 = por %p96, %p97
    %p99 = scmp.ne.s32.totalorder %s90, %s91
    %p100 = scmp.eq.s32.totalorder %s17, 0
    %p101 = por %p99, %p100
    %p102 = scmp.ne.s32.totalorder %s90, %s91
    %p103 = scmp.eq.s32.totalorder %s18, 1
    %p104 = por %p102, %p103
    %p106 = scmp.ne.s32.totalorder %s91, %s105
    %p107 = scmp.eq.s32.totalorder %s18, 0
    %p108 = por %p106, %p107
    %s109 = ssub.s32 %s12, %s19
    %p110 = scmp.eq.s32.totalorder %s109, 0
    %s112 = sadd.s32 %s111, 1
    %s113 = scalar_select %p110, %s111, %s112
    %p116 = pneg %p110
    %p117 = scmp.eq.s32.totalorder %s12, 1
    %p118 = por %p116, %p117
    %p119 = scmp.ne.s32.totalorder %s111, %s114
    %p120 = scmp.eq.s32.totalorder %s12, 0
    %p121 = por %p119, %p120
    %p122 = scmp.ne.s32.totalorder %s111, %s114
    %p123 = scmp.eq.s32.totalorder %s17, 1
    %p124 = por %p122, %p123
    %p125 = scmp.ne.s32.totalorder %s114, %s115
    %p126 = scmp.eq.s32.totalorder %s17, 0
    %p127 = por %p125, %p126
    %p128 = scmp.ne.s32.totalorder %s114, %s115
    %p129 = scmp.eq.s32.totalorder %s18, 1
    %p130 = por %p128, %p129
    %p132 = scmp.ne.s32.totalorder %s115, %s131
    %p133 = scmp.eq.s32.totalorder %s18, 0
    %p134 = por %p132, %p133
    %s135 = ssub.s32 %s12, %s19
    %p136 = scmp.eq.s32.totalorder %s135, 0
    %s138 = sadd.s32 %s137, 1
    %s139 = scalar_select %p136, %s137, %s138
    %p142 = pneg %p136
    %p143 = scmp.eq.s32.totalorder %s12, 1
    %p144 = por %p142, %p143
    %p145 = scmp.ne.s32.totalorder %s137, %s140
    %p146 = scmp.eq.s32.totalorder %s12, 0
    %p147 = por %p145, %p146
    %p148 = scmp.ne.s32.totalorder %s137, %s140
    %p149 = scmp.eq.s32.totalorder %s17, 1
    %p150 = por %p148, %p149
    %p151 = scmp.ne.s32.totalorder %s140, %s141
    %p152 = scmp.eq.s32.totalorder %s17, 0
    %p153 = por %p151, %p152
    %p154 = scmp.ne.s32.totalorder %s140, %s141
    %p155 = scmp.eq.s32.totalorder %s18, 1
    %p156 = por %p154, %p155
    %p158 = scmp.ne.s32.totalorder %s141, %s157
    %p159 = scmp.eq.s32.totalorder %s18, 0
    %p160 = por %p158, %p159
    %p161 = scmp.le.s32.totalorder 1, %s12
    %p162 = scmp.lt.s32.totalorder %s12, 3
    %p163 = pnand %p161, %p162
    %p164 = pneg %p163
    // Predicated region
    $region9: #{residual_block.4} parent=5 // pred_check
      _
    $region10: #{residual_block.4} parent=5 // pred_check_branch
      %166 = sbr.rel (%p163) target = $region12
    $region11: #{residual_block.4} parent=5 // pred_region
      %s167 = ssub.s32 %s12, 1
      // Predicated region
      $region13: #{residual_block.4} parent=11 // pred_check
        %p168 = pneg %p59
      $region14: #{residual_block.4} parent=11 // pred_check_branch
        %170 = sbr.rel (%p168) target = $region16
      $region15: #{residual_block.4} parent=11 // pred_region
        _
      $region16: #{residual_block.4} parent=11 // pred_fallthru
        _
      // Predicated region
      $region17: #{residual_block.4} parent=11 // pred_check
        %p171 = pneg %p80
      $region18: #{residual_block.4} parent=11 // pred_check_branch
        %173 = sbr.rel (%p171) target = $region20
      $region19: #{residual_block.4} parent=11 // pred_region
        _
      $region20: #{residual_block.4} parent=11 // pred_fallthru
        _
      // Predicated region
      $region21: #{residual_block.4} parent=11 // pred_check
        %p174 = pneg %p101
      $region22: #{residual_block.4} parent=11 // pred_check_branch
        %176 = sbr.rel (%p174) target = $region24
      $region23: #{residual_block.4} parent=11 // pred_region
        _
      $region24: #{residual_block.4} parent=11 // pred_fallthru
        _
    $region12: #{residual_block.4} parent=5 // pred_fallthru
      _
    %p177 = scmp.lt.s32.totalorder %s12, 2
    // Predicated region
    $region25: #{residual_block.4} parent=5 // pred_check
      %p178 = pneg %p177
    $region26: #{residual_block.4} parent=5 // pred_check_branch
      %180 = sbr.rel (%p178) target = $region28
    $region27: #{residual_block.4} parent=5 // pred_region
      // Predicated region
      $region29: #{residual_block.4} parent=27 // pred_check
        %p181 = pneg %p32
      $region30: #{residual_block.4} parent=27 // pred_check_branch
        %183 = sbr.rel (%p181) target = $region32
      $region31: #{residual_block.4} parent=27 // pred_region
        %p184 = scmp.lt.s32.totalorder %s12, 1
        %s185 = scalar_select %p184, %s12, 1
        %s186 = smul.addr %s185, 32
        %s187 = smul.addr %s186, 8
        %s188 = scalar_lea.vmem %s0, %s187
      $region32: #{residual_block.4} parent=27 // pred_fallthru
        _
    $region28: #{residual_block.4} parent=5 // pred_fallthru
      _
    %p189 = scmp.le.s32.totalorder 1, %s12
    %p190 = scmp.lt.s32.totalorder %s12, 3
    %p191 = pnand %p189, %p190
    %p192 = pneg %p191
    // Predicated region
    $region33: #{residual_block.4} parent=5 // pred_check
      _
    $region34: #{residual_block.4} parent=5 // pred_check_branch
      %194 = sbr.rel (%p191) target = $region36
    $region35: #{residual_block.4} parent=5 // pred_region
      %s195 = ssub.s32 %s12, 1
      %p196 = scmp.lt.s32.totalorder %s17, 1
      %s197 = scalar_select %p196, %s17, 1
      %s198 = smul.addr %s197, 32
      %s199 = smul.addr %s198, 8
      %s200 = scalar_lea.vmem %s0, %s199
      %p201 = pneg %p38
      %p202 = pneg %p35
      %p203 = pneg %p59
      %p204 = pneg %p56
      %p205 = pneg %p80
      %p206 = pneg %p77
      %p207 = pneg %p101
      %p208 = pneg %p98
      %p209 = pneg %p127
      %p210 = pneg %p124
      %p211 = scmp.lt.s32.totalorder %s17, 1
      %s212 = scalar_select %p211, %s17, 1
      %s213 = smul.addr %s212, 32
      %s214 = smul.addr %s213, 8
      %s215 = scalar_lea.vmem %s4, %s214
      %p216 = pneg %p153
      %p217 = pneg %p150
      %p218 = scmp.lt.s32.totalorder %s17, 1
      %s219 = scalar_select %p218, %s17, 1
      %s220 = smul.addr %s219, 2
      %s221 = scalar_lea.vmem %s5, %s220
      %p222 = scmp.lt.s32.totalorder %s17, 1
      %s223 = scalar_select %p222, %s17, 1
      %s224 = smul.addr %s223, 32
      %s225 = smul.addr %s224, 8
      %s226 = scalar_lea.vmem %s0, %s225
      %p227 = scmp.lt.s32.totalorder %s17, 1
      %s228 = scalar_select %p227, %s17, 1
      %s229 = smul.addr %s228, 32
      %s230 = smul.addr %s229, 8
      %s231 = scalar_lea.vmem %s4, %s230
      %p232 = scmp.lt.s32.totalorder %s17, 1
      %s233 = scalar_select %p232, %s17, 1
      %s234 = smul.addr %s233, 2
      %s235 = scalar_lea.vmem %s5, %s234
      %v237 = vld [vmem:[%s1] sm:$0x1]
      %v238 = vld [vmem:[%s2] sm:$0x1]
      %v239 = vld [vmem:[%s226] sm:$0xff]
      %v240 = vld [vmem:[%s226 + $0x8] sm:$0xff]
      %v241 = vld [vmem:[%s226 + $0x10] sm:$0xff]
      %v242 = vld [vmem:[%s226 + $0x18] sm:$0xff]
      %v243 = vld [vmem:[%s226 + $0x20] sm:$0xff]
      %v244 = vld [vmem:[%s226 + $0x28] sm:$0xff]
      %v245 = vld [vmem:[%s226 + $0x30] sm:$0xff]
      %v246 = vld [vmem:[%s226 + $0x38] sm:$0xff]
      %v247 = vld [vmem:[%s226 + $0x40] sm:$0xff]
      %v248 = vld [vmem:[%s226 + $0x48] sm:$0xff]
      %v249 = vld [vmem:[%s226 + $0x50] sm:$0xff]
      %v250 = vld [vmem:[%s226 + $0x58] sm:$0xff]
      %v251 = vld [vmem:[%s226 + $0x60] sm:$0xff]
      %v252 = vld [vmem:[%s226 + $0x68] sm:$0xff]
      %v253 = vld [vmem:[%s226 + $0x70] sm:$0xff]
      %v254 = vld [vmem:[%s226 + $0x78] sm:$0xff]
      %v255 = vld [vmem:[%s226 + $0x80] sm:$0xff]
      %v256 = vld [vmem:[%s226 + $0x88] sm:$0xff]
      %v257 = vld [vmem:[%s226 + $0x90] sm:$0xff]
      %v258 = vld [vmem:[%s226 + $0x98] sm:$0xff]
      %v259 = vld [vmem:[%s226 + $0xa0] sm:$0xff]
      %v260 = vld [vmem:[%s226 + $0xa8] sm:$0xff]
      %v261 = vld [vmem:[%s226 + $0xb0] sm:$0xff]
      %v262 = vld [vmem:[%s226 + $0xb8] sm:$0xff]
      %v263 = vld [vmem:[%s226 + $0xc0] sm:$0xff]
      %v264 = vld [vmem:[%s226 + $0xc8] sm:$0xff]
      %v265 = vld [vmem:[%s226 + $0xd0] sm:$0xff]
      %v266 = vld [vmem:[%s226 + $0xd8] sm:$0xff]
      %v267 = vld [vmem:[%s226 + $0xe0] sm:$0xff]
      %v268 = vld [vmem:[%s226 + $0xe8] sm:$0xff]
      %v269 = vld [vmem:[%s226 + $0xf0] sm:$0xff]
      %v270 = vld [vmem:[%s226 + $0xf8] sm:$0xff]
      %v272 = vlaneseq
      %v273 = vshrl.u32 %v272, 7
      %v274 = vsub.s32 0, %v273
      %v275 = vrot.slane %v237, %v274
      %v277 = vmul.f32 %v239, %v275
      %v278 = vmul.f32 %v240, %v275
      %v279 = vmul.f32 %v241, %v275
      %v280 = vmul.f32 %v242, %v275
      %v281 = vmul.f32 %v243, %v275
      %v282 = vmul.f32 %v244, %v275
      %v283 = vmul.f32 %v245, %v275
      %v284 = vmul.f32 %v246, %v275
      %v285 = vmul.f32 %v247, %v275
      %v286 = vmul.f32 %v248, %v275
      %v287 = vmul.f32 %v249, %v275
      %v288 = vmul.f32 %v250, %v275
      %v289 = vmul.f32 %v251, %v275
      %v290 = vmul.f32 %v252, %v275
      %v291 = vmul.f32 %v253, %v275
      %v292 = vmul.f32 %v254, %v275
      %v293 = vmul.f32 %v255, %v275
      %v294 = vmul.f32 %v256, %v275
      %v295 = vmul.f32 %v257, %v275
      %v296 = vmul.f32 %v258, %v275
      %v297 = vmul.f32 %v259, %v275
      %v298 = vmul.f32 %v260, %v275
      %v299 = vmul.f32 %v261, %v275
      %v300 = vmul.f32 %v262, %v275
      %v301 = vmul.f32 %v263, %v275
      %v302 = vmul.f32 %v264, %v275
      %v303 = vmul.f32 %v265, %v275
      %v304 = vmul.f32 %v266, %v275
      %v305 = vmul.f32 %v267, %v275
      %v306 = vmul.f32 %v268, %v275
      %v307 = vmul.f32 %v269, %v275
      %v308 = vmul.f32 %v270, %v275
      %v310 = vlaneseq
      %v311 = vshrl.u32 %v310, 7
      %v312 = vsub.s32 0, %v311
      %v313 = vrot.slane %v238, %v312
      %v315 = vadd.f32 %v277, %v313
      %v316 = vadd.f32 %v278, %v313
      %v317 = vadd.f32 %v279, %v313
      %v318 = vadd.f32 %v280, %v313
      %v319 = vadd.f32 %v281, %v313
      %v320 = vadd.f32 %v282, %v313
      %v321 = vadd.f32 %v283, %v313
      %v322 = vadd.f32 %v284, %v313
      %v323 = vadd.f32 %v285, %v313
      %v324 = vadd.f32 %v286, %v313
      %v325 = vadd.f32 %v287, %v313
      %v326 = vadd.f32 %v288, %v313
      %v327 = vadd.f32 %v289, %v313
      %v328 = vadd.f32 %v290, %v313
      %v329 = vadd.f32 %v291, %v313
      %v330 = vadd.f32 %v292, %v313
      %v331 = vadd.f32 %v293, %v313
      %v332 = vadd.f32 %v294, %v313
      %v333 = vadd.f32 %v295, %v313
      %v334 = vadd.f32 %v296, %v313
      %v335 = vadd.f32 %v297, %v313
      %v336 = vadd.f32 %v298, %v313
      %v337 = vadd.f32 %v299, %v313
      %v338 = vadd.f32 %v300, %v313
      %v339 = vadd.f32 %v301, %v313
      %v340 = vadd.f32 %v302, %v313
      %v341 = vadd.f32 %v303, %v313
      %v342 = vadd.f32 %v304, %v313
      %v343 = vadd.f32 %v305, %v313
      %v344 = vadd.f32 %v306, %v313
      %v345 = vadd.f32 %v307, %v313
      %v346 = vadd.f32 %v308, %v313
      %v347 = vmax.f32 %v315, 0.0
      %v348 = vmax.f32 %v316, 0.0
      %v349 = vmax.f32 %v317, 0.0
      %v350 = vmax.f32 %v318, 0.0
      %v351 = vmax.f32 %v319, 0.0
      %v352 = vmax.f32 %v320, 0.0
      %v353 = vmax.f32 %v321, 0.0
      %v354 = vmax.f32 %v322, 0.0
      %v355 = vmax.f32 %v323, 0.0
      %v356 = vmax.f32 %v324, 0.0
      %v357 = vmax.f32 %v325, 0.0
      %v358 = vmax.f32 %v326, 0.0
      %v359 = vmax.f32 %v327, 0.0
      %v360 = vmax.f32 %v328, 0.0
      %v361 = vmax.f32 %v329, 0.0
      %v362 = vmax.f32 %v330, 0.0
      %v363 = vmax.f32 %v331, 0.0
      %v364 = vmax.f32 %v332, 0.0
      %v365 = vmax.f32 %v333, 0.0
      %v366 = vmax.f32 %v334, 0.0
      %v367 = vmax.f32 %v335, 0.0
      %v368 = vmax.f32 %v336, 0.0
      %v369 = vmax.f32 %v337, 0.0
      %v370 = vmax.f32 %v338, 0.0
      %v371 = vmax.f32 %v339, 0.0
      %v372 = vmax.f32 %v340, 0.0
      %v373 = vmax.f32 %v341, 0.0
      %v374 = vmax.f32 %v342, 0.0
      %v375 = vmax.f32 %v343, 0.0
      %v376 = vmax.f32 %v344, 0.0
      %v377 = vmax.f32 %v345, 0.0
      %v378 = vmax.f32 %v346, 0.0
      %v379 = vpack.c.bf16 %v348, %v347
      %v380 = vpack.c.bf16 %v350, %v349
      %v381 = vpack.c.bf16 %v352, %v351
      %v382 = vpack.c.bf16 %v354, %v353
      %v383 = vpack.c.bf16 %v356, %v355
      %v384 = vpack.c.bf16 %v358, %v357
      %v385 = vpack.c.bf16 %v360, %v359
      %v386 = vpack.c.bf16 %v362, %v361
      %v387 = vpack.c.bf16 %v364, %v363
      %v388 = vpack.c.bf16 %v366, %v365
      %v389 = vpack.c.bf16 %v368, %v367
      %v390 = vpack.c.bf16 %v370, %v369
      %v391 = vpack.c.bf16 %v372, %v371
      %v392 = vpack.c.bf16 %v374, %v373
      %v393 = vpack.c.bf16 %v376, %v375
      %v394 = vpack.c.bf16 %v378, %v377
      %395 = vst [vmem:[#allocation2] sm:$0xff] 0
      %396 = vst [vmem:[#allocation2 + $0x8] sm:$0xf] 0
      %397 = vst [vmem:[#allocation2 + $0xc] sm:$0xff] 0
      %398 = vst [vmem:[#allocation2 + $0x14] sm:$0xf] 0
      %s399 = scalar_lea.vmem [#allocation2], 408
      %400 = vst [vmem:[%s399] sm:$0xff] 0
      %401 = vst [vmem:[%s399 + $0x8] sm:$0xf] 0
      %402 = vst [vmem:[%s399 + $0xc] sm:$0xff] 0
      %403 = vst [vmem:[%s399 + $0x14] sm:$0xf] 0
      %v420 = vunpack.c.l.b16 %v379
      %v421 = vunpack.c.h.b16 %v379
      %v422 = vunpack.c.l.b16 %v380
      %v423 = vunpack.c.h.b16 %v380
      %v424 = vunpack.c.l.b16 %v381
      %v425 = vunpack.c.h.b16 %v381
      %v426 = vunpack.c.l.b16 %v382
      %v427 = vunpack.c.h.b16 %v382
      %v428 = vunpack.c.l.b16 %v383
      %v429 = vunpack.c.h.b16 %v383
      %v430 = vunpack.c.l.b16 %v384
      %v431 = vunpack.c.h.b16 %v384
      %v432 = vunpack.c.l.b16 %v385
      %v433 = vunpack.c.h.b16 %v385
      %v434 = vunpack.c.l.b16 %v386
      %v435 = vunpack.c.h.b16 %v386
      %v436 = vunpack.c.l.b16 %v387
      %v437 = vunpack.c.h.b16 %v387
      %v438 = vunpack.c.l.b16 %v388
      %v439 = vunpack.c.h.b16 %v388
      %v440 = vunpack.c.l.b16 %v389
      %v441 = vunpack.c.h.b16 %v389
      %v442 = vunpack.c.l.b16 %v390
      %v443 = vunpack.c.h.b16 %v390
      %v444 = vunpack.c.l.b16 %v391
      %v445 = vunpack.c.h.b16 %v391
      %v446 = vunpack.c.l.b16 %v392
      %v447 = vunpack.c.h.b16 %v392
      %v448 = vunpack.c.l.b16 %v393
      %v449 = vunpack.c.h.b16 %v393
      %v450 = vunpack.c.l.b16 %v394
      %v451 = vunpack.c.h.b16 %v394
      %v452 = vpack.c.b16 %v420, %v420
      %v453 = vpack.c.b16 %v421, %v421
      %v454 = vpack.c.b16 %v422, %v422
      %v455 = vpack.c.b16 %v423, %v423
      %v456 = vpack.c.b16 %v424, %v424
      %v457 = vpack.c.b16 %v425, %v425
      %v458 = vpack.c.b16 %v426, %v426
      %v459 = vpack.c.b16 %v427, %v427
      %v460 = vpack.c.b16 %v428, %v428
      %v461 = vpack.c.b16 %v429, %v429
      %v462 = vpack.c.b16 %v430, %v430
      %v463 = vpack.c.b16 %v431, %v431
      %v464 = vpack.c.b16 %v432, %v432
      %v465 = vpack.c.b16 %v433, %v433
      %v466 = vpack.c.b16 %v434, %v434
      %v467 = vpack.c.b16 %v435, %v435
      %v468 = vpack.c.b16 %v436, %v436
      %v469 = vpack.c.b16 %v437, %v437
      %v470 = vpack.c.b16 %v438, %v438
      %v471 = vpack.c.b16 %v439, %v439
      %v472 = vpack.c.b16 %v440, %v440
      %v473 = vpack.c.b16 %v441, %v441
      %v474 = vpack.c.b16 %v442, %v442
      %v475 = vpack.c.b16 %v443, %v443
      %v476 = vpack.c.b16 %v444, %v444
      %v477 = vpack.c.b16 %v445, %v445
      %v478 = vpack.c.b16 %v446, %v446
      %v479 = vpack.c.b16 %v447, %v447
      %v480 = vpack.c.b16 %v448, %v448
      %v481 = vpack.c.b16 %v449, %v449
      %v482 = vpack.c.b16 %v450, %v450
      %v483 = vpack.c.b16 %v451, %v451
      %s516 = scalar_lea.vmem [#allocation2], 24
      %517 = vst [vmem:[%s516 + $0x4] sm:$0xf] %v452
      %518 = vst [vmem:[%s516 + $0x10] sm:$0xf] %v453
      %519 = vst [vmem:[%s516 + $0x1c] sm:$0xf] %v454
      %520 = vst [vmem:[%s516 + $0x28] sm:$0xf] %v455
      %521 = vst [vmem:[%s516 + $0x34] sm:$0xf] %v456
      %522 = vst [vmem:[%s516 + $0x40] sm:$0xf] %v457
      %523 = vst [vmem:[%s516 + $0x4c] sm:$0xf] %v458
      %524 = vst [vmem:[%s516 + $0x58] sm:$0xf] %v459
      %525 = vst [vmem:[%s516 + $0x64] sm:$0xf] %v460
      %526 = vst [vmem:[%s516 + $0x70] sm:$0xf] %v461
      %527 = vst [vmem:[%s516 + $0x7c] sm:$0xf] %v462
      %528 = vst [vmem:[%s516 + $0x88] sm:$0xf] %v463
      %529 = vst [vmem:[%s516 + $0x94] sm:$0xf] %v464
      %530 = vst [vmem:[%s516 + $0xa0] sm:$0xf] %v465
      %531 = vst [vmem:[%s516 + $0xac] sm:$0xf] %v466
      %532 = vst [vmem:[%s516 + $0xb8] sm:$0xf] %v467
      %533 = vst [vmem:[%s516 + $0xc4] sm:$0xf] %v468
      %534 = vst [vmem:[%s516 + $0xd0] sm:$0xf] %v469
      %535 = vst [vmem:[%s516 + $0xdc] sm:$0xf] %v470
      %536 = vst [vmem:[%s516 + $0xe8] sm:$0xf] %v471
      %537 = vst [vmem:[%s516 + $0xf4] sm:$0xf] %v472
      %538 = vst [vmem:[%s516 + $0x100] sm:$0xf] %v473
      %539 = vst [vmem:[%s516 + $0x10c] sm:$0xf] %v474
      %540 = vst [vmem:[%s516 + $0x118] sm:$0xf] %v475
      %541 = vst [vmem:[%s516 + $0x124] sm:$0xf] %v476
      %542 = vst [vmem:[%s516 + $0x130] sm:$0xf] %v477
      %543 = vst [vmem:[%s516 + $0x13c] sm:$0xf] %v478
      %544 = vst [vmem:[%s516 + $0x148] sm:$0xf] %v479
      %545 = vst [vmem:[%s516 + $0x154] sm:$0xf] %v480
      %546 = vst [vmem:[%s516 + $0x160] sm:$0xf] %v481
      %547 = vst [vmem:[%s516 + $0x16c] sm:$0xf] %v482
      %548 = vst [vmem:[%s516 + $0x178] sm:$0xf] %v483
      %vm549 = vsmask.f32 256
      %vm550 = vsmask.f32 4368
      %vm551 = vmor %vm549, %vm550
      %v553 = vshrl.u32 %v452, 16
      %v555 = vrot.slane %v553, 7
      %v556 = vshll.u32 %v452, 16
      %v558 = vor.u32 %v555, %v556
      %v559 = vrot.slane %v555, 4
      %v561 = vshrl.u32 %v453, 16
      %v563 = vrot.slane %v561, 7
      %v564 = vshll.u32 %v453, 16
      %v566 = vor.u32 %v563, %v564
      %v567 = vsel %vm551, %v559, %v566
      %v569 = vshrl.u32 %v454, 16
      %v571 = vrot.slane %v569, 7
      %v572 = vshll.u32 %v454, 16
      %v574 = vor.u32 %v571, %v572
      %v575 = vrot.slane %v571, 4
      %v577 = vshrl.u32 %v455, 16
      %v579 = vrot.slane %v577, 7
      %v580 = vshll.u32 %v455, 16
      %v582 = vor.u32 %v579, %v580
      %v583 = vsel %vm551, %v575, %v582
      %v585 = vshrl.u32 %v456, 16
      %v587 = vrot.slane %v585, 7
      %v588 = vshll.u32 %v456, 16
      %v590 = vor.u32 %v587, %v588
      %v591 = vrot.slane %v587, 4
      %v593 = vshrl.u32 %v457, 16
      %v595 = vrot.slane %v593, 7
      %v596 = vshll.u32 %v457, 16
      %v598 = vor.u32 %v595, %v596
      %v599 = vsel %vm551, %v591, %v598
      %v601 = vshrl.u32 %v458, 16
      %v603 = vrot.slane %v601, 7
      %v604 = vshll.u32 %v458, 16
      %v606 = vor.u32 %v603, %v604
      %v607 = vrot.slane %v603, 4
      %v609 = vshrl.u32 %v459, 16
      %v611 = vrot.slane %v609, 7
      %v612 = vshll.u32 %v459, 16
      %v614 = vor.u32 %v611, %v612
      %v615 = vsel %vm551, %v607, %v614
      %v617 = vshrl.u32 %v460, 16
      %v619 = vrot.slane %v617, 7
      %v620 = vshll.u32 %v460, 16
      %v622 = vor.u32 %v619, %v620
      %v623 = vrot.slane %v619, 4
      %v625 = vshrl.u32 %v461, 16
      %v627 = vrot.slane %v625, 7
      %v628 = vshll.u32 %v461, 16
      %v630 = vor.u32 %v627, %v628
      %v631 = vsel %vm551, %v623, %v630
      %v633 = vshrl.u32 %v462, 16
      %v635 = vrot.slane %v633, 7
      %v636 = vshll.u32 %v462, 16
      %v638 = vor.u32 %v635, %v636
      %v639 = vrot.slane %v635, 4
      %v641 = vshrl.u32 %v463, 16
      %v643 = vrot.slane %v641, 7
      %v644 = vshll.u32 %v463, 16
      %v646 = vor.u32 %v643, %v644
      %v647 = vsel %vm551, %v639, %v646
      %v649 = vshrl.u32 %v464, 16
      %v651 = vrot.slane %v649, 7
      %v652 = vshll.u32 %v464, 16
      %v654 = vor.u32 %v651, %v652
      %v655 = vrot.slane %v651, 4
      %v657 = vshrl.u32 %v465, 16
      %v659 = vrot.slane %v657, 7
      %v660 = vshll.u32 %v465, 16
      %v662 = vor.u32 %v659, %v660
      %v663 = vsel %vm551, %v655, %v662
      %v665 = vshrl.u32 %v466, 16
      %v667 = vrot.slane %v665, 7
      %v668 = vshll.u32 %v466, 16
      %v670 = vor.u32 %v667, %v668
      %v671 = vrot.slane %v667, 4
      %v673 = vshrl.u32 %v467, 16
      %v675 = vrot.slane %v673, 7
      %v676 = vshll.u32 %v467, 16
      %v678 = vor.u32 %v675, %v676
      %v679 = vsel %vm551, %v671, %v678
      %v681 = vshrl.u32 %v468, 16
      %v683 = vrot.slane %v681, 7
      %v684 = vshll.u32 %v468, 16
      %v686 = vor.u32 %v683, %v684
      %v687 = vrot.slane %v683, 4
      %v689 = vshrl.u32 %v469, 16
      %v691 = vrot.slane %v689, 7
      %v692 = vshll.u32 %v469, 16
      %v694 = vor.u32 %v691, %v692
      %v695 = vsel %vm551, %v687, %v694
      %v697 = vshrl.u32 %v470, 16
      %v699 = vrot.slane %v697, 7
      %v700 = vshll.u32 %v470, 16
      %v702 = vor.u32 %v699, %v700
      %v703 = vrot.slane %v699, 4
      %v705 = vshrl.u32 %v471, 16
      %v707 = vrot.slane %v705, 7
      %v708 = vshll.u32 %v471, 16
      %v710 = vor.u32 %v707, %v708
      %v711 = vsel %vm551, %v703, %v710
      %v713 = vshrl.u32 %v472, 16
      %v715 = vrot.slane %v713, 7
      %v716 = vshll.u32 %v472, 16
      %v718 = vor.u32 %v715, %v716
      %v719 = vrot.slane %v715, 4
      %v721 = vshrl.u32 %v473, 16
      %v723 = vrot.slane %v721, 7
      %v724 = vshll.u32 %v473, 16
      %v726 = vor.u32 %v723, %v724
      %v727 = vsel %vm551, %v719, %v726
      %v729 = vshrl.u32 %v474, 16
      %v731 = vrot.slane %v729, 7
      %v732 = vshll.u32 %v474, 16
      %v734 = vor.u32 %v731, %v732
      %v735 = vrot.slane %v731, 4
      %v737 = vshrl.u32 %v475, 16
      %v739 = vrot.slane %v737, 7
      %v740 = vshll.u32 %v475, 16
      %v742 = vor.u32 %v739, %v740
      %v743 = vsel %vm551, %v735, %v742
      %v745 = vshrl.u32 %v476, 16
      %v747 = vrot.slane %v745, 7
      %v748 = vshll.u32 %v476, 16
      %v750 = vor.u32 %v747, %v748
      %v751 = vrot.slane %v747, 4
      %v753 = vshrl.u32 %v477, 16
      %v755 = vrot.slane %v753, 7
      %v756 = vshll.u32 %v477, 16
      %v758 = vor.u32 %v755, %v756
      %v759 = vsel %vm551, %v751, %v758
      %v761 = vshrl.u32 %v478, 16
      %v763 = vrot.slane %v761, 7
      %v764 = vshll.u32 %v478, 16
      %v766 = vor.u32 %v763, %v764
      %v767 = vrot.slane %v763, 4
      %v769 = vshrl.u32 %v479, 16
      %v771 = vrot.slane %v769, 7
      %v772 = vshll.u32 %v479, 16
      %v774 = vor.u32 %v771, %v772
      %v775 = vsel %vm551, %v767, %v774
      %v777 = vshrl.u32 %v480, 16
      %v779 = vrot.slane %v777, 7
      %v780 = vshll.u32 %v480, 16
      %v782 = vor.u32 %v779, %v780
      %v783 = vrot.slane %v779, 4
      %v785 = vshrl.u32 %v481, 16
      %v787 = vrot.slane %v785, 7
      %v788 = vshll.u32 %v481, 16
      %v790 = vor.u32 %v787, %v788
      %v791 = vsel %vm551, %v783, %v790
      %v793 = vshrl.u32 %v482, 16
      %v795 = vrot.slane %v793, 7
      %v796 = vshll.u32 %v482, 16
      %v798 = vor.u32 %v795, %v796
      %v799 = vrot.slane %v795, 4
      %v801 = vshrl.u32 %v483, 16
      %v803 = vrot.slane %v801, 7
      %v804 = vshll.u32 %v483, 16
      %v806 = vor.u32 %v803, %v804
      %v807 = vsel %vm551, %v799, %v806
      %vm840 = vcmask 1043456
      %vm841 = vsmask.f32 7938
      %vm842 = vmand %vm840, %vm841
      %v843 = vld [vmem:[%s516] sm:$0xf]
      %v844 = vsel %vm842, %v558, %v843
      %845 = vst [vmem:[%s516] sm:$0xf] %v844
      %846 = vst [vmem:[%s516 + $0xc] sm:$0xf] %v567
      %v847 = vld [vmem:[%s516 + $0x18] sm:$0xf]
      %v848 = vsel %vm842, %v574, %v847
      %849 = vst [vmem:[%s516 + $0x18] sm:$0xf] %v848
      %850 = vst [vmem:[%s516 + $0x24] sm:$0xf] %v583
      %v851 = vld [vmem:[%s516 + $0x30] sm:$0xf]
      %v852 = vsel %vm842, %v590, %v851
      %853 = vst [vmem:[%s516 + $0x30] sm:$0xf] %v852
      %854 = vst [vmem:[%s516 + $0x3c] sm:$0xf] %v599
      %v855 = vld [vmem:[%s516 + $0x48] sm:$0xf]
      %v856 = vsel %vm842, %v606, %v855
      %857 = vst [vmem:[%s516 + $0x48] sm:$0xf] %v856
      %858 = vst [vmem:[%s516 + $0x54] sm:$0xf] %v615
      %v859 = vld [vmem:[%s516 + $0x60] sm:$0xf]
      %v860 = vsel %vm842, %v622, %v859
      %861 = vst [vmem:[%s516 + $0x60] sm:$0xf] %v860
      %862 = vst [vmem:[%s516 + $0x6c] sm:$0xf] %v631
      %v863 = vld [vmem:[%s516 + $0x78] sm:$0xf]
      %v864 = vsel %vm842, %v638, %v863
      %865 = vst [vmem:[%s516 + $0x78] sm:$0xf] %v864
      %866 = vst [vmem:[%s516 + $0x84] sm:$0xf] %v647
      %v867 = vld [vmem:[%s516 + $0x90] sm:$0xf]
      %v868 = vsel %vm842, %v654, %v867
      %869 = vst [vmem:[%s516 + $0x90] sm:$0xf] %v868
      %870 = vst [vmem:[%s516 + $0x9c] sm:$0xf] %v663
      %v871 = vld [vmem:[%s516 + $0xa8] sm:$0xf]
      %v872 = vsel %vm842, %v670, %v871
      %873 = vst [vmem:[%s516 + $0xa8] sm:$0xf] %v872
      %874 = vst [vmem:[%s516 + $0xb4] sm:$0xf] %v679
      %v875 = vld [vmem:[%s516 + $0xc0] sm:$0xf]
      %v876 = vsel %vm842, %v686, %v875
      %877 = vst [vmem:[%s516 + $0xc0] sm:$0xf] %v876
      %878 = vst [vmem:[%s516 + $0xcc] sm:$0xf] %v695
      %v879 = vld [vmem:[%s516 + $0xd8] sm:$0xf]
      %v880 = vsel %vm842, %v702, %v879
      %881 = vst [vmem:[%s516 + $0xd8] sm:$0xf] %v880
      %882 = vst [vmem:[%s516 + $0xe4] sm:$0xf] %v711
      %v883 = vld [vmem:[%s516 + $0xf0] sm:$0xf]
      %v884 = vsel %vm842, %v718, %v883
      %885 = vst [vmem:[%s516 + $0xf0] sm:$0xf] %v884
      %886 = vst [vmem:[%s516 + $0xfc] sm:$0xf] %v727
      %v887 = vld [vmem:[%s516 + $0x108] sm:$0xf]
      %v888 = vsel %vm842, %v734, %v887
      %889 = vst [vmem:[%s516 + $0x108] sm:$0xf] %v888
      %890 = vst [vmem:[%s516 + $0x114] sm:$0xf] %v743
      %v891 = vld [vmem:[%s516 + $0x120] sm:$0xf]
      %v892 = vsel %vm842, %v750, %v891
      %893 = vst [vmem:[%s516 + $0x120] sm:$0xf] %v892
      %894 = vst [vmem:[%s516 + $0x12c] sm:$0xf] %v759
      %v895 = vld [vmem:[%s516 + $0x138] sm:$0xf]
      %v896 = vsel %vm842, %v766, %v895
      %897 = vst [vmem:[%s516 + $0x138] sm:$0xf] %v896
      %898 = vst [vmem:[%s516 + $0x144] sm:$0xf] %v775
      %v899 = vld [vmem:[%s516 + $0x150] sm:$0xf]
      %v900 = vsel %vm842, %v782, %v899
      %901 = vst [vmem:[%s516 + $0x150] sm:$0xf] %v900
      %902 = vst [vmem:[%s516 + $0x15c] sm:$0xf] %v791
      %v903 = vld [vmem:[%s516 + $0x168] sm:$0xf]
      %v904 = vsel %vm842, %v798, %v903
      %905 = vst [vmem:[%s516 + $0x168] sm:$0xf] %v904
      %906 = vst [vmem:[%s516 + $0x174] sm:$0xf] %v807
      %vm907 = vcmask 1040384
      %vm908 = vmand %vm907, %vm549
      %v909 = vld [vmem:[%s516] sm:$0x1]
      %v910 = vsel %vm908, 0, %v909
      %911 = vst [vmem:[%s516] sm:$0x1] %v910
      %v912 = vld [vmem:[%s516 + $0x18] sm:$0x1]
      %v913 = vsel %vm908, 0, %v912
      %914 = vst [vmem:[%s516 + $0x18] sm:$0x1] %v913
      %v915 = vld [vmem:[%s516 + $0x30] sm:$0x1]
      %v916 = vsel %vm908, 0, %v915
      %917 = vst [vmem:[%s516 + $0x30] sm:$0x1] %v916
      %v918 = vld [vmem:[%s516 + $0x48] sm:$0x1]
      %v919 = vsel %vm908, 0, %v918
      %920 = vst [vmem:[%s516 + $0x48] sm:$0x1] %v919
      %v921 = vld [vmem:[%s516 + $0x60] sm:$0x1]
      %v922 = vsel %vm908, 0, %v921
      %923 = vst [vmem:[%s516 + $0x60] sm:$0x1] %v922
      %v924 = vld [vmem:[%s516 + $0x78] sm:$0x1]
      %v925 = vsel %vm908, 0, %v924
      %926 = vst [vmem:[%s516 + $0x78] sm:$0x1] %v925
      %v927 = vld [vmem:[%s516 + $0x90] sm:$0x1]
      %v928 = vsel %vm908, 0, %v927
      %929 = vst [vmem:[%s516 + $0x90] sm:$0x1] %v928
      %v930 = vld [vmem:[%s516 + $0xa8] sm:$0x1]
      %v931 = vsel %vm908, 0, %v930
      %932 = vst [vmem:[%s516 + $0xa8] sm:$0x1] %v931
      %v933 = vld [vmem:[%s516 + $0xc0] sm:$0x1]
      %v934 = vsel %vm908, 0, %v933
      %935 = vst [vmem:[%s516 + $0xc0] sm:$0x1] %v934
      %v936 = vld [vmem:[%s516 + $0xd8] sm:$0x1]
      %v937 = vsel %vm908, 0, %v936
      %938 = vst [vmem:[%s516 + $0xd8] sm:$0x1] %v937
      %v939 = vld [vmem:[%s516 + $0xf0] sm:$0x1]
      %v940 = vsel %vm908, 0, %v939
      %941 = vst [vmem:[%s516 + $0xf0] sm:$0x1] %v940
      %v942 = vld [vmem:[%s516 + $0x108] sm:$0x1]
      %v943 = vsel %vm908, 0, %v942
      %944 = vst [vmem:[%s516 + $0x108] sm:$0x1] %v943
      %v945 = vld [vmem:[%s516 + $0x120] sm:$0x1]
      %v946 = vsel %vm908, 0, %v945
      %947 = vst [vmem:[%s516 + $0x120] sm:$0x1] %v946
      %v948 = vld [vmem:[%s516 + $0x138] sm:$0x1]
      %v949 = vsel %vm908, 0, %v948
      %950 = vst [vmem:[%s516 + $0x138] sm:$0x1] %v949
      %v951 = vld [vmem:[%s516 + $0x150] sm:$0x1]
      %v952 = vsel %vm908, 0, %v951
      %953 = vst [vmem:[%s516 + $0x150] sm:$0x1] %v952
      %v954 = vld [vmem:[%s516 + $0x168] sm:$0x1]
      %v955 = vsel %vm908, 0, %v954
      %956 = vst [vmem:[%s516 + $0x168] sm:$0x1] %v955
      %vm957 = vsmask.f32 3328
      %vm958 = vsmask.f32 7440
      %vm959 = vmor %vm957, %vm958
      %v960 = vrot.slane %v553, 4
      %v961 = vrot.slane %v556, 5
      %v962 = vor.u32 %v960, %v961
      %v963 = vrot.slane %v962, 4
      %v964 = vrot.slane %v564, 5
      %v965 = vsel %vm959, %v963, %v964
      %v966 = vrot.slane %v561, 4
      %v967 = vor.u32 %v966, %v964
      %v968 = vrot.slane %v967, 4
      %v969 = vrot.slane %v569, 4
      %v970 = vrot.slane %v572, 5
      %v971 = vor.u32 %v969, %v970
      %v972 = vrot.slane %v971, 4
      %v973 = vrot.slane %v580, 5
      %v974 = vsel %vm959, %v972, %v973
      %v975 = vrot.slane %v577, 4
      %v976 = vor.u32 %v975, %v973
      %v977 = vrot.slane %v976, 4
      %v978 = vrot.slane %v585, 4
      %v979 = vrot.slane %v588, 5
      %v980 = vor.u32 %v978, %v979
      %v981 = vrot.slane %v980, 4
      %v982 = vrot.slane %v596, 5
      %v983 = vsel %vm959, %v981, %v982
      %v984 = vrot.slane %v593, 4
      %v985 = vor.u32 %v984, %v982
      %v986 = vrot.slane %v985, 4
      %v987 = vrot.slane %v601, 4
      %v988 = vrot.slane %v604, 5
      %v989 = vor.u32 %v987, %v988
      %v990 = vrot.slane %v989, 4
      %v991 = vrot.slane %v612, 5
      %v992 = vsel %vm959, %v990, %v991
      %v993 = vrot.slane %v609, 4
      %v994 = vor.u32 %v993, %v991
      %v995 = vrot.slane %v994, 4
      %v996 = vrot.slane %v617, 4
      %v997 = vrot.slane %v620, 5
      %v998 = vor.u32 %v996, %v997
      %v999 = vrot.slane %v998, 4
      %v1000 = vrot.slane %v628, 5
      %v1001 = vsel %vm959, %v999, %v1000
      %v1002 = vrot.slane %v625, 4
      %v1003 = vor.u32 %v1002, %v1000
      %v1004 = vrot.slane %v1003, 4
      %v1005 = vrot.slane %v633, 4
      %v1006 = vrot.slane %v636, 5
      %v1007 = vor.u32 %v1005, %v1006
      %v1008 = vrot.slane %v1007, 4
      %v1009 = vrot.slane %v644, 5
      %v1010 = vsel %vm959, %v1008, %v1009
      %v1011 = vrot.slane %v641, 4
      %v1012 = vor.u32 %v1011, %v1009
      %v1013 = vrot.slane %v1012, 4
      %v1014 = vrot.slane %v649, 4
      %v1015 = vrot.slane %v652, 5
      %v1016 = vor.u32 %v1014, %v1015
      %v1017 = vrot.slane %v1016, 4
      %v1018 = vrot.slane %v660, 5
      %v1019 = vsel %vm959, %v1017, %v1018
      %v1020 = vrot.slane %v657, 4
      %v1021 = vor.u32 %v1020, %v1018
      %v1022 = vrot.slane %v1021, 4
      %v1023 = vrot.slane %v665, 4
      %v1024 = vrot.slane %v668, 5
      %v1025 = vor.u32 %v1023, %v1024
      %v1026 = vrot.slane %v1025, 4
      %v1027 = vrot.slane %v676, 5
      %v1028 = vsel %vm959, %v1026, %v1027
      %v1029 = vrot.slane %v673, 4
      %v1030 = vor.u32 %v1029, %v1027
      %v1031 = vrot.slane %v1030, 4
      %v1032 = vrot.slane %v681, 4
      %v1033 = vrot.slane %v684, 5
      %v1034 = vor.u32 %v1032, %v1033
      %v1035 = vrot.slane %v1034, 4
      %v1036 = vrot.slane %v692, 5
      %v1037 = vsel %vm959, %v1035, %v1036
      %v1038 = vrot.slane %v689, 4
      %v1039 = vor.u32 %v1038, %v1036
      %v1040 = vrot.slane %v1039, 4
      %v1041 = vrot.slane %v697, 4
      %v1042 = vrot.slane %v700, 5
      %v1043 = vor.u32 %v1041, %v1042
      %v1044 = vrot.slane %v1043, 4
      %v1045 = vrot.slane %v708, 5
      %v1046 = vsel %vm959, %v1044, %v1045
      %v1047 = vrot.slane %v705, 4
      %v1048 = vor.u32 %v1047, %v1045
      %v1049 = vrot.slane %v1048, 4
      %v1050 = vrot.slane %v713, 4
      %v1051 = vrot.slane %v716, 5
      %v1052 = vor.u32 %v1050, %v1051
      %v1053 = vrot.slane %v1052, 4
      %v1054 = vrot.slane %v724, 5
      %v1055 = vsel %vm959, %v1053, %v1054
      %v1056 = vrot.slane %v721, 4
      %v1057 = vor.u32 %v1056, %v1054
      %v1058 = vrot.slane %v1057, 4
      %v1059 = vrot.slane %v729, 4
      %v1060 = vrot.slane %v732, 5
      %v1061 = vor.u32 %v1059, %v1060
      %v1062 = vrot.slane %v1061, 4
      %v1063 = vrot.slane %v740, 5
      %v1064 = vsel %vm959, %v1062, %v1063
      %v1065 = vrot.slane %v737, 4
      %v1066 = vor.u32 %v1065, %v1063
      %v1067 = vrot.slane %v1066, 4
      %v1068 = vrot.slane %v745, 4
      %v1069 = vrot.slane %v748, 5
      %v1070 = vor.u32 %v1068, %v1069
      %v1071 = vrot.slane %v1070, 4
      %v1072 = vrot.slane %v756, 5
      %v1073 = vsel %vm959, %v1071, %v1072
      %v1074 = vrot.slane %v753, 4
      %v1075 = vor.u32 %v1074, %v1072
      %v1076 = vrot.slane %v1075, 4
      %v1077 = vrot.slane %v761, 4
      %v1078 = vrot.slane %v764, 5
      %v1079 = vor.u32 %v1077, %v1078
      %v1080 = vrot.slane %v1079, 4
      %v1081 = vrot.slane %v772, 5
      %v1082 = vsel %vm959, %v1080, %v1081
      %v1083 = vrot.slane %v769, 4
      %v1084 = vor.u32 %v1083, %v1081
      %v1085 = vrot.slane %v1084, 4
      %v1086 = vrot.slane %v777, 4
      %v1087 = vrot.slane %v780, 5
      %v1088 = vor.u32 %v1086, %v1087
      %v1089 = vrot.slane %v1088, 4
      %v1090 = vrot.slane %v788, 5
      %v1091 = vsel %vm959, %v1089, %v1090
      %v1092 = vrot.slane %v785, 4
      %v1093 = vor.u32 %v1092, %v1090
      %v1094 = vrot.slane %v1093, 4
      %v1095 = vrot.slane %v793, 4
      %v1096 = vrot.slane %v796, 5
      %v1097 = vor.u32 %v1095, %v1096
      %v1098 = vrot.slane %v1097, 4
      %v1099 = vrot.slane %v804, 5
      %v1100 = vsel %vm959, %v1098, %v1099
      %v1101 = vrot.slane %v801, 4
      %v1102 = vor.u32 %v1101, %v1099
      %v1103 = vrot.slane %v1102, 4
      %1136 = vst [vmem:[%s516 + $0x8] sm:$0xf] %v965
      %vm1137 = vmand %vm840, %vm957
      %v1138 = vld [vmem:[%s516 + $0x14] sm:$0xf]
      %v1139 = vsel %vm1137, %v968, %v1138
      %1140 = vst [vmem:[%s516 + $0x14] sm:$0xf] %v1139
      %1141 = vst [vmem:[%s516 + $0x20] sm:$0xf] %v974
      %v1142 = vld [vmem:[%s516 + $0x2c] sm:$0xf]
      %v1143 = vsel %vm1137, %v977, %v1142
      %1144 = vst [vmem:[%s516 + $0x2c] sm:$0xf] %v1143
      %1145 = vst [vmem:[%s516 + $0x38] sm:$0xf] %v983
      %v1146 = vld [vmem:[%s516 + $0x44] sm:$0xf]
      %v1147 = vsel %vm1137, %v986, %v1146
      %1148 = vst [vmem:[%s516 + $0x44] sm:$0xf] %v1147
      %1149 = vst [vmem:[%s516 + $0x50] sm:$0xf] %v992
      %v1150 = vld [vmem:[%s516 + $0x5c] sm:$0xf]
      %v1151 = vsel %vm1137, %v995, %v1150
      %1152 = vst [vmem:[%s516 + $0x5c] sm:$0xf] %v1151
      %1153 = vst [vmem:[%s516 + $0x68] sm:$0xf] %v1001
      %v1154 = vld [vmem:[%s516 + $0x74] sm:$0xf]
      %v1155 = vsel %vm1137, %v1004, %v1154
      %1156 = vst [vmem:[%s516 + $0x74] sm:$0xf] %v1155
      %1157 = vst [vmem:[%s516 + $0x80] sm:$0xf] %v1010
      %v1158 = vld [vmem:[%s516 + $0x8c] sm:$0xf]
      %v1159 = vsel %vm1137, %v1013, %v1158
      %1160 = vst [vmem:[%s516 + $0x8c] sm:$0xf] %v1159
      %1161 = vst [vmem:[%s516 + $0x98] sm:$0xf] %v1019
      %v1162 = vld [vmem:[%s516 + $0xa4] sm:$0xf]
      %v1163 = vsel %vm1137, %v1022, %v1162
      %1164 = vst [vmem:[%s516 + $0xa4] sm:$0xf] %v1163
      %1165 = vst [vmem:[%s516 + $0xb0] sm:$0xf] %v1028
      %v1166 = vld [vmem:[%s516 + $0xbc] sm:$0xf]
      %v1167 = vsel %vm1137, %v1031, %v1166
      %1168 = vst [vmem:[%s516 + $0xbc] sm:$0xf] %v1167
      %1169 = vst [vmem:[%s516 + $0xc8] sm:$0xf] %v1037
      %v1170 = vld [vmem:[%s516 + $0xd4] sm:$0xf]
      %v1171 = vsel %vm1137, %v1040, %v1170
      %1172 = vst [vmem:[%s516 + $0xd4] sm:$0xf] %v1171
      %1173 = vst [vmem:[%s516 + $0xe0] sm:$0xf] %v1046
      %v1174 = vld [vmem:[%s516 + $0xec] sm:$0xf]
      %v1175 = vsel %vm1137, %v1049, %v1174
      %1176 = vst [vmem:[%s516 + $0xec] sm:$0xf] %v1175
      %1177 = vst [vmem:[%s516 + $0xf8] sm:$0xf] %v1055
      %v1178 = vld [vmem:[%s516 + $0x104] sm:$0xf]
      %v1179 = vsel %vm1137, %v1058, %v1178
      %1180 = vst [vmem:[%s516 + $0x104] sm:$0xf] %v1179
      %1181 = vst [vmem:[%s516 + $0x110] sm:$0xf] %v1064
      %v1182 = vld [vmem:[%s516 + $0x11c] sm:$0xf]
      %v1183 = vsel %vm1137, %v1067, %v1182
      %1184 = vst [vmem:[%s516 + $0x11c] sm:$0xf] %v1183
      %1185 = vst [vmem:[%s516 + $0x128] sm:$0xf] %v1073
      %v1186 = vld [vmem:[%s516 + $0x134] sm:$0xf]
      %v1187 = vsel %vm1137, %v1076, %v1186
      %1188 = vst [vmem:[%s516 + $0x134] sm:$0xf] %v1187
      %1189 = vst [vmem:[%s516 + $0x140] sm:$0xf] %v1082
      %v1190 = vld [vmem:[%s516 + $0x14c] sm:$0xf]
      %v1191 = vsel %vm1137, %v1085, %v1190
      %1192 = vst [vmem:[%s516 + $0x14c] sm:$0xf] %v1191
      %1193 = vst [vmem:[%s516 + $0x158] sm:$0xf] %v1091
      %v1194 = vld [vmem:[%s516 + $0x164] sm:$0xf]
      %v1195 = vsel %vm1137, %v1094, %v1194
      %1196 = vst [vmem:[%s516 + $0x164] sm:$0xf] %v1195
      %1197 = vst [vmem:[%s516 + $0x170] sm:$0xf] %v1100
      %v1198 = vld [vmem:[%s516 + $0x17c] sm:$0xf]
      %v1199 = vsel %vm1137, %v1103, %v1198
      %1200 = vst [vmem:[%s516 + $0x17c] sm:$0xf] %v1199
      %vm1201 = vcmask 1043459
      %vm1202 = vsmask.f32 7950
      %vm1203 = vmand %vm1201, %vm1202
      %v1204 = vld [vmem:[%s516 + $0x14] sm:$0x8]
      %v1205 = vsel %vm1203, 0, %v1204
      %1206 = vst [vmem:[%s516 + $0x14] sm:$0x8] %v1205
      %v1207 = vld [vmem:[%s516 + $0x2c] sm:$0x8]
      %v1208 = vsel %vm1203, 0, %v1207
      %1209 = vst [vmem:[%s516 + $0x2c] sm:$0x8] %v1208
      %v1210 = vld [vmem:[%s516 + $0x44] sm:$0x8]
      %v1211 = vsel %vm1203, 0, %v1210
      %1212 = vst [vmem:[%s516 + $0x44] sm:$0x8] %v1211
      %v1213 = vld [vmem:[%s516 + $0x5c] sm:$0x8]
      %v1214 = vsel %vm1203, 0, %v1213
      %1215 = vst [vmem:[%s516 + $0x5c] sm:$0x8] %v1214
      %v1216 = vld [vmem:[%s516 + $0x74] sm:$0x8]
      %v1217 = vsel %vm1203, 0, %v1216
      %1218 = vst [vmem:[%s516 + $0x74] sm:$0x8] %v1217
      %v1219 = vld [vmem:[%s516 + $0x8c] sm:$0x8]
      %v1220 = vsel %vm1203, 0, %v1219
      %1221 = vst [vmem:[%s516 + $0x8c] sm:$0x8] %v1220
      %v1222 = vld [vmem:[%s516 + $0xa4] sm:$0x8]
      %v1223 = vsel %vm1203, 0, %v1222
      %1224 = vst [vmem:[%s516 + $0xa4] sm:$0x8] %v1223
      %v1225 = vld [vmem:[%s516 + $0xbc] sm:$0x8]
      %v1226 = vsel %vm1203, 0, %v1225
      %1227 = vst [vmem:[%s516 + $0xbc] sm:$0x8] %v1226
      %v1228 = vld [vmem:[%s516 + $0xd4] sm:$0x8]
      %v1229 = vsel %vm1203, 0, %v1228
      %1230 = vst [vmem:[%s516 + $0xd4] sm:$0x8] %v1229
      %v1231 = vld [vmem:[%s516 + $0xec] sm:$0x8]
      %v1232 = vsel %vm1203, 0, %v1231
      %1233 = vst [vmem:[%s516 + $0xec] sm:$0x8] %v1232
      %v1234 = vld [vmem:[%s516 + $0x104] sm:$0x8]
      %v1235 = vsel %vm1203, 0, %v1234
      %1236 = vst [vmem:[%s516 + $0x104] sm:$0x8] %v1235
      %v1237 = vld [vmem:[%s516 + $0x11c] sm:$0x8]
      %v1238 = vsel %vm1203, 0, %v1237
      %1239 = vst [vmem:[%s516 + $0x11c] sm:$0x8] %v1238
      %v1240 = vld [vmem:[%s516 + $0x134] sm:$0x8]
      %v1241 = vsel %vm1203, 0, %v1240
      %1242 = vst [vmem:[%s516 + $0x134] sm:$0x8] %v1241
      %v1243 = vld [vmem:[%s516 + $0x14c] sm:$0x8]
      %v1244 = vsel %vm1203, 0, %v1243
      %1245 = vst [vmem:[%s516 + $0x14c] sm:$0x8] %v1244
      %v1246 = vld [vmem:[%s516 + $0x164] sm:$0x8]
      %v1247 = vsel %vm1203, 0, %v1246
      %1248 = vst [vmem:[%s516 + $0x164] sm:$0x8] %v1247
      %v1249 = vld [vmem:[%s516 + $0x17c] sm:$0x8]
      %v1250 = vsel %vm1203, 0, %v1249
      %1251 = vst [vmem:[%s516 + $0x17c] sm:$0x8] %v1250
      %v1252 = vld [vmem:[#allocation2] sm:$0xff]
      %v1253 = vld [vmem:[#allocation2 + $0x8] sm:$0xf]
      %v1254 = vld [vmem:[#allocation2 + $0xc] sm:$0xff]
      %v1255 = vld [vmem:[#allocation2 + $0x14] sm:$0xf]
      %v1256 = vld [vmem:[#allocation2 + $0x18] sm:$0xff]
      %v1257 = vld [vmem:[#allocation2 + $0x20] sm:$0xf]
      %v1258 = vld [vmem:[#allocation2 + $0x24] sm:$0xff]
      %v1259 = vld [vmem:[#allocation2 + $0x2c] sm:$0xf]
      %v1260 = vld [vmem:[#allocation2 + $0x30] sm:$0xff]
      %v1261 = vld [vmem:[#allocation2 + $0x38] sm:$0xf]
      %v1262 = vld [vmem:[#allocation2 + $0x3c] sm:$0xff]
      %v1263 = vld [vmem:[#allocation2 + $0x44] sm:$0xf]
      %v1264 = vld [vmem:[#allocation2 + $0x48] sm:$0xff]
      %v1265 = vld [vmem:[#allocation2 + $0x50] sm:$0xf]
      %v1266 = vld [vmem:[#allocation2 + $0x54] sm:$0xff]
      %v1267 = vld [vmem:[#allocation2 + $0x5c] sm:$0xf]
      %v1268 = vld [vmem:[#allocation2 + $0x60] sm:$0xff]
      %v1269 = vld [vmem:[#allocation2 + $0x68] sm:$0xf]
      %v1270 = vld [vmem:[#allocation2 + $0x6c] sm:$0xff]
      %v1271 = vld [vmem:[#allocation2 + $0x74] sm:$0xf]
      %v1272 = vld [vmem:[#allocation2 + $0x78] sm:$0xff]
      %v1273 = vld [vmem:[#allocation2 + $0x80] sm:$0xf]
      %v1274 = vld [vmem:[#allocation2 + $0x84] sm:$0xff]
      %v1275 = vld [vmem:[#allocation2 + $0x8c] sm:$0xf]
      %v1276 = vld [vmem:[#allocation2 + $0x90] sm:$0xff]
      %v1277 = vld [vmem:[#allocation2 + $0x98] sm:$0xf]
      %v1278 = vld [vmem:[#allocation2 + $0x9c] sm:$0xff]
      %v1279 = vld [vmem:[#allocation2 + $0xa4] sm:$0xf]
      %v1280 = vld [vmem:[#allocation2 + $0xa8] sm:$0xff]
      %v1281 = vld [vmem:[#allocation2 + $0xb0] sm:$0xf]
      %v1282 = vld [vmem:[#allocation2 + $0xb4] sm:$0xff]
      %v1283 = vld [vmem:[#allocation2 + $0xbc] sm:$0xf]
      %v1284 = vld [vmem:[#allocation2 + $0xc0] sm:$0xff]
      %v1285 = vld [vmem:[#allocation2 + $0xc8] sm:$0xf]
      %v1286 = vld [vmem:[#allocation2 + $0xcc] sm:$0xff]
      %v1287 = vld [vmem:[#allocation2 + $0xd4] sm:$0xf]
      %v1288 = vld [vmem:[#allocation2 + $0xd8] sm:$0xff]
      %v1289 = vld [vmem:[#allocation2 + $0xe0] sm:$0xf]
      %v1290 = vld [vmem:[#allocation2 + $0xe4] sm:$0xff]
      %v1291 = vld [vmem:[#allocation2 + $0xec] sm:$0xf]
      %v1292 = vld [vmem:[#allocation2 + $0xf0] sm:$0xff]
      %v1293 = vld [vmem:[#allocation2 + $0xf8] sm:$0xf]
      %v1294 = vld [vmem:[#allocation2 + $0xfc] sm:$0xff]
      %v1295 = vld [vmem:[#allocation2 + $0x104] sm:$0xf]
      %v1296 = vld [vmem:[#allocation2 + $0x108] sm:$0xff]
      %v1297 = vld [vmem:[#allocation2 + $0x110] sm:$0xf]
      %v1298 = vld [vmem:[#allocation2 + $0x114] sm:$0xff]
      %v1299 = vld [vmem:[#allocation2 + $0x11c] sm:$0xf]
      %v1300 = vld [vmem:[#allocation2 + $0x120] sm:$0xff]
      %v1301 = vld [vmem:[#allocation2 + $0x128] sm:$0xf]
      %v1302 = vld [vmem:[#allocation2 + $0x12c] sm:$0xff]
      %v1303 = vld [vmem:[#allocation2 + $0x134] sm:$0xf]
      %v1304 = vld [vmem:[#allocation2 + $0x138] sm:$0xff]
      %v1305 = vld [vmem:[#allocation2 + $0x140] sm:$0xf]
      %v1306 = vld [vmem:[#allocation2 + $0x144] sm:$0xff]
      %v1307 = vld [vmem:[#allocation2 + $0x14c] sm:$0xf]
      %v1308 = vld [vmem:[#allocation2 + $0x150] sm:$0xff]
      %v1309 = vld [vmem:[#allocation2 + $0x158] sm:$0xf]
      %v1310 = vld [vmem:[#allocation2 + $0x15c] sm:$0xff]
      %v1311 = vld [vmem:[#allocation2 + $0x164] sm:$0xf]
      %v1312 = vld [vmem:[#allocation2 + $0x168] sm:$0xff]
      %v1313 = vld [vmem:[#allocation2 + $0x170] sm:$0xf]
      %v1314 = vld [vmem:[#allocation2 + $0x174] sm:$0xff]
      %v1315 = vld [vmem:[#allocation2 + $0x17c] sm:$0xf]
      %v1316 = vld [vmem:[%s3] sm:$0xf]
      %v1317 = vld [vmem:[%s3 + $0x4] sm:$0xf]
      %v1318 = vld [vmem:[%s3 + $0x8] sm:$0xf]
      %v1319 = vld [vmem:[%s3 + $0xc] sm:$0xf]
      %v1320 = vld [vmem:[%s3 + $0x10] sm:$0xf]
      %v1321 = vld [vmem:[%s3 + $0x14] sm:$0xf]
      %v1322 = vld [vmem:[%s3 + $0x18] sm:$0xf]
      %v1323 = vld [vmem:[%s3 + $0x1c] sm:$0xf]
      %v1324 = vld [vmem:[%s3 + $0x20] sm:$0xf]
      %v1325 = vld [vmem:[%s3 + $0x24] sm:$0xf]
      %v1326 = vld [vmem:[%s3 + $0x28] sm:$0xf]
      %v1327 = vld [vmem:[%s3 + $0x2c] sm:$0xf]
      %v1328 = vld [vmem:[%s3 + $0x30] sm:$0xf]
      %v1329 = vld [vmem:[%s3 + $0x34] sm:$0xf]
      %v1330 = vld [vmem:[%s3 + $0x38] sm:$0xf]
      %v1331 = vld [vmem:[%s3 + $0x3c] sm:$0xf]
      %v1332 = vld [vmem:[%s3 + $0x40] sm:$0xf]
      %v1333 = vld [vmem:[%s3 + $0x44] sm:$0xf]
      %v1334 = vld [vmem:[%s3 + $0x48] sm:$0xf]
      %v1335 = vld [vmem:[%s3 + $0x4c] sm:$0xf]
      %v1336 = vld [vmem:[%s3 + $0x50] sm:$0xf]
      %v1337 = vld [vmem:[%s3 + $0x54] sm:$0xf]
      %v1338 = vld [vmem:[%s3 + $0x58] sm:$0xf]
      %v1339 = vld [vmem:[%s3 + $0x5c] sm:$0xf]
      %v1340 = vld [vmem:[%s3 + $0x60] sm:$0xf]
      %v1341 = vld [vmem:[%s3 + $0x64] sm:$0xf]
      %v1342 = vld [vmem:[%s3 + $0x68] sm:$0xf]
      %v1343 = vld [vmem:[%s3 + $0x6c] sm:$0xf]
      %v1344 = vld [vmem:[%s3 + $0x70] sm:$0xf]
      %v1345 = vld [vmem:[%s3 + $0x74] sm:$0xf]
      %v1346 = vld [vmem:[%s3 + $0x78] sm:$0xf]
      %v1347 = vld [vmem:[%s3 + $0x7c] sm:$0xf]
      %v1348 = vld [vmem:[%s3 + $0x80] sm:$0xf]
      %v1349 = vld [vmem:[%s3 + $0x84] sm:$0xf]
      %v1350 = vld [vmem:[%s3 + $0x88] sm:$0xf]
      %v1351 = vld [vmem:[%s3 + $0x8c] sm:$0xf]
      %v1352 = vld [vmem:[%s3 + $0x90] sm:$0xf]
      %v1353 = vld [vmem:[%s3 + $0x94] sm:$0xf]
      %v1354 = vld [vmem:[%s3 + $0x98] sm:$0xf]
      %v1355 = vld [vmem:[%s3 + $0x9c] sm:$0xf]
      %v1356 = vld [vmem:[%s3 + $0xa0] sm:$0xf]
      %v1357 = vld [vmem:[%s3 + $0xa4] sm:$0xf]
      %v1358 = vld [vmem:[%s3 + $0xa8] sm:$0xf]
      %v1359 = vld [vmem:[%s3 + $0xac] sm:$0xf]
      %v1360 = vld [vmem:[%s3 + $0xb0] sm:$0xf]
      %v1361 = vld [vmem:[%s3 + $0xb4] sm:$0xf]
      %v1362 = vld [vmem:[%s3 + $0xb8] sm:$0xf]
      %v1363 = vld [vmem:[%s3 + $0xbc] sm:$0xf]
      %v1364 = vld [vmem:[%s516] sm:$0xff]
      %v1365 = vld [vmem:[%s516 + $0x8] sm:$0xf]
      %v1366 = vld [vmem:[%s516 + $0xc] sm:$0xff]
      %v1367 = vld [vmem:[%s516 + $0x14] sm:$0xf]
      %v1368 = vld [vmem:[%s516 + $0x18] sm:$0xff]
      %v1369 = vld [vmem:[%s516 + $0x20] sm:$0xf]
      %v1370 = vld [vmem:[%s516 + $0x24] sm:$0xff]
      %v1371 = vld [vmem:[%s516 + $0x2c] sm:$0xf]
      %v1372 = vld [vmem:[%s516 + $0x30] sm:$0xff]
      %v1373 = vld [vmem:[%s516 + $0x38] sm:$0xf]
      %v1374 = vld [vmem:[%s516 + $0x3c] sm:$0xff]
      %v1375 = vld [vmem:[%s516 + $0x44] sm:$0xf]
      %v1376 = vld [vmem:[%s516 + $0x48] sm:$0xff]
      %v1377 = vld [vmem:[%s516 + $0x50] sm:$0xf]
      %v1378 = vld [vmem:[%s516 + $0x54] sm:$0xff]
      %v1379 = vld [vmem:[%s516 + $0x5c] sm:$0xf]
      %v1380 = vld [vmem:[%s516 + $0x60] sm:$0xff]
      %v1381 = vld [vmem:[%s516 + $0x68] sm:$0xf]
      %v1382 = vld [vmem:[%s516 + $0x6c] sm:$0xff]
      %v1383 = vld [vmem:[%s516 + $0x74] sm:$0xf]
      %v1384 = vld [vmem:[%s516 + $0x78] sm:$0xff]
      %v1385 = vld [vmem:[%s516 + $0x80] sm:$0xf]
      %v1386 = vld [vmem:[%s516 + $0x84] sm:$0xff]
      %v1387 = vld [vmem:[%s516 + $0x8c] sm:$0xf]
      %v1388 = vld [vmem:[%s516 + $0x90] sm:$0xff]
      %v1389 = vld [vmem:[%s516 + $0x98] sm:$0xf]
      %v1390 = vld [vmem:[%s516 + $0x9c] sm:$0xff]
      %v1391 = vld [vmem:[%s516 + $0xa4] sm:$0xf]
      %v1392 = vld [vmem:[%s516 + $0xa8] sm:$0xff]
      %v1393 = vld [vmem:[%s516 + $0xb0] sm:$0xf]
      %v1394 = vld [vmem:[%s516 + $0xb4] sm:$0xff]
      %v1395 = vld [vmem:[%s516 + $0xbc] sm:$0xf]
      %v1396 = vld [vmem:[%s516 + $0xc0] sm:$0xff]
      %v1397 = vld [vmem:[%s516 + $0xc8] sm:$0xf]
      %v1398 = vld [vmem:[%s516 + $0xcc] sm:$0xff]
      %v1399 = vld [vmem:[%s516 + $0xd4] sm:$0xf]
      %v1400 = vld [vmem:[%s516 + $0xd8] sm:$0xff]
      %v1401 = vld [vmem:[%s516 + $0xe0] sm:$0xf]
      %v1402 = vld [vmem:[%s516 + $0xe4] sm:$0xff]
      %v1403 = vld [vmem:[%s516 + $0xec] sm:$0xf]
      %v1404 = vld [vmem:[%s516 + $0xf0] sm:$0xff]
      %v1405 = vld [vmem:[%s516 + $0xf8] sm:$0xf]
      %v1406 = vld [vmem:[%s516 + $0xfc] sm:$0xff]
      %v1407 = vld [vmem:[%s516 + $0x104] sm:$0xf]
      %v1408 = vld [vmem:[%s516 + $0x108] sm:$0xff]
      %v1409 = vld [vmem:[%s516 + $0x110] sm:$0xf]
      %v1410 = vld [vmem:[%s516 + $0x114] sm:$0xff]
      %v1411 = vld [vmem:[%s516 + $0x11c] sm:$0xf]
      %v1412 = vld [vmem:[%s516 + $0x120] sm:$0xff]
      %v1413 = vld [vmem:[%s516 + $0x128] sm:$0xf]
      %v1414 = vld [vmem:[%s516 + $0x12c] sm:$0xff]
      %v1415 = vld [vmem:[%s516 + $0x134] sm:$0xf]
      %v1416 = vld [vmem:[%s516 + $0x138] sm:$0xff]
      %v1417 = vld [vmem:[%s516 + $0x140] sm:$0xf]
      %v1418 = vld [vmem:[%s516 + $0x144] sm:$0xff]
      %v1419 = vld [vmem:[%s516 + $0x14c] sm:$0xf]
      %v1420 = vld [vmem:[%s516 + $0x150] sm:$0xff]
      %v1421 = vld [vmem:[%s516 + $0x158] sm:$0xf]
      %v1422 = vld [vmem:[%s516 + $0x15c] sm:$0xff]
      %v1423 = vld [vmem:[%s516 + $0x164] sm:$0xf]
      %v1424 = vld [vmem:[%s516 + $0x168] sm:$0xff]
      %v1425 = vld [vmem:[%s516 + $0x170] sm:$0xf]
      %v1426 = vld [vmem:[%s516 + $0x174] sm:$0xff]
      %v1427 = vld [vmem:[%s516 + $0x17c] sm:$0xf]
      %s1428 = scalar_lea.vmem %s3, 192
      %v1429 = vld [vmem:[%s1428] sm:$0xf]
      %v1430 = vld [vmem:[%s1428 + $0x4] sm:$0xf]
      %v1431 = vld [vmem:[%s1428 + $0x8] sm:$0xf]
      %v1432 = vld [vmem:[%s1428 + $0xc] sm:$0xf]
      %v1433 = vld [vmem:[%s1428 + $0x10] sm:$0xf]
      %v1434 = vld [vmem:[%s1428 + $0x14] sm:$0xf]
      %v1435 = vld [vmem:[%s1428 + $0x18] sm:$0xf]
      %v1436 = vld [vmem:[%s1428 + $0x1c] sm:$0xf]
      %v1437 = vld [vmem:[%s1428 + $0x20] sm:$0xf]
      %v1438 = vld [vmem:[%s1428 + $0x24] sm:$0xf]
      %v1439 = vld [vmem:[%s1428 + $0x28] sm:$0xf]
      %v1440 = vld [vmem:[%s1428 + $0x2c] sm:$0xf]
      %v1441 = vld [vmem:[%s1428 + $0x30] sm:$0xf]
      %v1442 = vld [vmem:[%s1428 + $0x34] sm:$0xf]
      %v1443 = vld [vmem:[%s1428 + $0x38] sm:$0xf]
      %v1444 = vld [vmem:[%s1428 + $0x3c] sm:$0xf]
      %v1445 = vld [vmem:[%s1428 + $0x40] sm:$0xf]
      %v1446 = vld [vmem:[%s1428 + $0x44] sm:$0xf]
      %v1447 = vld [vmem:[%s1428 + $0x48] sm:$0xf]
      %v1448 = vld [vmem:[%s1428 + $0x4c] sm:$0xf]
      %v1449 = vld [vmem:[%s1428 + $0x50] sm:$0xf]
      %v1450 = vld [vmem:[%s1428 + $0x54] sm:$0xf]
      %v1451 = vld [vmem:[%s1428 + $0x58] sm:$0xf]
      %v1452 = vld [vmem:[%s1428 + $0x5c] sm:$0xf]
      %v1453 = vld [vmem:[%s1428 + $0x60] sm:$0xf]
      %v1454 = vld [vmem:[%s1428 + $0x64] sm:$0xf]
      %v1455 = vld [vmem:[%s1428 + $0x68] sm:$0xf]
      %v1456 = vld [vmem:[%s1428 + $0x6c] sm:$0xf]
      %v1457 = vld [vmem:[%s1428 + $0x70] sm:$0xf]
      %v1458 = vld [vmem:[%s1428 + $0x74] sm:$0xf]
      %v1459 = vld [vmem:[%s1428 + $0x78] sm:$0xf]
      %v1460 = vld [vmem:[%s1428 + $0x7c] sm:$0xf]
      %v1461 = vld [vmem:[%s1428 + $0x80] sm:$0xf]
      %v1462 = vld [vmem:[%s1428 + $0x84] sm:$0xf]
      %v1463 = vld [vmem:[%s1428 + $0x88] sm:$0xf]
      %v1464 = vld [vmem:[%s1428 + $0x8c] sm:$0xf]
      %v1465 = vld [vmem:[%s1428 + $0x90] sm:$0xf]
      %v1466 = vld [vmem:[%s1428 + $0x94] sm:$0xf]
      %v1467 = vld [vmem:[%s1428 + $0x98] sm:$0xf]
      %v1468 = vld [vmem:[%s1428 + $0x9c] sm:$0xf]
      %v1469 = vld [vmem:[%s1428 + $0xa0] sm:$0xf]
      %v1470 = vld [vmem:[%s1428 + $0xa4] sm:$0xf]
      %v1471 = vld [vmem:[%s1428 + $0xa8] sm:$0xf]
      %v1472 = vld [vmem:[%s1428 + $0xac] sm:$0xf]
      %v1473 = vld [vmem:[%s1428 + $0xb0] sm:$0xf]
      %v1474 = vld [vmem:[%s1428 + $0xb4] sm:$0xf]
      %v1475 = vld [vmem:[%s1428 + $0xb8] sm:$0xf]
      %v1476 = vld [vmem:[%s1428 + $0xbc] sm:$0xf]
      %v1541 = vunpack.c.l.b16 %v1364
      %v1542 = vunpack.c.h.b16 %v1364
      %v1543 = vunpack.c.l.b16 %v1365
      %v1544 = vunpack.c.l.b16 %v1366
      %v1545 = vunpack.c.h.b16 %v1366
      %v1546 = vunpack.c.l.b16 %v1367
      %v1547 = vunpack.c.l.b16 %v1368
      %v1548 = vunpack.c.h.b16 %v1368
      %v1549 = vunpack.c.l.b16 %v1369
      %v1550 = vunpack.c.l.b16 %v1370
      %v1551 = vunpack.c.h.b16 %v1370
      %v1552 = vunpack.c.l.b16 %v1371
      %v1553 = vunpack.c.l.b16 %v1372
      %v1554 = vunpack.c.h.b16 %v1372
      %v1555 = vunpack.c.l.b16 %v1373
      %v1556 = vunpack.c.l.b16 %v1374
      %v1557 = vunpack.c.h.b16 %v1374
      %v1558 = vunpack.c.l.b16 %v1375
      %v1559 = vunpack.c.l.b16 %v1376
      %v1560 = vunpack.c.h.b16 %v1376
      %v1561 = vunpack.c.l.b16 %v1377
      %v1562 = vunpack.c.l.b16 %v1378
      %v1563 = vunpack.c.h.b16 %v1378
      %v1564 = vunpack.c.l.b16 %v1379
      %v1565 = vunpack.c.l.b16 %v1380
      %v1566 = vunpack.c.h.b16 %v1380
      %v1567 = vunpack.c.l.b16 %v1381
      %v1568 = vunpack.c.l.b16 %v1382
      %v1569 = vunpack.c.h.b16 %v1382
      %v1570 = vunpack.c.l.b16 %v1383
      %v1571 = vunpack.c.l.b16 %v1384
      %v1572 = vunpack.c.h.b16 %v1384
      %v1573 = vunpack.c.l.b16 %v1385
      %v1574 = vunpack.c.l.b16 %v1386
      %v1575 = vunpack.c.h.b16 %v1386
      %v1576 = vunpack.c.l.b16 %v1387
      %v1577 = vunpack.c.l.b16 %v1388
      %v1578 = vunpack.c.h.b16 %v1388
      %v1579 = vunpack.c.l.b16 %v1389
      %v1580 = vunpack.c.l.b16 %v1390
      %v1581 = vunpack.c.h.b16 %v1390
      %v1582 = vunpack.c.l.b16 %v1391
      %v1583 = vunpack.c.l.b16 %v1392
      %v1584 = vunpack.c.h.b16 %v1392
      %v1585 = vunpack.c.l.b16 %v1393
      %v1586 = vunpack.c.l.b16 %v1394
      %v1587 = vunpack.c.h.b16 %v1394
      %v1588 = vunpack.c.l.b16 %v1395
      %v1589 = vunpack.c.l.b16 %v1396
      %v1590 = vunpack.c.h.b16 %v1396
      %v1591 = vunpack.c.l.b16 %v1397
      %v1592 = vunpack.c.l.b16 %v1398
      %v1593 = vunpack.c.h.b16 %v1398
      %v1594 = vunpack.c.l.b16 %v1399
      %v1595 = vunpack.c.l.b16 %v1400
      %v1596 = vunpack.c.h.b16 %v1400
      %v1597 = vunpack.c.l.b16 %v1401
      %v1598 = vunpack.c.l.b16 %v1402
      %v1599 = vunpack.c.h.b16 %v1402
      %v1600 = vunpack.c.l.b16 %v1403
      %v1601 = vunpack.c.l.b16 %v1404
      %v1602 = vunpack.c.h.b16 %v1404
      %v1603 = vunpack.c.l.b16 %v1405
      %v1604 = vunpack.c.l.b16 %v1406
      %v1605 = vunpack.c.h.b16 %v1406
      %v1606 = vunpack.c.l.b16 %v1407
      %v1607 = vunpack.c.l.b16 %v1408
      %v1608 = vunpack.c.h.b16 %v1408
      %v1609 = vunpack.c.l.b16 %v1409
      %v1610 = vunpack.c.l.b16 %v1410
      %v1611 = vunpack.c.h.b16 %v1410
      %v1612 = vunpack.c.l.b16 %v1411
      %v1613 = vunpack.c.l.b16 %v1412
      %v1614 = vunpack.c.h.b16 %v1412
      %v1615 = vunpack.c.l.b16 %v1413
      %v1616 = vunpack.c.l.b16 %v1414
      %v1617 = vunpack.c.h.b16 %v1414
      %v1618 = vunpack.c.l.b16 %v1415
      %v1619 = vunpack.c.l.b16 %v1416
      %v1620 = vunpack.c.h.b16 %v1416
      %v1621 = vunpack.c.l.b16 %v1417
      %v1622 = vunpack.c.l.b16 %v1418
      %v1623 = vunpack.c.h.b16 %v1418
      %v1624 = vunpack.c.l.b16 %v1419
      %v1625 = vunpack.c.l.b16 %v1420
      %v1626 = vunpack.c.h.b16 %v1420
      %v1627 = vunpack.c.l.b16 %v1421
      %v1628 = vunpack.c.l.b16 %v1422
      %v1629 = vunpack.c.h.b16 %v1422
      %v1630 = vunpack.c.l.b16 %v1423
      %v1631 = vunpack.c.l.b16 %v1424
      %v1632 = vunpack.c.h.b16 %v1424
      %v1633 = vunpack.c.l.b16 %v1425
      %v1634 = vunpack.c.l.b16 %v1426
      %v1635 = vunpack.c.h.b16 %v1426
      %v1636 = vunpack.c.l.b16 %v1427
      %v1637 = vpack.c.b16 %v1544, %v1541
      %v1638 = vpack.c.b16 %v1545, %v1542
      %v1639 = vpack.c.b16 %v1546, %v1543
      %v1640 = vpack.c.b16 %v1550, %v1547
      %v1641 = vpack.c.b16 %v1551, %v1548
      %v1642 = vpack.c.b16 %v1552, %v1549
      %v1643 = vpack.c.b16 %v1556, %v1553
      %v1644 = vpack.c.b16 %v1557, %v1554
      %v1645 = vpack.c.b16 %v1558, %v1555
      %v1646 = vpack.c.b16 %v1562, %v1559
      %v1647 = vpack.c.b16 %v1563, %v1560
      %v1648 = vpack.c.b16 %v1564, %v1561
      %v1649 = vpack.c.b16 %v1568, %v1565
      %v1650 = vpack.c.b16 %v1569, %v1566
      %v1651 = vpack.c.b16 %v1570, %v1567
      %v1652 = vpack.c.b16 %v1574, %v1571
      %v1653 = vpack.c.b16 %v1575, %v1572
      %v1654 = vpack.c.b16 %v1576, %v1573
      %v1655 = vpack.c.b16 %v1580, %v1577
      %v1656 = vpack.c.b16 %v1581, %v1578
      %v1657 = vpack.c.b16 %v1582, %v1579
      %v1658 = vpack.c.b16 %v1586, %v1583
      %v1659 = vpack.c.b16 %v1587, %v1584
      %v1660 = vpack.c.b16 %v1588, %v1585
      %v1661 = vpack.c.b16 %v1592, %v1589
      %v1662 = vpack.c.b16 %v1593, %v1590
      %v1663 = vpack.c.b16 %v1594, %v1591
      %v1664 = vpack.c.b16 %v1598, %v1595
      %v1665 = vpack.c.b16 %v1599, %v1596
      %v1666 = vpack.c.b16 %v1600, %v1597
      %v1667 = vpack.c.b16 %v1604, %v1601
      %v1668 = vpack.c.b16 %v1605, %v1602
      %v1669 = vpack.c.b16 %v1606, %v1603
      %v1670 = vpack.c.b16 %v1610, %v1607
      %v1671 = vpack.c.b16 %v1611, %v1608
      %v1672 = vpack.c.b16 %v1612, %v1609
      %v1673 = vpack.c.b16 %v1616, %v1613
      %v1674 = vpack.c.b16 %v1617, %v1614
      %v1675 = vpack.c.b16 %v1618, %v1615
      %v1676 = vpack.c.b16 %v1622, %v1619
      %v1677 = vpack.c.b16 %v1623, %v1620
      %v1678 = vpack.c.b16 %v1624, %v1621
      %v1679 = vpack.c.b16 %v1628, %v1625
      %v1680 = vpack.c.b16 %v1629, %v1626
      %v1681 = vpack.c.b16 %v1630, %v1627
      %v1682 = vpack.c.b16 %v1634, %v1631
      %v1683 = vpack.c.b16 %v1635, %v1632
      %v1684 = vpack.c.b16 %v1636, %v1633
      %v1781 = vunpack.c.l.b16 %v1429
      %v1782 = vunpack.c.l.b16 %v1430
      %v1783 = vunpack.c.l.b16 %v1431
      %v1784 = vunpack.c.l.b16 %v1432
      %v1785 = vunpack.c.l.b16 %v1433
      %v1786 = vunpack.c.l.b16 %v1434
      %v1787 = vunpack.c.l.b16 %v1435
      %v1788 = vunpack.c.l.b16 %v1436
      %v1789 = vunpack.c.l.b16 %v1437
      %v1790 = vunpack.c.l.b16 %v1438
      %v1791 = vunpack.c.l.b16 %v1439
      %v1792 = vunpack.c.l.b16 %v1440
      %v1793 = vunpack.c.l.b16 %v1441
      %v1794 = vunpack.c.l.b16 %v1442
      %v1795 = vunpack.c.l.b16 %v1443
      %v1796 = vunpack.c.l.b16 %v1444
      %v1797 = vunpack.c.l.b16 %v1445
      %v1798 = vunpack.c.l.b16 %v1446
      %v1799 = vunpack.c.l.b16 %v1447
      %v1800 = vunpack.c.l.b16 %v1448
      %v1801 = vunpack.c.l.b16 %v1449
      %v1802 = vunpack.c.l.b16 %v1450
      %v1803 = vunpack.c.l.b16 %v1451
      %v1804 = vunpack.c.l.b16 %v1452
      %v1805 = vunpack.c.l.b16 %v1453
      %v1806 = vunpack.c.l.b16 %v1454
      %v1807 = vunpack.c.l.b16 %v1455
      %v1808 = vunpack.c.l.b16 %v1456
      %v1809 = vunpack.c.l.b16 %v1457
      %v1810 = vunpack.c.l.b16 %v1458
      %v1811 = vunpack.c.l.b16 %v1459
      %v1812 = vunpack.c.l.b16 %v1460
      %v1813 = vunpack.c.l.b16 %v1461
      %v1814 = vunpack.c.l.b16 %v1462
      %v1815 = vunpack.c.l.b16 %v1463
      %v1816 = vunpack.c.l.b16 %v1464
      %v1817 = vunpack.c.l.b16 %v1465
      %v1818 = vunpack.c.l.b16 %v1466
      %v1819 = vunpack.c.l.b16 %v1467
      %v1820 = vunpack.c.l.b16 %v1468
      %v1821 = vunpack.c.l.b16 %v1469
      %v1822 = vunpack.c.l.b16 %v1470
      %v1823 = vunpack.c.l.b16 %v1471
      %v1824 = vunpack.c.l.b16 %v1472
      %v1825 = vunpack.c.l.b16 %v1473
      %v1826 = vunpack.c.l.b16 %v1474
      %v1827 = vunpack.c.l.b16 %v1475
      %v1828 = vunpack.c.l.b16 %v1476
      %v1829 = vpack.c.b16 %v1782, %v1781
      %v1830 = vpack.c.b16 %v1784, %v1783
      %v1831 = vpack.c.b16 %v1786, %v1785
      %v1832 = vpack.c.b16 %v1788, %v1787
      %v1833 = vpack.c.b16 %v1790, %v1789
      %v1834 = vpack.c.b16 %v1792, %v1791
      %v1835 = vpack.c.b16 %v1794, %v1793
      %v1836 = vpack.c.b16 %v1796, %v1795
      %v1837 = vpack.c.b16 %v1798, %v1797
      %v1838 = vpack.c.b16 %v1800, %v1799
      %v1839 = vpack.c.b16 %v1802, %v1801
      %v1840 = vpack.c.b16 %v1804, %v1803
      %v1841 = vpack.c.b16 %v1806, %v1805
      %v1842 = vpack.c.b16 %v1808, %v1807
      %v1843 = vpack.c.b16 %v1810, %v1809
      %v1844 = vpack.c.b16 %v1812, %v1811
      %v1845 = vpack.c.b16 %v1814, %v1813
      %v1846 = vpack.c.b16 %v1816, %v1815
      %v1847 = vpack.c.b16 %v1818, %v1817
      %v1848 = vpack.c.b16 %v1820, %v1819
      %v1849 = vpack.c.b16 %v1822, %v1821
      %v1850 = vpack.c.b16 %v1824, %v1823
      %v1851 = vpack.c.b16 %v1826, %v1825
      %v1852 = vpack.c.b16 %v1828, %v1827
      %1877 = vmatprep.subr.bf16.mxu0 0
      %1878 = vmatpush1.bf16.msra.mxu0 %v1836
      %1879 = vmatprep.subr.bf16.mxu0 0
      %1880 = vmatpush1.bf16.msra.mxu0 %v1835
      %1881 = vmatprep.subr.bf16.mxu0 0
      %1882 = vmatpush1.bf16.msra.mxu0 %v1834
      %1883 = vmatprep.subr.bf16.mxu0 0
      %1884 = vmatpush1.bf16.msra.mxu0 %v1833
      %1885 = vmatprep.subr.bf16.mxu0 0
      %1886 = vmatpush1.bf16.msra.mxu0 %v1832
      %1887 = vmatprep.subr.bf16.mxu0 0
      %1888 = vmatpush1.bf16.msra.mxu0 %v1831
      %1889 = vmatprep.subr.bf16.mxu0 0
      %1890 = vmatpush1.bf16.msra.mxu0 %v1830
      %1891 = vmatprep.subr.bf16.mxu0 0
      %1892 = vmatpush1.bf16.msra.mxu0 %v1829
      %1893 = vmatprep.subr.bf16.mxu0 0
      %1894 = vmatpush2.bf16.msra.mxu0 %v1844
      %1895 = vmatprep.subr.bf16.mxu0 0
      %1896 = vmatpush2.bf16.msra.mxu0 %v1843
      %1897 = vmatprep.subr.bf16.mxu0 0
      %1898 = vmatpush2.bf16.msra.mxu0 %v1842
      %1899 = vmatprep.subr.bf16.mxu0 0
      %1900 = vmatpush2.bf16.msra.mxu0 %v1841
      %1901 = vmatprep.subr.bf16.mxu0 0
      %1902 = vmatpush2.bf16.msra.mxu0 %v1840
      %1903 = vmatprep.subr.bf16.mxu0 0
      %1904 = vmatpush2.bf16.msra.mxu0 %v1839
      %1905 = vmatprep.subr.bf16.mxu0 0
      %1906 = vmatpush2.bf16.msra.mxu0 %v1838
      %1907 = vmatprep.subr.bf16.mxu0 0
      %1908 = vmatpush2.bf16.msra.mxu0 %v1837
      %1909 = vmatprep.mubr.bf16.mxu0 %v1638
      %1910 = vmatmul.mubr.bf16.gmra.mxu0 %v1637
      %v1911 = vpop.f32.mrf.mxu0
      %v1912 = vadd.f32 0.0, %v1911
      %v1913 = vpop.f32.mrf.mxu0
      %v1914 = vpop.f32.mrf.mxu0
      %v1915 = vadd.f32 0.0, %v1914
      %v1916 = vpop.f32.mrf.mxu0
      %1917 = vmatprep.mubr.bf16.mxu0 %v1641
      %1918 = vmatmul.mubr.bf16.gmra.mxu0 %v1640
      %v1919 = vpop.f32.mrf.mxu0
      %v1920 = vadd.f32 0.0, %v1919
      %v1921 = vpop.f32.mrf.mxu0
      %v1922 = vpop.f32.mrf.mxu0
      %v1923 = vadd.f32 0.0, %v1922
      %v1924 = vpop.f32.mrf.mxu0
      %1925 = vmatprep.mubr.bf16.mxu0 %v1644
      %1926 = vmatmul.mubr.bf16.gmra.mxu0 %v1643
      %v1927 = vpop.f32.mrf.mxu0
      %v1928 = vadd.f32 0.0, %v1927
      %v1929 = vpop.f32.mrf.mxu0
      %v1930 = vpop.f32.mrf.mxu0
      %v1931 = vadd.f32 0.0, %v1930
      %v1932 = vpop.f32.mrf.mxu0
      %1933 = vmatprep.mubr.bf16.mxu0 %v1647
      %1934 = vmatmul.mubr.bf16.gmra.mxu0 %v1646
      %v1935 = vpop.f32.mrf.mxu0
      %v1936 = vadd.f32 0.0, %v1935
      %v1937 = vpop.f32.mrf.mxu0
      %v1938 = vpop.f32.mrf.mxu0
      %v1939 = vadd.f32 0.0, %v1938
      %v1940 = vpop.f32.mrf.mxu0
      %1941 = vmatprep.mubr.bf16.mxu0 %v1650
      %1942 = vmatmul.mubr.bf16.gmra.mxu0 %v1649
      %v1943 = vpop.f32.mrf.mxu0
      %v1944 = vadd.f32 0.0, %v1943
      %v1945 = vpop.f32.mrf.mxu0
      %v1946 = vpop.f32.mrf.mxu0
      %v1947 = vadd.f32 0.0, %v1946
      %v1948 = vpop.f32.mrf.mxu0
      %1949 = vmatprep.mubr.bf16.mxu0 %v1653
      %1950 = vmatmul.mubr.bf16.gmra.mxu0 %v1652
      %v1951 = vpop.f32.mrf.mxu0
      %v1952 = vadd.f32 0.0, %v1951
      %v1953 = vpop.f32.mrf.mxu0
      %v1954 = vpop.f32.mrf.mxu0
      %v1955 = vadd.f32 0.0, %v1954
      %v1956 = vpop.f32.mrf.mxu0
      %1957 = vmatprep.mubr.bf16.mxu0 %v1656
      %1958 = vmatmul.mubr.bf16.gmra.mxu0 %v1655
      %v1959 = vpop.f32.mrf.mxu0
      %v1960 = vadd.f32 0.0, %v1959
      %v1961 = vpop.f32.mrf.mxu0
      %v1962 = vpop.f32.mrf.mxu0
      %v1963 = vadd.f32 0.0, %v1962
      %v1964 = vpop.f32.mrf.mxu0
      %1965 = vmatprep.mubr.bf16.mxu0 %v1659
      %1966 = vmatmul.mubr.bf16.gmra.mxu0 %v1658
      %v1967 = vpop.f32.mrf.mxu0
      %v1968 = vadd.f32 0.0, %v1967
      %v1969 = vpop.f32.mrf.mxu0
      %v1970 = vpop.f32.mrf.mxu0
      %v1971 = vadd.f32 0.0, %v1970
      %v1972 = vpop.f32.mrf.mxu0
      %1973 = vmatprep.mubr.bf16.mxu0 %v1662
      %1974 = vmatmul.mubr.bf16.gmra.mxu0 %v1661
      %v1975 = vpop.f32.mrf.mxu0
      %v1976 = vadd.f32 0.0, %v1975
      %v1977 = vpop.f32.mrf.mxu0
      %v1978 = vpop.f32.mrf.mxu0
      %v1979 = vadd.f32 0.0, %v1978
      %v1980 = vpop.f32.mrf.mxu0
      %1981 = vmatprep.mubr.bf16.mxu0 %v1665
      %1982 = vmatmul.mubr.bf16.gmra.mxu0 %v1664
      %v1983 = vpop.f32.mrf.mxu0
      %v1984 = vadd.f32 0.0, %v1983
      %v1985 = vpop.f32.mrf.mxu0
      %v1986 = vpop.f32.mrf.mxu0
      %v1987 = vadd.f32 0.0, %v1986
      %v1988 = vpop.f32.mrf.mxu0
      %1989 = vmatprep.mubr.bf16.mxu0 %v1668
      %1990 = vmatmul.mubr.bf16.gmra.mxu0 %v1667
      %v1991 = vpop.f32.mrf.mxu0
      %v1992 = vadd.f32 0.0, %v1991
      %v1993 = vpop.f32.mrf.mxu0
      %v1994 = vpop.f32.mrf.mxu0
      %v1995 = vadd.f32 0.0, %v1994
      %v1996 = vpop.f32.mrf.mxu0
      %1997 = vmatprep.mubr.bf16.mxu0 %v1671
      %1998 = vmatmul.mubr.bf16.gmra.mxu0 %v1670
      %v1999 = vpop.f32.mrf.mxu0
      %v2000 = vadd.f32 0.0, %v1999
      %v2001 = vpop.f32.mrf.mxu0
      %v2002 = vpop.f32.mrf.mxu0
      %v2003 = vadd.f32 0.0, %v2002
      %v2004 = vpop.f32.mrf.mxu0
      %2005 = vmatprep.mubr.bf16.mxu0 %v1674
      %2006 = vmatmul.mubr.bf16.gmra.mxu0 %v1673
      %v2007 = vpop.f32.mrf.mxu0
      %v2008 = vadd.f32 0.0, %v2007
      %v2009 = vpop.f32.mrf.mxu0
      %v2010 = vpop.f32.mrf.mxu0
      %v2011 = vadd.f32 0.0, %v2010
      %v2012 = vpop.f32.mrf.mxu0
      %2013 = vmatprep.mubr.bf16.mxu0 %v1677
      %2014 = vmatmul.mubr.bf16.gmra.mxu0 %v1676
      %v2015 = vpop.f32.mrf.mxu0
      %v2016 = vadd.f32 0.0, %v2015
      %v2017 = vpop.f32.mrf.mxu0
      %v2018 = vpop.f32.mrf.mxu0
      %v2019 = vadd.f32 0.0, %v2018
      %v2020 = vpop.f32.mrf.mxu0
      %2021 = vmatprep.mubr.bf16.mxu0 %v1680
      %2022 = vmatmul.mubr.bf16.gmra.mxu0 %v1679
      %v2023 = vpop.f32.mrf.mxu0
      %v2024 = vadd.f32 0.0, %v2023
      %v2025 = vpop.f32.mrf.mxu0
      %v2026 = vpop.f32.mrf.mxu0
      %v2027 = vadd.f32 0.0, %v2026
      %v2028 = vpop.f32.mrf.mxu0
      %2029 = vmatprep.mubr.bf16.mxu0 %v1683
      %2030 = vmatmul.mubr.bf16.gmra.mxu0 %v1682
      %v2031 = vpop.f32.mrf.mxu0
      %v2032 = vadd.f32 0.0, %v2031
      %v2033 = vpop.f32.mrf.mxu0
      %v2034 = vpop.f32.mrf.mxu0
      %v2035 = vadd.f32 0.0, %v2034
      %v2036 = vpop.f32.mrf.mxu0
      %2037 = vdwg.mxu0
      %2038 = vmatprep.subr.bf16.mxu0 0
      %2039 = vmatpush1.bf16.msra.mxu0 %v1852
      %2040 = vmatprep.subr.bf16.mxu0 0
      %2041 = vmatpush1.bf16.msra.mxu0 %v1851
      %2042 = vmatprep.subr.bf16.mxu0 0
      %2043 = vmatpush1.bf16.msra.mxu0 %v1850
      %2044 = vmatprep.subr.bf16.mxu0 0
      %2045 = vmatpush1.bf16.msra.mxu0 %v1849
      %2046 = vmatprep.subr.bf16.mxu0 0
      %2047 = vmatpush1.bf16.msra.mxu0 %v1848
      %2048 = vmatprep.subr.bf16.mxu0 0
      %2049 = vmatpush1.bf16.msra.mxu0 %v1847
      %2050 = vmatprep.subr.bf16.mxu0 0
      %2051 = vmatpush1.bf16.msra.mxu0 %v1846
      %2052 = vmatprep.subr.bf16.mxu0 0
      %2053 = vmatpush1.bf16.msra.mxu0 %v1845
      %2054 = vmatprep.subr.bf16.mxu0 0
      %2055 = vmatpush2.bf16.msra.mxu0 0
      %2056 = vmatprep.subr.bf16.mxu0 0
      %2057 = vmatpush2.bf16.msra.mxu0 0
      %2058 = vmatprep.subr.bf16.mxu0 0
      %2059 = vmatpush2.bf16.msra.mxu0 0
      %2060 = vmatprep.subr.bf16.mxu0 0
      %2061 = vmatpush2.bf16.msra.mxu0 0
      %2062 = vmatprep.subr.bf16.mxu0 0
      %2063 = vmatpush2.bf16.msra.mxu0 0
      %2064 = vmatprep.subr.bf16.mxu0 0
      %2065 = vmatpush2.bf16.msra.mxu0 0
      %2066 = vmatprep.subr.bf16.mxu0 0
      %2067 = vmatpush2.bf16.msra.mxu0 0
      %2068 = vmatprep.subr.bf16.mxu0 0
      %2069 = vmatpush2.bf16.msra.mxu0 0
      %2070 = vmatprep.mubr.bf16.mxu0 0
      %2071 = vmatmul.mubr.bf16.gmra.mxu0 %v1639
      %v2072 = vpop.f32.mrf.mxu0
      %v2073 = vadd.f32 %v1912, %v2072
      %v2074 = vpop.f32.mrf.mxu0
      %v2075 = vpop.f32.mrf.mxu0
      %v2076 = vadd.f32 %v1915, %v2075
      %v2077 = vpop.f32.mrf.mxu0
      %2078 = vmatprep.mubr.bf16.mxu0 0
      %2079 = vmatmul.mubr.bf16.gmra.mxu0 %v1642
      %v2080 = vpop.f32.mrf.mxu0
      %v2081 = vadd.f32 %v1920, %v2080
      %v2082 = vpop.f32.mrf.mxu0
      %v2083 = vpop.f32.mrf.mxu0
      %v2084 = vadd.f32 %v1923, %v2083
      %v2085 = vpop.f32.mrf.mxu0
      %2086 = vmatprep.mubr.bf16.mxu0 0
      %2087 = vmatmul.mubr.bf16.gmra.mxu0 %v1645
      %v2088 = vpop.f32.mrf.mxu0
      %v2089 = vadd.f32 %v1928, %v2088
      %v2090 = vpop.f32.mrf.mxu0
      %v2091 = vpop.f32.mrf.mxu0
      %v2092 = vadd.f32 %v1931, %v2091
      %v2093 = vpop.f32.mrf.mxu0
      %2094 = vmatprep.mubr.bf16.mxu0 0
      %2095 = vmatmul.mubr.bf16.gmra.mxu0 %v1648
      %v2096 = vpop.f32.mrf.mxu0
      %v2097 = vadd.f32 %v1936, %v2096
      %v2098 = vpop.f32.mrf.mxu0
      %v2099 = vpop.f32.mrf.mxu0
      %v2100 = vadd.f32 %v1939, %v2099
      %v2101 = vpop.f32.mrf.mxu0
      %2102 = vmatprep.mubr.bf16.mxu0 0
      %2103 = vmatmul.mubr.bf16.gmra.mxu0 %v1651
      %v2104 = vpop.f32.mrf.mxu0
      %v2105 = vadd.f32 %v1944, %v2104
      %v2106 = vpop.f32.mrf.mxu0
      %v2107 = vpop.f32.mrf.mxu0
      %v2108 = vadd.f32 %v1947, %v2107
      %v2109 = vpop.f32.mrf.mxu0
      %2110 = vmatprep.mubr.bf16.mxu0 0
      %2111 = vmatmul.mubr.bf16.gmra.mxu0 %v1654
      %v2112 = vpop.f32.mrf.mxu0
      %v2113 = vadd.f32 %v1952, %v2112
      %v2114 = vpop.f32.mrf.mxu0
      %v2115 = vpop.f32.mrf.mxu0
      %v2116 = vadd.f32 %v1955, %v2115
      %v2117 = vpop.f32.mrf.mxu0
      %2118 = vmatprep.mubr.bf16.mxu0 0
      %2119 = vmatmul.mubr.bf16.gmra.mxu0 %v1657
      %v2120 = vpop.f32.mrf.mxu0
      %v2121 = vadd.f32 %v1960, %v2120
      %v2122 = vpop.f32.mrf.mxu0
      %v2123 = vpop.f32.mrf.mxu0
      %v2124 = vadd.f32 %v1963, %v2123
      %v2125 = vpop.f32.mrf.mxu0
      %2126 = vmatprep.mubr.bf16.mxu0 0
      %2127 = vmatmul.mubr.bf16.gmra.mxu0 %v1660
      %v2128 = vpop.f32.mrf.mxu0
      %v2129 = vadd.f32 %v1968, %v2128
      %v2130 = vpop.f32.mrf.mxu0
      %v2131 = vpop.f32.mrf.mxu0
      %v2132 = vadd.f32 %v1971, %v2131
      %v2133 = vpop.f32.mrf.mxu0
      %2134 = vmatprep.mubr.bf16.mxu0 0
      %2135 = vmatmul.mubr.bf16.gmra.mxu0 %v1663
      %v2136 = vpop.f32.mrf.mxu0
      %v2137 = vadd.f32 %v1976, %v2136
      %v2138 = vpop.f32.mrf.mxu0
      %v2139 = vpop.f32.mrf.mxu0
      %v2140 = vadd.f32 %v1979, %v2139
      %v2141 = vpop.f32.mrf.mxu0
      %2142 = vmatprep.mubr.bf16.mxu0 0
      %2143 = vmatmul.mubr.bf16.gmra.mxu0 %v1666
      %v2144 = vpop.f32.mrf.mxu0
      %v2145 = vadd.f32 %v1984, %v2144
      %v2146 = vpop.f32.mrf.mxu0
      %v2147 = vpop.f32.mrf.mxu0
      %v2148 = vadd.f32 %v1987, %v2147
      %v2149 = vpop.f32.mrf.mxu0
      %2150 = vmatprep.mubr.bf16.mxu0 0
      %2151 = vmatmul.mubr.bf16.gmra.mxu0 %v1669
      %v2152 = vpop.f32.mrf.mxu0
      %v2153 = vadd.f32 %v1992, %v2152
      %v2154 = vpop.f32.mrf.mxu0
      %v2155 = vpop.f32.mrf.mxu0
      %v2156 = vadd.f32 %v1995, %v2155
      %v2157 = vpop.f32.mrf.mxu0
      %2158 = vmatprep.mubr.bf16.mxu0 0
      %2159 = vmatmul.mubr.bf16.gmra.mxu0 %v1672
      %v2160 = vpop.f32.mrf.mxu0
      %v2161 = vadd.f32 %v2000, %v2160
      %v2162 = vpop.f32.mrf.mxu0
      %v2163 = vpop.f32.mrf.mxu0
      %v2164 = vadd.f32 %v2003, %v2163
      %v2165 = vpop.f32.mrf.mxu0
      %2166 = vmatprep.mubr.bf16.mxu0 0
      %2167 = vmatmul.mubr.bf16.gmra.mxu0 %v1675
      %v2168 = vpop.f32.mrf.mxu0
      %v2169 = vadd.f32 %v2008, %v2168
      %v2170 = vpop.f32.mrf.mxu0
      %v2171 = vpop.f32.mrf.mxu0
      %v2172 = vadd.f32 %v2011, %v2171
      %v2173 = vpop.f32.mrf.mxu0
      %2174 = vmatprep.mubr.bf16.mxu0 0
      %2175 = vmatmul.mubr.bf16.gmra.mxu0 %v1678
      %v2176 = vpop.f32.mrf.mxu0
      %v2177 = vadd.f32 %v2016, %v2176
      %v2178 = vpop.f32.mrf.mxu0
      %v2179 = vpop.f32.mrf.mxu0
      %v2180 = vadd.f32 %v2019, %v2179
      %v2181 = vpop.f32.mrf.mxu0
      %2182 = vmatprep.mubr.bf16.mxu0 0
      %2183 = vmatmul.mubr.bf16.gmra.mxu0 %v1681
      %v2184 = vpop.f32.mrf.mxu0
      %v2185 = vadd.f32 %v2024, %v2184
      %v2186 = vpop.f32.mrf.mxu0
      %v2187 = vpop.f32.mrf.mxu0
      %v2188 = vadd.f32 %v2027, %v2187
      %v2189 = vpop.f32.mrf.mxu0
      %2190 = vmatprep.mubr.bf16.mxu0 0
      %2191 = vmatmul.mubr.bf16.gmra.mxu0 %v1684
      %v2192 = vpop.f32.mrf.mxu0
      %v2193 = vadd.f32 %v2032, %v2192
      %v2194 = vpop.f32.mrf.mxu0
      %v2195 = vpop.f32.mrf.mxu0
      %v2196 = vadd.f32 %v2035, %v2195
      %v2197 = vpop.f32.mrf.mxu0
      %2198 = vdwg.mxu0
      %v2263 = vunpack.c.l.b16 %v1252
      %v2264 = vunpack.c.h.b16 %v1252
      %v2265 = vunpack.c.l.b16 %v1253
      %v2266 = vunpack.c.l.b16 %v1254
      %v2267 = vunpack.c.h.b16 %v1254
      %v2268 = vunpack.c.l.b16 %v1255
      %v2269 = vunpack.c.l.b16 %v1256
      %v2270 = vunpack.c.h.b16 %v1256
      %v2271 = vunpack.c.l.b16 %v1257
      %v2272 = vunpack.c.l.b16 %v1258
      %v2273 = vunpack.c.h.b16 %v1258
      %v2274 = vunpack.c.l.b16 %v1259
      %v2275 = vunpack.c.l.b16 %v1260
      %v2276 = vunpack.c.h.b16 %v1260
      %v2277 = vunpack.c.l.b16 %v1261
      %v2278 = vunpack.c.l.b16 %v1262
      %v2279 = vunpack.c.h.b16 %v1262
      %v2280 = vunpack.c.l.b16 %v1263
      %v2281 = vunpack.c.l.b16 %v1264
      %v2282 = vunpack.c.h.b16 %v1264
      %v2283 = vunpack.c.l.b16 %v1265
      %v2284 = vunpack.c.l.b16 %v1266
      %v2285 = vunpack.c.h.b16 %v1266
      %v2286 = vunpack.c.l.b16 %v1267
      %v2287 = vunpack.c.l.b16 %v1268
      %v2288 = vunpack.c.h.b16 %v1268
      %v2289 = vunpack.c.l.b16 %v1269
      %v2290 = vunpack.c.l.b16 %v1270
      %v2291 = vunpack.c.h.b16 %v1270
      %v2292 = vunpack.c.l.b16 %v1271
      %v2293 = vunpack.c.l.b16 %v1272
      %v2294 = vunpack.c.h.b16 %v1272
      %v2295 = vunpack.c.l.b16 %v1273
      %v2296 = vunpack.c.l.b16 %v1274
      %v2297 = vunpack.c.h.b16 %v1274
      %v2298 = vunpack.c.l.b16 %v1275
      %v2299 = vunpack.c.l.b16 %v1276
      %v2300 = vunpack.c.h.b16 %v1276
      %v2301 = vunpack.c.l.b16 %v1277
      %v2302 = vunpack.c.l.b16 %v1278
      %v2303 = vunpack.c.h.b16 %v1278
      %v2304 = vunpack.c.l.b16 %v1279
      %v2305 = vunpack.c.l.b16 %v1280
      %v2306 = vunpack.c.h.b16 %v1280
      %v2307 = vunpack.c.l.b16 %v1281
      %v2308 = vunpack.c.l.b16 %v1282
      %v2309 = vunpack.c.h.b16 %v1282
      %v2310 = vunpack.c.l.b16 %v1283
      %v2311 = vunpack.c.l.b16 %v1284
      %v2312 = vunpack.c.h.b16 %v1284
      %v2313 = vunpack.c.l.b16 %v1285
      %v2314 = vunpack.c.l.b16 %v1286
      %v2315 = vunpack.c.h.b16 %v1286
      %v2316 = vunpack.c.l.b16 %v1287
      %v2317 = vunpack.c.l.b16 %v1288
      %v2318 = vunpack.c.h.b16 %v1288
      %v2319 = vunpack.c.l.b16 %v1289
      %v2320 = vunpack.c.l.b16 %v1290
      %v2321 = vunpack.c.h.b16 %v1290
      %v2322 = vunpack.c.l.b16 %v1291
      %v2323 = vunpack.c.l.b16 %v1292
      %v2324 = vunpack.c.h.b16 %v1292
      %v2325 = vunpack.c.l.b16 %v1293
      %v2326 = vunpack.c.l.b16 %v1294
      %v2327 = vunpack.c.h.b16 %v1294
      %v2328 = vunpack.c.l.b16 %v1295
      %v2329 = vunpack.c.l.b16 %v1296
      %v2330 = vunpack.c.h.b16 %v1296
      %v2331 = vunpack.c.l.b16 %v1297
      %v2332 = vunpack.c.l.b16 %v1298
      %v2333 = vunpack.c.h.b16 %v1298
      %v2334 = vunpack.c.l.b16 %v1299
      %v2335 = vunpack.c.l.b16 %v1300
      %v2336 = vunpack.c.h.b16 %v1300
      %v2337 = vunpack.c.l.b16 %v1301
      %v2338 = vunpack.c.l.b16 %v1302
      %v2339 = vunpack.c.h.b16 %v1302
      %v2340 = vunpack.c.l.b16 %v1303
      %v2341 = vunpack.c.l.b16 %v1304
      %v2342 = vunpack.c.h.b16 %v1304
      %v2343 = vunpack.c.l.b16 %v1305
      %v2344 = vunpack.c.l.b16 %v1306
      %v2345 = vunpack.c.h.b16 %v1306
      %v2346 = vunpack.c.l.b16 %v1307
      %v2347 = vunpack.c.l.b16 %v1308
      %v2348 = vunpack.c.h.b16 %v1308
      %v2349 = vunpack.c.l.b16 %v1309
      %v2350 = vunpack.c.l.b16 %v1310
      %v2351 = vunpack.c.h.b16 %v1310
      %v2352 = vunpack.c.l.b16 %v1311
      %v2353 = vunpack.c.l.b16 %v1312
      %v2354 = vunpack.c.h.b16 %v1312
      %v2355 = vunpack.c.l.b16 %v1313
      %v2356 = vunpack.c.l.b16 %v1314
      %v2357 = vunpack.c.h.b16 %v1314
      %v2358 = vunpack.c.l.b16 %v1315
      %v2359 = vpack.c.b16 %v2266, %v2263
      %v2360 = vpack.c.b16 %v2267, %v2264
      %v2361 = vpack.c.b16 %v2268, %v2265
      %v2362 = vpack.c.b16 %v2272, %v2269
      %v2363 = vpack.c.b16 %v2273, %v2270
      %v2364 = vpack.c.b16 %v2274, %v2271
      %v2365 = vpack.c.b16 %v2278, %v2275
      %v2366 = vpack.c.b16 %v2279, %v2276
      %v2367 = vpack.c.b16 %v2280, %v2277
      %v2368 = vpack.c.b16 %v2284, %v2281
      %v2369 = vpack.c.b16 %v2285, %v2282
      %v2370 = vpack.c.b16 %v2286, %v2283
      %v2371 = vpack.c.b16 %v2290, %v2287
      %v2372 = vpack.c.b16 %v2291, %v2288
      %v2373 = vpack.c.b16 %v2292, %v2289
      %v2374 = vpack.c.b16 %v2296, %v2293
      %v2375 = vpack.c.b16 %v2297, %v2294
      %v2376 = vpack.c.b16 %v2298, %v2295
      %v2377 = vpack.c.b16 %v2302, %v2299
      %v2378 = vpack.c.b16 %v2303, %v2300
      %v2379 = vpack.c.b16 %v2304, %v2301
      %v2380 = vpack.c.b16 %v2308, %v2305
      %v2381 = vpack.c.b16 %v2309, %v2306
      %v2382 = vpack.c.b16 %v2310, %v2307
      %v2383 = vpack.c.b16 %v2314, %v2311
      %v2384 = vpack.c.b16 %v2315, %v2312
      %v2385 = vpack.c.b16 %v2316, %v2313
      %v2386 = vpack.c.b16 %v2320, %v2317
      %v2387 = vpack.c.b16 %v2321, %v2318
      %v2388 = vpack.c.b16 %v2322, %v2319
      %v2389 = vpack.c.b16 %v2326, %v2323
      %v2390 = vpack.c.b16 %v2327, %v2324
      %v2391 = vpack.c.b16 %v2328, %v2325
      %v2392 = vpack.c.b16 %v2332, %v2329
      %v2393 = vpack.c.b16 %v2333, %v2330
      %v2394 = vpack.c.b16 %v2334, %v2331
      %v2395 = vpack.c.b16 %v2338, %v2335
      %v2396 = vpack.c.b16 %v2339, %v2336
      %v2397 = vpack.c.b16 %v2340, %v2337
      %v2398 = vpack.c.b16 %v2344, %v2341
      %v2399 = vpack.c.b16 %v2345, %v2342
      %v2400 = vpack.c.b16 %v2346, %v2343
      %v2401 = vpack.c.b16 %v2350, %v2347
      %v2402 = vpack.c.b16 %v2351, %v2348
      %v2403 = vpack.c.b16 %v2352, %v2349
      %v2404 = vpack.c.b16 %v2356, %v2353
      %v2405 = vpack.c.b16 %v2357, %v2354
      %v2406 = vpack.c.b16 %v2358, %v2355
      %v2503 = vunpack.c.l.b16 %v1316
      %v2504 = vunpack.c.l.b16 %v1317
      %v2505 = vunpack.c.l.b16 %v1318
      %v2506 = vunpack.c.l.b16 %v1319
      %v2507 = vunpack.c.l.b16 %v1320
      %v2508 = vunpack.c.l.b16 %v1321
      %v2509 = vunpack.c.l.b16 %v1322
      %v2510 = vunpack.c.l.b16 %v1323
      %v2511 = vunpack.c.l.b16 %v1324
      %v2512 = vunpack.c.l.b16 %v1325
      %v2513 = vunpack.c.l.b16 %v1326
      %v2514 = vunpack.c.l.b16 %v1327
      %v2515 = vunpack.c.l.b16 %v1328
      %v2516 = vunpack.c.l.b16 %v1329
      %v2517 = vunpack.c.l.b16 %v1330
      %v2518 = vunpack.c.l.b16 %v1331
      %v2519 = vunpack.c.l.b16 %v1332
      %v2520 = vunpack.c.l.b16 %v1333
      %v2521 = vunpack.c.l.b16 %v1334
      %v2522 = vunpack.c.l.b16 %v1335
      %v2523 = vunpack.c.l.b16 %v1336
      %v2524 = vunpack.c.l.b16 %v1337
      %v2525 = vunpack.c.l.b16 %v1338
      %v2526 = vunpack.c.l.b16 %v1339
      %v2527 = vunpack.c.l.b16 %v1340
      %v2528 = vunpack.c.l.b16 %v1341
      %v2529 = vunpack.c.l.b16 %v1342
      %v2530 = vunpack.c.l.b16 %v1343
      %v2531 = vunpack.c.l.b16 %v1344
      %v2532 = vunpack.c.l.b16 %v1345
      %v2533 = vunpack.c.l.b16 %v1346
      %v2534 = vunpack.c.l.b16 %v1347
      %v2535 = vunpack.c.l.b16 %v1348
      %v2536 = vunpack.c.l.b16 %v1349
      %v2537 = vunpack.c.l.b16 %v1350
      %v2538 = vunpack.c.l.b16 %v1351
      %v2539 = vunpack.c.l.b16 %v1352
      %v2540 = vunpack.c.l.b16 %v1353
      %v2541 = vunpack.c.l.b16 %v1354
      %v2542 = vunpack.c.l.b16 %v1355
      %v2543 = vunpack.c.l.b16 %v1356
      %v2544 = vunpack.c.l.b16 %v1357
      %v2545 = vunpack.c.l.b16 %v1358
      %v2546 = vunpack.c.l.b16 %v1359
      %v2547 = vunpack.c.l.b16 %v1360
      %v2548 = vunpack.c.l.b16 %v1361
      %v2549 = vunpack.c.l.b16 %v1362
      %v2550 = vunpack.c.l.b16 %v1363
      %v2551 = vpack.c.b16 %v2504, %v2503
      %v2552 = vpack.c.b16 %v2506, %v2505
      %v2553 = vpack.c.b16 %v2508, %v2507
      %v2554 = vpack.c.b16 %v2510, %v2509
      %v2555 = vpack.c.b16 %v2512, %v2511
      %v2556 = vpack.c.b16 %v2514, %v2513
      %v2557 = vpack.c.b16 %v2516, %v2515
      %v2558 = vpack.c.b16 %v2518, %v2517
      %v2559 = vpack.c.b16 %v2520, %v2519
      %v2560 = vpack.c.b16 %v2522, %v2521
      %v2561 = vpack.c.b16 %v2524, %v2523
      %v2562 = vpack.c.b16 %v2526, %v2525
      %v2563 = vpack.c.b16 %v2528, %v2527
      %v2564 = vpack.c.b16 %v2530, %v2529
      %v2565 = vpack.c.b16 %v2532, %v2531
      %v2566 = vpack.c.b16 %v2534, %v2533
      %v2567 = vpack.c.b16 %v2536, %v2535
      %v2568 = vpack.c.b16 %v2538, %v2537
      %v2569 = vpack.c.b16 %v2540, %v2539
      %v2570 = vpack.c.b16 %v2542, %v2541
      %v2571 = vpack.c.b16 %v2544, %v2543
      %v2572 = vpack.c.b16 %v2546, %v2545
      %v2573 = vpack.c.b16 %v2548, %v2547
      %v2574 = vpack.c.b16 %v2550, %v2549
      %2599 = vmatprep.subr.bf16.mxu0 0
      %2600 = vmatpush1.bf16.msra.mxu0 %v2558
      %2601 = vmatprep.subr.bf16.mxu0 0
      %2602 = vmatpush1.bf16.msra.mxu0 %v2557
      %2603 = vmatprep.subr.bf16.mxu0 0
      %2604 = vmatpush1.bf16.msra.mxu0 %v2556
      %2605 = vmatprep.subr.bf16.mxu0 0
      %2606 = vmatpush1.bf16.msra.mxu0 %v2555
      %2607 = vmatprep.subr.bf16.mxu0 0
      %2608 = vmatpush1.bf16.msra.mxu0 %v2554
      %2609 = vmatprep.subr.bf16.mxu0 0
      %2610 = vmatpush1.bf16.msra.mxu0 %v2553
      %2611 = vmatprep.subr.bf16.mxu0 0
      %2612 = vmatpush1.bf16.msra.mxu0 %v2552
      %2613 = vmatprep.subr.bf16.mxu0 0
      %2614 = vmatpush1.bf16.msra.mxu0 %v2551
      %2615 = vmatprep.subr.bf16.mxu0 0
      %2616 = vmatpush2.bf16.msra.mxu0 %v2566
      %2617 = vmatprep.subr.bf16.mxu0 0
      %2618 = vmatpush2.bf16.msra.mxu0 %v2565
      %2619 = vmatprep.subr.bf16.mxu0 0
      %2620 = vmatpush2.bf16.msra.mxu0 %v2564
      %2621 = vmatprep.subr.bf16.mxu0 0
      %2622 = vmatpush2.bf16.msra.mxu0 %v2563
      %2623 = vmatprep.subr.bf16.mxu0 0
      %2624 = vmatpush2.bf16.msra.mxu0 %v2562
      %2625 = vmatprep.subr.bf16.mxu0 0
      %2626 = vmatpush2.bf16.msra.mxu0 %v2561
      %2627 = vmatprep.subr.bf16.mxu0 0
      %2628 = vmatpush2.bf16.msra.mxu0 %v2560
      %2629 = vmatprep.subr.bf16.mxu0 0
      %2630 = vmatpush2.bf16.msra.mxu0 %v2559
      %2631 = vmatprep.mubr.bf16.mxu0 %v2360
      %2632 = vmatmul.mubr.bf16.gmra.mxu0 %v2359
      %v2633 = vpop.f32.mrf.mxu0
      %v2634 = vadd.f32 %v2073, %v2633
      %v2635 = vpop.f32.mrf.mxu0
      %v2636 = vpop.f32.mrf.mxu0
      %v2637 = vadd.f32 %v2076, %v2636
      %v2638 = vpop.f32.mrf.mxu0
      %2639 = vmatprep.mubr.bf16.mxu0 %v2363
      %2640 = vmatmul.mubr.bf16.gmra.mxu0 %v2362
      %v2641 = vpop.f32.mrf.mxu0
      %v2642 = vadd.f32 %v2081, %v2641
      %v2643 = vpop.f32.mrf.mxu0
      %v2644 = vpop.f32.mrf.mxu0
      %v2645 = vadd.f32 %v2084, %v2644
      %v2646 = vpop.f32.mrf.mxu0
      %2647 = vmatprep.mubr.bf16.mxu0 %v2366
      %2648 = vmatmul.mubr.bf16.gmra.mxu0 %v2365
      %v2649 = vpop.f32.mrf.mxu0
      %v2650 = vadd.f32 %v2089, %v2649
      %v2651 = vpop.f32.mrf.mxu0
      %v2652 = vpop.f32.mrf.mxu0
      %v2653 = vadd.f32 %v2092, %v2652
      %v2654 = vpop.f32.mrf.mxu0
      %2655 = vmatprep.mubr.bf16.mxu0 %v2369
      %2656 = vmatmul.mubr.bf16.gmra.mxu0 %v2368
      %v2657 = vpop.f32.mrf.mxu0
      %v2658 = vadd.f32 %v2097, %v2657
      %v2659 = vpop.f32.mrf.mxu0
      %v2660 = vpop.f32.mrf.mxu0
      %v2661 = vadd.f32 %v2100, %v2660
      %v2662 = vpop.f32.mrf.mxu0
      %2663 = vmatprep.mubr.bf16.mxu0 %v2372
      %2664 = vmatmul.mubr.bf16.gmra.mxu0 %v2371
      %v2665 = vpop.f32.mrf.mxu0
      %v2666 = vadd.f32 %v2105, %v2665
      %v2667 = vpop.f32.mrf.mxu0
      %v2668 = vpop.f32.mrf.mxu0
      %v2669 = vadd.f32 %v2108, %v2668
      %v2670 = vpop.f32.mrf.mxu0
      %2671 = vmatprep.mubr.bf16.mxu0 %v2375
      %2672 = vmatmul.mubr.bf16.gmra.mxu0 %v2374
      %v2673 = vpop.f32.mrf.mxu0
      %v2674 = vadd.f32 %v2113, %v2673
      %v2675 = vpop.f32.mrf.mxu0
      %v2676 = vpop.f32.mrf.mxu0
      %v2677 = vadd.f32 %v2116, %v2676
      %v2678 = vpop.f32.mrf.mxu0
      %2679 = vmatprep.mubr.bf16.mxu0 %v2378
      %2680 = vmatmul.mubr.bf16.gmra.mxu0 %v2377
      %v2681 = vpop.f32.mrf.mxu0
      %v2682 = vadd.f32 %v2121, %v2681
      %v2683 = vpop.f32.mrf.mxu0
      %v2684 = vpop.f32.mrf.mxu0
      %v2685 = vadd.f32 %v2124, %v2684
      %v2686 = vpop.f32.mrf.mxu0
      %2687 = vmatprep.mubr.bf16.mxu0 %v2381
      %2688 = vmatmul.mubr.bf16.gmra.mxu0 %v2380
      %v2689 = vpop.f32.mrf.mxu0
      %v2690 = vadd.f32 %v2129, %v2689
      %v2691 = vpop.f32.mrf.mxu0
      %v2692 = vpop.f32.mrf.mxu0
      %v2693 = vadd.f32 %v2132, %v2692
      %v2694 = vpop.f32.mrf.mxu0
      %2695 = vmatprep.mubr.bf16.mxu0 %v2384
      %2696 = vmatmul.mubr.bf16.gmra.mxu0 %v2383
      %v2697 = vpop.f32.mrf.mxu0
      %v2698 = vadd.f32 %v2137, %v2697
      %v2699 = vpop.f32.mrf.mxu0
      %v2700 = vpop.f32.mrf.mxu0
      %v2701 = vadd.f32 %v2140, %v2700
      %v2702 = vpop.f32.mrf.mxu0
      %2703 = vmatprep.mubr.bf16.mxu0 %v2387
      %2704 = vmatmul.mubr.bf16.gmra.mxu0 %v2386
      %v2705 = vpop.f32.mrf.mxu0
      %v2706 = vadd.f32 %v2145, %v2705
      %v2707 = vpop.f32.mrf.mxu0
      %v2708 = vpop.f32.mrf.mxu0
      %v2709 = vadd.f32 %v2148, %v2708
      %v2710 = vpop.f32.mrf.mxu0
      %2711 = vmatprep.mubr.bf16.mxu0 %v2390
      %2712 = vmatmul.mubr.bf16.gmra.mxu0 %v2389
      %v2713 = vpop.f32.mrf.mxu0
      %v2714 = vadd.f32 %v2153, %v2713
      %v2715 = vpop.f32.mrf.mxu0
      %v2716 = vpop.f32.mrf.mxu0
      %v2717 = vadd.f32 %v2156, %v2716
      %v2718 = vpop.f32.mrf.mxu0
      %2719 = vmatprep.mubr.bf16.mxu0 %v2393
      %2720 = vmatmul.mubr.bf16.gmra.mxu0 %v2392
      %v2721 = vpop.f32.mrf.mxu0
      %v2722 = vadd.f32 %v2161, %v2721
      %v2723 = vpop.f32.mrf.mxu0
      %v2724 = vpop.f32.mrf.mxu0
      %v2725 = vadd.f32 %v2164, %v2724
      %v2726 = vpop.f32.mrf.mxu0
      %2727 = vmatprep.mubr.bf16.mxu0 %v2396
      %2728 = vmatmul.mubr.bf16.gmra.mxu0 %v2395
      %v2729 = vpop.f32.mrf.mxu0
      %v2730 = vadd.f32 %v2169, %v2729
      %v2731 = vpop.f32.mrf.mxu0
      %v2732 = vpop.f32.mrf.mxu0
      %v2733 = vadd.f32 %v2172, %v2732
      %v2734 = vpop.f32.mrf.mxu0
      %2735 = vmatprep.mubr.bf16.mxu0 %v2399
      %2736 = vmatmul.mubr.bf16.gmra.mxu0 %v2398
      %v2737 = vpop.f32.mrf.mxu0
      %v2738 = vadd.f32 %v2177, %v2737
      %v2739 = vpop.f32.mrf.mxu0
      %v2740 = vpop.f32.mrf.mxu0
      %v2741 = vadd.f32 %v2180, %v2740
      %v2742 = vpop.f32.mrf.mxu0
      %2743 = vmatprep.mubr.bf16.mxu0 %v2402
      %2744 = vmatmul.mubr.bf16.gmra.mxu0 %v2401
      %v2745 = vpop.f32.mrf.mxu0
      %v2746 = vadd.f32 %v2185, %v2745
      %v2747 = vpop.f32.mrf.mxu0
      %v2748 = vpop.f32.mrf.mxu0
      %v2749 = vadd.f32 %v2188, %v2748
      %v2750 = vpop.f32.mrf.mxu0
      %2751 = vmatprep.mubr.bf16.mxu0 %v2405
      %2752 = vmatmul.mubr.bf16.gmra.mxu0 %v2404
      %v2753 = vpop.f32.mrf.mxu0
      %v2754 = vadd.f32 %v2193, %v2753
      %v2755 = vpop.f32.mrf.mxu0
      %v2756 = vpop.f32.mrf.mxu0
      %v2757 = vadd.f32 %v2196, %v2756
      %v2758 = vpop.f32.mrf.mxu0
      %2759 = vdwg.mxu0
      %2760 = vmatprep.subr.bf16.mxu0 0
      %2761 = vmatpush1.bf16.msra.mxu0 %v2574
      %2762 = vmatprep.subr.bf16.mxu0 0
      %2763 = vmatpush1.bf16.msra.mxu0 %v2573
      %2764 = vmatprep.subr.bf16.mxu0 0
      %2765 = vmatpush1.bf16.msra.mxu0 %v2572
      %2766 = vmatprep.subr.bf16.mxu0 0
      %2767 = vmatpush1.bf16.msra.mxu0 %v2571
      %2768 = vmatprep.subr.bf16.mxu0 0
      %2769 = vmatpush1.bf16.msra.mxu0 %v2570
      %2770 = vmatprep.subr.bf16.mxu0 0
      %2771 = vmatpush1.bf16.msra.mxu0 %v2569
      %2772 = vmatprep.subr.bf16.mxu0 0
      %2773 = vmatpush1.bf16.msra.mxu0 %v2568
      %2774 = vmatprep.subr.bf16.mxu0 0
      %2775 = vmatpush1.bf16.msra.mxu0 %v2567
      %2776 = vmatprep.subr.bf16.mxu0 0
      %2777 = vmatpush2.bf16.msra.mxu0 0
      %2778 = vmatprep.subr.bf16.mxu0 0
      %2779 = vmatpush2.bf16.msra.mxu0 0
      %2780 = vmatprep.subr.bf16.mxu0 0
      %2781 = vmatpush2.bf16.msra.mxu0 0
      %2782 = vmatprep.subr.bf16.mxu0 0
      %2783 = vmatpush2.bf16.msra.mxu0 0
      %2784 = vmatprep.subr.bf16.mxu0 0
      %2785 = vmatpush2.bf16.msra.mxu0 0
      %2786 = vmatprep.subr.bf16.mxu0 0
      %2787 = vmatpush2.bf16.msra.mxu0 0
      %2788 = vmatprep.subr.bf16.mxu0 0
      %2789 = vmatpush2.bf16.msra.mxu0 0
      %2790 = vmatprep.subr.bf16.mxu0 0
      %2791 = vmatpush2.bf16.msra.mxu0 0
      %2792 = vmatprep.mubr.bf16.mxu0 0
      %2793 = vmatmul.mubr.bf16.gmra.mxu0 %v2361
      %v2794 = vpop.f32.mrf.mxu0
      %v2795 = vadd.f32 %v2634, %v2794
      %v2796 = vpop.f32.mrf.mxu0
      %v2797 = vpop.f32.mrf.mxu0
      %v2798 = vadd.f32 %v2637, %v2797
      %v2799 = vpop.f32.mrf.mxu0
      %2800 = vmatprep.mubr.bf16.mxu0 0
      %2801 = vmatmul.mubr.bf16.gmra.mxu0 %v2364
      %v2802 = vpop.f32.mrf.mxu0
      %v2803 = vadd.f32 %v2642, %v2802
      %v2804 = vpop.f32.mrf.mxu0
      %v2805 = vpop.f32.mrf.mxu0
      %v2806 = vadd.f32 %v2645, %v2805
      %v2807 = vpop.f32.mrf.mxu0
      %2808 = vmatprep.mubr.bf16.mxu0 0
      %2809 = vmatmul.mubr.bf16.gmra.mxu0 %v2367
      %v2810 = vpop.f32.mrf.mxu0
      %v2811 = vadd.f32 %v2650, %v2810
      %v2812 = vpop.f32.mrf.mxu0
      %v2813 = vpop.f32.mrf.mxu0
      %v2814 = vadd.f32 %v2653, %v2813
      %v2815 = vpop.f32.mrf.mxu0
      %2816 = vmatprep.mubr.bf16.mxu0 0
      %2817 = vmatmul.mubr.bf16.gmra.mxu0 %v2370
      %v2818 = vpop.f32.mrf.mxu0
      %v2819 = vadd.f32 %v2658, %v2818
      %v2820 = vpop.f32.mrf.mxu0
      %v2821 = vpop.f32.mrf.mxu0
      %v2822 = vadd.f32 %v2661, %v2821
      %v2823 = vpop.f32.mrf.mxu0
      %2824 = vmatprep.mubr.bf16.mxu0 0
      %2825 = vmatmul.mubr.bf16.gmra.mxu0 %v2373
      %v2826 = vpop.f32.mrf.mxu0
      %v2827 = vadd.f32 %v2666, %v2826
      %v2828 = vpop.f32.mrf.mxu0
      %v2829 = vpop.f32.mrf.mxu0
      %v2830 = vadd.f32 %v2669, %v2829
      %v2831 = vpop.f32.mrf.mxu0
      %2832 = vmatprep.mubr.bf16.mxu0 0
      %2833 = vmatmul.mubr.bf16.gmra.mxu0 %v2376
      %v2834 = vpop.f32.mrf.mxu0
      %v2835 = vadd.f32 %v2674, %v2834
      %v2836 = vpop.f32.mrf.mxu0
      %v2837 = vpop.f32.mrf.mxu0
      %v2838 = vadd.f32 %v2677, %v2837
      %v2839 = vpop.f32.mrf.mxu0
      %2840 = vmatprep.mubr.bf16.mxu0 0
      %2841 = vmatmul.mubr.bf16.gmra.mxu0 %v2379
      %v2842 = vpop.f32.mrf.mxu0
      %v2843 = vadd.f32 %v2682, %v2842
      %v2844 = vpop.f32.mrf.mxu0
      %v2845 = vpop.f32.mrf.mxu0
      %v2846 = vadd.f32 %v2685, %v2845
      %v2847 = vpop.f32.mrf.mxu0
      %2848 = vmatprep.mubr.bf16.mxu0 0
      %2849 = vmatmul.mubr.bf16.gmra.mxu0 %v2382
      %v2850 = vpop.f32.mrf.mxu0
      %v2851 = vadd.f32 %v2690, %v2850
      %v2852 = vpop.f32.mrf.mxu0
      %v2853 = vpop.f32.mrf.mxu0
      %v2854 = vadd.f32 %v2693, %v2853
      %v2855 = vpop.f32.mrf.mxu0
      %2856 = vmatprep.mubr.bf16.mxu0 0
      %2857 = vmatmul.mubr.bf16.gmra.mxu0 %v2385
      %v2858 = vpop.f32.mrf.mxu0
      %v2859 = vadd.f32 %v2698, %v2858
      %v2860 = vpop.f32.mrf.mxu0
      %v2861 = vpop.f32.mrf.mxu0
      %v2862 = vadd.f32 %v2701, %v2861
      %v2863 = vpop.f32.mrf.mxu0
      %2864 = vmatprep.mubr.bf16.mxu0 0
      %2865 = vmatmul.mubr.bf16.gmra.mxu0 %v2388
      %v2866 = vpop.f32.mrf.mxu0
      %v2867 = vadd.f32 %v2706, %v2866
      %v2868 = vpop.f32.mrf.mxu0
      %v2869 = vpop.f32.mrf.mxu0
      %v2870 = vadd.f32 %v2709, %v2869
      %v2871 = vpop.f32.mrf.mxu0
      %2872 = vmatprep.mubr.bf16.mxu0 0
      %2873 = vmatmul.mubr.bf16.gmra.mxu0 %v2391
      %v2874 = vpop.f32.mrf.mxu0
      %v2875 = vadd.f32 %v2714, %v2874
      %v2876 = vpop.f32.mrf.mxu0
      %v2877 = vpop.f32.mrf.mxu0
      %v2878 = vadd.f32 %v2717, %v2877
      %v2879 = vpop.f32.mrf.mxu0
      %2880 = vmatprep.mubr.bf16.mxu0 0
      %2881 = vmatmul.mubr.bf16.gmra.mxu0 %v2394
      %v2882 = vpop.f32.mrf.mxu0
      %v2883 = vadd.f32 %v2722, %v2882
      %v2884 = vpop.f32.mrf.mxu0
      %v2885 = vpop.f32.mrf.mxu0
      %v2886 = vadd.f32 %v2725, %v2885
      %v2887 = vpop.f32.mrf.mxu0
      %2888 = vmatprep.mubr.bf16.mxu0 0
      %2889 = vmatmul.mubr.bf16.gmra.mxu0 %v2397
      %v2890 = vpop.f32.mrf.mxu0
      %v2891 = vadd.f32 %v2730, %v2890
      %v2892 = vpop.f32.mrf.mxu0
      %v2893 = vpop.f32.mrf.mxu0
      %v2894 = vadd.f32 %v2733, %v2893
      %v2895 = vpop.f32.mrf.mxu0
      %2896 = vmatprep.mubr.bf16.mxu0 0
      %2897 = vmatmul.mubr.bf16.gmra.mxu0 %v2400
      %v2898 = vpop.f32.mrf.mxu0
      %v2899 = vadd.f32 %v2738, %v2898
      %v2900 = vpop.f32.mrf.mxu0
      %v2901 = vpop.f32.mrf.mxu0
      %v2902 = vadd.f32 %v2741, %v2901
      %v2903 = vpop.f32.mrf.mxu0
      %2904 = vmatprep.mubr.bf16.mxu0 0
      %2905 = vmatmul.mubr.bf16.gmra.mxu0 %v2403
      %v2906 = vpop.f32.mrf.mxu0
      %v2907 = vadd.f32 %v2746, %v2906
      %v2908 = vpop.f32.mrf.mxu0
      %v2909 = vpop.f32.mrf.mxu0
      %v2910 = vadd.f32 %v2749, %v2909
      %v2911 = vpop.f32.mrf.mxu0
      %2912 = vmatprep.mubr.bf16.mxu0 0
      %2913 = vmatmul.mubr.bf16.gmra.mxu0 %v2406
      %v2914 = vpop.f32.mrf.mxu0
      %v2915 = vadd.f32 %v2754, %v2914
      %v2916 = vpop.f32.mrf.mxu0
      %v2917 = vpop.f32.mrf.mxu0
      %v2918 = vadd.f32 %v2757, %v2917
      %v2919 = vpop.f32.mrf.mxu0
      %2920 = vdwg.mxu0
      %s2921 = scalar_lea.vmem [#allocation2], 48
      %v2922 = vld [vmem:[%s2921] sm:$0xff]
      %v2923 = vld [vmem:[%s2921 + $0x8] sm:$0xf]
      %v2924 = vld [vmem:[%s2921 + $0xc] sm:$0xff]
      %v2925 = vld [vmem:[%s2921 + $0x14] sm:$0xf]
      %v2926 = vld [vmem:[%s2921 + $0x18] sm:$0xff]
      %v2927 = vld [vmem:[%s2921 + $0x20] sm:$0xf]
      %v2928 = vld [vmem:[%s2921 + $0x24] sm:$0xff]
      %v2929 = vld [vmem:[%s2921 + $0x2c] sm:$0xf]
      %v2930 = vld [vmem:[%s2921 + $0x30] sm:$0xff]
      %v2931 = vld [vmem:[%s2921 + $0x38] sm:$0xf]
      %v2932 = vld [vmem:[%s2921 + $0x3c] sm:$0xff]
      %v2933 = vld [vmem:[%s2921 + $0x44] sm:$0xf]
      %v2934 = vld [vmem:[%s2921 + $0x48] sm:$0xff]
      %v2935 = vld [vmem:[%s2921 + $0x50] sm:$0xf]
      %v2936 = vld [vmem:[%s2921 + $0x54] sm:$0xff]
      %v2937 = vld [vmem:[%s2921 + $0x5c] sm:$0xf]
      %v2938 = vld [vmem:[%s2921 + $0x60] sm:$0xff]
      %v2939 = vld [vmem:[%s2921 + $0x68] sm:$0xf]
      %v2940 = vld [vmem:[%s2921 + $0x6c] sm:$0xff]
      %v2941 = vld [vmem:[%s2921 + $0x74] sm:$0xf]
      %v2942 = vld [vmem:[%s2921 + $0x78] sm:$0xff]
      %v2943 = vld [vmem:[%s2921 + $0x80] sm:$0xf]
      %v2944 = vld [vmem:[%s2921 + $0x84] sm:$0xff]
      %v2945 = vld [vmem:[%s2921 + $0x8c] sm:$0xf]
      %v2946 = vld [vmem:[%s2921 + $0x90] sm:$0xff]
      %v2947 = vld [vmem:[%s2921 + $0x98] sm:$0xf]
      %v2948 = vld [vmem:[%s2921 + $0x9c] sm:$0xff]
      %v2949 = vld [vmem:[%s2921 + $0xa4] sm:$0xf]
      %v2950 = vld [vmem:[%s2921 + $0xa8] sm:$0xff]
      %v2951 = vld [vmem:[%s2921 + $0xb0] sm:$0xf]
      %v2952 = vld [vmem:[%s2921 + $0xb4] sm:$0xff]
      %v2953 = vld [vmem:[%s2921 + $0xbc] sm:$0xf]
      %v2954 = vld [vmem:[%s2921 + $0xc0] sm:$0xff]
      %v2955 = vld [vmem:[%s2921 + $0xc8] sm:$0xf]
      %v2956 = vld [vmem:[%s2921 + $0xcc] sm:$0xff]
      %v2957 = vld [vmem:[%s2921 + $0xd4] sm:$0xf]
      %v2958 = vld [vmem:[%s2921 + $0xd8] sm:$0xff]
      %v2959 = vld [vmem:[%s2921 + $0xe0] sm:$0xf]
      %v2960 = vld [vmem:[%s2921 + $0xe4] sm:$0xff]
      %v2961 = vld [vmem:[%s2921 + $0xec] sm:$0xf]
      %v2962 = vld [vmem:[%s2921 + $0xf0] sm:$0xff]
      %v2963 = vld [vmem:[%s2921 + $0xf8] sm:$0xf]
      %v2964 = vld [vmem:[%s2921 + $0xfc] sm:$0xff]
      %v2965 = vld [vmem:[%s2921 + $0x104] sm:$0xf]
      %v2966 = vld [vmem:[%s2921 + $0x108] sm:$0xff]
      %v2967 = vld [vmem:[%s2921 + $0x110] sm:$0xf]
      %v2968 = vld [vmem:[%s2921 + $0x114] sm:$0xff]
      %v2969 = vld [vmem:[%s2921 + $0x11c] sm:$0xf]
      %v2970 = vld [vmem:[%s2921 + $0x120] sm:$0xff]
      %v2971 = vld [vmem:[%s2921 + $0x128] sm:$0xf]
      %v2972 = vld [vmem:[%s2921 + $0x12c] sm:$0xff]
      %v2973 = vld [vmem:[%s2921 + $0x134] sm:$0xf]
      %v2974 = vld [vmem:[%s2921 + $0x138] sm:$0xff]
      %v2975 = vld [vmem:[%s2921 + $0x140] sm:$0xf]
      %v2976 = vld [vmem:[%s2921 + $0x144] sm:$0xff]
      %v2977 = vld [vmem:[%s2921 + $0x14c] sm:$0xf]
      %v2978 = vld [vmem:[%s2921 + $0x150] sm:$0xff]
      %v2979 = vld [vmem:[%s2921 + $0x158] sm:$0xf]
      %v2980 = vld [vmem:[%s2921 + $0x15c] sm:$0xff]
      %v2981 = vld [vmem:[%s2921 + $0x164] sm:$0xf]
      %v2982 = vld [vmem:[%s2921 + $0x168] sm:$0xff]
      %v2983 = vld [vmem:[%s2921 + $0x170] sm:$0xf]
      %v2984 = vld [vmem:[%s2921 + $0x174] sm:$0xff]
      %v2985 = vld [vmem:[%s2921 + $0x17c] sm:$0xf]
      %s2986 = scalar_lea.vmem %s3, 384
      %v2987 = vld [vmem:[%s2986] sm:$0xf]
      %v2988 = vld [vmem:[%s2986 + $0x4] sm:$0xf]
      %v2989 = vld [vmem:[%s2986 + $0x8] sm:$0xf]
      %v2990 = vld [vmem:[%s2986 + $0xc] sm:$0xf]
      %v2991 = vld [vmem:[%s2986 + $0x10] sm:$0xf]
      %v2992 = vld [vmem:[%s2986 + $0x14] sm:$0xf]
      %v2993 = vld [vmem:[%s2986 + $0x18] sm:$0xf]
      %v2994 = vld [vmem:[%s2986 + $0x1c] sm:$0xf]
      %v2995 = vld [vmem:[%s2986 + $0x20] sm:$0xf]
      %v2996 = vld [vmem:[%s2986 + $0x24] sm:$0xf]
      %v2997 = vld [vmem:[%s2986 + $0x28] sm:$0xf]
      %v2998 = vld [vmem:[%s2986 + $0x2c] sm:$0xf]
      %v2999 = vld [vmem:[%s2986 + $0x30] sm:$0xf]
      %v3000 = vld [vmem:[%s2986 + $0x34] sm:$0xf]
      %v3001 = vld [vmem:[%s2986 + $0x38] sm:$0xf]
      %v3002 = vld [vmem:[%s2986 + $0x3c] sm:$0xf]
      %v3003 = vld [vmem:[%s2986 + $0x40] sm:$0xf]
      %v3004 = vld [vmem:[%s2986 + $0x44] sm:$0xf]
      %v3005 = vld [vmem:[%s2986 + $0x48] sm:$0xf]
      %v3006 = vld [vmem:[%s2986 + $0x4c] sm:$0xf]
      %v3007 = vld [vmem:[%s2986 + $0x50] sm:$0xf]
      %v3008 = vld [vmem:[%s2986 + $0x54] sm:$0xf]
      %v3009 = vld [vmem:[%s2986 + $0x58] sm:$0xf]
      %v3010 = vld [vmem:[%s2986 + $0x5c] sm:$0xf]
      %v3011 = vld [vmem:[%s2986 + $0x60] sm:$0xf]
      %v3012 = vld [vmem:[%s2986 + $0x64] sm:$0xf]
      %v3013 = vld [vmem:[%s2986 + $0x68] sm:$0xf]
      %v3014 = vld [vmem:[%s2986 + $0x6c] sm:$0xf]
      %v3015 = vld [vmem:[%s2986 + $0x70] sm:$0xf]
      %v3016 = vld [vmem:[%s2986 + $0x74] sm:$0xf]
      %v3017 = vld [vmem:[%s2986 + $0x78] sm:$0xf]
      %v3018 = vld [vmem:[%s2986 + $0x7c] sm:$0xf]
      %v3019 = vld [vmem:[%s2986 + $0x80] sm:$0xf]
      %v3020 = vld [vmem:[%s2986 + $0x84] sm:$0xf]
      %v3021 = vld [vmem:[%s2986 + $0x88] sm:$0xf]
      %v3022 = vld [vmem:[%s2986 + $0x8c] sm:$0xf]
      %v3023 = vld [vmem:[%s2986 + $0x90] sm:$0xf]
      %v3024 = vld [vmem:[%s2986 + $0x94] sm:$0xf]
      %v3025 = vld [vmem:[%s2986 + $0x98] sm:$0xf]
      %v3026 = vld [vmem:[%s2986 + $0x9c] sm:$0xf]
      %v3027 = vld [vmem:[%s2986 + $0xa0] sm:$0xf]
      %v3028 = vld [vmem:[%s2986 + $0xa4] sm:$0xf]
      %v3029 = vld [vmem:[%s2986 + $0xa8] sm:$0xf]
      %v3030 = vld [vmem:[%s2986 + $0xac] sm:$0xf]
      %v3031 = vld [vmem:[%s2986 + $0xb0] sm:$0xf]
      %v3032 = vld [vmem:[%s2986 + $0xb4] sm:$0xf]
      %v3033 = vld [vmem:[%s2986 + $0xb8] sm:$0xf]
      %v3034 = vld [vmem:[%s2986 + $0xbc] sm:$0xf]
      %v3099 = vunpack.c.l.b16 %v2922
      %v3100 = vunpack.c.h.b16 %v2922
      %v3101 = vunpack.c.l.b16 %v2923
      %v3102 = vunpack.c.l.b16 %v2924
      %v3103 = vunpack.c.h.b16 %v2924
      %v3104 = vunpack.c.l.b16 %v2925
      %v3105 = vunpack.c.l.b16 %v2926
      %v3106 = vunpack.c.h.b16 %v2926
      %v3107 = vunpack.c.l.b16 %v2927
      %v3108 = vunpack.c.l.b16 %v2928
      %v3109 = vunpack.c.h.b16 %v2928
      %v3110 = vunpack.c.l.b16 %v2929
      %v3111 = vunpack.c.l.b16 %v2930
      %v3112 = vunpack.c.h.b16 %v2930
      %v3113 = vunpack.c.l.b16 %v2931
      %v3114 = vunpack.c.l.b16 %v2932
      %v3115 = vunpack.c.h.b16 %v2932
      %v3116 = vunpack.c.l.b16 %v2933
      %v3117 = vunpack.c.l.b16 %v2934
      %v3118 = vunpack.c.h.b16 %v2934
      %v3119 = vunpack.c.l.b16 %v2935
      %v3120 = vunpack.c.l.b16 %v2936
      %v3121 = vunpack.c.h.b16 %v2936
      %v3122 = vunpack.c.l.b16 %v2937
      %v3123 = vunpack.c.l.b16 %v2938
      %v3124 = vunpack.c.h.b16 %v2938
      %v3125 = vunpack.c.l.b16 %v2939
      %v3126 = vunpack.c.l.b16 %v2940
      %v3127 = vunpack.c.h.b16 %v2940
      %v3128 = vunpack.c.l.b16 %v2941
      %v3129 = vunpack.c.l.b16 %v2942
      %v3130 = vunpack.c.h.b16 %v2942
      %v3131 = vunpack.c.l.b16 %v2943
      %v3132 = vunpack.c.l.b16 %v2944
      %v3133 = vunpack.c.h.b16 %v2944
      %v3134 = vunpack.c.l.b16 %v2945
      %v3135 = vunpack.c.l.b16 %v2946
      %v3136 = vunpack.c.h.b16 %v2946
      %v3137 = vunpack.c.l.b16 %v2947
      %v3138 = vunpack.c.l.b16 %v2948
      %v3139 = vunpack.c.h.b16 %v2948
      %v3140 = vunpack.c.l.b16 %v2949
      %v3141 = vunpack.c.l.b16 %v2950
      %v3142 = vunpack.c.h.b16 %v2950
      %v3143 = vunpack.c.l.b16 %v2951
      %v3144 = vunpack.c.l.b16 %v2952
      %v3145 = vunpack.c.h.b16 %v2952
      %v3146 = vunpack.c.l.b16 %v2953
      %v3147 = vunpack.c.l.b16 %v2954
      %v3148 = vunpack.c.h.b16 %v2954
      %v3149 = vunpack.c.l.b16 %v2955
      %v3150 = vunpack.c.l.b16 %v2956
      %v3151 = vunpack.c.h.b16 %v2956
      %v3152 = vunpack.c.l.b16 %v2957
      %v3153 = vunpack.c.l.b16 %v2958
      %v3154 = vunpack.c.h.b16 %v2958
      %v3155 = vunpack.c.l.b16 %v2959
      %v3156 = vunpack.c.l.b16 %v2960
      %v3157 = vunpack.c.h.b16 %v2960
      %v3158 = vunpack.c.l.b16 %v2961
      %v3159 = vunpack.c.l.b16 %v2962
      %v3160 = vunpack.c.h.b16 %v2962
      %v3161 = vunpack.c.l.b16 %v2963
      %v3162 = vunpack.c.l.b16 %v2964
      %v3163 = vunpack.c.h.b16 %v2964
      %v3164 = vunpack.c.l.b16 %v2965
      %v3165 = vunpack.c.l.b16 %v2966
      %v3166 = vunpack.c.h.b16 %v2966
      %v3167 = vunpack.c.l.b16 %v2967
      %v3168 = vunpack.c.l.b16 %v2968
      %v3169 = vunpack.c.h.b16 %v2968
      %v3170 = vunpack.c.l.b16 %v2969
      %v3171 = vunpack.c.l.b16 %v2970
      %v3172 = vunpack.c.h.b16 %v2970
      %v3173 = vunpack.c.l.b16 %v2971
      %v3174 = vunpack.c.l.b16 %v2972
      %v3175 = vunpack.c.h.b16 %v2972
      %v3176 = vunpack.c.l.b16 %v2973
      %v3177 = vunpack.c.l.b16 %v2974
      %v3178 = vunpack.c.h.b16 %v2974
      %v3179 = vunpack.c.l.b16 %v2975
      %v3180 = vunpack.c.l.b16 %v2976
      %v3181 = vunpack.c.h.b16 %v2976
      %v3182 = vunpack.c.l.b16 %v2977
      %v3183 = vunpack.c.l.b16 %v2978
      %v3184 = vunpack.c.h.b16 %v2978
      %v3185 = vunpack.c.l.b16 %v2979
      %v3186 = vunpack.c.l.b16 %v2980
      %v3187 = vunpack.c.h.b16 %v2980
      %v3188 = vunpack.c.l.b16 %v2981
      %v3189 = vunpack.c.l.b16 %v2982
      %v3190 = vunpack.c.h.b16 %v2982
      %v3191 = vunpack.c.l.b16 %v2983
      %v3192 = vunpack.c.l.b16 %v2984
      %v3193 = vunpack.c.h.b16 %v2984
      %v3194 = vunpack.c.l.b16 %v2985
      %v3195 = vpack.c.b16 %v3102, %v3099
      %v3196 = vpack.c.b16 %v3103, %v3100
      %v3197 = vpack.c.b16 %v3104, %v3101
      %v3198 = vpack.c.b16 %v3108, %v3105
      %v3199 = vpack.c.b16 %v3109, %v3106
      %v3200 = vpack.c.b16 %v3110, %v3107
      %v3201 = vpack.c.b16 %v3114, %v3111
      %v3202 = vpack.c.b16 %v3115, %v3112
      %v3203 = vpack.c.b16 %v3116, %v3113
      %v3204 = vpack.c.b16 %v3120, %v3117
      %v3205 = vpack.c.b16 %v3121, %v3118
      %v3206 = vpack.c.b16 %v3122, %v3119
      %v3207 = vpack.c.b16 %v3126, %v3123
      %v3208 = vpack.c.b16 %v3127, %v3124
      %v3209 = vpack.c.b16 %v3128, %v3125
      %v3210 = vpack.c.b16 %v3132, %v3129
      %v3211 = vpack.c.b16 %v3133, %v3130
      %v3212 = vpack.c.b16 %v3134, %v3131
      %v3213 = vpack.c.b16 %v3138, %v3135
      %v3214 = vpack.c.b16 %v3139, %v3136
      %v3215 = vpack.c.b16 %v3140, %v3137
      %v3216 = vpack.c.b16 %v3144, %v3141
      %v3217 = vpack.c.b16 %v3145, %v3142
      %v3218 = vpack.c.b16 %v3146, %v3143
      %v3219 = vpack.c.b16 %v3150, %v3147
      %v3220 = vpack.c.b16 %v3151, %v3148
      %v3221 = vpack.c.b16 %v3152, %v3149
      %v3222 = vpack.c.b16 %v3156, %v3153
      %v3223 = vpack.c.b16 %v3157, %v3154
      %v3224 = vpack.c.b16 %v3158, %v3155
      %v3225 = vpack.c.b16 %v3162, %v3159
      %v3226 = vpack.c.b16 %v3163, %v3160
      %v3227 = vpack.c.b16 %v3164, %v3161
      %v3228 = vpack.c.b16 %v3168, %v3165
      %v3229 = vpack.c.b16 %v3169, %v3166
      %v3230 = vpack.c.b16 %v3170, %v3167
      %v3231 = vpack.c.b16 %v3174, %v3171
      %v3232 = vpack.c.b16 %v3175, %v3172
      %v3233 = vpack.c.b16 %v3176, %v3173
      %v3234 = vpack.c.b16 %v3180, %v3177
      %v3235 = vpack.c.b16 %v3181, %v3178
      %v3236 = vpack.c.b16 %v3182, %v3179
      %v3237 = vpack.c.b16 %v3186, %v3183
      %v3238 = vpack.c.b16 %v3187, %v3184
      %v3239 = vpack.c.b16 %v3188, %v3185
      %v3240 = vpack.c.b16 %v3192, %v3189
      %v3241 = vpack.c.b16 %v3193, %v3190
      %v3242 = vpack.c.b16 %v3194, %v3191
      %v3339 = vunpack.c.l.b16 %v2987
      %v3340 = vunpack.c.l.b16 %v2988
      %v3341 = vunpack.c.l.b16 %v2989
      %v3342 = vunpack.c.l.b16 %v2990
      %v3343 = vunpack.c.l.b16 %v2991
      %v3344 = vunpack.c.l.b16 %v2992
      %v3345 = vunpack.c.l.b16 %v2993
      %v3346 = vunpack.c.l.b16 %v2994
      %v3347 = vunpack.c.l.b16 %v2995
      %v3348 = vunpack.c.l.b16 %v2996
      %v3349 = vunpack.c.l.b16 %v2997
      %v3350 = vunpack.c.l.b16 %v2998
      %v3351 = vunpack.c.l.b16 %v2999
      %v3352 = vunpack.c.l.b16 %v3000
      %v3353 = vunpack.c.l.b16 %v3001
      %v3354 = vunpack.c.l.b16 %v3002
      %v3355 = vunpack.c.l.b16 %v3003
      %v3356 = vunpack.c.l.b16 %v3004
      %v3357 = vunpack.c.l.b16 %v3005
      %v3358 = vunpack.c.l.b16 %v3006
      %v3359 = vunpack.c.l.b16 %v3007
      %v3360 = vunpack.c.l.b16 %v3008
      %v3361 = vunpack.c.l.b16 %v3009
      %v3362 = vunpack.c.l.b16 %v3010
      %v3363 = vunpack.c.l.b16 %v3011
      %v3364 = vunpack.c.l.b16 %v3012
      %v3365 = vunpack.c.l.b16 %v3013
      %v3366 = vunpack.c.l.b16 %v3014
      %v3367 = vunpack.c.l.b16 %v3015
      %v3368 = vunpack.c.l.b16 %v3016
      %v3369 = vunpack.c.l.b16 %v3017
      %v3370 = vunpack.c.l.b16 %v3018
      %v3371 = vunpack.c.l.b16 %v3019
      %v3372 = vunpack.c.l.b16 %v3020
      %v3373 = vunpack.c.l.b16 %v3021
      %v3374 = vunpack.c.l.b16 %v3022
      %v3375 = vunpack.c.l.b16 %v3023
      %v3376 = vunpack.c.l.b16 %v3024
      %v3377 = vunpack.c.l.b16 %v3025
      %v3378 = vunpack.c.l.b16 %v3026
      %v3379 = vunpack.c.l.b16 %v3027
      %v3380 = vunpack.c.l.b16 %v3028
      %v3381 = vunpack.c.l.b16 %v3029
      %v3382 = vunpack.c.l.b16 %v3030
      %v3383 = vunpack.c.l.b16 %v3031
      %v3384 = vunpack.c.l.b16 %v3032
      %v3385 = vunpack.c.l.b16 %v3033
      %v3386 = vunpack.c.l.b16 %v3034
      %v3387 = vpack.c.b16 %v3340, %v3339
      %v3388 = vpack.c.b16 %v3342, %v3341
      %v3389 = vpack.c.b16 %v3344, %v3343
      %v3390 = vpack.c.b16 %v3346, %v3345
      %v3391 = vpack.c.b16 %v3348, %v3347
      %v3392 = vpack.c.b16 %v3350, %v3349
      %v3393 = vpack.c.b16 %v3352, %v3351
      %v3394 = vpack.c.b16 %v3354, %v3353
      %v3395 = vpack.c.b16 %v3356, %v3355
      %v3396 = vpack.c.b16 %v3358, %v3357
      %v3397 = vpack.c.b16 %v3360, %v3359
      %v3398 = vpack.c.b16 %v3362, %v3361
      %v3399 = vpack.c.b16 %v3364, %v3363
      %v3400 = vpack.c.b16 %v3366, %v3365
      %v3401 = vpack.c.b16 %v3368, %v3367
      %v3402 = vpack.c.b16 %v3370, %v3369
      %v3403 = vpack.c.b16 %v3372, %v3371
      %v3404 = vpack.c.b16 %v3374, %v3373
      %v3405 = vpack.c.b16 %v3376, %v3375
      %v3406 = vpack.c.b16 %v3378, %v3377
      %v3407 = vpack.c.b16 %v3380, %v3379
      %v3408 = vpack.c.b16 %v3382, %v3381
      %v3409 = vpack.c.b16 %v3384, %v3383
      %v3410 = vpack.c.b16 %v3386, %v3385
      %3435 = vmatprep.subr.bf16.mxu0 0
      %3436 = vmatpush1.bf16.msra.mxu0 %v3394
      %3437 = vmatprep.subr.bf16.mxu0 0
      %3438 = vmatpush1.bf16.msra.mxu0 %v3393
      %3439 = vmatprep.subr.bf16.mxu0 0
      %3440 = vmatpush1.bf16.msra.mxu0 %v3392
      %3441 = vmatprep.subr.bf16.mxu0 0
      %3442 = vmatpush1.bf16.msra.mxu0 %v3391
      %3443 = vmatprep.subr.bf16.mxu0 0
      %3444 = vmatpush1.bf16.msra.mxu0 %v3390
      %3445 = vmatprep.subr.bf16.mxu0 0
      %3446 = vmatpush1.bf16.msra.mxu0 %v3389
      %3447 = vmatprep.subr.bf16.mxu0 0
      %3448 = vmatpush1.bf16.msra.mxu0 %v3388
      %3449 = vmatprep.subr.bf16.mxu0 0
      %3450 = vmatpush1.bf16.msra.mxu0 %v3387
      %3451 = vmatprep.subr.bf16.mxu0 0
      %3452 = vmatpush2.bf16.msra.mxu0 %v3402
      %3453 = vmatprep.subr.bf16.mxu0 0
      %3454 = vmatpush2.bf16.msra.mxu0 %v3401
      %3455 = vmatprep.subr.bf16.mxu0 0
      %3456 = vmatpush2.bf16.msra.mxu0 %v3400
      %3457 = vmatprep.subr.bf16.mxu0 0
      %3458 = vmatpush2.bf16.msra.mxu0 %v3399
      %3459 = vmatprep.subr.bf16.mxu0 0
      %3460 = vmatpush2.bf16.msra.mxu0 %v3398
      %3461 = vmatprep.subr.bf16.mxu0 0
      %3462 = vmatpush2.bf16.msra.mxu0 %v3397
      %3463 = vmatprep.subr.bf16.mxu0 0
      %3464 = vmatpush2.bf16.msra.mxu0 %v3396
      %3465 = vmatprep.subr.bf16.mxu0 0
      %3466 = vmatpush2.bf16.msra.mxu0 %v3395
      %3467 = vmatprep.mubr.bf16.mxu0 %v3196
      %3468 = vmatmul.mubr.bf16.gmra.mxu0 %v3195
      %v3469 = vpop.f32.mrf.mxu0
      %v3470 = vadd.f32 0.0, %v3469
      %v3471 = vpop.f32.mrf.mxu0
      %v3472 = vpop.f32.mrf.mxu0
      %v3473 = vadd.f32 0.0, %v3472
      %v3474 = vpop.f32.mrf.mxu0
      %3475 = vmatprep.mubr.bf16.mxu0 %v3199
      %3476 = vmatmul.mubr.bf16.gmra.mxu0 %v3198
      %v3477 = vpop.f32.mrf.mxu0
      %v3478 = vadd.f32 0.0, %v3477
      %v3479 = vpop.f32.mrf.mxu0
      %v3480 = vpop.f32.mrf.mxu0
      %v3481 = vadd.f32 0.0, %v3480
      %v3482 = vpop.f32.mrf.mxu0
      %3483 = vmatprep.mubr.bf16.mxu0 %v3202
      %3484 = vmatmul.mubr.bf16.gmra.mxu0 %v3201
      %v3485 = vpop.f32.mrf.mxu0
      %v3486 = vadd.f32 0.0, %v3485
      %v3487 = vpop.f32.mrf.mxu0
      %v3488 = vpop.f32.mrf.mxu0
      %v3489 = vadd.f32 0.0, %v3488
      %v3490 = vpop.f32.mrf.mxu0
      %3491 = vmatprep.mubr.bf16.mxu0 %v3205
      %3492 = vmatmul.mubr.bf16.gmra.mxu0 %v3204
      %v3493 = vpop.f32.mrf.mxu0
      %v3494 = vadd.f32 0.0, %v3493
      %v3495 = vpop.f32.mrf.mxu0
      %v3496 = vpop.f32.mrf.mxu0
      %v3497 = vadd.f32 0.0, %v3496
      %v3498 = vpop.f32.mrf.mxu0
      %3499 = vmatprep.mubr.bf16.mxu0 %v3208
      %3500 = vmatmul.mubr.bf16.gmra.mxu0 %v3207
      %v3501 = vpop.f32.mrf.mxu0
      %v3502 = vadd.f32 0.0, %v3501
      %v3503 = vpop.f32.mrf.mxu0
      %v3504 = vpop.f32.mrf.mxu0
      %v3505 = vadd.f32 0.0, %v3504
      %v3506 = vpop.f32.mrf.mxu0
      %3507 = vmatprep.mubr.bf16.mxu0 %v3211
      %3508 = vmatmul.mubr.bf16.gmra.mxu0 %v3210
      %v3509 = vpop.f32.mrf.mxu0
      %v3510 = vadd.f32 0.0, %v3509
      %v3511 = vpop.f32.mrf.mxu0
      %v3512 = vpop.f32.mrf.mxu0
      %v3513 = vadd.f32 0.0, %v3512
      %v3514 = vpop.f32.mrf.mxu0
      %3515 = vmatprep.mubr.bf16.mxu0 %v3214
      %3516 = vmatmul.mubr.bf16.gmra.mxu0 %v3213
      %v3517 = vpop.f32.mrf.mxu0
      %v3518 = vadd.f32 0.0, %v3517
      %v3519 = vpop.f32.mrf.mxu0
      %v3520 = vpop.f32.mrf.mxu0
      %v3521 = vadd.f32 0.0, %v3520
      %v3522 = vpop.f32.mrf.mxu0
      %3523 = vmatprep.mubr.bf16.mxu0 %v3217
      %3524 = vmatmul.mubr.bf16.gmra.mxu0 %v3216
      %v3525 = vpop.f32.mrf.mxu0
      %v3526 = vadd.f32 0.0, %v3525
      %v3527 = vpop.f32.mrf.mxu0
      %v3528 = vpop.f32.mrf.mxu0
      %v3529 = vadd.f32 0.0, %v3528
      %v3530 = vpop.f32.mrf.mxu0
      %3531 = vmatprep.mubr.bf16.mxu0 %v3220
      %3532 = vmatmul.mubr.bf16.gmra.mxu0 %v3219
      %v3533 = vpop.f32.mrf.mxu0
      %v3534 = vadd.f32 0.0, %v3533
      %v3535 = vpop.f32.mrf.mxu0
      %v3536 = vpop.f32.mrf.mxu0
      %v3537 = vadd.f32 0.0, %v3536
      %v3538 = vpop.f32.mrf.mxu0
      %3539 = vmatprep.mubr.bf16.mxu0 %v3223
      %3540 = vmatmul.mubr.bf16.gmra.mxu0 %v3222
      %v3541 = vpop.f32.mrf.mxu0
      %v3542 = vadd.f32 0.0, %v3541
      %v3543 = vpop.f32.mrf.mxu0
      %v3544 = vpop.f32.mrf.mxu0
      %v3545 = vadd.f32 0.0, %v3544
      %v3546 = vpop.f32.mrf.mxu0
      %3547 = vmatprep.mubr.bf16.mxu0 %v3226
      %3548 = vmatmul.mubr.bf16.gmra.mxu0 %v3225
      %v3549 = vpop.f32.mrf.mxu0
      %v3550 = vadd.f32 0.0, %v3549
      %v3551 = vpop.f32.mrf.mxu0
      %v3552 = vpop.f32.mrf.mxu0
      %v3553 = vadd.f32 0.0, %v3552
      %v3554 = vpop.f32.mrf.mxu0
      %3555 = vmatprep.mubr.bf16.mxu0 %v3229
      %3556 = vmatmul.mubr.bf16.gmra.mxu0 %v3228
      %v3557 = vpop.f32.mrf.mxu0
      %v3558 = vadd.f32 0.0, %v3557
      %v3559 = vpop.f32.mrf.mxu0
      %v3560 = vpop.f32.mrf.mxu0
      %v3561 = vadd.f32 0.0, %v3560
      %v3562 = vpop.f32.mrf.mxu0
      %3563 = vmatprep.mubr.bf16.mxu0 %v3232
      %3564 = vmatmul.mubr.bf16.gmra.mxu0 %v3231
      %v3565 = vpop.f32.mrf.mxu0
      %v3566 = vadd.f32 0.0, %v3565
      %v3567 = vpop.f32.mrf.mxu0
      %v3568 = vpop.f32.mrf.mxu0
      %v3569 = vadd.f32 0.0, %v3568
      %v3570 = vpop.f32.mrf.mxu0
      %3571 = vmatprep.mubr.bf16.mxu0 %v3235
      %3572 = vmatmul.mubr.bf16.gmra.mxu0 %v3234
      %v3573 = vpop.f32.mrf.mxu0
      %v3574 = vadd.f32 0.0, %v3573
      %v3575 = vpop.f32.mrf.mxu0
      %v3576 = vpop.f32.mrf.mxu0
      %v3577 = vadd.f32 0.0, %v3576
      %v3578 = vpop.f32.mrf.mxu0
      %3579 = vmatprep.mubr.bf16.mxu0 %v3238
      %3580 = vmatmul.mubr.bf16.gmra.mxu0 %v3237
      %v3581 = vpop.f32.mrf.mxu0
      %v3582 = vadd.f32 0.0, %v3581
      %v3583 = vpop.f32.mrf.mxu0
      %v3584 = vpop.f32.mrf.mxu0
      %v3585 = vadd.f32 0.0, %v3584
      %v3586 = vpop.f32.mrf.mxu0
      %3587 = vmatprep.mubr.bf16.mxu0 %v3241
      %3588 = vmatmul.mubr.bf16.gmra.mxu0 %v3240
      %v3589 = vpop.f32.mrf.mxu0
      %v3590 = vadd.f32 0.0, %v3589
      %v3591 = vpop.f32.mrf.mxu0
      %v3592 = vpop.f32.mrf.mxu0
      %v3593 = vadd.f32 0.0, %v3592
      %v3594 = vpop.f32.mrf.mxu0
      %3595 = vdwg.mxu0
      %3596 = vmatprep.subr.bf16.mxu0 0
      %3597 = vmatpush1.bf16.msra.mxu0 %v3410
      %3598 = vmatprep.subr.bf16.mxu0 0
      %3599 = vmatpush1.bf16.msra.mxu0 %v3409
      %3600 = vmatprep.subr.bf16.mxu0 0
      %3601 = vmatpush1.bf16.msra.mxu0 %v3408
      %3602 = vmatprep.subr.bf16.mxu0 0
      %3603 = vmatpush1.bf16.msra.mxu0 %v3407
      %3604 = vmatprep.subr.bf16.mxu0 0
      %3605 = vmatpush1.bf16.msra.mxu0 %v3406
      %3606 = vmatprep.subr.bf16.mxu0 0
      %3607 = vmatpush1.bf16.msra.mxu0 %v3405
      %3608 = vmatprep.subr.bf16.mxu0 0
      %3609 = vmatpush1.bf16.msra.mxu0 %v3404
      %3610 = vmatprep.subr.bf16.mxu0 0
      %3611 = vmatpush1.bf16.msra.mxu0 %v3403
      %3612 = vmatprep.subr.bf16.mxu0 0
      %3613 = vmatpush2.bf16.msra.mxu0 0
      %3614 = vmatprep.subr.bf16.mxu0 0
      %3615 = vmatpush2.bf16.msra.mxu0 0
      %3616 = vmatprep.subr.bf16.mxu0 0
      %3617 = vmatpush2.bf16.msra.mxu0 0
      %3618 = vmatprep.subr.bf16.mxu0 0
      %3619 = vmatpush2.bf16.msra.mxu0 0
      %3620 = vmatprep.subr.bf16.mxu0 0
      %3621 = vmatpush2.bf16.msra.mxu0 0
      %3622 = vmatprep.subr.bf16.mxu0 0
      %3623 = vmatpush2.bf16.msra.mxu0 0
      %3624 = vmatprep.subr.bf16.mxu0 0
      %3625 = vmatpush2.bf16.msra.mxu0 0
      %3626 = vmatprep.subr.bf16.mxu0 0
      %3627 = vmatpush2.bf16.msra.mxu0 0
      %3628 = vmatprep.mubr.bf16.mxu0 0
      %3629 = vmatmul.mubr.bf16.gmra.mxu0 %v3197
      %v3630 = vpop.f32.mrf.mxu0
      %v3631 = vadd.f32 %v3470, %v3630
      %v3632 = vpop.f32.mrf.mxu0
      %v3633 = vpop.f32.mrf.mxu0
      %v3634 = vadd.f32 %v3473, %v3633
      %v3635 = vpop.f32.mrf.mxu0
      %3636 = vmatprep.mubr.bf16.mxu0 0
      %3637 = vmatmul.mubr.bf16.gmra.mxu0 %v3200
      %v3638 = vpop.f32.mrf.mxu0
      %v3639 = vadd.f32 %v3478, %v3638
      %v3640 = vpop.f32.mrf.mxu0
      %v3641 = vpop.f32.mrf.mxu0
      %v3642 = vadd.f32 %v3481, %v3641
      %v3643 = vpop.f32.mrf.mxu0
      %3644 = vmatprep.mubr.bf16.mxu0 0
      %3645 = vmatmul.mubr.bf16.gmra.mxu0 %v3203
      %v3646 = vpop.f32.mrf.mxu0
      %v3647 = vadd.f32 %v3486, %v3646
      %v3648 = vpop.f32.mrf.mxu0
      %v3649 = vpop.f32.mrf.mxu0
      %v3650 = vadd.f32 %v3489, %v3649
      %v3651 = vpop.f32.mrf.mxu0
      %3652 = vmatprep.mubr.bf16.mxu0 0
      %3653 = vmatmul.mubr.bf16.gmra.mxu0 %v3206
      %v3654 = vpop.f32.mrf.mxu0
      %v3655 = vadd.f32 %v3494, %v3654
      %v3656 = vpop.f32.mrf.mxu0
      %v3657 = vpop.f32.mrf.mxu0
      %v3658 = vadd.f32 %v3497, %v3657
      %v3659 = vpop.f32.mrf.mxu0
      %3660 = vmatprep.mubr.bf16.mxu0 0
      %3661 = vmatmul.mubr.bf16.gmra.mxu0 %v3209
      %v3662 = vpop.f32.mrf.mxu0
      %v3663 = vadd.f32 %v3502, %v3662
      %v3664 = vpop.f32.mrf.mxu0
      %v3665 = vpop.f32.mrf.mxu0
      %v3666 = vadd.f32 %v3505, %v3665
      %v3667 = vpop.f32.mrf.mxu0
      %3668 = vmatprep.mubr.bf16.mxu0 0
      %3669 = vmatmul.mubr.bf16.gmra.mxu0 %v3212
      %v3670 = vpop.f32.mrf.mxu0
      %v3671 = vadd.f32 %v3510, %v3670
      %v3672 = vpop.f32.mrf.mxu0
      %v3673 = vpop.f32.mrf.mxu0
      %v3674 = vadd.f32 %v3513, %v3673
      %v3675 = vpop.f32.mrf.mxu0
      %3676 = vmatprep.mubr.bf16.mxu0 0
      %3677 = vmatmul.mubr.bf16.gmra.mxu0 %v3215
      %v3678 = vpop.f32.mrf.mxu0
      %v3679 = vadd.f32 %v3518, %v3678
      %v3680 = vpop.f32.mrf.mxu0
      %v3681 = vpop.f32.mrf.mxu0
      %v3682 = vadd.f32 %v3521, %v3681
      %v3683 = vpop.f32.mrf.mxu0
      %3684 = vmatprep.mubr.bf16.mxu0 0
      %3685 = vmatmul.mubr.bf16.gmra.mxu0 %v3218
      %v3686 = vpop.f32.mrf.mxu0
      %v3687 = vadd.f32 %v3526, %v3686
      %v3688 = vpop.f32.mrf.mxu0
      %v3689 = vpop.f32.mrf.mxu0
      %v3690 = vadd.f32 %v3529, %v3689
      %v3691 = vpop.f32.mrf.mxu0
      %3692 = vmatprep.mubr.bf16.mxu0 0
      %3693 = vmatmul.mubr.bf16.gmra.mxu0 %v3221
      %v3694 = vpop.f32.mrf.mxu0
      %v3695 = vadd.f32 %v3534, %v3694
      %v3696 = vpop.f32.mrf.mxu0
      %v3697 = vpop.f32.mrf.mxu0
      %v3698 = vadd.f32 %v3537, %v3697
      %v3699 = vpop.f32.mrf.mxu0
      %3700 = vmatprep.mubr.bf16.mxu0 0
      %3701 = vmatmul.mubr.bf16.gmra.mxu0 %v3224
      %v3702 = vpop.f32.mrf.mxu0
      %v3703 = vadd.f32 %v3542, %v3702
      %v3704 = vpop.f32.mrf.mxu0
      %v3705 = vpop.f32.mrf.mxu0
      %v3706 = vadd.f32 %v3545, %v3705
      %v3707 = vpop.f32.mrf.mxu0
      %3708 = vmatprep.mubr.bf16.mxu0 0
      %3709 = vmatmul.mubr.bf16.gmra.mxu0 %v3227
      %v3710 = vpop.f32.mrf.mxu0
      %v3711 = vadd.f32 %v3550, %v3710
      %v3712 = vpop.f32.mrf.mxu0
      %v3713 = vpop.f32.mrf.mxu0
      %v3714 = vadd.f32 %v3553, %v3713
      %v3715 = vpop.f32.mrf.mxu0
      %3716 = vmatprep.mubr.bf16.mxu0 0
      %3717 = vmatmul.mubr.bf16.gmra.mxu0 %v3230
      %v3718 = vpop.f32.mrf.mxu0
      %v3719 = vadd.f32 %v3558, %v3718
      %v3720 = vpop.f32.mrf.mxu0
      %v3721 = vpop.f32.mrf.mxu0
      %v3722 = vadd.f32 %v3561, %v3721
      %v3723 = vpop.f32.mrf.mxu0
      %3724 = vmatprep.mubr.bf16.mxu0 0
      %3725 = vmatmul.mubr.bf16.gmra.mxu0 %v3233
      %v3726 = vpop.f32.mrf.mxu0
      %v3727 = vadd.f32 %v3566, %v3726
      %v3728 = vpop.f32.mrf.mxu0
      %v3729 = vpop.f32.mrf.mxu0
      %v3730 = vadd.f32 %v3569, %v3729
      %v3731 = vpop.f32.mrf.mxu0
      %3732 = vmatprep.mubr.bf16.mxu0 0
      %3733 = vmatmul.mubr.bf16.gmra.mxu0 %v3236
      %v3734 = vpop.f32.mrf.mxu0
      %v3735 = vadd.f32 %v3574, %v3734
      %v3736 = vpop.f32.mrf.mxu0
      %v3737 = vpop.f32.mrf.mxu0
      %v3738 = vadd.f32 %v3577, %v3737
      %v3739 = vpop.f32.mrf.mxu0
      %3740 = vmatprep.mubr.bf16.mxu0 0
      %3741 = vmatmul.mubr.bf16.gmra.mxu0 %v3239
      %v3742 = vpop.f32.mrf.mxu0
      %v3743 = vadd.f32 %v3582, %v3742
      %v3744 = vpop.f32.mrf.mxu0
      %v3745 = vpop.f32.mrf.mxu0
      %v3746 = vadd.f32 %v3585, %v3745
      %v3747 = vpop.f32.mrf.mxu0
      %3748 = vmatprep.mubr.bf16.mxu0 0
      %3749 = vmatmul.mubr.bf16.gmra.mxu0 %v3242
      %v3750 = vpop.f32.mrf.mxu0
      %v3751 = vadd.f32 %v3590, %v3750
      %v3752 = vpop.f32.mrf.mxu0
      %v3753 = vpop.f32.mrf.mxu0
      %v3754 = vadd.f32 %v3593, %v3753
      %v3755 = vpop.f32.mrf.mxu0
      %3756 = vdwg.mxu0
      %v3757 = vadd.f32 %v2795, %v3631
      %v3758 = vadd.f32 %v2798, %v3634
      %v3759 = vadd.f32 %v2803, %v3639
      %v3760 = vadd.f32 %v2806, %v3642
      %v3761 = vadd.f32 %v2811, %v3647
      %v3762 = vadd.f32 %v2814, %v3650
      %v3763 = vadd.f32 %v2819, %v3655
      %v3764 = vadd.f32 %v2822, %v3658
      %v3765 = vadd.f32 %v2827, %v3663
      %v3766 = vadd.f32 %v2830, %v3666
      %v3767 = vadd.f32 %v2835, %v3671
      %v3768 = vadd.f32 %v2838, %v3674
      %v3769 = vadd.f32 %v2843, %v3679
      %v3770 = vadd.f32 %v2846, %v3682
      %v3771 = vadd.f32 %v2851, %v3687
      %v3772 = vadd.f32 %v2854, %v3690
      %v3773 = vadd.f32 %v2859, %v3695
      %v3774 = vadd.f32 %v2862, %v3698
      %v3775 = vadd.f32 %v2867, %v3703
      %v3776 = vadd.f32 %v2870, %v3706
      %v3777 = vadd.f32 %v2875, %v3711
      %v3778 = vadd.f32 %v2878, %v3714
      %v3779 = vadd.f32 %v2883, %v3719
      %v3780 = vadd.f32 %v2886, %v3722
      %v3781 = vadd.f32 %v2891, %v3727
      %v3782 = vadd.f32 %v2894, %v3730
      %v3783 = vadd.f32 %v2899, %v3735
      %v3784 = vadd.f32 %v2902, %v3738
      %v3785 = vadd.f32 %v2907, %v3743
      %v3786 = vadd.f32 %v2910, %v3746
      %v3787 = vadd.f32 %v2915, %v3751
      %v3788 = vadd.f32 %v2918, %v3754
      %3789 = vst [vmem:[%s231] sm:$0xff] %v3757
      %3790 = vst [vmem:[%s231 + $0x8] sm:$0xff] %v3758
      %3791 = vst [vmem:[%s231 + $0x10] sm:$0xff] %v3759
      %3792 = vst [vmem:[%s231 + $0x18] sm:$0xff] %v3760
      %3793 = vst [vmem:[%s231 + $0x20] sm:$0xff] %v3761
      %3794 = vst [vmem:[%s231 + $0x28] sm:$0xff] %v3762
      %3795 = vst [vmem:[%s231 + $0x30] sm:$0xff] %v3763
      %3796 = vst [vmem:[%s231 + $0x38] sm:$0xff] %v3764
      %3797 = vst [vmem:[%s231 + $0x40] sm:$0xff] %v3765
      %3798 = vst [vmem:[%s231 + $0x48] sm:$0xff] %v3766
      %3799 = vst [vmem:[%s231 + $0x50] sm:$0xff] %v3767
      %3800 = vst [vmem:[%s231 + $0x58] sm:$0xff] %v3768
      %3801 = vst [vmem:[%s231 + $0x60] sm:$0xff] %v3769
      %3802 = vst [vmem:[%s231 + $0x68] sm:$0xff] %v3770
      %3803 = vst [vmem:[%s231 + $0x70] sm:$0xff] %v3771
      %3804 = vst [vmem:[%s231 + $0x78] sm:$0xff] %v3772
      %3805 = vst [vmem:[%s231 + $0x80] sm:$0xff] %v3773
      %3806 = vst [vmem:[%s231 + $0x88] sm:$0xff] %v3774
      %3807 = vst [vmem:[%s231 + $0x90] sm:$0xff] %v3775
      %3808 = vst [vmem:[%s231 + $0x98] sm:$0xff] %v3776
      %3809 = vst [vmem:[%s231 + $0xa0] sm:$0xff] %v3777
      %3810 = vst [vmem:[%s231 + $0xa8] sm:$0xff] %v3778
      %3811 = vst [vmem:[%s231 + $0xb0] sm:$0xff] %v3779
      %3812 = vst [vmem:[%s231 + $0xb8] sm:$0xff] %v3780
      %3813 = vst [vmem:[%s231 + $0xc0] sm:$0xff] %v3781
      %3814 = vst [vmem:[%s231 + $0xc8] sm:$0xff] %v3782
      %3815 = vst [vmem:[%s231 + $0xd0] sm:$0xff] %v3783
      %3816 = vst [vmem:[%s231 + $0xd8] sm:$0xff] %v3784
      %3817 = vst [vmem:[%s231 + $0xe0] sm:$0xff] %v3785
      %3818 = vst [vmem:[%s231 + $0xe8] sm:$0xff] %v3786
      %3819 = vst [vmem:[%s231 + $0xf0] sm:$0xff] %v3787
      %3820 = vst [vmem:[%s231 + $0xf8] sm:$0xff] %v3788
      %3821 = vmatprep.subr.mxu0 0.0
      %3822 = vmatpush1.msra.mxu0 %v3772
      %3823 = vmatprep.subr.mxu0 0.0
      %3824 = vmatpush1.msra.mxu0 %v3771
      %3825 = vmatprep.subr.mxu0 0.0
      %3826 = vmatpush1.msra.mxu0 %v3770
      %3827 = vmatprep.subr.mxu0 0.0
      %3828 = vmatpush1.msra.mxu0 %v3769
      %3829 = vmatprep.subr.mxu0 0.0
      %3830 = vmatpush1.msra.mxu0 %v3768
      %3831 = vmatprep.subr.mxu0 0.0
      %3832 = vmatpush1.msra.mxu0 %v3767
      %3833 = vmatprep.subr.mxu0 0.0
      %3834 = vmatpush1.msra.mxu0 %v3766
      %3835 = vmatprep.subr.mxu0 0.0
      %3836 = vmatpush1.msra.mxu0 %v3765
      %3837 = vmatprep.subr.mxu0 0.0
      %3838 = vmatpush1.msra.mxu0 %v3764
      %3839 = vmatprep.subr.mxu0 0.0
      %3840 = vmatpush1.msra.mxu0 %v3763
      %3841 = vmatprep.subr.mxu0 0.0
      %3842 = vmatpush1.msra.mxu0 %v3762
      %3843 = vmatprep.subr.mxu0 0.0
      %3844 = vmatpush1.msra.mxu0 %v3761
      %3845 = vmatprep.subr.mxu0 0.0
      %3846 = vmatpush1.msra.mxu0 %v3760
      %3847 = vmatprep.subr.mxu0 0.0
      %3848 = vmatpush1.msra.mxu0 %v3759
      %3849 = vmatprep.subr.mxu0 0.0
      %3850 = vmatpush1.msra.mxu0 %v3758
      %3851 = vmatprep.subr.mxu0 0.0
      %3852 = vmatpush1.msra.mxu0 %v3757
      %3853 = vmatprep.subr.mxu0 0.0
      %3854 = vmatpush2.msra.mxu0 %v3788
      %3855 = vmatprep.subr.mxu0 0.0
      %3856 = vmatpush2.msra.mxu0 %v3787
      %3857 = vmatprep.subr.mxu0 0.0
      %3858 = vmatpush2.msra.mxu0 %v3786
      %3859 = vmatprep.subr.mxu0 0.0
      %3860 = vmatpush2.msra.mxu0 %v3785
      %3861 = vmatprep.subr.mxu0 0.0
      %3862 = vmatpush2.msra.mxu0 %v3784
      %3863 = vmatprep.subr.mxu0 0.0
      %3864 = vmatpush2.msra.mxu0 %v3783
      %3865 = vmatprep.subr.mxu0 0.0
      %3866 = vmatpush2.msra.mxu0 %v3782
      %3867 = vmatprep.subr.mxu0 0.0
      %3868 = vmatpush2.msra.mxu0 %v3781
      %3869 = vmatprep.subr.mxu0 0.0
      %3870 = vmatpush2.msra.mxu0 %v3780
      %3871 = vmatprep.subr.mxu0 0.0
      %3872 = vmatpush2.msra.mxu0 %v3779
      %3873 = vmatprep.subr.mxu0 0.0
      %3874 = vmatpush2.msra.mxu0 %v3778
      %3875 = vmatprep.subr.mxu0 0.0
      %3876 = vmatpush2.msra.mxu0 %v3777
      %3877 = vmatprep.subr.mxu0 0.0
      %3878 = vmatpush2.msra.mxu0 %v3776
      %3879 = vmatprep.subr.mxu0 0.0
      %3880 = vmatpush2.msra.mxu0 %v3775
      %3881 = vmatprep.subr.mxu0 0.0
      %3882 = vmatpush2.msra.mxu0 %v3774
      %3883 = vmatprep.subr.mxu0 0.0
      %3884 = vmatpush2.msra.mxu0 %v3773
      %3885 = vmatprep.mubr.f32.mxu0 1.0
      %3886 = vmatmul.mubr.f32.gmra.mxu0 1.0
      %v3887 = vpop.f32.mrf.mxu0
      %v3888 = vadd.f32 0.0, %v3887
      %v3889 = vpop.f32.mrf.mxu0
      %3890 = vdwg.mxu0
      %3891 = vst [vmem:[%s235] sm:$0x1] %v3888
      %v3892 = vmul.f32 %v3757, %v3757
      %v3893 = vmul.f32 %v3758, %v3758
      %v3894 = vmul.f32 %v3759, %v3759
      %v3895 = vmul.f32 %v3760, %v3760
      %v3896 = vmul.f32 %v3761, %v3761
      %v3897 = vmul.f32 %v3762, %v3762
      %v3898 = vmul.f32 %v3763, %v3763
      %v3899 = vmul.f32 %v3764, %v3764
      %v3900 = vmul.f32 %v3765, %v3765
      %v3901 = vmul.f32 %v3766, %v3766
      %v3902 = vmul.f32 %v3767, %v3767
      %v3903 = vmul.f32 %v3768, %v3768
      %v3904 = vmul.f32 %v3769, %v3769
      %v3905 = vmul.f32 %v3770, %v3770
      %v3906 = vmul.f32 %v3771, %v3771
      %v3907 = vmul.f32 %v3772, %v3772
      %v3908 = vmul.f32 %v3773, %v3773
      %v3909 = vmul.f32 %v3774, %v3774
      %v3910 = vmul.f32 %v3775, %v3775
      %v3911 = vmul.f32 %v3776, %v3776
      %v3912 = vmul.f32 %v3777, %v3777
      %v3913 = vmul.f32 %v3778, %v3778
      %v3914 = vmul.f32 %v3779, %v3779
      %v3915 = vmul.f32 %v3780, %v3780
      %v3916 = vmul.f32 %v3781, %v3781
      %v3917 = vmul.f32 %v3782, %v3782
      %v3918 = vmul.f32 %v3783, %v3783
      %v3919 = vmul.f32 %v3784, %v3784
      %v3920 = vmul.f32 %v3785, %v3785
      %v3921 = vmul.f32 %v3786, %v3786
      %v3922 = vmul.f32 %v3787, %v3787
      %v3923 = vmul.f32 %v3788, %v3788
      %3924 = vmatprep.subr.mxu0 0.0
      %3925 = vmatpush1.msra.mxu0 %v3907
      %3926 = vmatprep.subr.mxu0 0.0
      %3927 = vmatpush1.msra.mxu0 %v3906
      %3928 = vmatprep.subr.mxu0 0.0
      %3929 = vmatpush1.msra.mxu0 %v3905
      %3930 = vmatprep.subr.mxu0 0.0
      %3931 = vmatpush1.msra.mxu0 %v3904
      %3932 = vmatprep.subr.mxu0 0.0
      %3933 = vmatpush1.msra.mxu0 %v3903
      %3934 = vmatprep.subr.mxu0 0.0
      %3935 = vmatpush1.msra.mxu0 %v3902
      %3936 = vmatprep.subr.mxu0 0.0
      %3937 = vmatpush1.msra.mxu0 %v3901
      %3938 = vmatprep.subr.mxu0 0.0
      %3939 = vmatpush1.msra.mxu0 %v3900
      %3940 = vmatprep.subr.mxu0 0.0
      %3941 = vmatpush1.msra.mxu0 %v3899
      %3942 = vmatprep.subr.mxu0 0.0
      %3943 = vmatpush1.msra.mxu0 %v3898
      %3944 = vmatprep.subr.mxu0 0.0
      %3945 = vmatpush1.msra.mxu0 %v3897
      %3946 = vmatprep.subr.mxu0 0.0
      %3947 = vmatpush1.msra.mxu0 %v3896
      %3948 = vmatprep.subr.mxu0 0.0
      %3949 = vmatpush1.msra.mxu0 %v3895
      %3950 = vmatprep.subr.mxu0 0.0
      %3951 = vmatpush1.msra.mxu0 %v3894
      %3952 = vmatprep.subr.mxu0 0.0
      %3953 = vmatpush1.msra.mxu0 %v3893
      %3954 = vmatprep.subr.mxu0 0.0
      %3955 = vmatpush1.msra.mxu0 %v3892
      %3956 = vmatprep.subr.mxu0 0.0
      %3957 = vmatpush2.msra.mxu0 %v3923
      %3958 = vmatprep.subr.mxu0 0.0
      %3959 = vmatpush2.msra.mxu0 %v3922
      %3960 = vmatprep.subr.mxu0 0.0
      %3961 = vmatpush2.msra.mxu0 %v3921
      %3962 = vmatprep.subr.mxu0 0.0
      %3963 = vmatpush2.msra.mxu0 %v3920
      %3964 = vmatprep.subr.mxu0 0.0
      %3965 = vmatpush2.msra.mxu0 %v3919
      %3966 = vmatprep.subr.mxu0 0.0
      %3967 = vmatpush2.msra.mxu0 %v3918
      %3968 = vmatprep.subr.mxu0 0.0
      %3969 = vmatpush2.msra.mxu0 %v3917
      %3970 = vmatprep.subr.mxu0 0.0
      %3971 = vmatpush2.msra.mxu0 %v3916
      %3972 = vmatprep.subr.mxu0 0.0
      %3973 = vmatpush2.msra.mxu0 %v3915
      %3974 = vmatprep.subr.mxu0 0.0
      %3975 = vmatpush2.msra.mxu0 %v3914
      %3976 = vmatprep.subr.mxu0 0.0
      %3977 = vmatpush2.msra.mxu0 %v3913
      %3978 = vmatprep.subr.mxu0 0.0
      %3979 = vmatpush2.msra.mxu0 %v3912
      %3980 = vmatprep.subr.mxu0 0.0
      %3981 = vmatpush2.msra.mxu0 %v3911
      %3982 = vmatprep.subr.mxu0 0.0
      %3983 = vmatpush2.msra.mxu0 %v3910
      %3984 = vmatprep.subr.mxu0 0.0
      %3985 = vmatpush2.msra.mxu0 %v3909
      %3986 = vmatprep.subr.mxu0 0.0
      %3987 = vmatpush2.msra.mxu0 %v3908
      %3988 = vmatprep.mubr.f32.mxu0 1.0
      %3989 = vmatmul.mubr.f32.gmra.mxu0 1.0
      %v3990 = vpop.f32.mrf.mxu0
      %v3991 = vadd.f32 0.0, %v3990
      %v3992 = vpop.f32.mrf.mxu0
      %3993 = vdwg.mxu0
      %3994 = vst [vmem:[%s235 + $0x1] sm:$0x1] %v3991
      %p3995 = scmp.lt.s32.totalorder %s17, 1
      %s3996 = scalar_select %p3995, %s17, 1
      %s3997 = smul.addr %s3996, 32
      %s3998 = smul.addr %s3997, 8
      %s3999 = scalar_lea.vmem %s4, %s3998
      %p4000 = scmp.lt.s32.totalorder %s17, 1
      %s4001 = scalar_select %p4000, %s17, 1
      %s4002 = smul.addr %s4001, 2
      %s4003 = scalar_lea.vmem %s5, %s4002
      // Predicated region
      $region37: #{residual_block.4} parent=35 // pred_check
        %p4004 = pneg %p124
      $region38: #{residual_block.4} parent=35 // pred_check_branch
        %4006 = sbr.rel (%p4004) target = $region40
      $region39: #{residual_block.4} parent=35 // pred_region
        _
      $region40: #{residual_block.4} parent=35 // pred_fallthru
        _
      // Predicated region
      $region41: #{residual_block.4} parent=35 // pred_check
        %p4007 = pneg %p150
      $region42: #{residual_block.4} parent=35 // pred_check_branch
        %4009 = sbr.rel (%p4007) target = $region44
      $region43: #{residual_block.4} parent=35 // pred_region
        _
      $region44: #{residual_block.4} parent=35 // pred_fallthru
        _
    $region36: #{residual_block.4} parent=5 // pred_fallthru
      _
    %p4010 = scmp.le.s32.totalorder 2, %s12
    // Predicated region
    $region45: #{residual_block.4} parent=5 // pred_check
      %p4011 = pneg %p4010
    $region46: #{residual_block.4} parent=5 // pred_check_branch
      %4013 = sbr.rel (%p4011) target = $region48
    $region47: #{residual_block.4} parent=5 // pred_region
      %s4014 = ssub.s32 %s12, 2
      // Predicated region
      $region49: #{residual_block.4} parent=47 // pred_check
        %p4015 = pneg %p130
      $region50: #{residual_block.4} parent=47 // pred_check_branch
        %4017 = sbr.rel (%p4015) target = $region52
      $region51: #{residual_block.4} parent=47 // pred_region
        %p4018 = scmp.lt.s32.totalorder %s18, 1
        %s4019 = scalar_select %p4018, %s18, 1
        %s4020 = smul.addr %s4019, 32
        %s4021 = smul.addr %s4020, 8
        %s4022 = scalar_lea.vmem %s4, %s4021
      $region52: #{residual_block.4} parent=47 // pred_fallthru
        _
      // Predicated region
      $region53: #{residual_block.4} parent=47 // pred_check
        %p4023 = pneg %p156
      $region54: #{residual_block.4} parent=47 // pred_check_branch
        %4025 = sbr.rel (%p4023) target = $region56
      $region55: #{residual_block.4} parent=47 // pred_region
        %p4026 = scmp.lt.s32.totalorder %s18, 1
        %s4027 = scalar_select %p4026, %s18, 1
        %s4028 = smul.addr %s4027, 2
        %s4029 = scalar_lea.vmem %s5, %s4028
      $region56: #{residual_block.4} parent=47 // pred_fallthru
        _
    $region48: #{residual_block.4} parent=5 // pred_fallthru
      _
  $region6: #{residual_block.4} parent=0 // loop_footer
    %s16 = sadd.s32 1, %s12
  $region7: #{residual_block.4} parent=0 // loop_footer_branch
    %11 = sbr.rel target = $region3
  $region8: #{residual_block.4} parent=0 // loop_exit
    _

// kernel: residual_block.5
$region0: #{residual_block.5}
  #allocation0 [shape = 'u32[]', space=smem, size = 0x4, offset = 0x4, fixed_abs, tag = 'smem constant byte address 0x4 - core index']
  #allocation1 [shape = 'u32[144,128]{1,0:T(1,128)}', space=vmem, size = 0x12000, scoped, tag = 'internal scratch']
  #allocation2 [shape = 'bf16[1,18,16,384]{3,2,1,0:T(8,128)(2,1)}', space=vmem, size = 0x36000, scoped, tag = 'scratch operand']
  %s0 = inlined_call_operand.vmem [shape: f32[2,16,16,128], index: 0, kind: input, shape index: {}]
  %s1 = inlined_call_operand.vmem [shape: f32[2,16,16,128], index: 1, kind: input, shape index: {}]
  %s2 = inlined_call_operand.vmem [shape: f32[1,128], index: 2, kind: input, shape index: {}]
  %s3 = inlined_call_operand.vmem [shape: f32[1,128], index: 3, kind: input, shape index: {}]
  %s4 = inlined_call_operand.vmem [shape: bf16[3,384,128], index: 4, kind: input, shape index: {}]
  %s5 = inlined_call_operand.vmem [shape: f32[2,16,16,128], index: 5, kind: output, shape index: {}]
  %s6 = sld [smem:[#allocation0]]
  $region53: #{residual_block.5} parent=0
    _
  %s8 = ssub.s32 1, %s6
  %s9 = scalar_select 0, %s8, %s6
  loop: start=0, step=1, limit=4
  $region2: #{residual_block.5} parent=0 // loop_pre_header
    _
  $region3: #{residual_block.5} parent=0 // loop_header
    %s11 = sphi 0, %s15
    %p12 = scmp.ge.s32.totalorder %s11, 4
    %s21 = sphi 0, %s23
    %s24 = sphi 0, %s21
    %s25 = sphi 0, %s24
    %s41 = sphi 0, %s25
    %s47 = sphi 0, %s49
    %s50 = sphi 0, %s47
    %s51 = sphi 0, %s50
    %s67 = sphi 0, %s51
    %s71 = sphi 0, %s71
    %s73 = sphi 0, %s71
    %s74 = sphi 0, %s73
    %s88 = sphi 0, %s74
    %s92 = sphi 0, %s92
    %s94 = sphi 0, %s92
    %s95 = sphi 0, %s94
    %s109 = sphi 0, %s95
    %s113 = sphi 0, %s113
    %s115 = sphi 0, %s113
    %s116 = sphi 0, %s115
    %s130 = sphi 0, %s116
    %s136 = sphi 0, %s138
    %s139 = sphi 0, %s136
    %s140 = sphi 0, %s139
    %s156 = sphi 0, %s140
  $region4: #{residual_block.5} parent=0 // loop_header_branch
    %14 = sbr.rel (%p12) target = $region8
  $region5: #{residual_block.5} parent=0 // loop_body
    %s16 = ssub.s32 %s11, 1
    %s17 = ssub.s32 %s11, 2
    %s18 = sadd.s32 %s11, 1
    %s19 = ssub.s32 %s11, %s18
    %p20 = scmp.eq.s32.totalorder %s19, 0
    %s22 = sadd.s32 %s21, 1
    %s23 = scalar_select %p20, %s21, %s22
    %p26 = pneg %p20
    %p27 = scmp.eq.s32.totalorder %s11, 1
    %p28 = por %p26, %p27
    %p29 = scmp.ne.s32.totalorder %s21, %s24
    %p30 = scmp.eq.s32.totalorder %s11, 0
    %p31 = por %p29, %p30
    %p32 = scmp.ne.s32.totalorder %s21, %s24
    %p33 = scmp.eq.s32.totalorder %s16, 1
    %p34 = por %p32, %p33
    %p35 = scmp.ne.s32.totalorder %s24, %s25
    %p36 = scmp.eq.s32.totalorder %s16, 0
    %p37 = por %p35, %p36
    %p38 = scmp.ne.s32.totalorder %s24, %s25
    %p39 = scmp.eq.s32.totalorder %s17, 1
    %p40 = por %p38, %p39
    %p42 = scmp.ne.s32.totalorder %s25, %s41
    %p43 = scmp.eq.s32.totalorder %s17, 0
    %p44 = por %p42, %p43
    %s45 = ssub.s32 %s11, %s18
    %p46 = scmp.eq.s32.totalorder %s45, 0
    %s48 = sadd.s32 %s47, 1
    %s49 = scalar_select %p46, %s47, %s48
    %p52 = pneg %p46
    %p53 = scmp.eq.s32.totalorder %s11, 1
    %p54 = por %p52, %p53
    %p55 = scmp.ne.s32.totalorder %s47, %s50
    %p56 = scmp.eq.s32.totalorder %s11, 0
    %p57 = por %p55, %p56
    %p58 = scmp.ne.s32.totalorder %s47, %s50
    %p59 = scmp.eq.s32.totalorder %s16, 1
    %p60 = por %p58, %p59
    %p61 = scmp.ne.s32.totalorder %s50, %s51
    %p62 = scmp.eq.s32.totalorder %s16, 0
    %p63 = por %p61, %p62
    %p64 = scmp.ne.s32.totalorder %s50, %s51
    %p65 = scmp.eq.s32.totalorder %s17, 1
    %p66 = por %p64, %p65
    %p68 = scmp.ne.s32.totalorder %s51, %s67
    %p69 = scmp.eq.s32.totalorder %s17, 0
    %p70 = por %p68, %p69
    %s72 = sadd.s32 %s71, 1
    %p75 = scmp.eq.s32.totalorder %s11, 1
    %p76 = scmp.ne.s32.totalorder %s71, %s73
    %p77 = scmp.eq.s32.totalorder %s11, 0
    %p78 = por %p76, %p77
    %p79 = scmp.ne.s32.totalorder %s71, %s73
    %p80 = scmp.eq.s32.totalorder %s16, 1
    %p81 = por %p79, %p80
    %p82 = scmp.ne.s32.totalorder %s73, %s74
    %p83 = scmp.eq.s32.totalorder %s16, 0
    %p84 = por %p82, %p83
    %p85 = scmp.ne.s32.totalorder %s73, %s74
    %p86 = scmp.eq.s32.totalorder %s17, 1
    %p87 = por %p85, %p86
    %p89 = scmp.ne.s32.totalorder %s74, %s88
    %p90 = scmp.eq.s32.totalorder %s17, 0
    %p91 = por %p89, %p90
    %s93 = sadd.s32 %s92, 1
    %p96 = scmp.eq.s32.totalorder %s11, 1
    %p97 = scmp.ne.s32.totalorder %s92, %s94
    %p98 = scmp.eq.s32.totalorder %s11, 0
    %p99 = por %p97, %p98
    %p100 = scmp.ne.s32.totalorder %s92, %s94
    %p101 = scmp.eq.s32.totalorder %s16, 1
    %p102 = por %p100, %p101
    %p103 = scmp.ne.s32.totalorder %s94, %s95
    %p104 = scmp.eq.s32.totalorder %s16, 0
    %p105 = por %p103, %p104
    %p106 = scmp.ne.s32.totalorder %s94, %s95
    %p107 = scmp.eq.s32.totalorder %s17, 1
    %p108 = por %p106, %p107
    %p110 = scmp.ne.s32.totalorder %s95, %s109
    %p111 = scmp.eq.s32.totalorder %s17, 0
    %p112 = por %p110, %p111
    %s114 = sadd.s32 %s113, 1
    %p117 = scmp.eq.s32.totalorder %s11, 1
    %p118 = scmp.ne.s32.totalorder %s113, %s115
    %p119 = scmp.eq.s32.totalorder %s11, 0
    %p120 = por %p118, %p119
    %p121 = scmp.ne.s32.totalorder %s113, %s115
    %p122 = scmp.eq.s32.totalorder %s16, 1
    %p123 = por %p121, %p122
    %p124 = scmp.ne.s32.totalorder %s115, %s116
    %p125 = scmp.eq.s32.totalorder %s16, 0
    %p126 = por %p124, %p125
    %p127 = scmp.ne.s32.totalorder %s115, %s116
    %p128 = scmp.eq.s32.totalorder %s17, 1
    %p129 = por %p127, %p128
    %p131 = scmp.ne.s32.totalorder %s116, %s130
    %p132 = scmp.eq.s32.totalorder %s17, 0
    %p133 = por %p131, %p132
    %s134 = ssub.s32 %s11, %s18
    %p135 = scmp.eq.s32.totalorder %s134, 0
    %s137 = sadd.s32 %s136, 1
    %s138 = scalar_select %p135, %s136, %s137
    %p141 = pneg %p135
    %p142 = scmp.eq.s32.totalorder %s11, 1
    %p143 = por %p141, %p142
    %p144 = scmp.ne.s32.totalorder %s136, %s139
    %p145 = scmp.eq.s32.totalorder %s11, 0
    %p146 = por %p144, %p145
    %p147 = scmp.ne.s32.totalorder %s136, %s139
    %p148 = scmp.eq.s32.totalorder %s16, 1
    %p149 = por %p147, %p148
    %p150 = scmp.ne.s32.totalorder %s139, %s140
    %p151 = scmp.eq.s32.totalorder %s16, 0
    %p152 = por %p150, %p151
    %p153 = scmp.ne.s32.totalorder %s139, %s140
    %p154 = scmp.eq.s32.totalorder %s17, 1
    %p155 = por %p153, %p154
    %p157 = scmp.ne.s32.totalorder %s140, %s156
    %p158 = scmp.eq.s32.totalorder %s17, 0
    %p159 = por %p157, %p158
    %p160 = scmp.le.s32.totalorder 1, %s11
    %p161 = scmp.lt.s32.totalorder %s11, 3
    %p162 = pnand %p160, %p161
    %p163 = pneg %p162
    // Predicated region
    $region9: #{residual_block.5} parent=5 // pred_check
      _
    $region10: #{residual_block.5} parent=5 // pred_check_branch
      %165 = sbr.rel (%p162) target = $region12
    $region11: #{residual_block.5} parent=5 // pred_region
      %s166 = ssub.s32 %s11, 1
      // Predicated region
      $region13: #{residual_block.5} parent=11 // pred_check
        %p167 = pneg %p84
      $region14: #{residual_block.5} parent=11 // pred_check_branch
        %169 = sbr.rel (%p167) target = $region16
      $region15: #{residual_block.5} parent=11 // pred_region
        _
      $region16: #{residual_block.5} parent=11 // pred_fallthru
        _
      // Predicated region
      $region17: #{residual_block.5} parent=11 // pred_check
        %p170 = pneg %p105
      $region18: #{residual_block.5} parent=11 // pred_check_branch
        %172 = sbr.rel (%p170) target = $region20
      $region19: #{residual_block.5} parent=11 // pred_region
        _
      $region20: #{residual_block.5} parent=11 // pred_fallthru
        _
      // Predicated region
      $region21: #{residual_block.5} parent=11 // pred_check
        %p173 = pneg %p126
      $region22: #{residual_block.5} parent=11 // pred_check_branch
        %175 = sbr.rel (%p173) target = $region24
      $region23: #{residual_block.5} parent=11 // pred_region
        _
      $region24: #{residual_block.5} parent=11 // pred_fallthru
        _
    $region12: #{residual_block.5} parent=5 // pred_fallthru
      _
    %p176 = scmp.lt.s32.totalorder %s11, 2
    // Predicated region
    $region25: #{residual_block.5} parent=5 // pred_check
      %p177 = pneg %p176
    $region26: #{residual_block.5} parent=5 // pred_check_branch
      %179 = sbr.rel (%p177) target = $region28
    $region27: #{residual_block.5} parent=5 // pred_region
      // Predicated region
      $region29: #{residual_block.5} parent=27 // pred_check
        %p180 = pneg %p31
      $region30: #{residual_block.5} parent=27 // pred_check_branch
        %182 = sbr.rel (%p180) target = $region32
      $region31: #{residual_block.5} parent=27 // pred_region
        %p183 = scmp.lt.s32.totalorder %s11, 1
        %s184 = scalar_select %p183, %s11, 1
        %s185 = smul.addr %s184, 32
        %s186 = smul.addr %s185, 8
        %s187 = scalar_lea.vmem %s0, %s186
      $region32: #{residual_block.5} parent=27 // pred_fallthru
        _
      // Predicated region
      $region33: #{residual_block.5} parent=27 // pred_check
        %p188 = pneg %p57
      $region34: #{residual_block.5} parent=27 // pred_check_branch
        %190 = sbr.rel (%p188) target = $region36
      $region35: #{residual_block.5} parent=27 // pred_region
        %p191 = scmp.lt.s32.totalorder %s11, 1
        %s192 = scalar_select %p191, %s11, 1
        %s193 = smul.addr %s192, 32
        %s194 = smul.addr %s193, 8
        %s195 = scalar_lea.vmem %s1, %s194
      $region36: #{residual_block.5} parent=27 // pred_fallthru
        _
    $region28: #{residual_block.5} parent=5 // pred_fallthru
      _
    %p196 = scmp.le.s32.totalorder 1, %s11
    %p197 = scmp.lt.s32.totalorder %s11, 3
    %p198 = pnand %p196, %p197
    %p199 = pneg %p198
    // Predicated region
    $region37: #{residual_block.5} parent=5 // pred_check
      _
    $region38: #{residual_block.5} parent=5 // pred_check_branch
      %201 = sbr.rel (%p198) target = $region40
    $region39: #{residual_block.5} parent=5 // pred_region
      %s202 = ssub.s32 %s11, 1
      %p203 = scmp.lt.s32.totalorder %s16, 1
      %s204 = scalar_select %p203, %s16, 1
      %s205 = smul.addr %s204, 32
      %s206 = smul.addr %s205, 8
      %s207 = scalar_lea.vmem %s0, %s206
      %p208 = pneg %p37
      %p209 = pneg %p34
      %p210 = scmp.lt.s32.totalorder %s16, 1
      %s211 = scalar_select %p210, %s16, 1
      %s212 = smul.addr %s211, 32
      %s213 = smul.addr %s212, 8
      %s214 = scalar_lea.vmem %s1, %s213
      %p215 = pneg %p63
      %p216 = pneg %p60
      %p217 = pneg %p84
      %p218 = pneg %p81
      %p219 = pneg %p105
      %p220 = pneg %p102
      %p221 = pneg %p126
      %p222 = pneg %p123
      %p223 = pneg %p152
      %p224 = pneg %p149
      %p225 = scmp.lt.s32.totalorder %s16, 1
      %s226 = scalar_select %p225, %s16, 1
      %s227 = smul.addr %s226, 32
      %s228 = smul.addr %s227, 8
      %s229 = scalar_lea.vmem %s5, %s228
      %p230 = scmp.lt.s32.totalorder %s16, 1
      %s231 = scalar_select %p230, %s16, 1
      %s232 = smul.addr %s231, 32
      %s233 = smul.addr %s232, 8
      %s234 = scalar_lea.vmem %s0, %s233
      %p235 = scmp.lt.s32.totalorder %s16, 1
      %s236 = scalar_select %p235, %s16, 1
      %s237 = smul.addr %s236, 32
      %s238 = smul.addr %s237, 8
      %s239 = scalar_lea.vmem %s1, %s238
      %p240 = scmp.lt.s32.totalorder %s16, 1
      %s241 = scalar_select %p240, %s16, 1
      %s242 = smul.addr %s241, 32
      %s243 = smul.addr %s242, 8
      %s244 = scalar_lea.vmem %s5, %s243
      %v246 = vld [vmem:[%s2] sm:$0x1]
      %v247 = vld [vmem:[%s3] sm:$0x1]
      %v248 = vld [vmem:[%s234] sm:$0xff]
      %v249 = vld [vmem:[%s234 + $0x8] sm:$0xff]
      %v250 = vld [vmem:[%s234 + $0x10] sm:$0xff]
      %v251 = vld [vmem:[%s234 + $0x18] sm:$0xff]
      %v252 = vld [vmem:[%s234 + $0x20] sm:$0xff]
      %v253 = vld [vmem:[%s234 + $0x28] sm:$0xff]
      %v254 = vld [vmem:[%s234 + $0x30] sm:$0xff]
      %v255 = vld [vmem:[%s234 + $0x38] sm:$0xff]
      %v256 = vld [vmem:[%s234 + $0x40] sm:$0xff]
      %v257 = vld [vmem:[%s234 + $0x48] sm:$0xff]
      %v258 = vld [vmem:[%s234 + $0x50] sm:$0xff]
      %v259 = vld [vmem:[%s234 + $0x58] sm:$0xff]
      %v260 = vld [vmem:[%s234 + $0x60] sm:$0xff]
      %v261 = vld [vmem:[%s234 + $0x68] sm:$0xff]
      %v262 = vld [vmem:[%s234 + $0x70] sm:$0xff]
      %v263 = vld [vmem:[%s234 + $0x78] sm:$0xff]
      %v264 = vld [vmem:[%s234 + $0x80] sm:$0xff]
      %v265 = vld [vmem:[%s234 + $0x88] sm:$0xff]
      %v266 = vld [vmem:[%s234 + $0x90] sm:$0xff]
      %v267 = vld [vmem:[%s234 + $0x98] sm:$0xff]
      %v268 = vld [vmem:[%s234 + $0xa0] sm:$0xff]
      %v269 = vld [vmem:[%s234 + $0xa8] sm:$0xff]
      %v270 = vld [vmem:[%s234 + $0xb0] sm:$0xff]
      %v271 = vld [vmem:[%s234 + $0xb8] sm:$0xff]
      %v272 = vld [vmem:[%s234 + $0xc0] sm:$0xff]
      %v273 = vld [vmem:[%s234 + $0xc8] sm:$0xff]
      %v274 = vld [vmem:[%s234 + $0xd0] sm:$0xff]
      %v275 = vld [vmem:[%s234 + $0xd8] sm:$0xff]
      %v276 = vld [vmem:[%s234 + $0xe0] sm:$0xff]
      %v277 = vld [vmem:[%s234 + $0xe8] sm:$0xff]
      %v278 = vld [vmem:[%s234 + $0xf0] sm:$0xff]
      %v279 = vld [vmem:[%s234 + $0xf8] sm:$0xff]
      %v281 = vlaneseq
      %v282 = vshrl.u32 %v281, 7
      %v283 = vsub.s32 0, %v282
      %v284 = vrot.slane %v246, %v283
      %v286 = vmul.f32 %v248, %v284
      %v287 = vmul.f32 %v249, %v284
      %v288 = vmul.f32 %v250, %v284
      %v289 = vmul.f32 %v251, %v284
      %v290 = vmul.f32 %v252, %v284
      %v291 = vmul.f32 %v253, %v284
      %v292 = vmul.f32 %v254, %v284
      %v293 = vmul.f32 %v255, %v284
      %v294 = vmul.f32 %v256, %v284
      %v295 = vmul.f32 %v257, %v284
      %v296 = vmul.f32 %v258, %v284
      %v297 = vmul.f32 %v259, %v284
      %v298 = vmul.f32 %v260, %v284
      %v299 = vmul.f32 %v261, %v284
      %v300 = vmul.f32 %v262, %v284
      %v301 = vmul.f32 %v263, %v284
      %v302 = vmul.f32 %v264, %v284
      %v303 = vmul.f32 %v265, %v284
      %v304 = vmul.f32 %v266, %v284
      %v305 = vmul.f32 %v267, %v284
      %v306 = vmul.f32 %v268, %v284
      %v307 = vmul.f32 %v269, %v284
      %v308 = vmul.f32 %v270, %v284
      %v309 = vmul.f32 %v271, %v284
      %v310 = vmul.f32 %v272, %v284
      %v311 = vmul.f32 %v273, %v284
      %v312 = vmul.f32 %v274, %v284
      %v313 = vmul.f32 %v275, %v284
      %v314 = vmul.f32 %v276, %v284
      %v315 = vmul.f32 %v277, %v284
      %v316 = vmul.f32 %v278, %v284
      %v317 = vmul.f32 %v279, %v284
      %v319 = vlaneseq
      %v320 = vshrl.u32 %v319, 7
      %v321 = vsub.s32 0, %v320
      %v322 = vrot.slane %v247, %v321
      %v324 = vadd.f32 %v286, %v322
      %v325 = vadd.f32 %v287, %v322
      %v326 = vadd.f32 %v288, %v322
      %v327 = vadd.f32 %v289, %v322
      %v328 = vadd.f32 %v290, %v322
      %v329 = vadd.f32 %v291, %v322
      %v330 = vadd.f32 %v292, %v322
      %v331 = vadd.f32 %v293, %v322
      %v332 = vadd.f32 %v294, %v322
      %v333 = vadd.f32 %v295, %v322
      %v334 = vadd.f32 %v296, %v322
      %v335 = vadd.f32 %v297, %v322
      %v336 = vadd.f32 %v298, %v322
      %v337 = vadd.f32 %v299, %v322
      %v338 = vadd.f32 %v300, %v322
      %v339 = vadd.f32 %v301, %v322
      %v340 = vadd.f32 %v302, %v322
      %v341 = vadd.f32 %v303, %v322
      %v342 = vadd.f32 %v304, %v322
      %v343 = vadd.f32 %v305, %v322
      %v344 = vadd.f32 %v306, %v322
      %v345 = vadd.f32 %v307, %v322
      %v346 = vadd.f32 %v308, %v322
      %v347 = vadd.f32 %v309, %v322
      %v348 = vadd.f32 %v310, %v322
      %v349 = vadd.f32 %v311, %v322
      %v350 = vadd.f32 %v312, %v322
      %v351 = vadd.f32 %v313, %v322
      %v352 = vadd.f32 %v314, %v322
      %v353 = vadd.f32 %v315, %v322
      %v354 = vadd.f32 %v316, %v322
      %v355 = vadd.f32 %v317, %v322
      %v356 = vmax.f32 %v324, 0.0
      %v357 = vmax.f32 %v325, 0.0
      %v358 = vmax.f32 %v326, 0.0
      %v359 = vmax.f32 %v327, 0.0
      %v360 = vmax.f32 %v328, 0.0
      %v361 = vmax.f32 %v329, 0.0
      %v362 = vmax.f32 %v330, 0.0
      %v363 = vmax.f32 %v331, 0.0
      %v364 = vmax.f32 %v332, 0.0
      %v365 = vmax.f32 %v333, 0.0
      %v366 = vmax.f32 %v334, 0.0
      %v367 = vmax.f32 %v335, 0.0
      %v368 = vmax.f32 %v336, 0.0
      %v369 = vmax.f32 %v337, 0.0
      %v370 = vmax.f32 %v338, 0.0
      %v371 = vmax.f32 %v339, 0.0
      %v372 = vmax.f32 %v340, 0.0
      %v373 = vmax.f32 %v341, 0.0
      %v374 = vmax.f32 %v342, 0.0
      %v375 = vmax.f32 %v343, 0.0
      %v376 = vmax.f32 %v344, 0.0
      %v377 = vmax.f32 %v345, 0.0
      %v378 = vmax.f32 %v346, 0.0
      %v379 = vmax.f32 %v347, 0.0
      %v380 = vmax.f32 %v348, 0.0
      %v381 = vmax.f32 %v349, 0.0
      %v382 = vmax.f32 %v350, 0.0
      %v383 = vmax.f32 %v351, 0.0
      %v384 = vmax.f32 %v352, 0.0
      %v385 = vmax.f32 %v353, 0.0
      %v386 = vmax.f32 %v354, 0.0
      %v387 = vmax.f32 %v355, 0.0
      %v388 = vpack.c.bf16 %v357, %v356
      %v389 = vpack.c.bf16 %v359, %v358
      %v390 = vpack.c.bf16 %v361, %v360
      %v391 = vpack.c.bf16 %v363, %v362
      %v392 = vpack.c.bf16 %v365, %v364
      %v393 = vpack.c.bf16 %v367, %v366
      %v394 = vpack.c.bf16 %v369, %v368
      %v395 = vpack.c.bf16 %v371, %v370
      %v396 = vpack.c.bf16 %v373, %v372
      %v397 = vpack.c.bf16 %v375, %v374
      %v398 = vpack.c.bf16 %v377, %v376
      %v399 = vpack.c.bf16 %v379, %v378
      %v400 = vpack.c.bf16 %v381, %v380
      %v401 = vpack.c.bf16 %v383, %v382
      %v402 = vpack.c.bf16 %v385, %v384
      %v403 = vpack.c.bf16 %v387, %v386
      %404 = vst [vmem:[#allocation2] sm:$0xff] 0
      %405 = vst [vmem:[#allocation2 + $0x8] sm:$0xf] 0
      %406 = vst [vmem:[#allocation2 + $0xc] sm:$0xff] 0
      %407 = vst [vmem:[#allocation2 + $0x14] sm:$0xf] 0
      %s408 = scalar_lea.vmem [#allocation2], 408
      %409 = vst [vmem:[%s408] sm:$0xff] 0
      %410 = vst [vmem:[%s408 + $0x8] sm:$0xf] 0
      %411 = vst [vmem:[%s408 + $0xc] sm:$0xff] 0
      %412 = vst [vmem:[%s408 + $0x14] sm:$0xf] 0
      %v429 = vunpack.c.l.b16 %v388
      %v430 = vunpack.c.h.b16 %v388
      %v431 = vunpack.c.l.b16 %v389
      %v432 = vunpack.c.h.b16 %v389
      %v433 = vunpack.c.l.b16 %v390
      %v434 = vunpack.c.h.b16 %v390
      %v435 = vunpack.c.l.b16 %v391
      %v436 = vunpack.c.h.b16 %v391
      %v437 = vunpack.c.l.b16 %v392
      %v438 = vunpack.c.h.b16 %v392
      %v439 = vunpack.c.l.b16 %v393
      %v440 = vunpack.c.h.b16 %v393
      %v441 = vunpack.c.l.b16 %v394
      %v442 = vunpack.c.h.b16 %v394
      %v443 = vunpack.c.l.b16 %v395
      %v444 = vunpack.c.h.b16 %v395
      %v445 = vunpack.c.l.b16 %v396
      %v446 = vunpack.c.h.b16 %v396
      %v447 = vunpack.c.l.b16 %v397
      %v448 = vunpack.c.h.b16 %v397
      %v449 = vunpack.c.l.b16 %v398
      %v450 = vunpack.c.h.b16 %v398
      %v451 = vunpack.c.l.b16 %v399
      %v452 = vunpack.c.h.b16 %v399
      %v453 = vunpack.c.l.b16 %v400
      %v454 = vunpack.c.h.b16 %v400
      %v455 = vunpack.c.l.b16 %v401
      %v456 = vunpack.c.h.b16 %v401
      %v457 = vunpack.c.l.b16 %v402
      %v458 = vunpack.c.h.b16 %v402
      %v459 = vunpack.c.l.b16 %v403
      %v460 = vunpack.c.h.b16 %v403
      %v461 = vpack.c.b16 %v429, %v429
      %v462 = vpack.c.b16 %v430, %v430
      %v463 = vpack.c.b16 %v431, %v431
      %v464 = vpack.c.b16 %v432, %v432
      %v465 = vpack.c.b16 %v433, %v433
      %v466 = vpack.c.b16 %v434, %v434
      %v467 = vpack.c.b16 %v435, %v435
      %v468 = vpack.c.b16 %v436, %v436
      %v469 = vpack.c.b16 %v437, %v437
      %v470 = vpack.c.b16 %v438, %v438
      %v471 = vpack.c.b16 %v439, %v439
      %v472 = vpack.c.b16 %v440, %v440
      %v473 = vpack.c.b16 %v441, %v441
      %v474 = vpack.c.b16 %v442, %v442
      %v475 = vpack.c.b16 %v443, %v443
      %v476 = vpack.c.b16 %v444, %v444
      %v477 = vpack.c.b16 %v445, %v445
      %v478 = vpack.c.b16 %v446, %v446
      %v479 = vpack.c.b16 %v447, %v447
      %v480 = vpack.c.b16 %v448, %v448
      %v481 = vpack.c.b16 %v449, %v449
      %v482 = vpack.c.b16 %v450, %v450
      %v483 = vpack.c.b16 %v451, %v451
      %v484 = vpack.c.b16 %v452, %v452
      %v485 = vpack.c.b16 %v453, %v453
      %v486 = vpack.c.b16 %v454, %v454
      %v487 = vpack.c.b16 %v455, %v455
      %v488 = vpack.c.b16 %v456, %v456
      %v489 = vpack.c.b16 %v457, %v457
      %v490 = vpack.c.b16 %v458, %v458
      %v491 = vpack.c.b16 %v459, %v459
      %v492 = vpack.c.b16 %v460, %v460
      %s525 = scalar_lea.vmem [#allocation2], 24
      %526 = vst [vmem:[%s525 + $0x4] sm:$0xf] %v461
      %527 = vst [vmem:[%s525 + $0x10] sm:$0xf] %v462
      %528 = vst [vmem:[%s525 + $0x1c] sm:$0xf] %v463
      %529 = vst [vmem:[%s525 + $0x28] sm:$0xf] %v464
      %530 = vst [vmem:[%s525 + $0x34] sm:$0xf] %v465
      %531 = vst [vmem:[%s525 + $0x40] sm:$0xf] %v466
      %532 = vst [vmem:[%s525 + $0x4c] sm:$0xf] %v467
      %533 = vst [vmem:[%s525 + $0x58] sm:$0xf] %v468
      %534 = vst [vmem:[%s525 + $0x64] sm:$0xf] %v469
      %535 = vst [vmem:[%s525 + $0x70] sm:$0xf] %v470
      %536 = vst [vmem:[%s525 + $0x7c] sm:$0xf] %v471
      %537 = vst [vmem:[%s525 + $0x88] sm:$0xf] %v472
      %538 = vst [vmem:[%s525 + $0x94] sm:$0xf] %v473
      %539 = vst [vmem:[%s525 + $0xa0] sm:$0xf] %v474
      %540 = vst [vmem:[%s525 + $0xac] sm:$0xf] %v475
      %541 = vst [vmem:[%s525 + $0xb8] sm:$0xf] %v476
      %542 = vst [vmem:[%s525 + $0xc4] sm:$0xf] %v477
      %543 = vst [vmem:[%s525 + $0xd0] sm:$0xf] %v478
      %544 = vst [vmem:[%s525 + $0xdc] sm:$0xf] %v479
      %545 = vst [vmem:[%s525 + $0xe8] sm:$0xf] %v480
      %546 = vst [vmem:[%s525 + $0xf4] sm:$0xf] %v481
      %547 = vst [vmem:[%s525 + $0x100] sm:$0xf] %v482
      %548 = vst [vmem:[%s525 + $0x10c] sm:$0xf] %v483
      %549 = vst [vmem:[%s525 + $0x118] sm:$0xf] %v484
      %550 = vst [vmem:[%s525 + $0x124] sm:$0xf] %v485
      %551 = vst [vmem:[%s525 + $0x130] sm:$0xf] %v486
      %552 = vst [vmem:[%s525 + $0x13c] sm:$0xf] %v487
      %553 = vst [vmem:[%s525 + $0x148] sm:$0xf] %v488
      %554 = vst [vmem:[%s525 + $0x154] sm:$0xf] %v489
      %555 = vst [vmem:[%s525 + $0x160] sm:$0xf] %v490
      %556 = vst [vmem:[%s525 + $0x16c] sm:$0xf] %v491
      %557 = vst [vmem:[%s525 + $0x178] sm:$0xf] %v492
      %vm558 = vsmask.f32 256
      %vm559 = vsmask.f32 4368
      %vm560 = vmor %vm558, %vm559
      %v562 = vshrl.u32 %v461, 16
      %v564 = vrot.slane %v562, 7
      %v565 = vshll.u32 %v461, 16
      %v567 = vor.u32 %v564, %v565
      %v568 = vrot.slane %v564, 4
      %v570 = vshrl.u32 %v462, 16
      %v572 = vrot.slane %v570, 7
      %v573 = vshll.u32 %v462, 16
      %v575 = vor.u32 %v572, %v573
      %v576 = vsel %vm560, %v568, %v575
      %v578 = vshrl.u32 %v463, 16
      %v580 = vrot.slane %v578, 7
      %v581 = vshll.u32 %v463, 16
      %v583 = vor.u32 %v580, %v581
      %v584 = vrot.slane %v580, 4
      %v586 = vshrl.u32 %v464, 16
      %v588 = vrot.slane %v586, 7
      %v589 = vshll.u32 %v464, 16
      %v591 = vor.u32 %v588, %v589
      %v592 = vsel %vm560, %v584, %v591
      %v594 = vshrl.u32 %v465, 16
      %v596 = vrot.slane %v594, 7
      %v597 = vshll.u32 %v465, 16
      %v599 = vor.u32 %v596, %v597
      %v600 = vrot.slane %v596, 4
      %v602 = vshrl.u32 %v466, 16
      %v604 = vrot.slane %v602, 7
      %v605 = vshll.u32 %v466, 16
      %v607 = vor.u32 %v604, %v605
      %v608 = vsel %vm560, %v600, %v607
      %v610 = vshrl.u32 %v467, 16
      %v612 = vrot.slane %v610, 7
      %v613 = vshll.u32 %v467, 16
      %v615 = vor.u32 %v612, %v613
      %v616 = vrot.slane %v612, 4
      %v618 = vshrl.u32 %v468, 16
      %v620 = vrot.slane %v618, 7
      %v621 = vshll.u32 %v468, 16
      %v623 = vor.u32 %v620, %v621
      %v624 = vsel %vm560, %v616, %v623
      %v626 = vshrl.u32 %v469, 16
      %v628 = vrot.slane %v626, 7
      %v629 = vshll.u32 %v469, 16
      %v631 = vor.u32 %v628, %v629
      %v632 = vrot.slane %v628, 4
      %v634 = vshrl.u32 %v470, 16
      %v636 = vrot.slane %v634, 7
      %v637 = vshll.u32 %v470, 16
      %v639 = vor.u32 %v636, %v637
      %v640 = vsel %vm560, %v632, %v639
      %v642 = vshrl.u32 %v471, 16
      %v644 = vrot.slane %v642, 7
      %v645 = vshll.u32 %v471, 16
      %v647 = vor.u32 %v644, %v645
      %v648 = vrot.slane %v644, 4
      %v650 = vshrl.u32 %v472, 16
      %v652 = vrot.slane %v650, 7
      %v653 = vshll.u32 %v472, 16
      %v655 = vor.u32 %v652, %v653
      %v656 = vsel %vm560, %v648, %v655
      %v658 = vshrl.u32 %v473, 16
      %v660 = vrot.slane %v658, 7
      %v661 = vshll.u32 %v473, 16
      %v663 = vor.u32 %v660, %v661
      %v664 = vrot.slane %v660, 4
      %v666 = vshrl.u32 %v474, 16
      %v668 = vrot.slane %v666, 7
      %v669 = vshll.u32 %v474, 16
      %v671 = vor.u32 %v668, %v669
      %v672 = vsel %vm560, %v664, %v671
      %v674 = vshrl.u32 %v475, 16
      %v676 = vrot.slane %v674, 7
      %v677 = vshll.u32 %v475, 16
      %v679 = vor.u32 %v676, %v677
      %v680 = vrot.slane %v676, 4
      %v682 = vshrl.u32 %v476, 16
      %v684 = vrot.slane %v682, 7
      %v685 = vshll.u32 %v476, 16
      %v687 = vor.u32 %v684, %v685
      %v688 = vsel %vm560, %v680, %v687
      %v690 = vshrl.u32 %v477, 16
      %v692 = vrot.slane %v690, 7
      %v693 = vshll.u32 %v477, 16
      %v695 = vor.u32 %v692, %v693
      %v696 = vrot.slane %v692, 4
      %v698 = vshrl.u32 %v478, 16
      %v700 = vrot.slane %v698, 7
      %v701 = vshll.u32 %v478, 16
      %v703 = vor.u32 %v700, %v701
      %v704 = vsel %vm560, %v696, %v703
      %v706 = vshrl.u32 %v479, 16
      %v708 = vrot.slane %v706, 7
      %v709 = vshll.u32 %v479, 16
      %v711 = vor.u32 %v708, %v709
      %v712 = vrot.slane %v708, 4
      %v714 = vshrl.u32 %v480, 16
      %v716 = vrot.slane %v714, 7
      %v717 = vshll.u32 %v480, 16
      %v719 = vor.u32 %v716, %v717
      %v720 = vsel %vm560, %v712, %v719
      %v722 = vshrl.u32 %v481, 16
      %v724 = vrot.slane %v722, 7
      %v725 = vshll.u32 %v481, 16
      %v727 = vor.u32 %v724, %v725
      %v728 = vrot.slane %v724, 4
      %v730 = vshrl.u32 %v482, 16
      %v732 = vrot.slane %v730, 7
      %v733 = vshll.u32 %v482, 16
      %v735 = vor.u32 %v732, %v733
      %v736 = vsel %vm560, %v728, %v735
      %v738 = vshrl.u32 %v483, 16
      %v740 = vrot.slane %v738, 7
      %v741 = vshll.u32 %v483, 16
      %v743 = vor.u32 %v740, %v741
      %v744 = vrot.slane %v740, 4
      %v746 = vshrl.u32 %v484, 16
      %v748 = vrot.slane %v746, 7
      %v749 = vshll.u32 %v484, 16
      %v751 = vor.u32 %v748, %v749
      %v752 = vsel %vm560, %v744, %v751
      %v754 = vshrl.u32 %v485, 16
      %v756 = vrot.slane %v754, 7
      %v757 = vshll.u32 %v485, 16
      %v759 = vor.u32 %v756, %v757
      %v760 = vrot.slane %v756, 4
      %v762 = vshrl.u32 %v486, 16
      %v764 = vrot.slane %v762, 7
      %v765 = vshll.u32 %v486, 16
      %v767 = vor.u32 %v764, %v765
      %v768 = vsel %vm560, %v760, %v767
      %v770 = vshrl.u32 %v487, 16
      %v772 = vrot.slane %v770, 7
      %v773 = vshll.u32 %v487, 16
      %v775 = vor.u32 %v772, %v773
      %v776 = vrot.slane %v772, 4
      %v778 = vshrl.u32 %v488, 16
      %v780 = vrot.slane %v778, 7
      %v781 = vshll.u32 %v488, 16
      %v783 = vor.u32 %v780, %v781
      %v784 = vsel %vm560, %v776, %v783
      %v786 = vshrl.u32 %v489, 16
      %v788 = vrot.slane %v786, 7
      %v789 = vshll.u32 %v489, 16
      %v791 = vor.u32 %v788, %v789
      %v792 = vrot.slane %v788, 4
      %v794 = vshrl.u32 %v490, 16
      %v796 = vrot.slane %v794, 7
      %v797 = vshll.u32 %v490, 16
      %v799 = vor.u32 %v796, %v797
      %v800 = vsel %vm560, %v792, %v799
      %v802 = vshrl.u32 %v491, 16
      %v804 = vrot.slane %v802, 7
      %v805 = vshll.u32 %v491, 16
      %v807 = vor.u32 %v804, %v805
      %v808 = vrot.slane %v804, 4
      %v810 = vshrl.u32 %v492, 16
      %v812 = vrot.slane %v810, 7
      %v813 = vshll.u32 %v492, 16
      %v815 = vor.u32 %v812, %v813
      %v816 = vsel %vm560, %v808, %v815
      %vm849 = vcmask 1043456
      %vm850 = vsmask.f32 7938
      %vm851 = vmand %vm849, %vm850
      %v852 = vld [vmem:[%s525] sm:$0xf]
      %v853 = vsel %vm851, %v567, %v852
      %854 = vst [vmem:[%s525] sm:$0xf] %v853
      %855 = vst [vmem:[%s525 + $0xc] sm:$0xf] %v576
      %v856 = vld [vmem:[%s525 + $0x18] sm:$0xf]
      %v857 = vsel %vm851, %v583, %v856
      %858 = vst [vmem:[%s525 + $0x18] sm:$0xf] %v857
      %859 = vst [vmem:[%s525 + $0x24] sm:$0xf] %v592
      %v860 = vld [vmem:[%s525 + $0x30] sm:$0xf]
      %v861 = vsel %vm851, %v599, %v860
      %862 = vst [vmem:[%s525 + $0x30] sm:$0xf] %v861
      %863 = vst [vmem:[%s525 + $0x3c] sm:$0xf] %v608
      %v864 = vld [vmem:[%s525 + $0x48] sm:$0xf]
      %v865 = vsel %vm851, %v615, %v864
      %866 = vst [vmem:[%s525 + $0x48] sm:$0xf] %v865
      %867 = vst [vmem:[%s525 + $0x54] sm:$0xf] %v624
      %v868 = vld [vmem:[%s525 + $0x60] sm:$0xf]
      %v869 = vsel %vm851, %v631, %v868
      %870 = vst [vmem:[%s525 + $0x60] sm:$0xf] %v869
      %871 = vst [vmem:[%s525 + $0x6c] sm:$0xf] %v640
      %v872 = vld [vmem:[%s525 + $0x78] sm:$0xf]
      %v873 = vsel %vm851, %v647, %v872
      %874 = vst [vmem:[%s525 + $0x78] sm:$0xf] %v873
      %875 = vst [vmem:[%s525 + $0x84] sm:$0xf] %v656
      %v876 = vld [vmem:[%s525 + $0x90] sm:$0xf]
      %v877 = vsel %vm851, %v663, %v876
      %878 = vst [vmem:[%s525 + $0x90] sm:$0xf] %v877
      %879 = vst [vmem:[%s525 + $0x9c] sm:$0xf] %v672
      %v880 = vld [vmem:[%s525 + $0xa8] sm:$0xf]
      %v881 = vsel %vm851, %v679, %v880
      %882 = vst [vmem:[%s525 + $0xa8] sm:$0xf] %v881
      %883 = vst [vmem:[%s525 + $0xb4] sm:$0xf] %v688
      %v884 = vld [vmem:[%s525 + $0xc0] sm:$0xf]
      %v885 = vsel %vm851, %v695, %v884
      %886 = vst [vmem:[%s525 + $0xc0] sm:$0xf] %v885
      %887 = vst [vmem:[%s525 + $0xcc] sm:$0xf] %v704
      %v888 = vld [vmem:[%s525 + $0xd8] sm:$0xf]
      %v889 = vsel %vm851, %v711, %v888
      %890 = vst [vmem:[%s525 + $0xd8] sm:$0xf] %v889
      %891 = vst [vmem:[%s525 + $0xe4] sm:$0xf] %v720
      %v892 = vld [vmem:[%s525 + $0xf0] sm:$0xf]
      %v893 = vsel %vm851, %v727, %v892
      %894 = vst [vmem:[%s525 + $0xf0] sm:$0xf] %v893
      %895 = vst [vmem:[%s525 + $0xfc] sm:$0xf] %v736
      %v896 = vld [vmem:[%s525 + $0x108] sm:$0xf]
      %v897 = vsel %vm851, %v743, %v896
      %898 = vst [vmem:[%s525 + $0x108] sm:$0xf] %v897
      %899 = vst [vmem:[%s525 + $0x114] sm:$0xf] %v752
      %v900 = vld [vmem:[%s525 + $0x120] sm:$0xf]
      %v901 = vsel %vm851, %v759, %v900
      %902 = vst [vmem:[%s525 + $0x120] sm:$0xf] %v901
      %903 = vst [vmem:[%s525 + $0x12c] sm:$0xf] %v768
      %v904 = vld [vmem:[%s525 + $0x138] sm:$0xf]
      %v905 = vsel %vm851, %v775, %v904
      %906 = vst [vmem:[%s525 + $0x138] sm:$0xf] %v905
      %907 = vst [vmem:[%s525 + $0x144] sm:$0xf] %v784
      %v908 = vld [vmem:[%s525 + $0x150] sm:$0xf]
      %v909 = vsel %vm851, %v791, %v908
      %910 = vst [vmem:[%s525 + $0x150] sm:$0xf] %v909
      %911 = vst [vmem:[%s525 + $0x15c] sm:$0xf] %v800
      %v912 = vld [vmem:[%s525 + $0x168] sm:$0xf]
      %v913 = vsel %vm851, %v807, %v912
      %914 = vst [vmem:[%s525 + $0x168] sm:$0xf] %v913
      %915 = vst [vmem:[%s525 + $0x174] sm:$0xf] %v816
      %vm916 = vcmask 1040384
      %vm917 = vmand %vm916, %vm558
      %v918 = vld [vmem:[%s525] sm:$0x1]
      %v919 = vsel %vm917, 0, %v918
      %920 = vst [vmem:[%s525] sm:$0x1] %v919
      %v921 = vld [vmem:[%s525 + $0x18] sm:$0x1]
      %v922 = vsel %vm917, 0, %v921
      %923 = vst [vmem:[%s525 + $0x18] sm:$0x1] %v922
      %v924 = vld [vmem:[%s525 + $0x30] sm:$0x1]
      %v925 = vsel %vm917, 0, %v924
      %926 = vst [vmem:[%s525 + $0x30] sm:$0x1] %v925
      %v927 = vld [vmem:[%s525 + $0x48] sm:$0x1]
      %v928 = vsel %vm917, 0, %v927
      %929 = vst [vmem:[%s525 + $0x48] sm:$0x1] %v928
      %v930 = vld [vmem:[%s525 + $0x60] sm:$0x1]
      %v931 = vsel %vm917, 0, %v930
      %932 = vst [vmem:[%s525 + $0x60] sm:$0x1] %v931
      %v933 = vld [vmem:[%s525 + $0x78] sm:$0x1]
      %v934 = vsel %vm917, 0, %v933
      %935 = vst [vmem:[%s525 + $0x78] sm:$0x1] %v934
      %v936 = vld [vmem:[%s525 + $0x90] sm:$0x1]
      %v937 = vsel %vm917, 0, %v936
      %938 = vst [vmem:[%s525 + $0x90] sm:$0x1] %v937
      %v939 = vld [vmem:[%s525 + $0xa8] sm:$0x1]
      %v940 = vsel %vm917, 0, %v939
      %941 = vst [vmem:[%s525 + $0xa8] sm:$0x1] %v940
      %v942 = vld [vmem:[%s525 + $0xc0] sm:$0x1]
      %v943 = vsel %vm917, 0, %v942
      %944 = vst [vmem:[%s525 + $0xc0] sm:$0x1] %v943
      %v945 = vld [vmem:[%s525 + $0xd8] sm:$0x1]
      %v946 = vsel %vm917, 0, %v945
      %947 = vst [vmem:[%s525 + $0xd8] sm:$0x1] %v946
      %v948 = vld [vmem:[%s525 + $0xf0] sm:$0x1]
      %v949 = vsel %vm917, 0, %v948
      %950 = vst [vmem:[%s525 + $0xf0] sm:$0x1] %v949
      %v951 = vld [vmem:[%s525 + $0x108] sm:$0x1]
      %v952 = vsel %vm917, 0, %v951
      %953 = vst [vmem:[%s525 + $0x108] sm:$0x1] %v952
      %v954 = vld [vmem:[%s525 + $0x120] sm:$0x1]
      %v955 = vsel %vm917, 0, %v954
      %956 = vst [vmem:[%s525 + $0x120] sm:$0x1] %v955
      %v957 = vld [vmem:[%s525 + $0x138] sm:$0x1]
      %v958 = vsel %vm917, 0, %v957
      %959 = vst [vmem:[%s525 + $0x138] sm:$0x1] %v958
      %v960 = vld [vmem:[%s525 + $0x150] sm:$0x1]
      %v961 = vsel %vm917, 0, %v960
      %962 = vst [vmem:[%s525 + $0x150] sm:$0x1] %v961
      %v963 = vld [vmem:[%s525 + $0x168] sm:$0x1]
      %v964 = vsel %vm917, 0, %v963
      %965 = vst [vmem:[%s525 + $0x168] sm:$0x1] %v964
      %vm966 = vsmask.f32 3328
      %vm967 = vsmask.f32 7440
      %vm968 = vmor %vm966, %vm967
      %v969 = vrot.slane %v562, 4
      %v970 = vrot.slane %v565, 5
      %v971 = vor.u32 %v969, %v970
      %v972 = vrot.slane %v971, 4
      %v973 = vrot.slane %v573, 5
      %v974 = vsel %vm968, %v972, %v973
      %v975 = vrot.slane %v570, 4
      %v976 = vor.u32 %v975, %v973
      %v977 = vrot.slane %v976, 4
      %v978 = vrot.slane %v578, 4
      %v979 = vrot.slane %v581, 5
      %v980 = vor.u32 %v978, %v979
      %v981 = vrot.slane %v980, 4
      %v982 = vrot.slane %v589, 5
      %v983 = vsel %vm968, %v981, %v982
      %v984 = vrot.slane %v586, 4
      %v985 = vor.u32 %v984, %v982
      %v986 = vrot.slane %v985, 4
      %v987 = vrot.slane %v594, 4
      %v988 = vrot.slane %v597, 5
      %v989 = vor.u32 %v987, %v988
      %v990 = vrot.slane %v989, 4
      %v991 = vrot.slane %v605, 5
      %v992 = vsel %vm968, %v990, %v991
      %v993 = vrot.slane %v602, 4
      %v994 = vor.u32 %v993, %v991
      %v995 = vrot.slane %v994, 4
      %v996 = vrot.slane %v610, 4
      %v997 = vrot.slane %v613, 5
      %v998 = vor.u32 %v996, %v997
      %v999 = vrot.slane %v998, 4
      %v1000 = vrot.slane %v621, 5
      %v1001 = vsel %vm968, %v999, %v1000
      %v1002 = vrot.slane %v618, 4
      %v1003 = vor.u32 %v1002, %v1000
      %v1004 = vrot.slane %v1003, 4
      %v1005 = vrot.slane %v626, 4
      %v1006 = vrot.slane %v629, 5
      %v1007 = vor.u32 %v1005, %v1006
      %v1008 = vrot.slane %v1007, 4
      %v1009 = vrot.slane %v637, 5
      %v1010 = vsel %vm968, %v1008, %v1009
      %v1011 = vrot.slane %v634, 4
      %v1012 = vor.u32 %v1011, %v1009
      %v1013 = vrot.slane %v1012, 4
      %v1014 = vrot.slane %v642, 4
      %v1015 = vrot.slane %v645, 5
      %v1016 = vor.u32 %v1014, %v1015
      %v1017 = vrot.slane %v1016, 4
      %v1018 = vrot.slane %v653, 5
      %v1019 = vsel %vm968, %v1017, %v1018
      %v1020 = vrot.slane %v650, 4
      %v1021 = vor.u32 %v1020, %v1018
      %v1022 = vrot.slane %v1021, 4
      %v1023 = vrot.slane %v658, 4
      %v1024 = vrot.slane %v661, 5
      %v1025 = vor.u32 %v1023, %v1024
      %v1026 = vrot.slane %v1025, 4
      %v1027 = vrot.slane %v669, 5
      %v1028 = vsel %vm968, %v1026, %v1027
      %v1029 = vrot.slane %v666, 4
      %v1030 = vor.u32 %v1029, %v1027
      %v1031 = vrot.slane %v1030, 4
      %v1032 = vrot.slane %v674, 4
      %v1033 = vrot.slane %v677, 5
      %v1034 = vor.u32 %v1032, %v1033
      %v1035 = vrot.slane %v1034, 4
      %v1036 = vrot.slane %v685, 5
      %v1037 = vsel %vm968, %v1035, %v1036
      %v1038 = vrot.slane %v682, 4
      %v1039 = vor.u32 %v1038, %v1036
      %v1040 = vrot.slane %v1039, 4
      %v1041 = vrot.slane %v690, 4
      %v1042 = vrot.slane %v693, 5
      %v1043 = vor.u32 %v1041, %v1042
      %v1044 = vrot.slane %v1043, 4
      %v1045 = vrot.slane %v701, 5
      %v1046 = vsel %vm968, %v1044, %v1045
      %v1047 = vrot.slane %v698, 4
      %v1048 = vor.u32 %v1047, %v1045
      %v1049 = vrot.slane %v1048, 4
      %v1050 = vrot.slane %v706, 4
      %v1051 = vrot.slane %v709, 5
      %v1052 = vor.u32 %v1050, %v1051
      %v1053 = vrot.slane %v1052, 4
      %v1054 = vrot.slane %v717, 5
      %v1055 = vsel %vm968, %v1053, %v1054
      %v1056 = vrot.slane %v714, 4
      %v1057 = vor.u32 %v1056, %v1054
      %v1058 = vrot.slane %v1057, 4
      %v1059 = vrot.slane %v722, 4
      %v1060 = vrot.slane %v725, 5
      %v1061 = vor.u32 %v1059, %v1060
      %v1062 = vrot.slane %v1061, 4
      %v1063 = vrot.slane %v733, 5
      %v1064 = vsel %vm968, %v1062, %v1063
      %v1065 = vrot.slane %v730, 4
      %v1066 = vor.u32 %v1065, %v1063
      %v1067 = vrot.slane %v1066, 4
      %v1068 = vrot.slane %v738, 4
      %v1069 = vrot.slane %v741, 5
      %v1070 = vor.u32 %v1068, %v1069
      %v1071 = vrot.slane %v1070, 4
      %v1072 = vrot.slane %v749, 5
      %v1073 = vsel %vm968, %v1071, %v1072
      %v1074 = vrot.slane %v746, 4
      %v1075 = vor.u32 %v1074, %v1072
      %v1076 = vrot.slane %v1075, 4
      %v1077 = vrot.slane %v754, 4
      %v1078 = vrot.slane %v757, 5
      %v1079 = vor.u32 %v1077, %v1078
      %v1080 = vrot.slane %v1079, 4
      %v1081 = vrot.slane %v765, 5
      %v1082 = vsel %vm968, %v1080, %v1081
      %v1083 = vrot.slane %v762, 4
      %v1084 = vor.u32 %v1083, %v1081
      %v1085 = vrot.slane %v1084, 4
      %v1086 = vrot.slane %v770, 4
      %v1087 = vrot.slane %v773, 5
      %v1088 = vor.u32 %v1086, %v1087
      %v1089 = vrot.slane %v1088, 4
      %v1090 = vrot.slane %v781, 5
      %v1091 = vsel %vm968, %v1089, %v1090
      %v1092 = vrot.slane %v778, 4
      %v1093 = vor.u32 %v1092, %v1090
      %v1094 = vrot.slane %v1093, 4
      %v1095 = vrot.slane %v786, 4
      %v1096 = vrot.slane %v789, 5
      %v1097 = vor.u32 %v1095, %v1096
      %v1098 = vrot.slane %v1097, 4
      %v1099 = vrot.slane %v797, 5
      %v1100 = vsel %vm968, %v1098, %v1099
      %v1101 = vrot.slane %v794, 4
      %v1102 = vor.u32 %v1101, %v1099
      %v1103 = vrot.slane %v1102, 4
      %v1104 = vrot.slane %v802, 4
      %v1105 = vrot.slane %v805, 5
      %v1106 = vor.u32 %v1104, %v1105
      %v1107 = vrot.slane %v1106, 4
      %v1108 = vrot.slane %v813, 5
      %v1109 = vsel %vm968, %v1107, %v1108
      %v1110 = vrot.slane %v810, 4
      %v1111 = vor.u32 %v1110, %v1108
      %v1112 = vrot.slane %v1111, 4
      %1145 = vst [vmem:[%s525 + $0x8] sm:$0xf] %v974
      %vm1146 = vmand %vm849, %vm966
      %v1147 = vld [vmem:[%s525 + $0x14] sm:$0xf]
      %v1148 = vsel %vm1146, %v977, %v1147
      %1149 = vst [vmem:[%s525 + $0x14] sm:$0xf] %v1148
      %1150 = vst [vmem:[%s525 + $0x20] sm:$0xf] %v983
      %v1151 = vld [vmem:[%s525 + $0x2c] sm:$0xf]
      %v1152 = vsel %vm1146, %v986, %v1151
      %1153 = vst [vmem:[%s525 + $0x2c] sm:$0xf] %v1152
      %1154 = vst [vmem:[%s525 + $0x38] sm:$0xf] %v992
      %v1155 = vld [vmem:[%s525 + $0x44] sm:$0xf]
      %v1156 = vsel %vm1146, %v995, %v1155
      %1157 = vst [vmem:[%s525 + $0x44] sm:$0xf] %v1156
      %1158 = vst [vmem:[%s525 + $0x50] sm:$0xf] %v1001
      %v1159 = vld [vmem:[%s525 + $0x5c] sm:$0xf]
      %v1160 = vsel %vm1146, %v1004, %v1159
      %1161 = vst [vmem:[%s525 + $0x5c] sm:$0xf] %v1160
      %1162 = vst [vmem:[%s525 + $0x68] sm:$0xf] %v1010
      %v1163 = vld [vmem:[%s525 + $0x74] sm:$0xf]
      %v1164 = vsel %vm1146, %v1013, %v1163
      %1165 = vst [vmem:[%s525 + $0x74] sm:$0xf] %v1164
      %1166 = vst [vmem:[%s525 + $0x80] sm:$0xf] %v1019
      %v1167 = vld [vmem:[%s525 + $0x8c] sm:$0xf]
      %v1168 = vsel %vm1146, %v1022, %v1167
      %1169 = vst [vmem:[%s525 + $0x8c] sm:$0xf] %v1168
      %1170 = vst [vmem:[%s525 + $0x98] sm:$0xf] %v1028
      %v1171 = vld [vmem:[%s525 + $0xa4] sm:$0xf]
      %v1172 = vsel %vm1146, %v1031, %v1171
      %1173 = vst [vmem:[%s525 + $0xa4] sm:$0xf] %v1172
      %1174 = vst [vmem:[%s525 + $0xb0] sm:$0xf] %v1037
      %v1175 = vld [vmem:[%s525 + $0xbc] sm:$0xf]
      %v1176 = vsel %vm1146, %v1040, %v1175
      %1177 = vst [vmem:[%s525 + $0xbc] sm:$0xf] %v1176
      %1178 = vst [vmem:[%s525 + $0xc8] sm:$0xf] %v1046
      %v1179 = vld [vmem:[%s525 + $0xd4] sm:$0xf]
      %v1180 = vsel %vm1146, %v1049, %v1179
      %1181 = vst [vmem:[%s525 + $0xd4] sm:$0xf] %v1180
      %1182 = vst [vmem:[%s525 + $0xe0] sm:$0xf] %v1055
      %v1183 = vld [vmem:[%s525 + $0xec] sm:$0xf]
      %v1184 = vsel %vm1146, %v1058, %v1183
      %1185 = vst [vmem:[%s525 + $0xec] sm:$0xf] %v1184
      %1186 = vst [vmem:[%s525 + $0xf8] sm:$0xf] %v1064
      %v1187 = vld [vmem:[%s525 + $0x104] sm:$0xf]
      %v1188 = vsel %vm1146, %v1067, %v1187
      %1189 = vst [vmem:[%s525 + $0x104] sm:$0xf] %v1188
      %1190 = vst [vmem:[%s525 + $0x110] sm:$0xf] %v1073
      %v1191 = vld [vmem:[%s525 + $0x11c] sm:$0xf]
      %v1192 = vsel %vm1146, %v1076, %v1191
      %1193 = vst [vmem:[%s525 + $0x11c] sm:$0xf] %v1192
      %1194 = vst [vmem:[%s525 + $0x128] sm:$0xf] %v1082
      %v1195 = vld [vmem:[%s525 + $0x134] sm:$0xf]
      %v1196 = vsel %vm1146, %v1085, %v1195
      %1197 = vst [vmem:[%s525 + $0x134] sm:$0xf] %v1196
      %1198 = vst [vmem:[%s525 + $0x140] sm:$0xf] %v1091
      %v1199 = vld [vmem:[%s525 + $0x14c] sm:$0xf]
      %v1200 = vsel %vm1146, %v1094, %v1199
      %1201 = vst [vmem:[%s525 + $0x14c] sm:$0xf] %v1200
      %1202 = vst [vmem:[%s525 + $0x158] sm:$0xf] %v1100
      %v1203 = vld [vmem:[%s525 + $0x164] sm:$0xf]
      %v1204 = vsel %vm1146, %v1103, %v1203
      %1205 = vst [vmem:[%s525 + $0x164] sm:$0xf] %v1204
      %1206 = vst [vmem:[%s525 + $0x170] sm:$0xf] %v1109
      %v1207 = vld [vmem:[%s525 + $0x17c] sm:$0xf]
      %v1208 = vsel %vm1146, %v1112, %v1207
      %1209 = vst [vmem:[%s525 + $0x17c] sm:$0xf] %v1208
      %vm1210 = vcmask 1043459
      %vm1211 = vsmask.f32 7950
      %vm1212 = vmand %vm1210, %vm1211
      %v1213 = vld [vmem:[%s525 + $0x14] sm:$0x8]
      %v1214 = vsel %vm1212, 0, %v1213
      %1215 = vst [vmem:[%s525 + $0x14] sm:$0x8] %v1214
      %v1216 = vld [vmem:[%s525 + $0x2c] sm:$0x8]
      %v1217 = vsel %vm1212, 0, %v1216
      %1218 = vst [vmem:[%s525 + $0x2c] sm:$0x8] %v1217
      %v1219 = vld [vmem:[%s525 + $0x44] sm:$0x8]
      %v1220 = vsel %vm1212, 0, %v1219
      %1221 = vst [vmem:[%s525 + $0x44] sm:$0x8] %v1220
      %v1222 = vld [vmem:[%s525 + $0x5c] sm:$0x8]
      %v1223 = vsel %vm1212, 0, %v1222
      %1224 = vst [vmem:[%s525 + $0x5c] sm:$0x8] %v1223
      %v1225 = vld [vmem:[%s525 + $0x74] sm:$0x8]
      %v1226 = vsel %vm1212, 0, %v1225
      %1227 = vst [vmem:[%s525 + $0x74] sm:$0x8] %v1226
      %v1228 = vld [vmem:[%s525 + $0x8c] sm:$0x8]
      %v1229 = vsel %vm1212, 0, %v1228
      %1230 = vst [vmem:[%s525 + $0x8c] sm:$0x8] %v1229
      %v1231 = vld [vmem:[%s525 + $0xa4] sm:$0x8]
      %v1232 = vsel %vm1212, 0, %v1231
      %1233 = vst [vmem:[%s525 + $0xa4] sm:$0x8] %v1232
      %v1234 = vld [vmem:[%s525 + $0xbc] sm:$0x8]
      %v1235 = vsel %vm1212, 0, %v1234
      %1236 = vst [vmem:[%s525 + $0xbc] sm:$0x8] %v1235
      %v1237 = vld [vmem:[%s525 + $0xd4] sm:$0x8]
      %v1238 = vsel %vm1212, 0, %v1237
      %1239 = vst [vmem:[%s525 + $0xd4] sm:$0x8] %v1238
      %v1240 = vld [vmem:[%s525 + $0xec] sm:$0x8]
      %v1241 = vsel %vm1212, 0, %v1240
      %1242 = vst [vmem:[%s525 + $0xec] sm:$0x8] %v1241
      %v1243 = vld [vmem:[%s525 + $0x104] sm:$0x8]
      %v1244 = vsel %vm1212, 0, %v1243
      %1245 = vst [vmem:[%s525 + $0x104] sm:$0x8] %v1244
      %v1246 = vld [vmem:[%s525 + $0x11c] sm:$0x8]
      %v1247 = vsel %vm1212, 0, %v1246
      %1248 = vst [vmem:[%s525 + $0x11c] sm:$0x8] %v1247
      %v1249 = vld [vmem:[%s525 + $0x134] sm:$0x8]
      %v1250 = vsel %vm1212, 0, %v1249
      %1251 = vst [vmem:[%s525 + $0x134] sm:$0x8] %v1250
      %v1252 = vld [vmem:[%s525 + $0x14c] sm:$0x8]
      %v1253 = vsel %vm1212, 0, %v1252
      %1254 = vst [vmem:[%s525 + $0x14c] sm:$0x8] %v1253
      %v1255 = vld [vmem:[%s525 + $0x164] sm:$0x8]
      %v1256 = vsel %vm1212, 0, %v1255
      %1257 = vst [vmem:[%s525 + $0x164] sm:$0x8] %v1256
      %v1258 = vld [vmem:[%s525 + $0x17c] sm:$0x8]
      %v1259 = vsel %vm1212, 0, %v1258
      %1260 = vst [vmem:[%s525 + $0x17c] sm:$0x8] %v1259
      %v1261 = vld [vmem:[#allocation2] sm:$0xff]
      %v1262 = vld [vmem:[#allocation2 + $0x8] sm:$0xf]
      %v1263 = vld [vmem:[#allocation2 + $0xc] sm:$0xff]
      %v1264 = vld [vmem:[#allocation2 + $0x14] sm:$0xf]
      %v1265 = vld [vmem:[#allocation2 + $0x18] sm:$0xff]
      %v1266 = vld [vmem:[#allocation2 + $0x20] sm:$0xf]
      %v1267 = vld [vmem:[#allocation2 + $0x24] sm:$0xff]
      %v1268 = vld [vmem:[#allocation2 + $0x2c] sm:$0xf]
      %v1269 = vld [vmem:[#allocation2 + $0x30] sm:$0xff]
      %v1270 = vld [vmem:[#allocation2 + $0x38] sm:$0xf]
      %v1271 = vld [vmem:[#allocation2 + $0x3c] sm:$0xff]
      %v1272 = vld [vmem:[#allocation2 + $0x44] sm:$0xf]
      %v1273 = vld [vmem:[#allocation2 + $0x48] sm:$0xff]
      %v1274 = vld [vmem:[#allocation2 + $0x50] sm:$0xf]
      %v1275 = vld [vmem:[#allocation2 + $0x54] sm:$0xff]
      %v1276 = vld [vmem:[#allocation2 + $0x5c] sm:$0xf]
      %v1277 = vld [vmem:[#allocation2 + $0x60] sm:$0xff]
      %v1278 = vld [vmem:[#allocation2 + $0x68] sm:$0xf]
      %v1279 = vld [vmem:[#allocation2 + $0x6c] sm:$0xff]
      %v1280 = vld [vmem:[#allocation2 + $0x74] sm:$0xf]
      %v1281 = vld [vmem:[#allocation2 + $0x78] sm:$0xff]
      %v1282 = vld [vmem:[#allocation2 + $0x80] sm:$0xf]
      %v1283 = vld [vmem:[#allocation2 + $0x84] sm:$0xff]
      %v1284 = vld [vmem:[#allocation2 + $0x8c] sm:$0xf]
      %v1285 = vld [vmem:[#allocation2 + $0x90] sm:$0xff]
      %v1286 = vld [vmem:[#allocation2 + $0x98] sm:$0xf]
      %v1287 = vld [vmem:[#allocation2 + $0x9c] sm:$0xff]
      %v1288 = vld [vmem:[#allocation2 + $0xa4] sm:$0xf]
      %v1289 = vld [vmem:[#allocation2 + $0xa8] sm:$0xff]
      %v1290 = vld [vmem:[#allocation2 + $0xb0] sm:$0xf]
      %v1291 = vld [vmem:[#allocation2 + $0xb4] sm:$0xff]
      %v1292 = vld [vmem:[#allocation2 + $0xbc] sm:$0xf]
      %v1293 = vld [vmem:[#allocation2 + $0xc0] sm:$0xff]
      %v1294 = vld [vmem:[#allocation2 + $0xc8] sm:$0xf]
      %v1295 = vld [vmem:[#allocation2 + $0xcc] sm:$0xff]
      %v1296 = vld [vmem:[#allocation2 + $0xd4] sm:$0xf]
      %v1297 = vld [vmem:[#allocation2 + $0xd8] sm:$0xff]
      %v1298 = vld [vmem:[#allocation2 + $0xe0] sm:$0xf]
      %v1299 = vld [vmem:[#allocation2 + $0xe4] sm:$0xff]
      %v1300 = vld [vmem:[#allocation2 + $0xec] sm:$0xf]
      %v1301 = vld [vmem:[#allocation2 + $0xf0] sm:$0xff]
      %v1302 = vld [vmem:[#allocation2 + $0xf8] sm:$0xf]
      %v1303 = vld [vmem:[#allocation2 + $0xfc] sm:$0xff]
      %v1304 = vld [vmem:[#allocation2 + $0x104] sm:$0xf]
      %v1305 = vld [vmem:[#allocation2 + $0x108] sm:$0xff]
      %v1306 = vld [vmem:[#allocation2 + $0x110] sm:$0xf]
      %v1307 = vld [vmem:[#allocation2 + $0x114] sm:$0xff]
      %v1308 = vld [vmem:[#allocation2 + $0x11c] sm:$0xf]
      %v1309 = vld [vmem:[#allocation2 + $0x120] sm:$0xff]
      %v1310 = vld [vmem:[#allocation2 + $0x128] sm:$0xf]
      %v1311 = vld [vmem:[#allocation2 + $0x12c] sm:$0xff]
      %v1312 = vld [vmem:[#allocation2 + $0x134] sm:$0xf]
      %v1313 = vld [vmem:[#allocation2 + $0x138] sm:$0xff]
      %v1314 = vld [vmem:[#allocation2 + $0x140] sm:$0xf]
      %v1315 = vld [vmem:[#allocation2 + $0x144] sm:$0xff]
      %v1316 = vld [vmem:[#allocation2 + $0x14c] sm:$0xf]
      %v1317 = vld [vmem:[#allocation2 + $0x150] sm:$0xff]
      %v1318 = vld [vmem:[#allocation2 + $0x158] sm:$0xf]
      %v1319 = vld [vmem:[#allocation2 + $0x15c] sm:$0xff]
      %v1320 = vld [vmem:[#allocation2 + $0x164] sm:$0xf]
      %v1321 = vld [vmem:[#allocation2 + $0x168] sm:$0xff]
      %v1322 = vld [vmem:[#allocation2 + $0x170] sm:$0xf]
      %v1323 = vld [vmem:[#allocation2 + $0x174] sm:$0xff]
      %v1324 = vld [vmem:[#allocation2 + $0x17c] sm:$0xf]
      %v1325 = vld [vmem:[%s4] sm:$0xf]
      %v1326 = vld [vmem:[%s4 + $0x4] sm:$0xf]
      %v1327 = vld [vmem:[%s4 + $0x8] sm:$0xf]
      %v1328 = vld [vmem:[%s4 + $0xc] sm:$0xf]
      %v1329 = vld [vmem:[%s4 + $0x10] sm:$0xf]
      %v1330 = vld [vmem:[%s4 + $0x14] sm:$0xf]
      %v1331 = vld [vmem:[%s4 + $0x18] sm:$0xf]
      %v1332 = vld [vmem:[%s4 + $0x1c] sm:$0xf]
      %v1333 = vld [vmem:[%s4 + $0x20] sm:$0xf]
      %v1334 = vld [vmem:[%s4 + $0x24] sm:$0xf]
      %v1335 = vld [vmem:[%s4 + $0x28] sm:$0xf]
      %v1336 = vld [vmem:[%s4 + $0x2c] sm:$0xf]
      %v1337 = vld [vmem:[%s4 + $0x30] sm:$0xf]
      %v1338 = vld [vmem:[%s4 + $0x34] sm:$0xf]
      %v1339 = vld [vmem:[%s4 + $0x38] sm:$0xf]
      %v1340 = vld [vmem:[%s4 + $0x3c] sm:$0xf]
      %v1341 = vld [vmem:[%s4 + $0x40] sm:$0xf]
      %v1342 = vld [vmem:[%s4 + $0x44] sm:$0xf]
      %v1343 = vld [vmem:[%s4 + $0x48] sm:$0xf]
      %v1344 = vld [vmem:[%s4 + $0x4c] sm:$0xf]
      %v1345 = vld [vmem:[%s4 + $0x50] sm:$0xf]
      %v1346 = vld [vmem:[%s4 + $0x54] sm:$0xf]
      %v1347 = vld [vmem:[%s4 + $0x58] sm:$0xf]
      %v1348 = vld [vmem:[%s4 + $0x5c] sm:$0xf]
      %v1349 = vld [vmem:[%s4 + $0x60] sm:$0xf]
      %v1350 = vld [vmem:[%s4 + $0x64] sm:$0xf]
      %v1351 = vld [vmem:[%s4 + $0x68] sm:$0xf]
      %v1352 = vld [vmem:[%s4 + $0x6c] sm:$0xf]
      %v1353 = vld [vmem:[%s4 + $0x70] sm:$0xf]
      %v1354 = vld [vmem:[%s4 + $0x74] sm:$0xf]
      %v1355 = vld [vmem:[%s4 + $0x78] sm:$0xf]
      %v1356 = vld [vmem:[%s4 + $0x7c] sm:$0xf]
      %v1357 = vld [vmem:[%s4 + $0x80] sm:$0xf]
      %v1358 = vld [vmem:[%s4 + $0x84] sm:$0xf]
      %v1359 = vld [vmem:[%s4 + $0x88] sm:$0xf]
      %v1360 = vld [vmem:[%s4 + $0x8c] sm:$0xf]
      %v1361 = vld [vmem:[%s4 + $0x90] sm:$0xf]
      %v1362 = vld [vmem:[%s4 + $0x94] sm:$0xf]
      %v1363 = vld [vmem:[%s4 + $0x98] sm:$0xf]
      %v1364 = vld [vmem:[%s4 + $0x9c] sm:$0xf]
      %v1365 = vld [vmem:[%s4 + $0xa0] sm:$0xf]
      %v1366 = vld [vmem:[%s4 + $0xa4] sm:$0xf]
      %v1367 = vld [vmem:[%s4 + $0xa8] sm:$0xf]
      %v1368 = vld [vmem:[%s4 + $0xac] sm:$0xf]
      %v1369 = vld [vmem:[%s4 + $0xb0] sm:$0xf]
      %v1370 = vld [vmem:[%s4 + $0xb4] sm:$0xf]
      %v1371 = vld [vmem:[%s4 + $0xb8] sm:$0xf]
      %v1372 = vld [vmem:[%s4 + $0xbc] sm:$0xf]
      %v1373 = vld [vmem:[%s525] sm:$0xff]
      %v1374 = vld [vmem:[%s525 + $0x8] sm:$0xf]
      %v1375 = vld [vmem:[%s525 + $0xc] sm:$0xff]
      %v1376 = vld [vmem:[%s525 + $0x14] sm:$0xf]
      %v1377 = vld [vmem:[%s525 + $0x18] sm:$0xff]
      %v1378 = vld [vmem:[%s525 + $0x20] sm:$0xf]
      %v1379 = vld [vmem:[%s525 + $0x24] sm:$0xff]
      %v1380 = vld [vmem:[%s525 + $0x2c] sm:$0xf]
      %v1381 = vld [vmem:[%s525 + $0x30] sm:$0xff]
      %v1382 = vld [vmem:[%s525 + $0x38] sm:$0xf]
      %v1383 = vld [vmem:[%s525 + $0x3c] sm:$0xff]
      %v1384 = vld [vmem:[%s525 + $0x44] sm:$0xf]
      %v1385 = vld [vmem:[%s525 + $0x48] sm:$0xff]
      %v1386 = vld [vmem:[%s525 + $0x50] sm:$0xf]
      %v1387 = vld [vmem:[%s525 + $0x54] sm:$0xff]
      %v1388 = vld [vmem:[%s525 + $0x5c] sm:$0xf]
      %v1389 = vld [vmem:[%s525 + $0x60] sm:$0xff]
      %v1390 = vld [vmem:[%s525 + $0x68] sm:$0xf]
      %v1391 = vld [vmem:[%s525 + $0x6c] sm:$0xff]
      %v1392 = vld [vmem:[%s525 + $0x74] sm:$0xf]
      %v1393 = vld [vmem:[%s525 + $0x78] sm:$0xff]
      %v1394 = vld [vmem:[%s525 + $0x80] sm:$0xf]
      %v1395 = vld [vmem:[%s525 + $0x84] sm:$0xff]
      %v1396 = vld [vmem:[%s525 + $0x8c] sm:$0xf]
      %v1397 = vld [vmem:[%s525 + $0x90] sm:$0xff]
      %v1398 = vld [vmem:[%s525 + $0x98] sm:$0xf]
      %v1399 = vld [vmem:[%s525 + $0x9c] sm:$0xff]
      %v1400 = vld [vmem:[%s525 + $0xa4] sm:$0xf]
      %v1401 = vld [vmem:[%s525 + $0xa8] sm:$0xff]
      %v1402 = vld [vmem:[%s525 + $0xb0] sm:$0xf]
      %v1403 = vld [vmem:[%s525 + $0xb4] sm:$0xff]
      %v1404 = vld [vmem:[%s525 + $0xbc] sm:$0xf]
      %v1405 = vld [vmem:[%s525 + $0xc0] sm:$0xff]
      %v1406 = vld [vmem:[%s525 + $0xc8] sm:$0xf]
      %v1407 = vld [vmem:[%s525 + $0xcc] sm:$0xff]
      %v1408 = vld [vmem:[%s525 + $0xd4] sm:$0xf]
      %v1409 = vld [vmem:[%s525 + $0xd8] sm:$0xff]
      %v1410 = vld [vmem:[%s525 + $0xe0] sm:$0xf]
      %v1411 = vld [vmem:[%s525 + $0xe4] sm:$0xff]
      %v1412 = vld [vmem:[%s525 + $0xec] sm:$0xf]
      %v1413 = vld [vmem:[%s525 + $0xf0] sm:$0xff]
      %v1414 = vld [vmem:[%s525 + $0xf8] sm:$0xf]
      %v1415 = vld [vmem:[%s525 + $0xfc] sm:$0xff]
      %v1416 = vld [vmem:[%s525 + $0x104] sm:$0xf]
      %v1417 = vld [vmem:[%s525 + $0x108] sm:$0xff]
      %v1418 = vld [vmem:[%s525 + $0x110] sm:$0xf]
      %v1419 = vld [vmem:[%s525 + $0x114] sm:$0xff]
      %v1420 = vld [vmem:[%s525 + $0x11c] sm:$0xf]
      %v1421 = vld [vmem:[%s525 + $0x120] sm:$0xff]
      %v1422 = vld [vmem:[%s525 + $0x128] sm:$0xf]
      %v1423 = vld [vmem:[%s525 + $0x12c] sm:$0xff]
      %v1424 = vld [vmem:[%s525 + $0x134] sm:$0xf]
      %v1425 = vld [vmem:[%s525 + $0x138] sm:$0xff]
      %v1426 = vld [vmem:[%s525 + $0x140] sm:$0xf]
      %v1427 = vld [vmem:[%s525 + $0x144] sm:$0xff]
      %v1428 = vld [vmem:[%s525 + $0x14c] sm:$0xf]
      %v1429 = vld [vmem:[%s525 + $0x150] sm:$0xff]
      %v1430 = vld [vmem:[%s525 + $0x158] sm:$0xf]
      %v1431 = vld [vmem:[%s525 + $0x15c] sm:$0xff]
      %v1432 = vld [vmem:[%s525 + $0x164] sm:$0xf]
      %v1433 = vld [vmem:[%s525 + $0x168] sm:$0xff]
      %v1434 = vld [vmem:[%s525 + $0x170] sm:$0xf]
      %v1435 = vld [vmem:[%s525 + $0x174] sm:$0xff]
      %v1436 = vld [vmem:[%s525 + $0x17c] sm:$0xf]
      %s1437 = scalar_lea.vmem %s4, 192
      %v1438 = vld [vmem:[%s1437] sm:$0xf]
      %v1439 = vld [vmem:[%s1437 + $0x4] sm:$0xf]
      %v1440 = vld [vmem:[%s1437 + $0x8] sm:$0xf]
      %v1441 = vld [vmem:[%s1437 + $0xc] sm:$0xf]
      %v1442 = vld [vmem:[%s1437 + $0x10] sm:$0xf]
      %v1443 = vld [vmem:[%s1437 + $0x14] sm:$0xf]
      %v1444 = vld [vmem:[%s1437 + $0x18] sm:$0xf]
      %v1445 = vld [vmem:[%s1437 + $0x1c] sm:$0xf]
      %v1446 = vld [vmem:[%s1437 + $0x20] sm:$0xf]
      %v1447 = vld [vmem:[%s1437 + $0x24] sm:$0xf]
      %v1448 = vld [vmem:[%s1437 + $0x28] sm:$0xf]
      %v1449 = vld [vmem:[%s1437 + $0x2c] sm:$0xf]
      %v1450 = vld [vmem:[%s1437 + $0x30] sm:$0xf]
      %v1451 = vld [vmem:[%s1437 + $0x34] sm:$0xf]
      %v1452 = vld [vmem:[%s1437 + $0x38] sm:$0xf]
      %v1453 = vld [vmem:[%s1437 + $0x3c] sm:$0xf]
      %v1454 = vld [vmem:[%s1437 + $0x40] sm:$0xf]
      %v1455 = vld [vmem:[%s1437 + $0x44] sm:$0xf]
      %v1456 = vld [vmem:[%s1437 + $0x48] sm:$0xf]
      %v1457 = vld [vmem:[%s1437 + $0x4c] sm:$0xf]
      %v1458 = vld [vmem:[%s1437 + $0x50] sm:$0xf]
      %v1459 = vld [vmem:[%s1437 + $0x54] sm:$0xf]
      %v1460 = vld [vmem:[%s1437 + $0x58] sm:$0xf]
      %v1461 = vld [vmem:[%s1437 + $0x5c] sm:$0xf]
      %v1462 = vld [vmem:[%s1437 + $0x60] sm:$0xf]
      %v1463 = vld [vmem:[%s1437 + $0x64] sm:$0xf]
      %v1464 = vld [vmem:[%s1437 + $0x68] sm:$0xf]
      %v1465 = vld [vmem:[%s1437 + $0x6c] sm:$0xf]
      %v1466 = vld [vmem:[%s1437 + $0x70] sm:$0xf]
      %v1467 = vld [vmem:[%s1437 + $0x74] sm:$0xf]
      %v1468 = vld [vmem:[%s1437 + $0x78] sm:$0xf]
      %v1469 = vld [vmem:[%s1437 + $0x7c] sm:$0xf]
      %v1470 = vld [vmem:[%s1437 + $0x80] sm:$0xf]
      %v1471 = vld [vmem:[%s1437 + $0x84] sm:$0xf]
      %v1472 = vld [vmem:[%s1437 + $0x88] sm:$0xf]
      %v1473 = vld [vmem:[%s1437 + $0x8c] sm:$0xf]
      %v1474 = vld [vmem:[%s1437 + $0x90] sm:$0xf]
      %v1475 = vld [vmem:[%s1437 + $0x94] sm:$0xf]
      %v1476 = vld [vmem:[%s1437 + $0x98] sm:$0xf]
      %v1477 = vld [vmem:[%s1437 + $0x9c] sm:$0xf]
      %v1478 = vld [vmem:[%s1437 + $0xa0] sm:$0xf]
      %v1479 = vld [vmem:[%s1437 + $0xa4] sm:$0xf]
      %v1480 = vld [vmem:[%s1437 + $0xa8] sm:$0xf]
      %v1481 = vld [vmem:[%s1437 + $0xac] sm:$0xf]
      %v1482 = vld [vmem:[%s1437 + $0xb0] sm:$0xf]
      %v1483 = vld [vmem:[%s1437 + $0xb4] sm:$0xf]
      %v1484 = vld [vmem:[%s1437 + $0xb8] sm:$0xf]
      %v1485 = vld [vmem:[%s1437 + $0xbc] sm:$0xf]
      %v1550 = vunpack.c.l.b16 %v1373
      %v1551 = vunpack.c.h.b16 %v1373
      %v1552 = vunpack.c.l.b16 %v1374
      %v1553 = vunpack.c.l.b16 %v1375
      %v1554 = vunpack.c.h.b16 %v1375
      %v1555 = vunpack.c.l.b16 %v1376
      %v1556 = vunpack.c.l.b16 %v1377
      %v1557 = vunpack.c.h.b16 %v1377
      %v1558 = vunpack.c.l.b16 %v1378
      %v1559 = vunpack.c.l.b16 %v1379
      %v1560 = vunpack.c.h.b16 %v1379
      %v1561 = vunpack.c.l.b16 %v1380
      %v1562 = vunpack.c.l.b16 %v1381
      %v1563 = vunpack.c.h.b16 %v1381
      %v1564 = vunpack.c.l.b16 %v1382
      %v1565 = vunpack.c.l.b16 %v1383
      %v1566 = vunpack.c.h.b16 %v1383
      %v1567 = vunpack.c.l.b16 %v1384
      %v1568 = vunpack.c.l.b16 %v1385
      %v1569 = vunpack.c.h.b16 %v1385
      %v1570 = vunpack.c.l.b16 %v1386
      %v1571 = vunpack.c.l.b16 %v1387
      %v1572 = vunpack.c.h.b16 %v1387
      %v1573 = vunpack.c.l.b16 %v1388
      %v1574 = vunpack.c.l.b16 %v1389
      %v1575 = vunpack.c.h.b16 %v1389
      %v1576 = vunpack.c.l.b16 %v1390
      %v1577 = vunpack.c.l.b16 %v1391
      %v1578 = vunpack.c.h.b16 %v1391
      %v1579 = vunpack.c.l.b16 %v1392
      %v1580 = vunpack.c.l.b16 %v1393
      %v1581 = vunpack.c.h.b16 %v1393
      %v1582 = vunpack.c.l.b16 %v1394
      %v1583 = vunpack.c.l.b16 %v1395
      %v1584 = vunpack.c.h.b16 %v1395
      %v1585 = vunpack.c.l.b16 %v1396
      %v1586 = vunpack.c.l.b16 %v1397
      %v1587 = vunpack.c.h.b16 %v1397
      %v1588 = vunpack.c.l.b16 %v1398
      %v1589 = vunpack.c.l.b16 %v1399
      %v1590 = vunpack.c.h.b16 %v1399
      %v1591 = vunpack.c.l.b16 %v1400
      %v1592 = vunpack.c.l.b16 %v1401
      %v1593 = vunpack.c.h.b16 %v1401
      %v1594 = vunpack.c.l.b16 %v1402
      %v1595 = vunpack.c.l.b16 %v1403
      %v1596 = vunpack.c.h.b16 %v1403
      %v1597 = vunpack.c.l.b16 %v1404
      %v1598 = vunpack.c.l.b16 %v1405
      %v1599 = vunpack.c.h.b16 %v1405
      %v1600 = vunpack.c.l.b16 %v1406
      %v1601 = vunpack.c.l.b16 %v1407
      %v1602 = vunpack.c.h.b16 %v1407
      %v1603 = vunpack.c.l.b16 %v1408
      %v1604 = vunpack.c.l.b16 %v1409
      %v1605 = vunpack.c.h.b16 %v1409
      %v1606 = vunpack.c.l.b16 %v1410
      %v1607 = vunpack.c.l.b16 %v1411
      %v1608 = vunpack.c.h.b16 %v1411
      %v1609 = vunpack.c.l.b16 %v1412
      %v1610 = vunpack.c.l.b16 %v1413
      %v1611 = vunpack.c.h.b16 %v1413
      %v1612 = vunpack.c.l.b16 %v1414
      %v1613 = vunpack.c.l.b16 %v1415
      %v1614 = vunpack.c.h.b16 %v1415
      %v1615 = vunpack.c.l.b16 %v1416
      %v1616 = vunpack.c.l.b16 %v1417
      %v1617 = vunpack.c.h.b16 %v1417
      %v1618 = vunpack.c.l.b16 %v1418
      %v1619 = vunpack.c.l.b16 %v1419
      %v1620 = vunpack.c.h.b16 %v1419
      %v1621 = vunpack.c.l.b16 %v1420
      %v1622 = vunpack.c.l.b16 %v1421
      %v1623 = vunpack.c.h.b16 %v1421
      %v1624 = vunpack.c.l.b16 %v1422
      %v1625 = vunpack.c.l.b16 %v1423
      %v1626 = vunpack.c.h.b16 %v1423
      %v1627 = vunpack.c.l.b16 %v1424
      %v1628 = vunpack.c.l.b16 %v1425
      %v1629 = vunpack.c.h.b16 %v1425
      %v1630 = vunpack.c.l.b16 %v1426
      %v1631 = vunpack.c.l.b16 %v1427
      %v1632 = vunpack.c.h.b16 %v1427
      %v1633 = vunpack.c.l.b16 %v1428
      %v1634 = vunpack.c.l.b16 %v1429
      %v1635 = vunpack.c.h.b16 %v1429
      %v1636 = vunpack.c.l.b16 %v1430
      %v1637 = vunpack.c.l.b16 %v1431
      %v1638 = vunpack.c.h.b16 %v1431
      %v1639 = vunpack.c.l.b16 %v1432
      %v1640 = vunpack.c.l.b16 %v1433
      %v1641 = vunpack.c.h.b16 %v1433
      %v1642 = vunpack.c.l.b16 %v1434
      %v1643 = vunpack.c.l.b16 %v1435
      %v1644 = vunpack.c.h.b16 %v1435
      %v1645 = vunpack.c.l.b16 %v1436
      %v1646 = vpack.c.b16 %v1553, %v1550
      %v1647 = vpack.c.b16 %v1554, %v1551
      %v1648 = vpack.c.b16 %v1555, %v1552
      %v1649 = vpack.c.b16 %v1559, %v1556
      %v1650 = vpack.c.b16 %v1560, %v1557
      %v1651 = vpack.c.b16 %v1561, %v1558
      %v1652 = vpack.c.b16 %v1565, %v1562
      %v1653 = vpack.c.b16 %v1566, %v1563
      %v1654 = vpack.c.b16 %v1567, %v1564
      %v1655 = vpack.c.b16 %v1571, %v1568
      %v1656 = vpack.c.b16 %v1572, %v1569
      %v1657 = vpack.c.b16 %v1573, %v1570
      %v1658 = vpack.c.b16 %v1577, %v1574
      %v1659 = vpack.c.b16 %v1578, %v1575
      %v1660 = vpack.c.b16 %v1579, %v1576
      %v1661 = vpack.c.b16 %v1583, %v1580
      %v1662 = vpack.c.b16 %v1584, %v1581
      %v1663 = vpack.c.b16 %v1585, %v1582
      %v1664 = vpack.c.b16 %v1589, %v1586
      %v1665 = vpack.c.b16 %v1590, %v1587
      %v1666 = vpack.c.b16 %v1591, %v1588
      %v1667 = vpack.c.b16 %v1595, %v1592
      %v1668 = vpack.c.b16 %v1596, %v1593
      %v1669 = vpack.c.b16 %v1597, %v1594
      %v1670 = vpack.c.b16 %v1601, %v1598
      %v1671 = vpack.c.b16 %v1602, %v1599
      %v1672 = vpack.c.b16 %v1603, %v1600
      %v1673 = vpack.c.b16 %v1607, %v1604
      %v1674 = vpack.c.b16 %v1608, %v1605
      %v1675 = vpack.c.b16 %v1609, %v1606
      %v1676 = vpack.c.b16 %v1613, %v1610
      %v1677 = vpack.c.b16 %v1614, %v1611
      %v1678 = vpack.c.b16 %v1615, %v1612
      %v1679 = vpack.c.b16 %v1619, %v1616
      %v1680 = vpack.c.b16 %v1620, %v1617
      %v1681 = vpack.c.b16 %v1621, %v1618
      %v1682 = vpack.c.b16 %v1625, %v1622
      %v1683 = vpack.c.b16 %v1626, %v1623
      %v1684 = vpack.c.b16 %v1627, %v1624
      %v1685 = vpack.c.b16 %v1631, %v1628
      %v1686 = vpack.c.b16 %v1632, %v1629
      %v1687 = vpack.c.b16 %v1633, %v1630
      %v1688 = vpack.c.b16 %v1637, %v1634
      %v1689 = vpack.c.b16 %v1638, %v1635
      %v1690 = vpack.c.b16 %v1639, %v1636
      %v1691 = vpack.c.b16 %v1643, %v1640
      %v1692 = vpack.c.b16 %v1644, %v1641
      %v1693 = vpack.c.b16 %v1645, %v1642
      %v1790 = vunpack.c.l.b16 %v1438
      %v1791 = vunpack.c.l.b16 %v1439
      %v1792 = vunpack.c.l.b16 %v1440
      %v1793 = vunpack.c.l.b16 %v1441
      %v1794 = vunpack.c.l.b16 %v1442
      %v1795 = vunpack.c.l.b16 %v1443
      %v1796 = vunpack.c.l.b16 %v1444
      %v1797 = vunpack.c.l.b16 %v1445
      %v1798 = vunpack.c.l.b16 %v1446
      %v1799 = vunpack.c.l.b16 %v1447
      %v1800 = vunpack.c.l.b16 %v1448
      %v1801 = vunpack.c.l.b16 %v1449
      %v1802 = vunpack.c.l.b16 %v1450
      %v1803 = vunpack.c.l.b16 %v1451
      %v1804 = vunpack.c.l.b16 %v1452
      %v1805 = vunpack.c.l.b16 %v1453
      %v1806 = vunpack.c.l.b16 %v1454
      %v1807 = vunpack.c.l.b16 %v1455
      %v1808 = vunpack.c.l.b16 %v1456
      %v1809 = vunpack.c.l.b16 %v1457
      %v1810 = vunpack.c.l.b16 %v1458
      %v1811 = vunpack.c.l.b16 %v1459
      %v1812 = vunpack.c.l.b16 %v1460
      %v1813 = vunpack.c.l.b16 %v1461
      %v1814 = vunpack.c.l.b16 %v1462
      %v1815 = vunpack.c.l.b16 %v1463
      %v1816 = vunpack.c.l.b16 %v1464
      %v1817 = vunpack.c.l.b16 %v1465
      %v1818 = vunpack.c.l.b16 %v1466
      %v1819 = vunpack.c.l.b16 %v1467
      %v1820 = vunpack.c.l.b16 %v1468
      %v1821 = vunpack.c.l.b16 %v1469
      %v1822 = vunpack.c.l.b16 %v1470
      %v1823 = vunpack.c.l.b16 %v1471
      %v1824 = vunpack.c.l.b16 %v1472
      %v1825 = vunpack.c.l.b16 %v1473
      %v1826 = vunpack.c.l.b16 %v1474
      %v1827 = vunpack.c.l.b16 %v1475
      %v1828 = vunpack.c.l.b16 %v1476
      %v1829 = vunpack.c.l.b16 %v1477
      %v1830 = vunpack.c.l.b16 %v1478
      %v1831 = vunpack.c.l.b16 %v1479
      %v1832 = vunpack.c.l.b16 %v1480
      %v1833 = vunpack.c.l.b16 %v1481
      %v1834 = vunpack.c.l.b16 %v1482
      %v1835 = vunpack.c.l.b16 %v1483
      %v1836 = vunpack.c.l.b16 %v1484
      %v1837 = vunpack.c.l.b16 %v1485
      %v1838 = vpack.c.b16 %v1791, %v1790
      %v1839 = vpack.c.b16 %v1793, %v1792
      %v1840 = vpack.c.b16 %v1795, %v1794
      %v1841 = vpack.c.b16 %v1797, %v1796
      %v1842 = vpack.c.b16 %v1799, %v1798
      %v1843 = vpack.c.b16 %v1801, %v1800
      %v1844 = vpack.c.b16 %v1803, %v1802
      %v1845 = vpack.c.b16 %v1805, %v1804
      %v1846 = vpack.c.b16 %v1807, %v1806
      %v1847 = vpack.c.b16 %v1809, %v1808
      %v1848 = vpack.c.b16 %v1811, %v1810
      %v1849 = vpack.c.b16 %v1813, %v1812
      %v1850 = vpack.c.b16 %v1815, %v1814
      %v1851 = vpack.c.b16 %v1817, %v1816
      %v1852 = vpack.c.b16 %v1819, %v1818
      %v1853 = vpack.c.b16 %v1821, %v1820
      %v1854 = vpack.c.b16 %v1823, %v1822
      %v1855 = vpack.c.b16 %v1825, %v1824
      %v1856 = vpack.c.b16 %v1827, %v1826
      %v1857 = vpack.c.b16 %v1829, %v1828
      %v1858 = vpack.c.b16 %v1831, %v1830
      %v1859 = vpack.c.b16 %v1833, %v1832
      %v1860 = vpack.c.b16 %v1835, %v1834
      %v1861 = vpack.c.b16 %v1837, %v1836
      %1886 = vmatprep.subr.bf16.mxu0 0
      %1887 = vmatpush1.bf16.msra.mxu0 %v1845
      %1888 = vmatprep.subr.bf16.mxu0 0
      %1889 = vmatpush1.bf16.msra.mxu0 %v1844
      %1890 = vmatprep.subr.bf16.mxu0 0
      %1891 = vmatpush1.bf16.msra.mxu0 %v1843
      %1892 = vmatprep.subr.bf16.mxu0 0
      %1893 = vmatpush1.bf16.msra.mxu0 %v1842
      %1894 = vmatprep.subr.bf16.mxu0 0
      %1895 = vmatpush1.bf16.msra.mxu0 %v1841
      %1896 = vmatprep.subr.bf16.mxu0 0
      %1897 = vmatpush1.bf16.msra.mxu0 %v1840
      %1898 = vmatprep.subr.bf16.mxu0 0
      %1899 = vmatpush1.bf16.msra.mxu0 %v1839
      %1900 = vmatprep.subr.bf16.mxu0 0
      %1901 = vmatpush1.bf16.msra.mxu0 %v1838
      %1902 = vmatprep.subr.bf16.mxu0 0
      %1903 = vmatpush2.bf16.msra.mxu0 %v1853
      %1904 = vmatprep.subr.bf16.mxu0 0
      %1905 = vmatpush2.bf16.msra.mxu0 %v1852
      %1906 = vmatprep.subr.bf16.mxu0 0
      %1907 = vmatpush2.bf16.msra.mxu0 %v1851
      %1908 = vmatprep.subr.bf16.mxu0 0
      %1909 = vmatpush2.bf16.msra.mxu0 %v1850
      %1910 = vmatprep.subr.bf16.mxu0 0
      %1911 = vmatpush2.bf16.msra.mxu0 %v1849
      %1912 = vmatprep.subr.bf16.mxu0 0
      %1913 = vmatpush2.bf16.msra.mxu0 %v1848
      %1914 = vmatprep.subr.bf16.mxu0 0
      %1915 = vmatpush2.bf16.msra.mxu0 %v1847
      %1916 = vmatprep.subr.bf16.mxu0 0
      %1917 = vmatpush2.bf16.msra.mxu0 %v1846
      %1918 = vmatprep.mubr.bf16.mxu0 %v1647
      %1919 = vmatmul.mubr.bf16.gmra.mxu0 %v1646
      %v1920 = vpop.f32.mrf.mxu0
      %v1921 = vadd.f32 0.0, %v1920
      %v1922 = vpop.f32.mrf.mxu0
      %v1923 = vpop.f32.mrf.mxu0
      %v1924 = vadd.f32 0.0, %v1923
      %v1925 = vpop.f32.mrf.mxu0
      %1926 = vmatprep.mubr.bf16.mxu0 %v1650
      %1927 = vmatmul.mubr.bf16.gmra.mxu0 %v1649
      %v1928 = vpop.f32.mrf.mxu0
      %v1929 = vadd.f32 0.0, %v1928
      %v1930 = vpop.f32.mrf.mxu0
      %v1931 = vpop.f32.mrf.mxu0
      %v1932 = vadd.f32 0.0, %v1931
      %v1933 = vpop.f32.mrf.mxu0
      %1934 = vmatprep.mubr.bf16.mxu0 %v1653
      %1935 = vmatmul.mubr.bf16.gmra.mxu0 %v1652
      %v1936 = vpop.f32.mrf.mxu0
      %v1937 = vadd.f32 0.0, %v1936
      %v1938 = vpop.f32.mrf.mxu0
      %v1939 = vpop.f32.mrf.mxu0
      %v1940 = vadd.f32 0.0, %v1939
      %v1941 = vpop.f32.mrf.mxu0
      %1942 = vmatprep.mubr.bf16.mxu0 %v1656
      %1943 = vmatmul.mubr.bf16.gmra.mxu0 %v1655
      %v1944 = vpop.f32.mrf.mxu0
      %v1945 = vadd.f32 0.0, %v1944
      %v1946 = vpop.f32.mrf.mxu0
      %v1947 = vpop.f32.mrf.mxu0
      %v1948 = vadd.f32 0.0, %v1947
      %v1949 = vpop.f32.mrf.mxu0
      %1950 = vmatprep.mubr.bf16.mxu0 %v1659
      %1951 = vmatmul.mubr.bf16.gmra.mxu0 %v1658
      %v1952 = vpop.f32.mrf.mxu0
      %v1953 = vadd.f32 0.0, %v1952
      %v1954 = vpop.f32.mrf.mxu0
      %v1955 = vpop.f32.mrf.mxu0
      %v1956 = vadd.f32 0.0, %v1955
      %v1957 = vpop.f32.mrf.mxu0
      %1958 = vmatprep.mubr.bf16.mxu0 %v1662
      %1959 = vmatmul.mubr.bf16.gmra.mxu0 %v1661
      %v1960 = vpop.f32.mrf.mxu0
      %v1961 = vadd.f32 0.0, %v1960
      %v1962 = vpop.f32.mrf.mxu0
      %v1963 = vpop.f32.mrf.mxu0
      %v1964 = vadd.f32 0.0, %v1963
      %v1965 = vpop.f32.mrf.mxu0
      %1966 = vmatprep.mubr.bf16.mxu0 %v1665
      %1967 = vmatmul.mubr.bf16.gmra.mxu0 %v1664
      %v1968 = vpop.f32.mrf.mxu0
      %v1969 = vadd.f32 0.0, %v1968
      %v1970 = vpop.f32.mrf.mxu0
      %v1971 = vpop.f32.mrf.mxu0
      %v1972 = vadd.f32 0.0, %v1971
      %v1973 = vpop.f32.mrf.mxu0
      %1974 = vmatprep.mubr.bf16.mxu0 %v1668
      %1975 = vmatmul.mubr.bf16.gmra.mxu0 %v1667
      %v1976 = vpop.f32.mrf.mxu0
      %v1977 = vadd.f32 0.0, %v1976
      %v1978 = vpop.f32.mrf.mxu0
      %v1979 = vpop.f32.mrf.mxu0
      %v1980 = vadd.f32 0.0, %v1979
      %v1981 = vpop.f32.mrf.mxu0
      %1982 = vmatprep.mubr.bf16.mxu0 %v1671
      %1983 = vmatmul.mubr.bf16.gmra.mxu0 %v1670
      %v1984 = vpop.f32.mrf.mxu0
      %v1985 = vadd.f32 0.0, %v1984
      %v1986 = vpop.f32.mrf.mxu0
      %v1987 = vpop.f32.mrf.mxu0
      %v1988 = vadd.f32 0.0, %v1987
      %v1989 = vpop.f32.mrf.mxu0
      %1990 = vmatprep.mubr.bf16.mxu0 %v1674
      %1991 = vmatmul.mubr.bf16.gmra.mxu0 %v1673
      %v1992 = vpop.f32.mrf.mxu0
      %v1993 = vadd.f32 0.0, %v1992
      %v1994 = vpop.f32.mrf.mxu0
      %v1995 = vpop.f32.mrf.mxu0
      %v1996 = vadd.f32 0.0, %v1995
      %v1997 = vpop.f32.mrf.mxu0
      %1998 = vmatprep.mubr.bf16.mxu0 %v1677
      %1999 = vmatmul.mubr.bf16.gmra.mxu0 %v1676
      %v2000 = vpop.f32.mrf.mxu0
      %v2001 = vadd.f32 0.0, %v2000
      %v2002 = vpop.f32.mrf.mxu0
      %v2003 = vpop.f32.mrf.mxu0
      %v2004 = vadd.f32 0.0, %v2003
      %v2005 = vpop.f32.mrf.mxu0
      %2006 = vmatprep.mubr.bf16.mxu0 %v1680
      %2007 = vmatmul.mubr.bf16.gmra.mxu0 %v1679
      %v2008 = vpop.f32.mrf.mxu0
      %v2009 = vadd.f32 0.0, %v2008
      %v2010 = vpop.f32.mrf.mxu0
      %v2011 = vpop.f32.mrf.mxu0
      %v2012 = vadd.f32 0.0, %v2011
      %v2013 = vpop.f32.mrf.mxu0
      %2014 = vmatprep.mubr.bf16.mxu0 %v1683
      %2015 = vmatmul.mubr.bf16.gmra.mxu0 %v1682
      %v2016 = vpop.f32.mrf.mxu0
      %v2017 = vadd.f32 0.0, %v2016
      %v2018 = vpop.f32.mrf.mxu0
      %v2019 = vpop.f32.mrf.mxu0
      %v2020 = vadd.f32 0.0, %v2019
      %v2021 = vpop.f32.mrf.mxu0
      %2022 = vmatprep.mubr.bf16.mxu0 %v1686
      %2023 = vmatmul.mubr.bf16.gmra.mxu0 %v1685
      %v2024 = vpop.f32.mrf.mxu0
      %v2025 = vadd.f32 0.0, %v2024
      %v2026 = vpop.f32.mrf.mxu0
      %v2027 = vpop.f32.mrf.mxu0
      %v2028 = vadd.f32 0.0, %v2027
      %v2029 = vpop.f32.mrf.mxu0
      %2030 = vmatprep.mubr.bf16.mxu0 %v1689
      %2031 = vmatmul.mubr.bf16.gmra.mxu0 %v1688
      %v2032 = vpop.f32.mrf.mxu0
      %v2033 = vadd.f32 0.0, %v2032
      %v2034 = vpop.f32.mrf.mxu0
      %v2035 = vpop.f32.mrf.mxu0
      %v2036 = vadd.f32 0.0, %v2035
      %v2037 = vpop.f32.mrf.mxu0
      %2038 = vmatprep.mubr.bf16.mxu0 %v1692
      %2039 = vmatmul.mubr.bf16.gmra.mxu0 %v1691
      %v2040 = vpop.f32.mrf.mxu0
      %v2041 = vadd.f32 0.0, %v2040
      %v2042 = vpop.f32.mrf.mxu0
      %v2043 = vpop.f32.mrf.mxu0
      %v2044 = vadd.f32 0.0, %v2043
      %v2045 = vpop.f32.mrf.mxu0
      %2046 = vdwg.mxu0
      %2047 = vmatprep.subr.bf16.mxu0 0
      %2048 = vmatpush1.bf16.msra.mxu0 %v1861
      %2049 = vmatprep.subr.bf16.mxu0 0
      %2050 = vmatpush1.bf16.msra.mxu0 %v1860
      %2051 = vmatprep.subr.bf16.mxu0 0
      %2052 = vmatpush1.bf16.msra.mxu0 %v1859
      %2053 = vmatprep.subr.bf16.mxu0 0
      %2054 = vmatpush1.bf16.msra.mxu0 %v1858
      %2055 = vmatprep.subr.bf16.mxu0 0
      %2056 = vmatpush1.bf16.msra.mxu0 %v1857
      %2057 = vmatprep.subr.bf16.mxu0 0
      %2058 = vmatpush1.bf16.msra.mxu0 %v1856
      %2059 = vmatprep.subr.bf16.mxu0 0
      %2060 = vmatpush1.bf16.msra.mxu0 %v1855
      %2061 = vmatprep.subr.bf16.mxu0 0
      %2062 = vmatpush1.bf16.msra.mxu0 %v1854
      %2063 = vmatprep.subr.bf16.mxu0 0
      %2064 = vmatpush2.bf16.msra.mxu0 0
      %2065 = vmatprep.subr.bf16.mxu0 0
      %2066 = vmatpush2.bf16.msra.mxu0 0
      %2067 = vmatprep.subr.bf16.mxu0 0
      %2068 = vmatpush2.bf16.msra.mxu0 0
      %2069 = vmatprep.subr.bf16.mxu0 0
      %2070 = vmatpush2.bf16.msra.mxu0 0
      %2071 = vmatprep.subr.bf16.mxu0 0
      %2072 = vmatpush2.bf16.msra.mxu0 0
      %2073 = vmatprep.subr.bf16.mxu0 0
      %2074 = vmatpush2.bf16.msra.mxu0 0
      %2075 = vmatprep.subr.bf16.mxu0 0
      %2076 = vmatpush2.bf16.msra.mxu0 0
      %2077 = vmatprep.subr.bf16.mxu0 0
      %2078 = vmatpush2.bf16.msra.mxu0 0
      %2079 = vmatprep.mubr.bf16.mxu0 0
      %2080 = vmatmul.mubr.bf16.gmra.mxu0 %v1648
      %v2081 = vpop.f32.mrf.mxu0
      %v2082 = vadd.f32 %v1921, %v2081
      %v2083 = vpop.f32.mrf.mxu0
      %v2084 = vpop.f32.mrf.mxu0
      %v2085 = vadd.f32 %v1924, %v2084
      %v2086 = vpop.f32.mrf.mxu0
      %2087 = vmatprep.mubr.bf16.mxu0 0
      %2088 = vmatmul.mubr.bf16.gmra.mxu0 %v1651
      %v2089 = vpop.f32.mrf.mxu0
      %v2090 = vadd.f32 %v1929, %v2089
      %v2091 = vpop.f32.mrf.mxu0
      %v2092 = vpop.f32.mrf.mxu0
      %v2093 = vadd.f32 %v1932, %v2092
      %v2094 = vpop.f32.mrf.mxu0
      %2095 = vmatprep.mubr.bf16.mxu0 0
      %2096 = vmatmul.mubr.bf16.gmra.mxu0 %v1654
      %v2097 = vpop.f32.mrf.mxu0
      %v2098 = vadd.f32 %v1937, %v2097
      %v2099 = vpop.f32.mrf.mxu0
      %v2100 = vpop.f32.mrf.mxu0
      %v2101 = vadd.f32 %v1940, %v2100
      %v2102 = vpop.f32.mrf.mxu0
      %2103 = vmatprep.mubr.bf16.mxu0 0
      %2104 = vmatmul.mubr.bf16.gmra.mxu0 %v1657
      %v2105 = vpop.f32.mrf.mxu0
      %v2106 = vadd.f32 %v1945, %v2105
      %v2107 = vpop.f32.mrf.mxu0
      %v2108 = vpop.f32.mrf.mxu0
      %v2109 = vadd.f32 %v1948, %v2108
      %v2110 = vpop.f32.mrf.mxu0
      %2111 = vmatprep.mubr.bf16.mxu0 0
      %2112 = vmatmul.mubr.bf16.gmra.mxu0 %v1660
      %v2113 = vpop.f32.mrf.mxu0
      %v2114 = vadd.f32 %v1953, %v2113
      %v2115 = vpop.f32.mrf.mxu0
      %v2116 = vpop.f32.mrf.mxu0
      %v2117 = vadd.f32 %v1956, %v2116
      %v2118 = vpop.f32.mrf.mxu0
      %2119 = vmatprep.mubr.bf16.mxu0 0
      %2120 = vmatmul.mubr.bf16.gmra.mxu0 %v1663
      %v2121 = vpop.f32.mrf.mxu0
      %v2122 = vadd.f32 %v1961, %v2121
      %v2123 = vpop.f32.mrf.mxu0
      %v2124 = vpop.f32.mrf.mxu0
      %v2125 = vadd.f32 %v1964, %v2124
      %v2126 = vpop.f32.mrf.mxu0
      %2127 = vmatprep.mubr.bf16.mxu0 0
      %2128 = vmatmul.mubr.bf16.gmra.mxu0 %v1666
      %v2129 = vpop.f32.mrf.mxu0
      %v2130 = vadd.f32 %v1969, %v2129
      %v2131 = vpop.f32.mrf.mxu0
      %v2132 = vpop.f32.mrf.mxu0
      %v2133 = vadd.f32 %v1972, %v2132
      %v2134 = vpop.f32.mrf.mxu0
      %2135 = vmatprep.mubr.bf16.mxu0 0
      %2136 = vmatmul.mubr.bf16.gmra.mxu0 %v1669
      %v2137 = vpop.f32.mrf.mxu0
      %v2138 = vadd.f32 %v1977, %v2137
      %v2139 = vpop.f32.mrf.mxu0
      %v2140 = vpop.f32.mrf.mxu0
      %v2141 = vadd.f32 %v1980, %v2140
      %v2142 = vpop.f32.mrf.mxu0
      %2143 = vmatprep.mubr.bf16.mxu0 0
      %2144 = vmatmul.mubr.bf16.gmra.mxu0 %v1672
      %v2145 = vpop.f32.mrf.mxu0
      %v2146 = vadd.f32 %v1985, %v2145
      %v2147 = vpop.f32.mrf.mxu0
      %v2148 = vpop.f32.mrf.mxu0
      %v2149 = vadd.f32 %v1988, %v2148
      %v2150 = vpop.f32.mrf.mxu0
      %2151 = vmatprep.mubr.bf16.mxu0 0
      %2152 = vmatmul.mubr.bf16.gmra.mxu0 %v1675
      %v2153 = vpop.f32.mrf.mxu0
      %v2154 = vadd.f32 %v1993, %v2153
      %v2155 = vpop.f32.mrf.mxu0
      %v2156 = vpop.f32.mrf.mxu0
      %v2157 = vadd.f32 %v1996, %v2156
      %v2158 = vpop.f32.mrf.mxu0
      %2159 = vmatprep.mubr.bf16.mxu0 0
      %2160 = vmatmul.mubr.bf16.gmra.mxu0 %v1678
      %v2161 = vpop.f32.mrf.mxu0
      %v2162 = vadd.f32 %v2001, %v2161
      %v2163 = vpop.f32.mrf.mxu0
      %v2164 = vpop.f32.mrf.mxu0
      %v2165 = vadd.f32 %v2004, %v2164
      %v2166 = vpop.f32.mrf.mxu0
      %2167 = vmatprep.mubr.bf16.mxu0 0
      %2168 = vmatmul.mubr.bf16.gmra.mxu0 %v1681
      %v2169 = vpop.f32.mrf.mxu0
      %v2170 = vadd.f32 %v2009, %v2169
      %v2171 = vpop.f32.mrf.mxu0
      %v2172 = vpop.f32.mrf.mxu0
      %v2173 = vadd.f32 %v2012, %v2172
      %v2174 = vpop.f32.mrf.mxu0
      %2175 = vmatprep.mubr.bf16.mxu0 0
      %2176 = vmatmul.mubr.bf16.gmra.mxu0 %v1684
      %v2177 = vpop.f32.mrf.mxu0
      %v2178 = vadd.f32 %v2017, %v2177
      %v2179 = vpop.f32.mrf.mxu0
      %v2180 = vpop.f32.mrf.mxu0
      %v2181 = vadd.f32 %v2020, %v2180
      %v2182 = vpop.f32.mrf.mxu0
      %2183 = vmatprep.mubr.bf16.mxu0 0
      %2184 = vmatmul.mubr.bf16.gmra.mxu0 %v1687
      %v2185 = vpop.f32.mrf.mxu0
      %v2186 = vadd.f32 %v2025, %v2185
      %v2187 = vpop.f32.mrf.mxu0
      %v2188 = vpop.f32.mrf.mxu0
      %v2189 = vadd.f32 %v2028, %v2188
      %v2190 = vpop.f32.mrf.mxu0
      %2191 = vmatprep.mubr.bf16.mxu0 0
      %2192 = vmatmul.mubr.bf16.gmra.mxu0 %v1690
      %v2193 = vpop.f32.mrf.mxu0
      %v2194 = vadd.f32 %v2033, %v2193
      %v2195 = vpop.f32.mrf.mxu0
      %v2196 = vpop.f32.mrf.mxu0
      %v2197 = vadd.f32 %v2036, %v2196
      %v2198 = vpop.f32.mrf.mxu0
      %2199 = vmatprep.mubr.bf16.mxu0 0
      %2200 = vmatmul.mubr.bf16.gmra.mxu0 %v1693
      %v2201 = vpop.f32.mrf.mxu0
      %v2202 = vadd.f32 %v2041, %v2201
      %v2203 = vpop.f32.mrf.mxu0
      %v2204 = vpop.f32.mrf.mxu0
      %v2205 = vadd.f32 %v2044, %v2204
      %v2206 = vpop.f32.mrf.mxu0
      %2207 = vdwg.mxu0
      %v2272 = vunpack.c.l.b16 %v1261
      %v2273 = vunpack.c.h.b16 %v1261
      %v2274 = vunpack.c.l.b16 %v1262
      %v2275 = vunpack.c.l.b16 %v1263
      %v2276 = vunpack.c.h.b16 %v1263
      %v2277 = vunpack.c.l.b16 %v1264
      %v2278 = vunpack.c.l.b16 %v1265
      %v2279 = vunpack.c.h.b16 %v1265
      %v2280 = vunpack.c.l.b16 %v1266
      %v2281 = vunpack.c.l.b16 %v1267
      %v2282 = vunpack.c.h.b16 %v1267
      %v2283 = vunpack.c.l.b16 %v1268
      %v2284 = vunpack.c.l.b16 %v1269
      %v2285 = vunpack.c.h.b16 %v1269
      %v2286 = vunpack.c.l.b16 %v1270
      %v2287 = vunpack.c.l.b16 %v1271
      %v2288 = vunpack.c.h.b16 %v1271
      %v2289 = vunpack.c.l.b16 %v1272
      %v2290 = vunpack.c.l.b16 %v1273
      %v2291 = vunpack.c.h.b16 %v1273
      %v2292 = vunpack.c.l.b16 %v1274
      %v2293 = vunpack.c.l.b16 %v1275
      %v2294 = vunpack.c.h.b16 %v1275
      %v2295 = vunpack.c.l.b16 %v1276
      %v2296 = vunpack.c.l.b16 %v1277
      %v2297 = vunpack.c.h.b16 %v1277
      %v2298 = vunpack.c.l.b16 %v1278
      %v2299 = vunpack.c.l.b16 %v1279
      %v2300 = vunpack.c.h.b16 %v1279
      %v2301 = vunpack.c.l.b16 %v1280
      %v2302 = vunpack.c.l.b16 %v1281
      %v2303 = vunpack.c.h.b16 %v1281
      %v2304 = vunpack.c.l.b16 %v1282
      %v2305 = vunpack.c.l.b16 %v1283
      %v2306 = vunpack.c.h.b16 %v1283
      %v2307 = vunpack.c.l.b16 %v1284
      %v2308 = vunpack.c.l.b16 %v1285
      %v2309 = vunpack.c.h.b16 %v1285
      %v2310 = vunpack.c.l.b16 %v1286
      %v2311 = vunpack.c.l.b16 %v1287
      %v2312 = vunpack.c.h.b16 %v1287
      %v2313 = vunpack.c.l.b16 %v1288
      %v2314 = vunpack.c.l.b16 %v1289
      %v2315 = vunpack.c.h.b16 %v1289
      %v2316 = vunpack.c.l.b16 %v1290
      %v2317 = vunpack.c.l.b16 %v1291
      %v2318 = vunpack.c.h.b16 %v1291
      %v2319 = vunpack.c.l.b16 %v1292
      %v2320 = vunpack.c.l.b16 %v1293
      %v2321 = vunpack.c.h.b16 %v1293
      %v2322 = vunpack.c.l.b16 %v1294
      %v2323 = vunpack.c.l.b16 %v1295
      %v2324 = vunpack.c.h.b16 %v1295
      %v2325 = vunpack.c.l.b16 %v1296
      %v2326 = vunpack.c.l.b16 %v1297
      %v2327 = vunpack.c.h.b16 %v1297
      %v2328 = vunpack.c.l.b16 %v1298
      %v2329 = vunpack.c.l.b16 %v1299
      %v2330 = vunpack.c.h.b16 %v1299
      %v2331 = vunpack.c.l.b16 %v1300
      %v2332 = vunpack.c.l.b16 %v1301
      %v2333 = vunpack.c.h.b16 %v1301
      %v2334 = vunpack.c.l.b16 %v1302
      %v2335 = vunpack.c.l.b16 %v1303
      %v2336 = vunpack.c.h.b16 %v1303
      %v2337 = vunpack.c.l.b16 %v1304
      %v2338 = vunpack.c.l.b16 %v1305
      %v2339 = vunpack.c.h.b16 %v1305
      %v2340 = vunpack.c.l.b16 %v1306
      %v2341 = vunpack.c.l.b16 %v1307
      %v2342 = vunpack.c.h.b16 %v1307
      %v2343 = vunpack.c.l.b16 %v1308
      %v2344 = vunpack.c.l.b16 %v1309
      %v2345 = vunpack.c.h.b16 %v1309
      %v2346 = vunpack.c.l.b16 %v1310
      %v2347 = vunpack.c.l.b16 %v1311
      %v2348 = vunpack.c.h.b16 %v1311
      %v2349 = vunpack.c.l.b16 %v1312
      %v2350 = vunpack.c.l.b16 %v1313
      %v2351 = vunpack.c.h.b16 %v1313
      %v2352 = vunpack.c.l.b16 %v1314
      %v2353 = vunpack.c.l.b16 %v1315
      %v2354 = vunpack.c.h.b16 %v1315
      %v2355 = vunpack.c.l.b16 %v1316
      %v2356 = vunpack.c.l.b16 %v1317
      %v2357 = vunpack.c.h.b16 %v1317
      %v2358 = vunpack.c.l.b16 %v1318
      %v2359 = vunpack.c.l.b16 %v1319
      %v2360 = vunpack.c.h.b16 %v1319
      %v2361 = vunpack.c.l.b16 %v1320
      %v2362 = vunpack.c.l.b16 %v1321
      %v2363 = vunpack.c.h.b16 %v1321
      %v2364 = vunpack.c.l.b16 %v1322
      %v2365 = vunpack.c.l.b16 %v1323
      %v2366 = vunpack.c.h.b16 %v1323
      %v2367 = vunpack.c.l.b16 %v1324
      %v2368 = vpack.c.b16 %v2275, %v2272
      %v2369 = vpack.c.b16 %v2276, %v2273
      %v2370 = vpack.c.b16 %v2277, %v2274
      %v2371 = vpack.c.b16 %v2281, %v2278
      %v2372 = vpack.c.b16 %v2282, %v2279
      %v2373 = vpack.c.b16 %v2283, %v2280
      %v2374 = vpack.c.b16 %v2287, %v2284
      %v2375 = vpack.c.b16 %v2288, %v2285
      %v2376 = vpack.c.b16 %v2289, %v2286
      %v2377 = vpack.c.b16 %v2293, %v2290
      %v2378 = vpack.c.b16 %v2294, %v2291
      %v2379 = vpack.c.b16 %v2295, %v2292
      %v2380 = vpack.c.b16 %v2299, %v2296
      %v2381 = vpack.c.b16 %v2300, %v2297
      %v2382 = vpack.c.b16 %v2301, %v2298
      %v2383 = vpack.c.b16 %v2305, %v2302
      %v2384 = vpack.c.b16 %v2306, %v2303
      %v2385 = vpack.c.b16 %v2307, %v2304
      %v2386 = vpack.c.b16 %v2311, %v2308
      %v2387 = vpack.c.b16 %v2312, %v2309
      %v2388 = vpack.c.b16 %v2313, %v2310
      %v2389 = vpack.c.b16 %v2317, %v2314
      %v2390 = vpack.c.b16 %v2318, %v2315
      %v2391 = vpack.c.b16 %v2319, %v2316
      %v2392 = vpack.c.b16 %v2323, %v2320
      %v2393 = vpack.c.b16 %v2324, %v2321
      %v2394 = vpack.c.b16 %v2325, %v2322
      %v2395 = vpack.c.b16 %v2329, %v2326
      %v2396 = vpack.c.b16 %v2330, %v2327
      %v2397 = vpack.c.b16 %v2331, %v2328
      %v2398 = vpack.c.b16 %v2335, %v2332
      %v2399 = vpack.c.b16 %v2336, %v2333
      %v2400 = vpack.c.b16 %v2337, %v2334
      %v2401 = vpack.c.b16 %v2341, %v2338
      %v2402 = vpack.c.b16 %v2342, %v2339
      %v2403 = vpack.c.b16 %v2343, %v2340
      %v2404 = vpack.c.b16 %v2347, %v2344
      %v2405 = vpack.c.b16 %v2348, %v2345
      %v2406 = vpack.c.b16 %v2349, %v2346
      %v2407 = vpack.c.b16 %v2353, %v2350
      %v2408 = vpack.c.b16 %v2354, %v2351
      %v2409 = vpack.c.b16 %v2355, %v2352
      %v2410 = vpack.c.b16 %v2359, %v2356
      %v2411 = vpack.c.b16 %v2360, %v2357
      %v2412 = vpack.c.b16 %v2361, %v2358
      %v2413 = vpack.c.b16 %v2365, %v2362
      %v2414 = vpack.c.b16 %v2366, %v2363
      %v2415 = vpack.c.b16 %v2367, %v2364
      %v2512 = vunpack.c.l.b16 %v1325
      %v2513 = vunpack.c.l.b16 %v1326
      %v2514 = vunpack.c.l.b16 %v1327
      %v2515 = vunpack.c.l.b16 %v1328
      %v2516 = vunpack.c.l.b16 %v1329
      %v2517 = vunpack.c.l.b16 %v1330
      %v2518 = vunpack.c.l.b16 %v1331
      %v2519 = vunpack.c.l.b16 %v1332
      %v2520 = vunpack.c.l.b16 %v1333
      %v2521 = vunpack.c.l.b16 %v1334
      %v2522 = vunpack.c.l.b16 %v1335
      %v2523 = vunpack.c.l.b16 %v1336
      %v2524 = vunpack.c.l.b16 %v1337
      %v2525 = vunpack.c.l.b16 %v1338
      %v2526 = vunpack.c.l.b16 %v1339
      %v2527 = vunpack.c.l.b16 %v1340
      %v2528 = vunpack.c.l.b16 %v1341
      %v2529 = vunpack.c.l.b16 %v1342
      %v2530 = vunpack.c.l.b16 %v1343
      %v2531 = vunpack.c.l.b16 %v1344
      %v2532 = vunpack.c.l.b16 %v1345
      %v2533 = vunpack.c.l.b16 %v1346
      %v2534 = vunpack.c.l.b16 %v1347
      %v2535 = vunpack.c.l.b16 %v1348
      %v2536 = vunpack.c.l.b16 %v1349
      %v2537 = vunpack.c.l.b16 %v1350
      %v2538 = vunpack.c.l.b16 %v1351
      %v2539 = vunpack.c.l.b16 %v1352
      %v2540 = vunpack.c.l.b16 %v1353
      %v2541 = vunpack.c.l.b16 %v1354
      %v2542 = vunpack.c.l.b16 %v1355
      %v2543 = vunpack.c.l.b16 %v1356
      %v2544 = vunpack.c.l.b16 %v1357
      %v2545 = vunpack.c.l.b16 %v1358
      %v2546 = vunpack.c.l.b16 %v1359
      %v2547 = vunpack.c.l.b16 %v1360
      %v2548 = vunpack.c.l.b16 %v1361
      %v2549 = vunpack.c.l.b16 %v1362
      %v2550 = vunpack.c.l.b16 %v1363
      %v2551 = vunpack.c.l.b16 %v1364
      %v2552 = vunpack.c.l.b16 %v1365
      %v2553 = vunpack.c.l.b16 %v1366
      %v2554 = vunpack.c.l.b16 %v1367
      %v2555 = vunpack.c.l.b16 %v1368
      %v2556 = vunpack.c.l.b16 %v1369
      %v2557 = vunpack.c.l.b16 %v1370
      %v2558 = vunpack.c.l.b16 %v1371
      %v2559 = vunpack.c.l.b16 %v1372
      %v2560 = vpack.c.b16 %v2513, %v2512
      %v2561 = vpack.c.b16 %v2515, %v2514
      %v2562 = vpack.c.b16 %v2517, %v2516
      %v2563 = vpack.c.b16 %v2519, %v2518
      %v2564 = vpack.c.b16 %v2521, %v2520
      %v2565 = vpack.c.b16 %v2523, %v2522
      %v2566 = vpack.c.b16 %v2525, %v2524
      %v2567 = vpack.c.b16 %v2527, %v2526
      %v2568 = vpack.c.b16 %v2529, %v2528
      %v2569 = vpack.c.b16 %v2531, %v2530
      %v2570 = vpack.c.b16 %v2533, %v2532
      %v2571 = vpack.c.b16 %v2535, %v2534
      %v2572 = vpack.c.b16 %v2537, %v2536
      %v2573 = vpack.c.b16 %v2539, %v2538
      %v2574 = vpack.c.b16 %v2541, %v2540
      %v2575 = vpack.c.b16 %v2543, %v2542
      %v2576 = vpack.c.b16 %v2545, %v2544
      %v2577 = vpack.c.b16 %v2547, %v2546
      %v2578 = vpack.c.b16 %v2549, %v2548
      %v2579 = vpack.c.b16 %v2551, %v2550
      %v2580 = vpack.c.b16 %v2553, %v2552
      %v2581 = vpack.c.b16 %v2555, %v2554
      %v2582 = vpack.c.b16 %v2557, %v2556
      %v2583 = vpack.c.b16 %v2559, %v2558
      %2608 = vmatprep.subr.bf16.mxu0 0
      %2609 = vmatpush1.bf16.msra.mxu0 %v2567
      %2610 = vmatprep.subr.bf16.mxu0 0
      %2611 = vmatpush1.bf16.msra.mxu0 %v2566
      %2612 = vmatprep.subr.bf16.mxu0 0
      %2613 = vmatpush1.bf16.msra.mxu0 %v2565
      %2614 = vmatprep.subr.bf16.mxu0 0
      %2615 = vmatpush1.bf16.msra.mxu0 %v2564
      %2616 = vmatprep.subr.bf16.mxu0 0
      %2617 = vmatpush1.bf16.msra.mxu0 %v2563
      %2618 = vmatprep.subr.bf16.mxu0 0
      %2619 = vmatpush1.bf16.msra.mxu0 %v2562
      %2620 = vmatprep.subr.bf16.mxu0 0
      %2621 = vmatpush1.bf16.msra.mxu0 %v2561
      %2622 = vmatprep.subr.bf16.mxu0 0
      %2623 = vmatpush1.bf16.msra.mxu0 %v2560
      %2624 = vmatprep.subr.bf16.mxu0 0
      %2625 = vmatpush2.bf16.msra.mxu0 %v2575
      %2626 = vmatprep.subr.bf16.mxu0 0
      %2627 = vmatpush2.bf16.msra.mxu0 %v2574
      %2628 = vmatprep.subr.bf16.mxu0 0
      %2629 = vmatpush2.bf16.msra.mxu0 %v2573
      %2630 = vmatprep.subr.bf16.mxu0 0
      %2631 = vmatpush2.bf16.msra.mxu0 %v2572
      %2632 = vmatprep.subr.bf16.mxu0 0
      %2633 = vmatpush2.bf16.msra.mxu0 %v2571
      %2634 = vmatprep.subr.bf16.mxu0 0
      %2635 = vmatpush2.bf16.msra.mxu0 %v2570
      %2636 = vmatprep.subr.bf16.mxu0 0
      %2637 = vmatpush2.bf16.msra.mxu0 %v2569
      %2638 = vmatprep.subr.bf16.mxu0 0
      %2639 = vmatpush2.bf16.msra.mxu0 %v2568
      %2640 = vmatprep.mubr.bf16.mxu0 %v2369
      %2641 = vmatmul.mubr.bf16.gmra.mxu0 %v2368
      %v2642 = vpop.f32.mrf.mxu0
      %v2643 = vadd.f32 %v2082, %v2642
      %v2644 = vpop.f32.mrf.mxu0
      %v2645 = vpop.f32.mrf.mxu0
      %v2646 = vadd.f32 %v2085, %v2645
      %v2647 = vpop.f32.mrf.mxu0
      %2648 = vmatprep.mubr.bf16.mxu0 %v2372
      %2649 = vmatmul.mubr.bf16.gmra.mxu0 %v2371
      %v2650 = vpop.f32.mrf.mxu0
      %v2651 = vadd.f32 %v2090, %v2650
      %v2652 = vpop.f32.mrf.mxu0
      %v2653 = vpop.f32.mrf.mxu0
      %v2654 = vadd.f32 %v2093, %v2653
      %v2655 = vpop.f32.mrf.mxu0
      %2656 = vmatprep.mubr.bf16.mxu0 %v2375
      %2657 = vmatmul.mubr.bf16.gmra.mxu0 %v2374
      %v2658 = vpop.f32.mrf.mxu0
      %v2659 = vadd.f32 %v2098, %v2658
      %v2660 = vpop.f32.mrf.mxu0
      %v2661 = vpop.f32.mrf.mxu0
      %v2662 = vadd.f32 %v2101, %v2661
      %v2663 = vpop.f32.mrf.mxu0
      %2664 = vmatprep.mubr.bf16.mxu0 %v2378
      %2665 = vmatmul.mubr.bf16.gmra.mxu0 %v2377
      %v2666 = vpop.f32.mrf.mxu0
      %v2667 = vadd.f32 %v2106, %v2666
      %v2668 = vpop.f32.mrf.mxu0
      %v2669 = vpop.f32.mrf.mxu0
      %v2670 = vadd.f32 %v2109, %v2669
      %v2671 = vpop.f32.mrf.mxu0
      %2672 = vmatprep.mubr.bf16.mxu0 %v2381
      %2673 = vmatmul.mubr.bf16.gmra.mxu0 %v2380
      %v2674 = vpop.f32.mrf.mxu0
      %v2675 = vadd.f32 %v2114, %v2674
      %v2676 = vpop.f32.mrf.mxu0
      %v2677 = vpop.f32.mrf.mxu0
      %v2678 = vadd.f32 %v2117, %v2677
      %v2679 = vpop.f32.mrf.mxu0
      %2680 = vmatprep.mubr.bf16.mxu0 %v2384
      %2681 = vmatmul.mubr.bf16.gmra.mxu0 %v2383
      %v2682 = vpop.f32.mrf.mxu0
      %v2683 = vadd.f32 %v2122, %v2682
      %v2684 = vpop.f32.mrf.mxu0
      %v2685 = vpop.f32.mrf.mxu0
      %v2686 = vadd.f32 %v2125, %v2685
      %v2687 = vpop.f32.mrf.mxu0
      %2688 = vmatprep.mubr.bf16.mxu0 %v2387
      %2689 = vmatmul.mubr.bf16.gmra.mxu0 %v2386
      %v2690 = vpop.f32.mrf.mxu0
      %v2691 = vadd.f32 %v2130, %v2690
      %v2692 = vpop.f32.mrf.mxu0
      %v2693 = vpop.f32.mrf.mxu0
      %v2694 = vadd.f32 %v2133, %v2693
      %v2695 = vpop.f32.mrf.mxu0
      %2696 = vmatprep.mubr.bf16.mxu0 %v2390
      %2697 = vmatmul.mubr.bf16.gmra.mxu0 %v2389
      %v2698 = vpop.f32.mrf.mxu0
      %v2699 = vadd.f32 %v2138, %v2698
      %v2700 = vpop.f32.mrf.mxu0
      %v2701 = vpop.f32.mrf.mxu0
      %v2702 = vadd.f32 %v2141, %v2701
      %v2703 = vpop.f32.mrf.mxu0
      %2704 = vmatprep.mubr.bf16.mxu0 %v2393
      %2705 = vmatmul.mubr.bf16.gmra.mxu0 %v2392
      %v2706 = vpop.f32.mrf.mxu0
      %v2707 = vadd.f32 %v2146, %v2706
      %v2708 = vpop.f32.mrf.mxu0
      %v2709 = vpop.f32.mrf.mxu0
      %v2710 = vadd.f32 %v2149, %v2709
      %v2711 = vpop.f32.mrf.mxu0
      %2712 = vmatprep.mubr.bf16.mxu0 %v2396
      %2713 = vmatmul.mubr.bf16.gmra.mxu0 %v2395
      %v2714 = vpop.f32.mrf.mxu0
      %v2715 = vadd.f32 %v2154, %v2714
      %v2716 = vpop.f32.mrf.mxu0
      %v2717 = vpop.f32.mrf.mxu0
      %v2718 = vadd.f32 %v2157, %v2717
      %v2719 = vpop.f32.mrf.mxu0
      %2720 = vmatprep.mubr.bf16.mxu0 %v2399
      %2721 = vmatmul.mubr.bf16.gmra.mxu0 %v2398
      %v2722 = vpop.f32.mrf.mxu0
      %v2723 = vadd.f32 %v2162, %v2722
      %v2724 = vpop.f32.mrf.mxu0
      %v2725 = vpop.f32.mrf.mxu0
      %v2726 = vadd.f32 %v2165, %v2725
      %v2727 = vpop.f32.mrf.mxu0
      %2728 = vmatprep.mubr.bf16.mxu0 %v2402
      %2729 = vmatmul.mubr.bf16.gmra.mxu0 %v2401
      %v2730 = vpop.f32.mrf.mxu0
      %v2731 = vadd.f32 %v2170, %v2730
      %v2732 = vpop.f32.mrf.mxu0
      %v2733 = vpop.f32.mrf.mxu0
      %v2734 = vadd.f32 %v2173, %v2733
      %v2735 = vpop.f32.mrf.mxu0
      %2736 = vmatprep.mubr.bf16.mxu0 %v2405
      %2737 = vmatmul.mubr.bf16.gmra.mxu0 %v2404
      %v2738 = vpop.f32.mrf.mxu0
      %v2739 = vadd.f32 %v2178, %v2738
      %v2740 = vpop.f32.mrf.mxu0
      %v2741 = vpop.f32.mrf.mxu0
      %v2742 = vadd.f32 %v2181, %v2741
      %v2743 = vpop.f32.mrf.mxu0
      %2744 = vmatprep.mubr.bf16.mxu0 %v2408
      %2745 = vmatmul.mubr.bf16.gmra.mxu0 %v2407
      %v2746 = vpop.f32.mrf.mxu0
      %v2747 = vadd.f32 %v2186, %v2746
      %v2748 = vpop.f32.mrf.mxu0
      %v2749 = vpop.f32.mrf.mxu0
      %v2750 = vadd.f32 %v2189, %v2749
      %v2751 = vpop.f32.mrf.mxu0
      %2752 = vmatprep.mubr.bf16.mxu0 %v2411
      %2753 = vmatmul.mubr.bf16.gmra.mxu0 %v2410
      %v2754 = vpop.f32.mrf.mxu0
      %v2755 = vadd.f32 %v2194, %v2754
      %v2756 = vpop.f32.mrf.mxu0
      %v2757 = vpop.f32.mrf.mxu0
      %v2758 = vadd.f32 %v2197, %v2757
      %v2759 = vpop.f32.mrf.mxu0
      %2760 = vmatprep.mubr.bf16.mxu0 %v2414
      %2761 = vmatmul.mubr.bf16.gmra.mxu0 %v2413
      %v2762 = vpop.f32.mrf.mxu0
      %v2763 = vadd.f32 %v2202, %v2762
      %v2764 = vpop.f32.mrf.mxu0
      %v2765 = vpop.f32.mrf.mxu0
      %v2766 = vadd.f32 %v2205, %v2765
      %v2767 = vpop.f32.mrf.mxu0
      %2768 = vdwg.mxu0
      %2769 = vmatprep.subr.bf16.mxu0 0
      %2770 = vmatpush1.bf16.msra.mxu0 %v2583
      %2771 = vmatprep.subr.bf16.mxu0 0
      %2772 = vmatpush1.bf16.msra.mxu0 %v2582
      %2773 = vmatprep.subr.bf16.mxu0 0
      %2774 = vmatpush1.bf16.msra.mxu0 %v2581
      %2775 = vmatprep.subr.bf16.mxu0 0
      %2776 = vmatpush1.bf16.msra.mxu0 %v2580
      %2777 = vmatprep.subr.bf16.mxu0 0
      %2778 = vmatpush1.bf16.msra.mxu0 %v2579
      %2779 = vmatprep.subr.bf16.mxu0 0
      %2780 = vmatpush1.bf16.msra.mxu0 %v2578
      %2781 = vmatprep.subr.bf16.mxu0 0
      %2782 = vmatpush1.bf16.msra.mxu0 %v2577
      %2783 = vmatprep.subr.bf16.mxu0 0
      %2784 = vmatpush1.bf16.msra.mxu0 %v2576
      %2785 = vmatprep.subr.bf16.mxu0 0
      %2786 = vmatpush2.bf16.msra.mxu0 0
      %2787 = vmatprep.subr.bf16.mxu0 0
      %2788 = vmatpush2.bf16.msra.mxu0 0
      %2789 = vmatprep.subr.bf16.mxu0 0
      %2790 = vmatpush2.bf16.msra.mxu0 0
      %2791 = vmatprep.subr.bf16.mxu0 0
      %2792 = vmatpush2.bf16.msra.mxu0 0
      %2793 = vmatprep.subr.bf16.mxu0 0
      %2794 = vmatpush2.bf16.msra.mxu0 0
      %2795 = vmatprep.subr.bf16.mxu0 0
      %2796 = vmatpush2.bf16.msra.mxu0 0
      %2797 = vmatprep.subr.bf16.mxu0 0
      %2798 = vmatpush2.bf16.msra.mxu0 0
      %2799 = vmatprep.subr.bf16.mxu0 0
      %2800 = vmatpush2.bf16.msra.mxu0 0
      %2801 = vmatprep.mubr.bf16.mxu0 0
      %2802 = vmatmul.mubr.bf16.gmra.mxu0 %v2370
      %v2803 = vpop.f32.mrf.mxu0
      %v2804 = vadd.f32 %v2643, %v2803
      %v2805 = vpop.f32.mrf.mxu0
      %v2806 = vpop.f32.mrf.mxu0
      %v2807 = vadd.f32 %v2646, %v2806
      %v2808 = vpop.f32.mrf.mxu0
      %2809 = vmatprep.mubr.bf16.mxu0 0
      %2810 = vmatmul.mubr.bf16.gmra.mxu0 %v2373
      %v2811 = vpop.f32.mrf.mxu0
      %v2812 = vadd.f32 %v2651, %v2811
      %v2813 = vpop.f32.mrf.mxu0
      %v2814 = vpop.f32.mrf.mxu0
      %v2815 = vadd.f32 %v2654, %v2814
      %v2816 = vpop.f32.mrf.mxu0
      %2817 = vmatprep.mubr.bf16.mxu0 0
      %2818 = vmatmul.mubr.bf16.gmra.mxu0 %v2376
      %v2819 = vpop.f32.mrf.mxu0
      %v2820 = vadd.f32 %v2659, %v2819
      %v2821 = vpop.f32.mrf.mxu0
      %v2822 = vpop.f32.mrf.mxu0
      %v2823 = vadd.f32 %v2662, %v2822
      %v2824 = vpop.f32.mrf.mxu0
      %2825 = vmatprep.mubr.bf16.mxu0 0
      %2826 = vmatmul.mubr.bf16.gmra.mxu0 %v2379
      %v2827 = vpop.f32.mrf.mxu0
      %v2828 = vadd.f32 %v2667, %v2827
      %v2829 = vpop.f32.mrf.mxu0
      %v2830 = vpop.f32.mrf.mxu0
      %v2831 = vadd.f32 %v2670, %v2830
      %v2832 = vpop.f32.mrf.mxu0
      %2833 = vmatprep.mubr.bf16.mxu0 0
      %2834 = vmatmul.mubr.bf16.gmra.mxu0 %v2382
      %v2835 = vpop.f32.mrf.mxu0
      %v2836 = vadd.f32 %v2675, %v2835
      %v2837 = vpop.f32.mrf.mxu0
      %v2838 = vpop.f32.mrf.mxu0
      %v2839 = vadd.f32 %v2678, %v2838
      %v2840 = vpop.f32.mrf.mxu0
      %2841 = vmatprep.mubr.bf16.mxu0 0
      %2842 = vmatmul.mubr.bf16.gmra.mxu0 %v2385
      %v2843 = vpop.f32.mrf.mxu0
      %v2844 = vadd.f32 %v2683, %v2843
      %v2845 = vpop.f32.mrf.mxu0
      %v2846 = vpop.f32.mrf.mxu0
      %v2847 = vadd.f32 %v2686, %v2846
      %v2848 = vpop.f32.mrf.mxu0
      %2849 = vmatprep.mubr.bf16.mxu0 0
      %2850 = vmatmul.mubr.bf16.gmra.mxu0 %v2388
      %v2851 = vpop.f32.mrf.mxu0
      %v2852 = vadd.f32 %v2691, %v2851
      %v2853 = vpop.f32.mrf.mxu0
      %v2854 = vpop.f32.mrf.mxu0
      %v2855 = vadd.f32 %v2694, %v2854
      %v2856 = vpop.f32.mrf.mxu0
      %2857 = vmatprep.mubr.bf16.mxu0 0
      %2858 = vmatmul.mubr.bf16.gmra.mxu0 %v2391
      %v2859 = vpop.f32.mrf.mxu0
      %v2860 = vadd.f32 %v2699, %v2859
      %v2861 = vpop.f32.mrf.mxu0
      %v2862 = vpop.f32.mrf.mxu0
      %v2863 = vadd.f32 %v2702, %v2862
      %v2864 = vpop.f32.mrf.mxu0
      %2865 = vmatprep.mubr.bf16.mxu0 0
      %2866 = vmatmul.mubr.bf16.gmra.mxu0 %v2394
      %v2867 = vpop.f32.mrf.mxu0
      %v2868 = vadd.f32 %v2707, %v2867
      %v2869 = vpop.f32.mrf.mxu0
      %v2870 = vpop.f32.mrf.mxu0
      %v2871 = vadd.f32 %v2710, %v2870
      %v2872 = vpop.f32.mrf.mxu0
      %2873 = vmatprep.mubr.bf16.mxu0 0
      %2874 = vmatmul.mubr.bf16.gmra.mxu0 %v2397
      %v2875 = vpop.f32.mrf.mxu0
      %v2876 = vadd.f32 %v2715, %v2875
      %v2877 = vpop.f32.mrf.mxu0
      %v2878 = vpop.f32.mrf.mxu0
      %v2879 = vadd.f32 %v2718, %v2878
      %v2880 = vpop.f32.mrf.mxu0
      %2881 = vmatprep.mubr.bf16.mxu0 0
      %2882 = vmatmul.mubr.bf16.gmra.mxu0 %v2400
      %v2883 = vpop.f32.mrf.mxu0
      %v2884 = vadd.f32 %v2723, %v2883
      %v2885 = vpop.f32.mrf.mxu0
      %v2886 = vpop.f32.mrf.mxu0
      %v2887 = vadd.f32 %v2726, %v2886
      %v2888 = vpop.f32.mrf.mxu0
      %2889 = vmatprep.mubr.bf16.mxu0 0
      %2890 = vmatmul.mubr.bf16.gmra.mxu0 %v2403
      %v2891 = vpop.f32.mrf.mxu0
      %v2892 = vadd.f32 %v2731, %v2891
      %v2893 = vpop.f32.mrf.mxu0
      %v2894 = vpop.f32.mrf.mxu0
      %v2895 = vadd.f32 %v2734, %v2894
      %v2896 = vpop.f32.mrf.mxu0
      %2897 = vmatprep.mubr.bf16.mxu0 0
      %2898 = vmatmul.mubr.bf16.gmra.mxu0 %v2406
      %v2899 = vpop.f32.mrf.mxu0
      %v2900 = vadd.f32 %v2739, %v2899
      %v2901 = vpop.f32.mrf.mxu0
      %v2902 = vpop.f32.mrf.mxu0
      %v2903 = vadd.f32 %v2742, %v2902
      %v2904 = vpop.f32.mrf.mxu0
      %2905 = vmatprep.mubr.bf16.mxu0 0
      %2906 = vmatmul.mubr.bf16.gmra.mxu0 %v2409
      %v2907 = vpop.f32.mrf.mxu0
      %v2908 = vadd.f32 %v2747, %v2907
      %v2909 = vpop.f32.mrf.mxu0
      %v2910 = vpop.f32.mrf.mxu0
      %v2911 = vadd.f32 %v2750, %v2910
      %v2912 = vpop.f32.mrf.mxu0
      %2913 = vmatprep.mubr.bf16.mxu0 0
      %2914 = vmatmul.mubr.bf16.gmra.mxu0 %v2412
      %v2915 = vpop.f32.mrf.mxu0
      %v2916 = vadd.f32 %v2755, %v2915
      %v2917 = vpop.f32.mrf.mxu0
      %v2918 = vpop.f32.mrf.mxu0
      %v2919 = vadd.f32 %v2758, %v2918
      %v2920 = vpop.f32.mrf.mxu0
      %2921 = vmatprep.mubr.bf16.mxu0 0
      %2922 = vmatmul.mubr.bf16.gmra.mxu0 %v2415
      %v2923 = vpop.f32.mrf.mxu0
      %v2924 = vadd.f32 %v2763, %v2923
      %v2925 = vpop.f32.mrf.mxu0
      %v2926 = vpop.f32.mrf.mxu0
      %v2927 = vadd.f32 %v2766, %v2926
      %v2928 = vpop.f32.mrf.mxu0
      %2929 = vdwg.mxu0
      %s2930 = scalar_lea.vmem [#allocation2], 48
      %v2931 = vld [vmem:[%s2930] sm:$0xff]
      %v2932 = vld [vmem:[%s2930 + $0x8] sm:$0xf]
      %v2933 = vld [vmem:[%s2930 + $0xc] sm:$0xff]
      %v2934 = vld [vmem:[%s2930 + $0x14] sm:$0xf]
      %v2935 = vld [vmem:[%s2930 + $0x18] sm:$0xff]
      %v2936 = vld [vmem:[%s2930 + $0x20] sm:$0xf]
      %v2937 = vld [vmem:[%s2930 + $0x24] sm:$0xff]
      %v2938 = vld [vmem:[%s2930 + $0x2c] sm:$0xf]
      %v2939 = vld [vmem:[%s2930 + $0x30] sm:$0xff]
      %v2940 = vld [vmem:[%s2930 + $0x38] sm:$0xf]
      %v2941 = vld [vmem:[%s2930 + $0x3c] sm:$0xff]
      %v2942 = vld [vmem:[%s2930 + $0x44] sm:$0xf]
      %v2943 = vld [vmem:[%s2930 + $0x48] sm:$0xff]
      %v2944 = vld [vmem:[%s2930 + $0x50] sm:$0xf]
      %v2945 = vld [vmem:[%s2930 + $0x54] sm:$0xff]
      %v2946 = vld [vmem:[%s2930 + $0x5c] sm:$0xf]
      %v2947 = vld [vmem:[%s2930 + $0x60] sm:$0xff]
      %v2948 = vld [vmem:[%s2930 + $0x68] sm:$0xf]
      %v2949 = vld [vmem:[%s2930 + $0x6c] sm:$0xff]
      %v2950 = vld [vmem:[%s2930 + $0x74] sm:$0xf]
      %v2951 = vld [vmem:[%s2930 + $0x78] sm:$0xff]
      %v2952 = vld [vmem:[%s2930 + $0x80] sm:$0xf]
      %v2953 = vld [vmem:[%s2930 + $0x84] sm:$0xff]
      %v2954 = vld [vmem:[%s2930 + $0x8c] sm:$0xf]
      %v2955 = vld [vmem:[%s2930 + $0x90] sm:$0xff]
      %v2956 = vld [vmem:[%s2930 + $0x98] sm:$0xf]
      %v2957 = vld [vmem:[%s2930 + $0x9c] sm:$0xff]
      %v2958 = vld [vmem:[%s2930 + $0xa4] sm:$0xf]
      %v2959 = vld [vmem:[%s2930 + $0xa8] sm:$0xff]
      %v2960 = vld [vmem:[%s2930 + $0xb0] sm:$0xf]
      %v2961 = vld [vmem:[%s2930 + $0xb4] sm:$0xff]
      %v2962 = vld [vmem:[%s2930 + $0xbc] sm:$0xf]
      %v2963 = vld [vmem:[%s2930 + $0xc0] sm:$0xff]
      %v2964 = vld [vmem:[%s2930 + $0xc8] sm:$0xf]
      %v2965 = vld [vmem:[%s2930 + $0xcc] sm:$0xff]
      %v2966 = vld [vmem:[%s2930 + $0xd4] sm:$0xf]
      %v2967 = vld [vmem:[%s2930 + $0xd8] sm:$0xff]
      %v2968 = vld [vmem:[%s2930 + $0xe0] sm:$0xf]
      %v2969 = vld [vmem:[%s2930 + $0xe4] sm:$0xff]
      %v2970 = vld [vmem:[%s2930 + $0xec] sm:$0xf]
      %v2971 = vld [vmem:[%s2930 + $0xf0] sm:$0xff]
      %v2972 = vld [vmem:[%s2930 + $0xf8] sm:$0xf]
      %v2973 = vld [vmem:[%s2930 + $0xfc] sm:$0xff]
      %v2974 = vld [vmem:[%s2930 + $0x104] sm:$0xf]
      %v2975 = vld [vmem:[%s2930 + $0x108] sm:$0xff]
      %v2976 = vld [vmem:[%s2930 + $0x110] sm:$0xf]
      %v2977 = vld [vmem:[%s2930 + $0x114] sm:$0xff]
      %v2978 = vld [vmem:[%s2930 + $0x11c] sm:$0xf]
      %v2979 = vld [vmem:[%s2930 + $0x120] sm:$0xff]
      %v2980 = vld [vmem:[%s2930 + $0x128] sm:$0xf]
      %v2981 = vld [vmem:[%s2930 + $0x12c] sm:$0xff]
      %v2982 = vld [vmem:[%s2930 + $0x134] sm:$0xf]
      %v2983 = vld [vmem:[%s2930 + $0x138] sm:$0xff]
      %v2984 = vld [vmem:[%s2930 + $0x140] sm:$0xf]
      %v2985 = vld [vmem:[%s2930 + $0x144] sm:$0xff]
      %v2986 = vld [vmem:[%s2930 + $0x14c] sm:$0xf]
      %v2987 = vld [vmem:[%s2930 + $0x150] sm:$0xff]
      %v2988 = vld [vmem:[%s2930 + $0x158] sm:$0xf]
      %v2989 = vld [vmem:[%s2930 + $0x15c] sm:$0xff]
      %v2990 = vld [vmem:[%s2930 + $0x164] sm:$0xf]
      %v2991 = vld [vmem:[%s2930 + $0x168] sm:$0xff]
      %v2992 = vld [vmem:[%s2930 + $0x170] sm:$0xf]
      %v2993 = vld [vmem:[%s2930 + $0x174] sm:$0xff]
      %v2994 = vld [vmem:[%s2930 + $0x17c] sm:$0xf]
      %s2995 = scalar_lea.vmem %s4, 384
      %v2996 = vld [vmem:[%s2995] sm:$0xf]
      %v2997 = vld [vmem:[%s2995 + $0x4] sm:$0xf]
      %v2998 = vld [vmem:[%s2995 + $0x8] sm:$0xf]
      %v2999 = vld [vmem:[%s2995 + $0xc] sm:$0xf]
      %v3000 = vld [vmem:[%s2995 + $0x10] sm:$0xf]
      %v3001 = vld [vmem:[%s2995 + $0x14] sm:$0xf]
      %v3002 = vld [vmem:[%s2995 + $0x18] sm:$0xf]
      %v3003 = vld [vmem:[%s2995 + $0x1c] sm:$0xf]
      %v3004 = vld [vmem:[%s2995 + $0x20] sm:$0xf]
      %v3005 = vld [vmem:[%s2995 + $0x24] sm:$0xf]
      %v3006 = vld [vmem:[%s2995 + $0x28] sm:$0xf]
      %v3007 = vld [vmem:[%s2995 + $0x2c] sm:$0xf]
      %v3008 = vld [vmem:[%s2995 + $0x30] sm:$0xf]
      %v3009 = vld [vmem:[%s2995 + $0x34] sm:$0xf]
      %v3010 = vld [vmem:[%s2995 + $0x38] sm:$0xf]
      %v3011 = vld [vmem:[%s2995 + $0x3c] sm:$0xf]
      %v3012 = vld [vmem:[%s2995 + $0x40] sm:$0xf]
      %v3013 = vld [vmem:[%s2995 + $0x44] sm:$0xf]
      %v3014 = vld [vmem:[%s2995 + $0x48] sm:$0xf]
      %v3015 = vld [vmem:[%s2995 + $0x4c] sm:$0xf]
      %v3016 = vld [vmem:[%s2995 + $0x50] sm:$0xf]
      %v3017 = vld [vmem:[%s2995 + $0x54] sm:$0xf]
      %v3018 = vld [vmem:[%s2995 + $0x58] sm:$0xf]
      %v3019 = vld [vmem:[%s2995 + $0x5c] sm:$0xf]
      %v3020 = vld [vmem:[%s2995 + $0x60] sm:$0xf]
      %v3021 = vld [vmem:[%s2995 + $0x64] sm:$0xf]
      %v3022 = vld [vmem:[%s2995 + $0x68] sm:$0xf]
      %v3023 = vld [vmem:[%s2995 + $0x6c] sm:$0xf]
      %v3024 = vld [vmem:[%s2995 + $0x70] sm:$0xf]
      %v3025 = vld [vmem:[%s2995 + $0x74] sm:$0xf]
      %v3026 = vld [vmem:[%s2995 + $0x78] sm:$0xf]
      %v3027 = vld [vmem:[%s2995 + $0x7c] sm:$0xf]
      %v3028 = vld [vmem:[%s2995 + $0x80] sm:$0xf]
      %v3029 = vld [vmem:[%s2995 + $0x84] sm:$0xf]
      %v3030 = vld [vmem:[%s2995 + $0x88] sm:$0xf]
      %v3031 = vld [vmem:[%s2995 + $0x8c] sm:$0xf]
      %v3032 = vld [vmem:[%s2995 + $0x90] sm:$0xf]
      %v3033 = vld [vmem:[%s2995 + $0x94] sm:$0xf]
      %v3034 = vld [vmem:[%s2995 + $0x98] sm:$0xf]
      %v3035 = vld [vmem:[%s2995 + $0x9c] sm:$0xf]
      %v3036 = vld [vmem:[%s2995 + $0xa0] sm:$0xf]
      %v3037 = vld [vmem:[%s2995 + $0xa4] sm:$0xf]
      %v3038 = vld [vmem:[%s2995 + $0xa8] sm:$0xf]
      %v3039 = vld [vmem:[%s2995 + $0xac] sm:$0xf]
      %v3040 = vld [vmem:[%s2995 + $0xb0] sm:$0xf]
      %v3041 = vld [vmem:[%s2995 + $0xb4] sm:$0xf]
      %v3042 = vld [vmem:[%s2995 + $0xb8] sm:$0xf]
      %v3043 = vld [vmem:[%s2995 + $0xbc] sm:$0xf]
      %v3108 = vunpack.c.l.b16 %v2931
      %v3109 = vunpack.c.h.b16 %v2931
      %v3110 = vunpack.c.l.b16 %v2932
      %v3111 = vunpack.c.l.b16 %v2933
      %v3112 = vunpack.c.h.b16 %v2933
      %v3113 = vunpack.c.l.b16 %v2934
      %v3114 = vunpack.c.l.b16 %v2935
      %v3115 = vunpack.c.h.b16 %v2935
      %v3116 = vunpack.c.l.b16 %v2936
      %v3117 = vunpack.c.l.b16 %v2937
      %v3118 = vunpack.c.h.b16 %v2937
      %v3119 = vunpack.c.l.b16 %v2938
      %v3120 = vunpack.c.l.b16 %v2939
      %v3121 = vunpack.c.h.b16 %v2939
      %v3122 = vunpack.c.l.b16 %v2940
      %v3123 = vunpack.c.l.b16 %v2941
      %v3124 = vunpack.c.h.b16 %v2941
      %v3125 = vunpack.c.l.b16 %v2942
      %v3126 = vunpack.c.l.b16 %v2943
      %v3127 = vunpack.c.h.b16 %v2943
      %v3128 = vunpack.c.l.b16 %v2944
      %v3129 = vunpack.c.l.b16 %v2945
      %v3130 = vunpack.c.h.b16 %v2945
      %v3131 = vunpack.c.l.b16 %v2946
      %v3132 = vunpack.c.l.b16 %v2947
      %v3133 = vunpack.c.h.b16 %v2947
      %v3134 = vunpack.c.l.b16 %v2948
      %v3135 = vunpack.c.l.b16 %v2949
      %v3136 = vunpack.c.h.b16 %v2949
      %v3137 = vunpack.c.l.b16 %v2950
      %v3138 = vunpack.c.l.b16 %v2951
      %v3139 = vunpack.c.h.b16 %v2951
      %v3140 = vunpack.c.l.b16 %v2952
      %v3141 = vunpack.c.l.b16 %v2953
      %v3142 = vunpack.c.h.b16 %v2953
      %v3143 = vunpack.c.l.b16 %v2954
      %v3144 = vunpack.c.l.b16 %v2955
      %v3145 = vunpack.c.h.b16 %v2955
      %v3146 = vunpack.c.l.b16 %v2956
      %v3147 = vunpack.c.l.b16 %v2957
      %v3148 = vunpack.c.h.b16 %v2957
      %v3149 = vunpack.c.l.b16 %v2958
      %v3150 = vunpack.c.l.b16 %v2959
      %v3151 = vunpack.c.h.b16 %v2959
      %v3152 = vunpack.c.l.b16 %v2960
      %v3153 = vunpack.c.l.b16 %v2961
      %v3154 = vunpack.c.h.b16 %v2961
      %v3155 = vunpack.c.l.b16 %v2962
      %v3156 = vunpack.c.l.b16 %v2963
      %v3157 = vunpack.c.h.b16 %v2963
      %v3158 = vunpack.c.l.b16 %v2964
      %v3159 = vunpack.c.l.b16 %v2965
      %v3160 = vunpack.c.h.b16 %v2965
      %v3161 = vunpack.c.l.b16 %v2966
      %v3162 = vunpack.c.l.b16 %v2967
      %v3163 = vunpack.c.h.b16 %v2967
      %v3164 = vunpack.c.l.b16 %v2968
      %v3165 = vunpack.c.l.b16 %v2969
      %v3166 = vunpack.c.h.b16 %v2969
      %v3167 = vunpack.c.l.b16 %v2970
      %v3168 = vunpack.c.l.b16 %v2971
      %v3169 = vunpack.c.h.b16 %v2971
      %v3170 = vunpack.c.l.b16 %v2972
      %v3171 = vunpack.c.l.b16 %v2973
      %v3172 = vunpack.c.h.b16 %v2973
      %v3173 = vunpack.c.l.b16 %v2974
      %v3174 = vunpack.c.l.b16 %v2975
      %v3175 = vunpack.c.h.b16 %v2975
      %v3176 = vunpack.c.l.b16 %v2976
      %v3177 = vunpack.c.l.b16 %v2977
      %v3178 = vunpack.c.h.b16 %v2977
      %v3179 = vunpack.c.l.b16 %v2978
      %v3180 = vunpack.c.l.b16 %v2979
      %v3181 = vunpack.c.h.b16 %v2979
      %v3182 = vunpack.c.l.b16 %v2980
      %v3183 = vunpack.c.l.b16 %v2981
      %v3184 = vunpack.c.h.b16 %v2981
      %v3185 = vunpack.c.l.b16 %v2982
      %v3186 = vunpack.c.l.b16 %v2983
      %v3187 = vunpack.c.h.b16 %v2983
      %v3188 = vunpack.c.l.b16 %v2984
      %v3189 = vunpack.c.l.b16 %v2985
      %v3190 = vunpack.c.h.b16 %v2985
      %v3191 = vunpack.c.l.b16 %v2986
      %v3192 = vunpack.c.l.b16 %v2987
      %v3193 = vunpack.c.h.b16 %v2987
      %v3194 = vunpack.c.l.b16 %v2988
      %v3195 = vunpack.c.l.b16 %v2989
      %v3196 = vunpack.c.h.b16 %v2989
      %v3197 = vunpack.c.l.b16 %v2990
      %v3198 = vunpack.c.l.b16 %v2991
      %v3199 = vunpack.c.h.b16 %v2991
      %v3200 = vunpack.c.l.b16 %v2992
      %v3201 = vunpack.c.l.b16 %v2993
      %v3202 = vunpack.c.h.b16 %v2993
      %v3203 = vunpack.c.l.b16 %v2994
      %v3204 = vpack.c.b16 %v3111, %v3108
      %v3205 = vpack.c.b16 %v3112, %v3109
      %v3206 = vpack.c.b16 %v3113, %v3110
      %v3207 = vpack.c.b16 %v3117, %v3114
      %v3208 = vpack.c.b16 %v3118, %v3115
      %v3209 = vpack.c.b16 %v3119, %v3116
      %v3210 = vpack.c.b16 %v3123, %v3120
      %v3211 = vpack.c.b16 %v3124, %v3121
      %v3212 = vpack.c.b16 %v3125, %v3122
      %v3213 = vpack.c.b16 %v3129, %v3126
      %v3214 = vpack.c.b16 %v3130, %v3127
      %v3215 = vpack.c.b16 %v3131, %v3128
      %v3216 = vpack.c.b16 %v3135, %v3132
      %v3217 = vpack.c.b16 %v3136, %v3133
      %v3218 = vpack.c.b16 %v3137, %v3134
      %v3219 = vpack.c.b16 %v3141, %v3138
      %v3220 = vpack.c.b16 %v3142, %v3139
      %v3221 = vpack.c.b16 %v3143, %v3140
      %v3222 = vpack.c.b16 %v3147, %v3144
      %v3223 = vpack.c.b16 %v3148, %v3145
      %v3224 = vpack.c.b16 %v3149, %v3146
      %v3225 = vpack.c.b16 %v3153, %v3150
      %v3226 = vpack.c.b16 %v3154, %v3151
      %v3227 = vpack.c.b16 %v3155, %v3152
      %v3228 = vpack.c.b16 %v3159, %v3156
      %v3229 = vpack.c.b16 %v3160, %v3157
      %v3230 = vpack.c.b16 %v3161, %v3158
      %v3231 = vpack.c.b16 %v3165, %v3162
      %v3232 = vpack.c.b16 %v3166, %v3163
      %v3233 = vpack.c.b16 %v3167, %v3164
      %v3234 = vpack.c.b16 %v3171, %v3168
      %v3235 = vpack.c.b16 %v3172, %v3169
      %v3236 = vpack.c.b16 %v3173, %v3170
      %v3237 = vpack.c.b16 %v3177, %v3174
      %v3238 = vpack.c.b16 %v3178, %v3175
      %v3239 = vpack.c.b16 %v3179, %v3176
      %v3240 = vpack.c.b16 %v3183, %v3180
      %v3241 = vpack.c.b16 %v3184, %v3181
      %v3242 = vpack.c.b16 %v3185, %v3182
      %v3243 = vpack.c.b16 %v3189, %v3186
      %v3244 = vpack.c.b16 %v3190, %v3187
      %v3245 = vpack.c.b16 %v3191, %v3188
      %v3246 = vpack.c.b16 %v3195, %v3192
      %v3247 = vpack.c.b16 %v3196, %v3193
      %v3248 = vpack.c.b16 %v3197, %v3194
      %v3249 = vpack.c.b16 %v3201, %v3198
      %v3250 = vpack.c.b16 %v3202, %v3199
      %v3251 = vpack.c.b16 %v3203, %v3200
      %v3348 = vunpack.c.l.b16 %v2996
      %v3349 = vunpack.c.l.b16 %v2997
      %v3350 = vunpack.c.l.b16 %v2998
      %v3351 = vunpack.c.l.b16 %v2999
      %v3352 = vunpack.c.l.b16 %v3000
      %v3353 = vunpack.c.l.b16 %v3001
      %v3354 = vunpack.c.l.b16 %v3002
      %v3355 = vunpack.c.l.b16 %v3003
      %v3356 = vunpack.c.l.b16 %v3004
      %v3357 = vunpack.c.l.b16 %v3005
      %v3358 = vunpack.c.l.b16 %v3006
      %v3359 = vunpack.c.l.b16 %v3007
      %v3360 = vunpack.c.l.b16 %v3008
      %v3361 = vunpack.c.l.b16 %v3009
      %v3362 = vunpack.c.l.b16 %v3010
      %v3363 = vunpack.c.l.b16 %v3011
      %v3364 = vunpack.c.l.b16 %v3012
      %v3365 = vunpack.c.l.b16 %v3013
      %v3366 = vunpack.c.l.b16 %v3014
      %v3367 = vunpack.c.l.b16 %v3015
      %v3368 = vunpack.c.l.b16 %v3016
      %v3369 = vunpack.c.l.b16 %v3017
      %v3370 = vunpack.c.l.b16 %v3018
      %v3371 = vunpack.c.l.b16 %v3019
      %v3372 = vunpack.c.l.b16 %v3020
      %v3373 = vunpack.c.l.b16 %v3021
      %v3374 = vunpack.c.l.b16 %v3022
      %v3375 = vunpack.c.l.b16 %v3023
      %v3376 = vunpack.c.l.b16 %v3024
      %v3377 = vunpack.c.l.b16 %v3025
      %v3378 = vunpack.c.l.b16 %v3026
      %v3379 = vunpack.c.l.b16 %v3027
      %v3380 = vunpack.c.l.b16 %v3028
      %v3381 = vunpack.c.l.b16 %v3029
      %v3382 = vunpack.c.l.b16 %v3030
      %v3383 = vunpack.c.l.b16 %v3031
      %v3384 = vunpack.c.l.b16 %v3032
      %v3385 = vunpack.c.l.b16 %v3033
      %v3386 = vunpack.c.l.b16 %v3034
      %v3387 = vunpack.c.l.b16 %v3035
      %v3388 = vunpack.c.l.b16 %v3036
      %v3389 = vunpack.c.l.b16 %v3037
      %v3390 = vunpack.c.l.b16 %v3038
      %v3391 = vunpack.c.l.b16 %v3039
      %v3392 = vunpack.c.l.b16 %v3040
      %v3393 = vunpack.c.l.b16 %v3041
      %v3394 = vunpack.c.l.b16 %v3042
      %v3395 = vunpack.c.l.b16 %v3043
      %v3396 = vpack.c.b16 %v3349, %v3348
      %v3397 = vpack.c.b16 %v3351, %v3350
      %v3398 = vpack.c.b16 %v3353, %v3352
      %v3399 = vpack.c.b16 %v3355, %v3354
      %v3400 = vpack.c.b16 %v3357, %v3356
      %v3401 = vpack.c.b16 %v3359, %v3358
      %v3402 = vpack.c.b16 %v3361, %v3360
      %v3403 = vpack.c.b16 %v3363, %v3362
      %v3404 = vpack.c.b16 %v3365, %v3364
      %v3405 = vpack.c.b16 %v3367, %v3366
      %v3406 = vpack.c.b16 %v3369, %v3368
      %v3407 = vpack.c.b16 %v3371, %v3370
      %v3408 = vpack.c.b16 %v3373, %v3372
      %v3409 = vpack.c.b16 %v3375, %v3374
      %v3410 = vpack.c.b16 %v3377, %v3376
      %v3411 = vpack.c.b16 %v3379, %v3378
      %v3412 = vpack.c.b16 %v3381, %v3380
      %v3413 = vpack.c.b16 %v3383, %v3382
      %v3414 = vpack.c.b16 %v3385, %v3384
      %v3415 = vpack.c.b16 %v3387, %v3386
      %v3416 = vpack.c.b16 %v3389, %v3388
      %v3417 = vpack.c.b16 %v3391, %v3390
      %v3418 = vpack.c.b16 %v3393, %v3392
      %v3419 = vpack.c.b16 %v3395, %v3394
      %3444 = vmatprep.subr.bf16.mxu0 0
      %3445 = vmatpush1.bf16.msra.mxu0 %v3403
      %3446 = vmatprep.subr.bf16.mxu0 0
      %3447 = vmatpush1.bf16.msra.mxu0 %v3402
      %3448 = vmatprep.subr.bf16.mxu0 0
      %3449 = vmatpush1.bf16.msra.mxu0 %v3401
      %3450 = vmatprep.subr.bf16.mxu0 0
      %3451 = vmatpush1.bf16.msra.mxu0 %v3400
      %3452 = vmatprep.subr.bf16.mxu0 0
      %3453 = vmatpush1.bf16.msra.mxu0 %v3399
      %3454 = vmatprep.subr.bf16.mxu0 0
      %3455 = vmatpush1.bf16.msra.mxu0 %v3398
      %3456 = vmatprep.subr.bf16.mxu0 0
      %3457 = vmatpush1.bf16.msra.mxu0 %v3397
      %3458 = vmatprep.subr.bf16.mxu0 0
      %3459 = vmatpush1.bf16.msra.mxu0 %v3396
      %3460 = vmatprep.subr.bf16.mxu0 0
      %3461 = vmatpush2.bf16.msra.mxu0 %v3411
      %3462 = vmatprep.subr.bf16.mxu0 0
      %3463 = vmatpush2.bf16.msra.mxu0 %v3410
      %3464 = vmatprep.subr.bf16.mxu0 0
      %3465 = vmatpush2.bf16.msra.mxu0 %v3409
      %3466 = vmatprep.subr.bf16.mxu0 0
      %3467 = vmatpush2.bf16.msra.mxu0 %v3408
      %3468 = vmatprep.subr.bf16.mxu0 0
      %3469 = vmatpush2.bf16.msra.mxu0 %v3407
      %3470 = vmatprep.subr.bf16.mxu0 0
      %3471 = vmatpush2.bf16.msra.mxu0 %v3406
      %3472 = vmatprep.subr.bf16.mxu0 0
      %3473 = vmatpush2.bf16.msra.mxu0 %v3405
      %3474 = vmatprep.subr.bf16.mxu0 0
      %3475 = vmatpush2.bf16.msra.mxu0 %v3404
      %3476 = vmatprep.mubr.bf16.mxu0 %v3205
      %3477 = vmatmul.mubr.bf16.gmra.mxu0 %v3204
      %v3478 = vpop.f32.mrf.mxu0
      %v3479 = vadd.f32 0.0, %v3478
      %v3480 = vpop.f32.mrf.mxu0
      %v3481 = vpop.f32.mrf.mxu0
      %v3482 = vadd.f32 0.0, %v3481
      %v3483 = vpop.f32.mrf.mxu0
      %3484 = vmatprep.mubr.bf16.mxu0 %v3208
      %3485 = vmatmul.mubr.bf16.gmra.mxu0 %v3207
      %v3486 = vpop.f32.mrf.mxu0
      %v3487 = vadd.f32 0.0, %v3486
      %v3488 = vpop.f32.mrf.mxu0
      %v3489 = vpop.f32.mrf.mxu0
      %v3490 = vadd.f32 0.0, %v3489
      %v3491 = vpop.f32.mrf.mxu0
      %3492 = vmatprep.mubr.bf16.mxu0 %v3211
      %3493 = vmatmul.mubr.bf16.gmra.mxu0 %v3210
      %v3494 = vpop.f32.mrf.mxu0
      %v3495 = vadd.f32 0.0, %v3494
      %v3496 = vpop.f32.mrf.mxu0
      %v3497 = vpop.f32.mrf.mxu0
      %v3498 = vadd.f32 0.0, %v3497
      %v3499 = vpop.f32.mrf.mxu0
      %3500 = vmatprep.mubr.bf16.mxu0 %v3214
      %3501 = vmatmul.mubr.bf16.gmra.mxu0 %v3213
      %v3502 = vpop.f32.mrf.mxu0
      %v3503 = vadd.f32 0.0, %v3502
      %v3504 = vpop.f32.mrf.mxu0
      %v3505 = vpop.f32.mrf.mxu0
      %v3506 = vadd.f32 0.0, %v3505
      %v3507 = vpop.f32.mrf.mxu0
      %3508 = vmatprep.mubr.bf16.mxu0 %v3217
      %3509 = vmatmul.mubr.bf16.gmra.mxu0 %v3216
      %v3510 = vpop.f32.mrf.mxu0
      %v3511 = vadd.f32 0.0, %v3510
      %v3512 = vpop.f32.mrf.mxu0
      %v3513 = vpop.f32.mrf.mxu0
      %v3514 = vadd.f32 0.0, %v3513
      %v3515 = vpop.f32.mrf.mxu0
      %3516 = vmatprep.mubr.bf16.mxu0 %v3220
      %3517 = vmatmul.mubr.bf16.gmra.mxu0 %v3219
      %v3518 = vpop.f32.mrf.mxu0
      %v3519 = vadd.f32 0.0, %v3518
      %v3520 = vpop.f32.mrf.mxu0
      %v3521 = vpop.f32.mrf.mxu0
      %v3522 = vadd.f32 0.0, %v3521
      %v3523 = vpop.f32.mrf.mxu0
      %3524 = vmatprep.mubr.bf16.mxu0 %v3223
      %3525 = vmatmul.mubr.bf16.gmra.mxu0 %v3222
      %v3526 = vpop.f32.mrf.mxu0
      %v3527 = vadd.f32 0.0, %v3526
      %v3528 = vpop.f32.mrf.mxu0
      %v3529 = vpop.f32.mrf.mxu0
      %v3530 = vadd.f32 0.0, %v3529
      %v3531 = vpop.f32.mrf.mxu0
      %3532 = vmatprep.mubr.bf16.mxu0 %v3226
      %3533 = vmatmul.mubr.bf16.gmra.mxu0 %v3225
      %v3534 = vpop.f32.mrf.mxu0
      %v3535 = vadd.f32 0.0, %v3534
      %v3536 = vpop.f32.mrf.mxu0
      %v3537 = vpop.f32.mrf.mxu0
      %v3538 = vadd.f32 0.0, %v3537
      %v3539 = vpop.f32.mrf.mxu0
      %3540 = vmatprep.mubr.bf16.mxu0 %v3229
      %3541 = vmatmul.mubr.bf16.gmra.mxu0 %v3228
      %v3542 = vpop.f32.mrf.mxu0
      %v3543 = vadd.f32 0.0, %v3542
      %v3544 = vpop.f32.mrf.mxu0
      %v3545 = vpop.f32.mrf.mxu0
      %v3546 = vadd.f32 0.0, %v3545
      %v3547 = vpop.f32.mrf.mxu0
      %3548 = vmatprep.mubr.bf16.mxu0 %v3232
      %3549 = vmatmul.mubr.bf16.gmra.mxu0 %v3231
      %v3550 = vpop.f32.mrf.mxu0
      %v3551 = vadd.f32 0.0, %v3550
      %v3552 = vpop.f32.mrf.mxu0
      %v3553 = vpop.f32.mrf.mxu0
      %v3554 = vadd.f32 0.0, %v3553
      %v3555 = vpop.f32.mrf.mxu0
      %3556 = vmatprep.mubr.bf16.mxu0 %v3235
      %3557 = vmatmul.mubr.bf16.gmra.mxu0 %v3234
      %v3558 = vpop.f32.mrf.mxu0
      %v3559 = vadd.f32 0.0, %v3558
      %v3560 = vpop.f32.mrf.mxu0
      %v3561 = vpop.f32.mrf.mxu0
      %v3562 = vadd.f32 0.0, %v3561
      %v3563 = vpop.f32.mrf.mxu0
      %3564 = vmatprep.mubr.bf16.mxu0 %v3238
      %3565 = vmatmul.mubr.bf16.gmra.mxu0 %v3237
      %v3566 = vpop.f32.mrf.mxu0
      %v3567 = vadd.f32 0.0, %v3566
      %v3568 = vpop.f32.mrf.mxu0
      %v3569 = vpop.f32.mrf.mxu0
      %v3570 = vadd.f32 0.0, %v3569
      %v3571 = vpop.f32.mrf.mxu0
      %3572 = vmatprep.mubr.bf16.mxu0 %v3241
      %3573 = vmatmul.mubr.bf16.gmra.mxu0 %v3240
      %v3574 = vpop.f32.mrf.mxu0
      %v3575 = vadd.f32 0.0, %v3574
      %v3576 = vpop.f32.mrf.mxu0
      %v3577 = vpop.f32.mrf.mxu0
      %v3578 = vadd.f32 0.0, %v3577
      %v3579 = vpop.f32.mrf.mxu0
      %3580 = vmatprep.mubr.bf16.mxu0 %v3244
      %3581 = vmatmul.mubr.bf16.gmra.mxu0 %v3243
      %v3582 = vpop.f32.mrf.mxu0
      %v3583 = vadd.f32 0.0, %v3582
      %v3584 = vpop.f32.mrf.mxu0
      %v3585 = vpop.f32.mrf.mxu0
      %v3586 = vadd.f32 0.0, %v3585
      %v3587 = vpop.f32.mrf.mxu0
      %3588 = vmatprep.mubr.bf16.mxu0 %v3247
      %3589 = vmatmul.mubr.bf16.gmra.mxu0 %v3246
      %v3590 = vpop.f32.mrf.mxu0
      %v3591 = vadd.f32 0.0, %v3590
      %v3592 = vpop.f32.mrf.mxu0
      %v3593 = vpop.f32.mrf.mxu0
      %v3594 = vadd.f32 0.0, %v3593
      %v3595 = vpop.f32.mrf.mxu0
      %3596 = vmatprep.mubr.bf16.mxu0 %v3250
      %3597 = vmatmul.mubr.bf16.gmra.mxu0 %v3249
      %v3598 = vpop.f32.mrf.mxu0
      %v3599 = vadd.f32 0.0, %v3598
      %v3600 = vpop.f32.mrf.mxu0
      %v3601 = vpop.f32.mrf.mxu0
      %v3602 = vadd.f32 0.0, %v3601
      %v3603 = vpop.f32.mrf.mxu0
      %3604 = vdwg.mxu0
      %3605 = vmatprep.subr.bf16.mxu0 0
      %3606 = vmatpush1.bf16.msra.mxu0 %v3419
      %3607 = vmatprep.subr.bf16.mxu0 0
      %3608 = vmatpush1.bf16.msra.mxu0 %v3418
      %3609 = vmatprep.subr.bf16.mxu0 0
      %3610 = vmatpush1.bf16.msra.mxu0 %v3417
      %3611 = vmatprep.subr.bf16.mxu0 0
      %3612 = vmatpush1.bf16.msra.mxu0 %v3416
      %3613 = vmatprep.subr.bf16.mxu0 0
      %3614 = vmatpush1.bf16.msra.mxu0 %v3415
      %3615 = vmatprep.subr.bf16.mxu0 0
      %3616 = vmatpush1.bf16.msra.mxu0 %v3414
      %3617 = vmatprep.subr.bf16.mxu0 0
      %3618 = vmatpush1.bf16.msra.mxu0 %v3413
      %3619 = vmatprep.subr.bf16.mxu0 0
      %3620 = vmatpush1.bf16.msra.mxu0 %v3412
      %3621 = vmatprep.subr.bf16.mxu0 0
      %3622 = vmatpush2.bf16.msra.mxu0 0
      %3623 = vmatprep.subr.bf16.mxu0 0
      %3624 = vmatpush2.bf16.msra.mxu0 0
      %3625 = vmatprep.subr.bf16.mxu0 0
      %3626 = vmatpush2.bf16.msra.mxu0 0
      %3627 = vmatprep.subr.bf16.mxu0 0
      %3628 = vmatpush2.bf16.msra.mxu0 0
      %3629 = vmatprep.subr.bf16.mxu0 0
      %3630 = vmatpush2.bf16.msra.mxu0 0
      %3631 = vmatprep.subr.bf16.mxu0 0
      %3632 = vmatpush2.bf16.msra.mxu0 0
      %3633 = vmatprep.subr.bf16.mxu0 0
      %3634 = vmatpush2.bf16.msra.mxu0 0
      %3635 = vmatprep.subr.bf16.mxu0 0
      %3636 = vmatpush2.bf16.msra.mxu0 0
      %3637 = vmatprep.mubr.bf16.mxu0 0
      %3638 = vmatmul.mubr.bf16.gmra.mxu0 %v3206
      %v3639 = vpop.f32.mrf.mxu0
      %v3640 = vadd.f32 %v3479, %v3639
      %v3641 = vpop.f32.mrf.mxu0
      %v3642 = vpop.f32.mrf.mxu0
      %v3643 = vadd.f32 %v3482, %v3642
      %v3644 = vpop.f32.mrf.mxu0
      %3645 = vmatprep.mubr.bf16.mxu0 0
      %3646 = vmatmul.mubr.bf16.gmra.mxu0 %v3209
      %v3647 = vpop.f32.mrf.mxu0
      %v3648 = vadd.f32 %v3487, %v3647
      %v3649 = vpop.f32.mrf.mxu0
      %v3650 = vpop.f32.mrf.mxu0
      %v3651 = vadd.f32 %v3490, %v3650
      %v3652 = vpop.f32.mrf.mxu0
      %3653 = vmatprep.mubr.bf16.mxu0 0
      %3654 = vmatmul.mubr.bf16.gmra.mxu0 %v3212
      %v3655 = vpop.f32.mrf.mxu0
      %v3656 = vadd.f32 %v3495, %v3655
      %v3657 = vpop.f32.mrf.mxu0
      %v3658 = vpop.f32.mrf.mxu0
      %v3659 = vadd.f32 %v3498, %v3658
      %v3660 = vpop.f32.mrf.mxu0
      %3661 = vmatprep.mubr.bf16.mxu0 0
      %3662 = vmatmul.mubr.bf16.gmra.mxu0 %v3215
      %v3663 = vpop.f32.mrf.mxu0
      %v3664 = vadd.f32 %v3503, %v3663
      %v3665 = vpop.f32.mrf.mxu0
      %v3666 = vpop.f32.mrf.mxu0
      %v3667 = vadd.f32 %v3506, %v3666
      %v3668 = vpop.f32.mrf.mxu0
      %3669 = vmatprep.mubr.bf16.mxu0 0
      %3670 = vmatmul.mubr.bf16.gmra.mxu0 %v3218
      %v3671 = vpop.f32.mrf.mxu0
      %v3672 = vadd.f32 %v3511, %v3671
      %v3673 = vpop.f32.mrf.mxu0
      %v3674 = vpop.f32.mrf.mxu0
      %v3675 = vadd.f32 %v3514, %v3674
      %v3676 = vpop.f32.mrf.mxu0
      %3677 = vmatprep.mubr.bf16.mxu0 0
      %3678 = vmatmul.mubr.bf16.gmra.mxu0 %v3221
      %v3679 = vpop.f32.mrf.mxu0
      %v3680 = vadd.f32 %v3519, %v3679
      %v3681 = vpop.f32.mrf.mxu0
      %v3682 = vpop.f32.mrf.mxu0
      %v3683 = vadd.f32 %v3522, %v3682
      %v3684 = vpop.f32.mrf.mxu0
      %3685 = vmatprep.mubr.bf16.mxu0 0
      %3686 = vmatmul.mubr.bf16.gmra.mxu0 %v3224
      %v3687 = vpop.f32.mrf.mxu0
      %v3688 = vadd.f32 %v3527, %v3687
      %v3689 = vpop.f32.mrf.mxu0
      %v3690 = vpop.f32.mrf.mxu0
      %v3691 = vadd.f32 %v3530, %v3690
      %v3692 = vpop.f32.mrf.mxu0
      %3693 = vmatprep.mubr.bf16.mxu0 0
      %3694 = vmatmul.mubr.bf16.gmra.mxu0 %v3227
      %v3695 = vpop.f32.mrf.mxu0
      %v3696 = vadd.f32 %v3535, %v3695
      %v3697 = vpop.f32.mrf.mxu0
      %v3698 = vpop.f32.mrf.mxu0
      %v3699 = vadd.f32 %v3538, %v3698
      %v3700 = vpop.f32.mrf.mxu0
      %3701 = vmatprep.mubr.bf16.mxu0 0
      %3702 = vmatmul.mubr.bf16.gmra.mxu0 %v3230
      %v3703 = vpop.f32.mrf.mxu0
      %v3704 = vadd.f32 %v3543, %v3703
      %v3705 = vpop.f32.mrf.mxu0
      %v3706 = vpop.f32.mrf.mxu0
      %v3707 = vadd.f32 %v3546, %v3706
      %v3708 = vpop.f32.mrf.mxu0
      %3709 = vmatprep.mubr.bf16.mxu0 0
      %3710 = vmatmul.mubr.bf16.gmra.mxu0 %v3233
      %v3711 = vpop.f32.mrf.mxu0
      %v3712 = vadd.f32 %v3551, %v3711
      %v3713 = vpop.f32.mrf.mxu0
      %v3714 = vpop.f32.mrf.mxu0
      %v3715 = vadd.f32 %v3554, %v3714
      %v3716 = vpop.f32.mrf.mxu0
      %3717 = vmatprep.mubr.bf16.mxu0 0
      %3718 = vmatmul.mubr.bf16.gmra.mxu0 %v3236
      %v3719 = vpop.f32.mrf.mxu0
      %v3720 = vadd.f32 %v3559, %v3719
      %v3721 = vpop.f32.mrf.mxu0
      %v3722 = vpop.f32.mrf.mxu0
      %v3723 = vadd.f32 %v3562, %v3722
      %v3724 = vpop.f32.mrf.mxu0
      %3725 = vmatprep.mubr.bf16.mxu0 0
      %3726 = vmatmul.mubr.bf16.gmra.mxu0 %v3239
      %v3727 = vpop.f32.mrf.mxu0
      %v3728 = vadd.f32 %v3567, %v3727
      %v3729 = vpop.f32.mrf.mxu0
      %v3730 = vpop.f32.mrf.mxu0
      %v3731 = vadd.f32 %v3570, %v3730
      %v3732 = vpop.f32.mrf.mxu0
      %3733 = vmatprep.mubr.bf16.mxu0 0
      %3734 = vmatmul.mubr.bf16.gmra.mxu0 %v3242
      %v3735 = vpop.f32.mrf.mxu0
      %v3736 = vadd.f32 %v3575, %v3735
      %v3737 = vpop.f32.mrf.mxu0
      %v3738 = vpop.f32.mrf.mxu0
      %v3739 = vadd.f32 %v3578, %v3738
      %v3740 = vpop.f32.mrf.mxu0
      %3741 = vmatprep.mubr.bf16.mxu0 0
      %3742 = vmatmul.mubr.bf16.gmra.mxu0 %v3245
      %v3743 = vpop.f32.mrf.mxu0
      %v3744 = vadd.f32 %v3583, %v3743
      %v3745 = vpop.f32.mrf.mxu0
      %v3746 = vpop.f32.mrf.mxu0
      %v3747 = vadd.f32 %v3586, %v3746
      %v3748 = vpop.f32.mrf.mxu0
      %3749 = vmatprep.mubr.bf16.mxu0 0
      %3750 = vmatmul.mubr.bf16.gmra.mxu0 %v3248
      %v3751 = vpop.f32.mrf.mxu0
      %v3752 = vadd.f32 %v3591, %v3751
      %v3753 = vpop.f32.mrf.mxu0
      %v3754 = vpop.f32.mrf.mxu0
      %v3755 = vadd.f32 %v3594, %v3754
      %v3756 = vpop.f32.mrf.mxu0
      %3757 = vmatprep.mubr.bf16.mxu0 0
      %3758 = vmatmul.mubr.bf16.gmra.mxu0 %v3251
      %v3759 = vpop.f32.mrf.mxu0
      %v3760 = vadd.f32 %v3599, %v3759
      %v3761 = vpop.f32.mrf.mxu0
      %v3762 = vpop.f32.mrf.mxu0
      %v3763 = vadd.f32 %v3602, %v3762
      %v3764 = vpop.f32.mrf.mxu0
      %3765 = vdwg.mxu0
      %v3766 = vadd.f32 %v2804, %v3640
      %v3767 = vadd.f32 %v2807, %v3643
      %v3768 = vadd.f32 %v2812, %v3648
      %v3769 = vadd.f32 %v2815, %v3651
      %v3770 = vadd.f32 %v2820, %v3656
      %v3771 = vadd.f32 %v2823, %v3659
      %v3772 = vadd.f32 %v2828, %v3664
      %v3773 = vadd.f32 %v2831, %v3667
      %v3774 = vadd.f32 %v2836, %v3672
      %v3775 = vadd.f32 %v2839, %v3675
      %v3776 = vadd.f32 %v2844, %v3680
      %v3777 = vadd.f32 %v2847, %v3683
      %v3778 = vadd.f32 %v2852, %v3688
      %v3779 = vadd.f32 %v2855, %v3691
      %v3780 = vadd.f32 %v2860, %v3696
      %v3781 = vadd.f32 %v2863, %v3699
      %v3782 = vadd.f32 %v2868, %v3704
      %v3783 = vadd.f32 %v2871, %v3707
      %v3784 = vadd.f32 %v2876, %v3712
      %v3785 = vadd.f32 %v2879, %v3715
      %v3786 = vadd.f32 %v2884, %v3720
      %v3787 = vadd.f32 %v2887, %v3723
      %v3788 = vadd.f32 %v2892, %v3728
      %v3789 = vadd.f32 %v2895, %v3731
      %v3790 = vadd.f32 %v2900, %v3736
      %v3791 = vadd.f32 %v2903, %v3739
      %v3792 = vadd.f32 %v2908, %v3744
      %v3793 = vadd.f32 %v2911, %v3747
      %v3794 = vadd.f32 %v2916, %v3752
      %v3795 = vadd.f32 %v2919, %v3755
      %v3796 = vadd.f32 %v2924, %v3760
      %v3797 = vadd.f32 %v2927, %v3763
      %v3798 = vld [vmem:[%s239] sm:$0xff]
      %v3799 = vld [vmem:[%s239 + $0x8] sm:$0xff]
      %v3800 = vld [vmem:[%s239 + $0x10] sm:$0xff]
      %v3801 = vld [vmem:[%s239 + $0x18] sm:$0xff]
      %v3802 = vld [vmem:[%s239 + $0x20] sm:$0xff]
      %v3803 = vld [vmem:[%s239 + $0x28] sm:$0xff]
      %v3804 = vld [vmem:[%s239 + $0x30] sm:$0xff]
      %v3805 = vld [vmem:[%s239 + $0x38] sm:$0xff]
      %v3806 = vld [vmem:[%s239 + $0x40] sm:$0xff]
      %v3807 = vld [vmem:[%s239 + $0x48] sm:$0xff]
      %v3808 = vld [vmem:[%s239 + $0x50] sm:$0xff]
      %v3809 = vld [vmem:[%s239 + $0x58] sm:$0xff]
      %v3810 = vld [vmem:[%s239 + $0x60] sm:$0xff]
      %v3811 = vld [vmem:[%s239 + $0x68] sm:$0xff]
      %v3812 = vld [vmem:[%s239 + $0x70] sm:$0xff]
      %v3813 = vld [vmem:[%s239 + $0x78] sm:$0xff]
      %v3814 = vld [vmem:[%s239 + $0x80] sm:$0xff]
      %v3815 = vld [vmem:[%s239 + $0x88] sm:$0xff]
      %v3816 = vld [vmem:[%s239 + $0x90] sm:$0xff]
      %v3817 = vld [vmem:[%s239 + $0x98] sm:$0xff]
      %v3818 = vld [vmem:[%s239 + $0xa0] sm:$0xff]
      %v3819 = vld [vmem:[%s239 + $0xa8] sm:$0xff]
      %v3820 = vld [vmem:[%s239 + $0xb0] sm:$0xff]
      %v3821 = vld [vmem:[%s239 + $0xb8] sm:$0xff]
      %v3822 = vld [vmem:[%s239 + $0xc0] sm:$0xff]
      %v3823 = vld [vmem:[%s239 + $0xc8] sm:$0xff]
      %v3824 = vld [vmem:[%s239 + $0xd0] sm:$0xff]
      %v3825 = vld [vmem:[%s239 + $0xd8] sm:$0xff]
      %v3826 = vld [vmem:[%s239 + $0xe0] sm:$0xff]
      %v3827 = vld [vmem:[%s239 + $0xe8] sm:$0xff]
      %v3828 = vld [vmem:[%s239 + $0xf0] sm:$0xff]
      %v3829 = vld [vmem:[%s239 + $0xf8] sm:$0xff]
      %v3830 = vadd.f32 %v3766, %v3798
      %v3831 = vadd.f32 %v3767, %v3799
      %v3832 = vadd.f32 %v3768, %v3800
      %v3833 = vadd.f32 %v3769, %v3801
      %v3834 = vadd.f32 %v3770, %v3802
      %v3835 = vadd.f32 %v3771, %v3803
      %v3836 = vadd.f32 %v3772, %v3804
      %v3837 = vadd.f32 %v3773, %v3805
      %v3838 = vadd.f32 %v3774, %v3806
      %v3839 = vadd.f32 %v3775, %v3807
      %v3840 = vadd.f32 %v3776, %v3808
      %v3841 = vadd.f32 %v3777, %v3809
      %v3842 = vadd.f32 %v3778, %v3810
      %v3843 = vadd.f32 %v3779, %v3811
      %v3844 = vadd.f32 %v3780, %v3812
      %v3845 = vadd.f32 %v3781, %v3813
      %v3846 = vadd.f32 %v3782, %v3814
      %v3847 = vadd.f32 %v3783, %v3815
      %v3848 = vadd.f32 %v3784, %v3816
      %v3849 = vadd.f32 %v3785, %v3817
      %v3850 = vadd.f32 %v3786, %v3818
      %v3851 = vadd.f32 %v3787, %v3819
      %v3852 = vadd.f32 %v3788, %v3820
      %v3853 = vadd.f32 %v3789, %v3821
      %v3854 = vadd.f32 %v3790, %v3822
      %v3855 = vadd.f32 %v3791, %v3823
      %v3856 = vadd.f32 %v3792, %v3824
      %v3857 = vadd.f32 %v3793, %v3825
      %v3858 = vadd.f32 %v3794, %v3826
      %v3859 = vadd.f32 %v3795, %v3827
      %v3860 = vadd.f32 %v3796, %v3828
      %v3861 = vadd.f32 %v3797, %v3829
      %3862 = vst [vmem:[%s244] sm:$0xff] %v3830
      %3863 = vst [vmem:[%s244 + $0x8] sm:$0xff] %v3831
      %3864 = vst [vmem:[%s244 + $0x10] sm:$0xff] %v3832
      %3865 = vst [vmem:[%s244 + $0x18] sm:$0xff] %v3833
      %3866 = vst [vmem:[%s244 + $0x20] sm:$0xff] %v3834
      %3867 = vst [vmem:[%s244 + $0x28] sm:$0xff] %v3835
      %3868 = vst [vmem:[%s244 + $0x30] sm:$0xff] %v3836
      %3869 = vst [vmem:[%s244 + $0x38] sm:$0xff] %v3837
      %3870 = vst [vmem:[%s244 + $0x40] sm:$0xff] %v3838
      %3871 = vst [vmem:[%s244 + $0x48] sm:$0xff] %v3839
      %3872 = vst [vmem:[%s244 + $0x50] sm:$0xff] %v3840
      %3873 = vst [vmem:[%s244 + $0x58] sm:$0xff] %v3841
      %3874 = vst [vmem:[%s244 + $0x60] sm:$0xff] %v3842
      %3875 = vst [vmem:[%s244 + $0x68] sm:$0xff] %v3843
      %3876 = vst [vmem:[%s244 + $0x70] sm:$0xff] %v3844
      %3877 = vst [vmem:[%s244 + $0x78] sm:$0xff] %v3845
      %3878 = vst [vmem:[%s244 + $0x80] sm:$0xff] %v3846
      %3879 = vst [vmem:[%s244 + $0x88] sm:$0xff] %v3847
      %3880 = vst [vmem:[%s244 + $0x90] sm:$0xff] %v3848
      %3881 = vst [vmem:[%s244 + $0x98] sm:$0xff] %v3849
      %3882 = vst [vmem:[%s244 + $0xa0] sm:$0xff] %v3850
      %3883 = vst [vmem:[%s244 + $0xa8] sm:$0xff] %v3851
      %3884 = vst [vmem:[%s244 + $0xb0] sm:$0xff] %v3852
      %3885 = vst [vmem:[%s244 + $0xb8] sm:$0xff] %v3853
      %3886 = vst [vmem:[%s244 + $0xc0] sm:$0xff] %v3854
      %3887 = vst [vmem:[%s244 + $0xc8] sm:$0xff] %v3855
      %3888 = vst [vmem:[%s244 + $0xd0] sm:$0xff] %v3856
      %3889 = vst [vmem:[%s244 + $0xd8] sm:$0xff] %v3857
      %3890 = vst [vmem:[%s244 + $0xe0] sm:$0xff] %v3858
      %3891 = vst [vmem:[%s244 + $0xe8] sm:$0xff] %v3859
      %3892 = vst [vmem:[%s244 + $0xf0] sm:$0xff] %v3860
      %3893 = vst [vmem:[%s244 + $0xf8] sm:$0xff] %v3861
      %p3894 = scmp.lt.s32.totalorder %s16, 1
      %s3895 = scalar_select %p3894, %s16, 1
      %s3896 = smul.addr %s3895, 32
      %s3897 = smul.addr %s3896, 8
      %s3898 = scalar_lea.vmem %s5, %s3897
      // Predicated region
      $region41: #{residual_block.5} parent=39 // pred_check
        %p3899 = pneg %p149
      $region42: #{residual_block.5} parent=39 // pred_check_branch
        %3901 = sbr.rel (%p3899) target = $region44
      $region43: #{residual_block.5} parent=39 // pred_region
        _
      $region44: #{residual_block.5} parent=39 // pred_fallthru
        _
    $region40: #{residual_block.5} parent=5 // pred_fallthru
      _
    %p3902 = scmp.le.s32.totalorder 2, %s11
    // Predicated region
    $region45: #{residual_block.5} parent=5 // pred_check
      %p3903 = pneg %p3902
    $region46: #{residual_block.5} parent=5 // pred_check_branch
      %3905 = sbr.rel (%p3903) target = $region48
    $region47: #{residual_block.5} parent=5 // pred_region
      %s3906 = ssub.s32 %s11, 2
      // Predicated region
      $region49: #{residual_block.5} parent=47 // pred_check
        %p3907 = pneg %p155
      $region50: #{residual_block.5} parent=47 // pred_check_branch
        %3909 = sbr.rel (%p3907) target = $region52
      $region51: #{residual_block.5} parent=47 // pred_region
        %p3910 = scmp.lt.s32.totalorder %s17, 1
        %s3911 = scalar_select %p3910, %s17, 1
        %s3912 = smul.addr %s3911, 32
        %s3913 = smul.addr %s3912, 8
        %s3914 = scalar_lea.vmem %s5, %s3913
      $region52: #{residual_block.5} parent=47 // pred_fallthru
        _
    $region48: #{residual_block.5} parent=5 // pred_fallthru
      _
  $region6: #{residual_block.5} parent=0 // loop_footer
    %s15 = sadd.s32 1, %s11
  $region7: #{residual_block.5} parent=0 // loop_footer_branch
    %10 = sbr.rel target = $region3
  $region8: #{residual_block.5} parent=0 // loop_exit
    _

</llo_original>
